<compile_context>
chip_gen: v6e
topology: v6e:2x2x1
jax: 0.10.0
libtpu: 0.0.40
codegen_flags: <defaults>
</compile_context>

<pallas_src>
import math

import jax
import jax.numpy as jnp
from jax.experimental import pallas as pl
from jax.experimental.pallas import tpu as pltpu

# Model hyperparameters (small, consistent with the module's __init__/forward)
B = 2      # batch
T = 8      # sequence length
D = 16     # input_size
H = 32     # hidden_size
L = 2      # num_layers (>= 2 so the stacked "rest" weights are non-empty)
O = 10     # output_size

_HIGH = jax.lax.Precision.HIGHEST


def _bidir_lstm_kernel(x_ref, w0_ref, b0_ref, wr_ref, br_ref, wfc_ref, bfc_ref,
                       out_ref, hbuf_ref):
    f32 = jnp.float32

    def cell(pg, h, c, wh):
        # Only the (2B,H) x (H,4H) recurrent matmul sits on the serial chain.
        gates = pg + jnp.dot(h, wh, preferred_element_type=f32, precision=_HIGH)
        # Gate columns were pre-scaled in the wrapper (i/f/o by 0.5, g by 1.0) so a
        # single full-lane tanh covers all four gates: sigmoid(z) = 0.5*(tanh(z/2)+1).
        a = jnp.tanh(gates)
        i_t = 0.5 * (a[:, 0 * H:1 * H] + 1.0)
        f_t = 0.5 * (a[:, 1 * H:2 * H] + 1.0)
        g_t = a[:, 2 * H:3 * H]
        o_t = 0.5 * (a[:, 3 * H:4 * H] + 1.0)
        c = c * f_t + i_t * g_t
        h = o_t * jnp.tanh(c)
        return h, c

    # ---------------- layer 0 ----------------
    # Shared fwd/bwd weights: hoist ONE (T*B, D) x (D, 4H) projection; the backward
    # direction reads it time-reversed (no reversed-input copy, half the MXU work).
    wx0 = w0_ref[:D, :]
    wh0 = w0_ref[D:, :]
    proj0 = (jnp.dot(x_ref[...], wx0, preferred_element_type=f32, precision=_HIGH)
             + b0_ref[...])                                    # (T*B, 4H)

    h = jnp.zeros((2 * B, H), f32)                             # rows [0,B)=fwd, [B,2B)=bwd
    c = jnp.zeros((2 * B, H), f32)
    hb0 = None
    for t in range(T):
        # pg has no dependence on h -> off the serial critical path.
        pg = jnp.concatenate(
            [proj0[t * B:(t + 1) * B, :],                      # fwd: x[:, t, :]
             proj0[(T - 1 - t) * B:(T - t) * B, :]],           # bwd: x[:, T-1-t, :]
            axis=0)                                            # (2B, 4H)
        h, c = cell(pg, h, c, wh0)
        hbuf_ref[2 * B * t:2 * B * (t + 1), :] = h             # step-t hiddens, both dirs
        if L == 1 and t == 0:
            hb0 = h[B:, :]

    # ---------------- layers 1 .. L-1 ----------------
    for layer in range(1, L):
        wlr = wr_ref[layer - 1]                                # (2H, 4H)
        wx, wh = wlr[:H, :], wlr[H:, :]
        # Hoisted non-recurrent projection for all T steps & both directions.
        proj = (jnp.dot(hbuf_ref[...], wx, preferred_element_type=f32, precision=_HIGH)
                + br_ref[layer - 1])                           # (T*2B, 4H)
        h = jnp.zeros((2 * B, H), f32)
        c = jnp.zeros((2 * B, H), f32)
        last = layer == L - 1
        for t in range(T):
            h, c = cell(proj[2 * B * t:2 * B * (t + 1), :], h, c, wh)
            if last:
                if t == 0:
                    hb0 = h[B:, :]                             # bwd output after x[:, T-1, :]
            else:
                hbuf_ref[2 * B * t:2 * B * (t + 1), :] = h

    # ---------------- final fc ----------------
    hf_last = h[:B, :]                                         # fwd output after t == T-1
    # Split the fc matmul instead of lane-concatenating (hf_last, hb0).
    out_ref[...] = (jnp.dot(hf_last, wfc_ref[:H, :], preferred_element_type=f32,
                            precision=_HIGH)
                    + jnp.dot(hb0, wfc_ref[H:, :], preferred_element_type=f32,
                              precision=_HIGH)
                    + bfc_ref[...])


def _pack_params(params):
    """One-time parameter preprocessing (wrapper-side, fuses under jit):
       * concat [wxh; whh] per layer into a single weight slab,
       * pre-sum the two bias vectors,
       * pre-scale i/f/o gate columns by 0.5 so the kernel needs a single
         full-lane tanh per cell (sigmoid(z) = 0.5*(tanh(z/2)+1))."""
    gate_scale = jnp.concatenate(
        [jnp.full((1, 2 * H), 0.5, jnp.float32),    # i, f
         jnp.full((1, H), 1.0, jnp.float32),        # g
         jnp.full((1, H), 0.5, jnp.float32)],       # o
        axis=1)                                     # (1, 4H)

    w0 = jnp.concatenate([params["wxh0"], params["whh0"]], axis=0) * gate_scale  # (D+H,4H)
    b0 = (params["bxh0"] + params["bhh0"]) * gate_scale                          # (1,4H)
    wr = jnp.concatenate([params["wxhr"], params["whhr"]], axis=1) * gate_scale  # (L-1,2H,4H)
    br = (params["bxhr"] + params["bhhr"]) * gate_scale                          # (L-1,1,4H)
    return w0, b0, wr, br, params["wfc"], params["bfc"]


@jax.jit
def bidir_recurrent_model(x, params):
    """x: (B, T, D) float32 -> (B, O) float32."""
    w0, b0, wr, br, wfc, bfc = _pack_params(params)
    # Time-major flatten in the wrapper (fuses with XLA's transpose); the kernel
    # sees one (T*B, D) forward-ordered slab and derives the backward view itself.
    x_flat = jnp.transpose(x, (1, 0, 2)).reshape(T * B, D)

    # No grid: the whole problem (~70 KiB of inputs/weights/scratch) is VMEM-resident
    # in a single kernel invocation — no per-step pipeline overhead on any generation.
    return pl.pallas_call(
        _bidir_lstm_kernel,
        out_shape=jax.ShapeDtypeStruct((B, O), jnp.float32),
        scratch_shapes=[pltpu.VMEM((T * 2 * B, H), jnp.float32)],
    )(x_flat, w0, b0, wr, br, wfc, bfc)


def init_params(key):
    """Deterministic synthetic init mirroring the PyTorch shapes (weights stored
    transposed, i.e. (in, out), since they are generated in-script)."""
    std = 1.0 / math.sqrt(H)
    std_fc = 1.0 / math.sqrt(2 * H)
    ks = jax.random.split(key, 10)

    def u(k, shape, bound):
        return jax.random.uniform(k, shape, jnp.float32, -bound, bound)

    return {
        "wxh0": u(ks[0], (D, 4 * H), std),
        "bxh0": u(ks[1], (1, 4 * H), std),
        "whh0": u(ks[2], (H, 4 * H), std),
        "bhh0": u(ks[3], (1, 4 * H), std),
        "wxhr": u(ks[4], (L - 1, H, 4 * H), std),
        "bxhr": u(ks[5], (L - 1, 1, 4 * H), std),
        "whhr": u(ks[6], (L - 1, H, 4 * H), std),
        "bhhr": u(ks[7], (L - 1, 1, 4 * H), std),
        "wfc":  u(ks[8], (2 * H, O), std_fc),
        "bfc":  u(ks[9], (1, O), std_fc),
    }


def reference_forward(x, params):
    """Pure-JAX replica of the PyTorch forward (for a correctness check)."""
    def mm(a, b):
        return jnp.dot(a, b, precision=_HIGH)

    def cell(inp, hc, wxh, bxh, whh, bhh):
        h, c = hc
        gates = mm(inp, wxh) + bxh + mm(h, whh) + bhh
        i = jax.nn.sigmoid(gates[:, 0 * H:1 * H])
        f = jax.nn.sigmoid(gates[:, 1 * H:2 * H])
        g = jnp.tanh(gates[:, 2 * H:3 * H])
        o = jax.nn.sigmoid(gates[:, 3 * H:4 * H])
        cy = c * f + i * g
        return o * jnp.tanh(cy), cy

    hf = [(jnp.zeros((B, H)), jnp.zeros((B, H))) for _ in range(L)]
    hb = [(jnp.zeros((B, H)), jnp.zeros((B, H))) for _ in range(L)]
    outs, outs_rev = [], []
    for t in range(T):
        for l in range(L):
            if l == 0:
                wxh, bxh = params["wxh0"], params["bxh0"]
                whh, bhh = params["whh0"], params["bhh0"]
                xi_f, xi_b = x[:, t, :], x[:, T - 1 - t, :]
            else:
                wxh, bxh = params["wxhr"][l - 1], params["bxhr"][l - 1]
                whh, bhh = params["whhr"][l - 1], params["bhhr"][l - 1]
                xi_f, xi_b = hf[l - 1][0], hb[l - 1][0]
            hf[l] = cell(xi_f, hf[l], wxh, bxh, whh, bhh)
            hb[l] = cell(xi_b, hb[l], wxh, bxh, whh, bhh)
        outs.append(hf[L - 1][0])
        outs_rev.append(hb[L - 1][0])
    feat = jnp.concatenate([outs[-1], outs_rev[0]], axis=1)
    return mm(feat, params["wfc"]) + params["bfc"]


if __name__ == "__main__":
    key = jax.random.PRNGKey(0)
    kx, kp = jax.random.split(key)
    x = jax.random.normal(kx, (B, T, D), jnp.float32)
    params = init_params(kp)

    out = jax.block_until_ready(bidir_recurrent_model(x, params))

    ref = reference_forward(x, params)
    max_err = float(jnp.max(jnp.abs(out - ref)))
    assert out.shape == (B, O), out.shape
    # All matmuls now run at Precision.HIGHEST (f32), so the tolerance is tight.
    assert max_err < 1e-4, f"kernel/reference mismatch: {max_err}"

    print("KERNEL_OK")
</pallas_src>

<mosaic_0001>
module attributes {stable_mosaic.version = 11 : i64} {
  func.func @_bidir_lstm_kernel(%arg0: memref<16x16xf32, #tpu.memory_space<vmem>>, %arg1: memref<48x128xf32, #tpu.memory_space<vmem>>, %arg2: memref<1x128xf32, #tpu.memory_space<vmem>>, %arg3: memref<1x64x128xf32, #tpu.memory_space<vmem>>, %arg4: memref<1x1x128xf32, #tpu.memory_space<vmem>>, %arg5: memref<64x10xf32, #tpu.memory_space<vmem>>, %arg6: memref<1x10xf32, #tpu.memory_space<vmem>>, %arg7: memref<2x10xf32, #tpu.memory_space<vmem>>, %arg8: memref<32x32xf32, #tpu.memory_space<vmem>>) attributes {dimension_semantics = [], scalar_prefetch = 0 : i64, scratch_operands = 1 : i64, tpu.core_type = #tpu.core_type<tc>} {
    %c0 = arith.constant 0 : index
    %c0_0 = arith.constant 0 : index
    %0 = vector.load %arg1[%c0, %c0_0] : memref<48x128xf32, #tpu.memory_space<vmem>>, vector<16x128xf32>
    %c16 = arith.constant 16 : index
    %c0_1 = arith.constant 0 : index
    %1 = vector.load %arg1[%c16, %c0_1] : memref<48x128xf32, #tpu.memory_space<vmem>>, vector<32x128xf32>
    %c0_2 = arith.constant 0 : index
    %c0_3 = arith.constant 0 : index
    %2 = vector.load %arg0[%c0_2, %c0_3] : memref<16x16xf32, #tpu.memory_space<vmem>>, vector<16x16xf32>
    %cst = arith.constant dense<0.000000e+00> : vector<16x128xf32>
    %3 = tpu.matmul %2, %0, %cst {dimension_numbers = #tpu.dot_dimension_numbers<[1], [0], [0], [1], [0, 0, 1, 1], [], []>, precision = #tpu.contract_precision<fp32>} : vector<16x16xf32>, vector<16x128xf32>, vector<16x128xf32> -> vector<16x128xf32>
    %c0_4 = arith.constant 0 : index
    %c0_5 = arith.constant 0 : index
    %4 = vector.load %arg2[%c0_4, %c0_5] : memref<1x128xf32, #tpu.memory_space<vmem>>, vector<1x128xf32>
    %5 = vector.broadcast %4 : vector<1x128xf32> to vector<16x128xf32>
    %6 = arith.addf %3, %5 : vector<16x128xf32>
    %cst_6 = arith.constant 0.000000e+00 : f32
    %7 = vector.broadcast %cst_6 : f32 to vector<4x32xf32>
    %cst_7 = arith.constant 0.000000e+00 : f32
    %8 = vector.broadcast %cst_7 : f32 to vector<4x32xf32>
    %9 = vector.extract_strided_slice %6 {offsets = [0, 0], sizes = [2, 128], strides = [1, 1]} : vector<16x128xf32> to vector<2x128xf32>
    %10 = vector.extract_strided_slice %6 {offsets = [14, 0], sizes = [2, 128], strides = [1, 1]} : vector<16x128xf32> to vector<2x128xf32>
    %11 = tpu.concatenate %9, %10 in 0 : vector<2x128xf32>, vector<2x128xf32> -> vector<4x128xf32>
    %cst_8 = arith.constant dense<0.000000e+00> : vector<4x128xf32>
    %12 = tpu.matmul %7, %1, %cst_8 {dimension_numbers = #tpu.dot_dimension_numbers<[1], [0], [0], [1], [0, 0, 1, 1], [], []>, precision = #tpu.contract_precision<fp32>} : vector<4x32xf32>, vector<32x128xf32>, vector<4x128xf32> -> vector<4x128xf32>
    %13 = arith.addf %11, %12 : vector<4x128xf32>
    %14 = math.tanh %13 : vector<4x128xf32>
    %15 = vector.extract_strided_slice %14 {offsets = [0, 0], sizes = [4, 32], strides = [1, 1]} : vector<4x128xf32> to vector<4x32xf32>
    %cst_9 = arith.constant 1.000000e+00 : f32
    %16 = vector.broadcast %cst_9 : f32 to vector<4x32xf32>
    %17 = arith.addf %15, %16 : vector<4x32xf32>
    %cst_10 = arith.constant 5.000000e-01 : f32
    %18 = vector.broadcast %cst_10 : f32 to vector<4x32xf32>
    %19 = arith.mulf %18, %17 : vector<4x32xf32>
    %20 = vector.extract_strided_slice %14 {offsets = [0, 32], sizes = [4, 32], strides = [1, 1]} : vector<4x128xf32> to vector<4x32xf32>
    %cst_11 = arith.constant 1.000000e+00 : f32
    %21 = vector.broadcast %cst_11 : f32 to vector<4x32xf32>
    %22 = arith.addf %20, %21 : vector<4x32xf32>
    %cst_12 = arith.constant 5.000000e-01 : f32
    %23 = vector.broadcast %cst_12 : f32 to vector<4x32xf32>
    %24 = arith.mulf %23, %22 : vector<4x32xf32>
    %25 = vector.extract_strided_slice %14 {offsets = [0, 64], sizes = [4, 32], strides = [1, 1]} : vector<4x128xf32> to vector<4x32xf32>
    %26 = vector.extract_strided_slice %14 {offsets = [0, 96], sizes = [4, 32], strides = [1, 1]} : vector<4x128xf32> to vector<4x32xf32>
    %cst_13 = arith.constant 1.000000e+00 : f32
    %27 = vector.broadcast %cst_13 : f32 to vector<4x32xf32>
    %28 = arith.addf %26, %27 : vector<4x32xf32>
    %cst_14 = arith.constant 5.000000e-01 : f32
    %29 = vector.broadcast %cst_14 : f32 to vector<4x32xf32>
    %30 = arith.mulf %29, %28 : vector<4x32xf32>
    %31 = arith.mulf %8, %24 : vector<4x32xf32>
    %32 = arith.mulf %19, %25 : vector<4x32xf32>
    %33 = arith.addf %31, %32 : vector<4x32xf32>
    %34 = math.tanh %33 : vector<4x32xf32>
    %35 = arith.mulf %30, %34 : vector<4x32xf32>
    %c0_15 = arith.constant 0 : index
    %c0_16 = arith.constant 0 : index
    %36 = vector.load %arg8[%c0_15, %c0_16] : memref<32x32xf32, #tpu.memory_space<vmem>>, vector<4x32xf32>
    tpu.vector_store %arg8[%c0_15, %c0_16], %35 {strides = array<i32>} : memref<32x32xf32, #tpu.memory_space<vmem>>, vector<4x32xf32>,
    %37 = vector.extract_strided_slice %6 {offsets = [2, 0], sizes = [2, 128], strides = [1, 1]} : vector<16x128xf32> to vector<2x128xf32>
    %38 = vector.extract_strided_slice %6 {offsets = [12, 0], sizes = [2, 128], strides = [1, 1]} : vector<16x128xf32> to vector<2x128xf32>
    %39 = tpu.concatenate %37, %38 in 0 : vector<2x128xf32>, vector<2x128xf32> -> vector<4x128xf32>
    %cst_17 = arith.constant dense<0.000000e+00> : vector<4x128xf32>
    %40 = tpu.matmul %35, %1, %cst_17 {dimension_numbers = #tpu.dot_dimension_numbers<[1], [0], [0], [1], [0, 0, 1, 1], [], []>, precision = #tpu.contract_precision<fp32>} : vector<4x32xf32>, vector<32x128xf32>, vector<4x128xf32> -> vector<4x128xf32>
    %41 = arith.addf %39, %40 : vector<4x128xf32>
    %42 = math.tanh %41 : vector<4x128xf32>
    %43 = vector.extract_strided_slice %42 {offsets = [0, 0], sizes = [4, 32], strides = [1, 1]} : vector<4x128xf32> to vector<4x32xf32>
    %cst_18 = arith.constant 1.000000e+00 : f32
    %44 = vector.broadcast %cst_18 : f32 to vector<4x32xf32>
    %45 = arith.addf %43, %44 : vector<4x32xf32>
    %cst_19 = arith.constant 5.000000e-01 : f32
    %46 = vector.broadcast %cst_19 : f32 to vector<4x32xf32>
    %47 = arith.mulf %46, %45 : vector<4x32xf32>
    %48 = vector.extract_strided_slice %42 {offsets = [0, 32], sizes = [4, 32], strides = [1, 1]} : vector<4x128xf32> to vector<4x32xf32>
    %cst_20 = arith.constant 1.000000e+00 : f32
    %49 = vector.broadcast %cst_20 : f32 to vector<4x32xf32>
    %50 = arith.addf %48, %49 : vector<4x32xf32>
    %cst_21 = arith.constant 5.000000e-01 : f32
    %51 = vector.broadcast %cst_21 : f32 to vector<4x32xf32>
    %52 = arith.mulf %51, %50 : vector<4x32xf32>
    %53 = vector.extract_strided_slice %42 {offsets = [0, 64], sizes = [4, 32], strides = [1, 1]} : vector<4x128xf32> to vector<4x32xf32>
    %54 = vector.extract_strided_slice %42 {offsets = [0, 96], sizes = [4, 32], strides = [1, 1]} : vector<4x128xf32> to vector<4x32xf32>
    %cst_22 = arith.constant 1.000000e+00 : f32
    %55 = vector.broadcast %cst_22 : f32 to vector<4x32xf32>
    %56 = arith.addf %54, %55 : vector<4x32xf32>
    %cst_23 = arith.constant 5.000000e-01 : f32
    %57 = vector.broadcast %cst_23 : f32 to vector<4x32xf32>
    %58 = arith.mulf %57, %56 : vector<4x32xf32>
    %59 = arith.mulf %33, %52 : vector<4x32xf32>
    %60 = arith.mulf %47, %53 : vector<4x32xf32>
    %61 = arith.addf %59, %60 : vector<4x32xf32>
    %62 = math.tanh %61 : vector<4x32xf32>
    %63 = arith.mulf %58, %62 : vector<4x32xf32>
    %c4 = arith.constant 4 : index
    %c0_24 = arith.constant 0 : index
    %64 = vector.load %arg8[%c4, %c0_24] : memref<32x32xf32, #tpu.memory_space<vmem>>, vector<4x32xf32>
    tpu.vector_store %arg8[%c4, %c0_24], %63 {strides = array<i32>} : memref<32x32xf32, #tpu.memory_space<vmem>>, vector<4x32xf32>,
    %65 = vector.extract_strided_slice %6 {offsets = [4, 0], sizes = [2, 128], strides = [1, 1]} : vector<16x128xf32> to vector<2x128xf32>
    %66 = vector.extract_strided_slice %6 {offsets = [10, 0], sizes = [2, 128], strides = [1, 1]} : vector<16x128xf32> to vector<2x128xf32>
    %67 = tpu.concatenate %65, %66 in 0 : vector<2x128xf32>, vector<2x128xf32> -> vector<4x128xf32>
    %cst_25 = arith.constant dense<0.000000e+00> : vector<4x128xf32>
    %68 = tpu.matmul %63, %1, %cst_25 {dimension_numbers = #tpu.dot_dimension_numbers<[1], [0], [0], [1], [0, 0, 1, 1], [], []>, precision = #tpu.contract_precision<fp32>} : vector<4x32xf32>, vector<32x128xf32>, vector<4x128xf32> -> vector<4x128xf32>
    %69 = arith.addf %67, %68 : vector<4x128xf32>
    %70 = math.tanh %69 : vector<4x128xf32>
    %71 = vector.extract_strided_slice %70 {offsets = [0, 0], sizes = [4, 32], strides = [1, 1]} : vector<4x128xf32> to vector<4x32xf32>
    %cst_26 = arith.constant 1.000000e+00 : f32
    %72 = vector.broadcast %cst_26 : f32 to vector<4x32xf32>
    %73 = arith.addf %71, %72 : vector<4x32xf32>
    %cst_27 = arith.constant 5.000000e-01 : f32
    %74 = vector.broadcast %cst_27 : f32 to vector<4x32xf32>
    %75 = arith.mulf %74, %73 : vector<4x32xf32>
    %76 = vector.extract_strided_slice %70 {offsets = [0, 32], sizes = [4, 32], strides = [1, 1]} : vector<4x128xf32> to vector<4x32xf32>
    %cst_28 = arith.constant 1.000000e+00 : f32
    %77 = vector.broadcast %cst_28 : f32 to vector<4x32xf32>
    %78 = arith.addf %76, %77 : vector<4x32xf32>
    %cst_29 = arith.constant 5.000000e-01 : f32
    %79 = vector.broadcast %cst_29 : f32 to vector<4x32xf32>
    %80 = arith.mulf %79, %78 : vector<4x32xf32>
    %81 = vector.extract_strided_slice %70 {offsets = [0, 64], sizes = [4, 32], strides = [1, 1]} : vector<4x128xf32> to vector<4x32xf32>
    %82 = vector.extract_strided_slice %70 {offsets = [0, 96], sizes = [4, 32], strides = [1, 1]} : vector<4x128xf32> to vector<4x32xf32>
    %cst_30 = arith.constant 1.000000e+00 : f32
    %83 = vector.broadcast %cst_30 : f32 to vector<4x32xf32>
    %84 = arith.addf %82, %83 : vector<4x32xf32>
    %cst_31 = arith.constant 5.000000e-01 : f32
    %85 = vector.broadcast %cst_31 : f32 to vector<4x32xf32>
    %86 = arith.mulf %85, %84 : vector<4x32xf32>
    %87 = arith.mulf %61, %80 : vector<4x32xf32>
    %88 = arith.mulf %75, %81 : vector<4x32xf32>
    %89 = arith.addf %87, %88 : vector<4x32xf32>
    %90 = math.tanh %89 : vector<4x32xf32>
    %91 = arith.mulf %86, %90 : vector<4x32xf32>
    %c8 = arith.constant 8 : index
    %c0_32 = arith.constant 0 : index
    %92 = vector.load %arg8[%c8, %c0_32] : memref<32x32xf32, #tpu.memory_space<vmem>>, vector<4x32xf32>
    tpu.vector_store %arg8[%c8, %c0_32], %91 {strides = array<i32>} : memref<32x32xf32, #tpu.memory_space<vmem>>, vector<4x32xf32>,
    %93 = vector.extract_strided_slice %6 {offsets = [6, 0], sizes = [2, 128], strides = [1, 1]} : vector<16x128xf32> to vector<2x128xf32>
    %94 = vector.extract_strided_slice %6 {offsets = [8, 0], sizes = [2, 128], strides = [1, 1]} : vector<16x128xf32> to vector<2x128xf32>
    %95 = tpu.concatenate %93, %94 in 0 : vector<2x128xf32>, vector<2x128xf32> -> vector<4x128xf32>
    %cst_33 = arith.constant dense<0.000000e+00> : vector<4x128xf32>
    %96 = tpu.matmul %91, %1, %cst_33 {dimension_numbers = #tpu.dot_dimension_numbers<[1], [0], [0], [1], [0, 0, 1, 1], [], []>, precision = #tpu.contract_precision<fp32>} : vector<4x32xf32>, vector<32x128xf32>, vector<4x128xf32> -> vector<4x128xf32>
    %97 = arith.addf %95, %96 : vector<4x128xf32>
    %98 = math.tanh %97 : vector<4x128xf32>
    %99 = vector.extract_strided_slice %98 {offsets = [0, 0], sizes = [4, 32], strides = [1, 1]} : vector<4x128xf32> to vector<4x32xf32>
    %cst_34 = arith.constant 1.000000e+00 : f32
    %100 = vector.broadcast %cst_34 : f32 to vector<4x32xf32>
    %101 = arith.addf %99, %100 : vector<4x32xf32>
    %cst_35 = arith.constant 5.000000e-01 : f32
    %102 = vector.broadcast %cst_35 : f32 to vector<4x32xf32>
    %103 = arith.mulf %102, %101 : vector<4x32xf32>
    %104 = vector.extract_strided_slice %98 {offsets = [0, 32], sizes = [4, 32], strides = [1, 1]} : vector<4x128xf32> to vector<4x32xf32>
    %cst_36 = arith.constant 1.000000e+00 : f32
    %105 = vector.broadcast %cst_36 : f32 to vector<4x32xf32>
    %106 = arith.addf %104, %105 : vector<4x32xf32>
    %cst_37 = arith.constant 5.000000e-01 : f32
    %107 = vector.broadcast %cst_37 : f32 to vector<4x32xf32>
    %108 = arith.mulf %107, %106 : vector<4x32xf32>
    %109 = vector.extract_strided_slice %98 {offsets = [0, 64], sizes = [4, 32], strides = [1, 1]} : vector<4x128xf32> to vector<4x32xf32>
    %110 = vector.extract_strided_slice %98 {offsets = [0, 96], sizes = [4, 32], strides = [1, 1]} : vector<4x128xf32> to vector<4x32xf32>
    %cst_38 = arith.constant 1.000000e+00 : f32
    %111 = vector.broadcast %cst_38 : f32 to vector<4x32xf32>
    %112 = arith.addf %110, %111 : vector<4x32xf32>
    %cst_39 = arith.constant 5.000000e-01 : f32
    %113 = vector.broadcast %cst_39 : f32 to vector<4x32xf32>
    %114 = arith.mulf %113, %112 : vector<4x32xf32>
    %115 = arith.mulf %89, %108 : vector<4x32xf32>
    %116 = arith.mulf %103, %109 : vector<4x32xf32>
    %117 = arith.addf %115, %116 : vector<4x32xf32>
    %118 = math.tanh %117 : vector<4x32xf32>
    %119 = arith.mulf %114, %118 : vector<4x32xf32>
    %c12 = arith.constant 12 : index
    %c0_40 = arith.constant 0 : index
    %120 = vector.load %arg8[%c12, %c0_40] : memref<32x32xf32, #tpu.memory_space<vmem>>, vector<4x32xf32>
    tpu.vector_store %arg8[%c12, %c0_40], %119 {strides = array<i32>} : memref<32x32xf32, #tpu.memory_space<vmem>>, vector<4x32xf32>,
    %121 = vector.extract_strided_slice %6 {offsets = [8, 0], sizes = [2, 128], strides = [1, 1]} : vector<16x128xf32> to vector<2x128xf32>
    %122 = vector.extract_strided_slice %6 {offsets = [6, 0], sizes = [2, 128], strides = [1, 1]} : vector<16x128xf32> to vector<2x128xf32>
    %123 = tpu.concatenate %121, %122 in 0 : vector<2x128xf32>, vector<2x128xf32> -> vector<4x128xf32>
    %cst_41 = arith.constant dense<0.000000e+00> : vector<4x128xf32>
    %124 = tpu.matmul %119, %1, %cst_41 {dimension_numbers = #tpu.dot_dimension_numbers<[1], [0], [0], [1], [0, 0, 1, 1], [], []>, precision = #tpu.contract_precision<fp32>} : vector<4x32xf32>, vector<32x128xf32>, vector<4x128xf32> -> vector<4x128xf32>
    %125 = arith.addf %123, %124 : vector<4x128xf32>
    %126 = math.tanh %125 : vector<4x128xf32>
    %127 = vector.extract_strided_slice %126 {offsets = [0, 0], sizes = [4, 32], strides = [1, 1]} : vector<4x128xf32> to vector<4x32xf32>
    %cst_42 = arith.constant 1.000000e+00 : f32
    %128 = vector.broadcast %cst_42 : f32 to vector<4x32xf32>
    %129 = arith.addf %127, %128 : vector<4x32xf32>
    %cst_43 = arith.constant 5.000000e-01 : f32
    %130 = vector.broadcast %cst_43 : f32 to vector<4x32xf32>
    %131 = arith.mulf %130, %129 : vector<4x32xf32>
    %132 = vector.extract_strided_slice %126 {offsets = [0, 32], sizes = [4, 32], strides = [1, 1]} : vector<4x128xf32> to vector<4x32xf32>
    %cst_44 = arith.constant 1.000000e+00 : f32
    %133 = vector.broadcast %cst_44 : f32 to vector<4x32xf32>
    %134 = arith.addf %132, %133 : vector<4x32xf32>
    %cst_45 = arith.constant 5.000000e-01 : f32
    %135 = vector.broadcast %cst_45 : f32 to vector<4x32xf32>
    %136 = arith.mulf %135, %134 : vector<4x32xf32>
    %137 = vector.extract_strided_slice %126 {offsets = [0, 64], sizes = [4, 32], strides = [1, 1]} : vector<4x128xf32> to vector<4x32xf32>
    %138 = vector.extract_strided_slice %126 {offsets = [0, 96], sizes = [4, 32], strides = [1, 1]} : vector<4x128xf32> to vector<4x32xf32>
    %cst_46 = arith.constant 1.000000e+00 : f32
    %139 = vector.broadcast %cst_46 : f32 to vector<4x32xf32>
    %140 = arith.addf %138, %139 : vector<4x32xf32>
    %cst_47 = arith.constant 5.000000e-01 : f32
    %141 = vector.broadcast %cst_47 : f32 to vector<4x32xf32>
    %142 = arith.mulf %141, %140 : vector<4x32xf32>
    %143 = arith.mulf %117, %136 : vector<4x32xf32>
    %144 = arith.mulf %131, %137 : vector<4x32xf32>
    %145 = arith.addf %143, %144 : vector<4x32xf32>
    %146 = math.tanh %145 : vector<4x32xf32>
    %147 = arith.mulf %142, %146 : vector<4x32xf32>
    %c16_48 = arith.constant 16 : index
    %c0_49 = arith.constant 0 : index
    %148 = vector.load %arg8[%c16_48, %c0_49] : memref<32x32xf32, #tpu.memory_space<vmem>>, vector<4x32xf32>
    tpu.vector_store %arg8[%c16_48, %c0_49], %147 {strides = array<i32>} : memref<32x32xf32, #tpu.memory_space<vmem>>, vector<4x32xf32>,
    %149 = vector.extract_strided_slice %6 {offsets = [10, 0], sizes = [2, 128], strides = [1, 1]} : vector<16x128xf32> to vector<2x128xf32>
    %150 = vector.extract_strided_slice %6 {offsets = [4, 0], sizes = [2, 128], strides = [1, 1]} : vector<16x128xf32> to vector<2x128xf32>
    %151 = tpu.concatenate %149, %150 in 0 : vector<2x128xf32>, vector<2x128xf32> -> vector<4x128xf32>
    %cst_50 = arith.constant dense<0.000000e+00> : vector<4x128xf32>
    %152 = tpu.matmul %147, %1, %cst_50 {dimension_numbers = #tpu.dot_dimension_numbers<[1], [0], [0], [1], [0, 0, 1, 1], [], []>, precision = #tpu.contract_precision<fp32>} : vector<4x32xf32>, vector<32x128xf32>, vector<4x128xf32> -> vector<4x128xf32>
    %153 = arith.addf %151, %152 : vector<4x128xf32>
    %154 = math.tanh %153 : vector<4x128xf32>
    %155 = vector.extract_strided_slice %154 {offsets = [0, 0], sizes = [4, 32], strides = [1, 1]} : vector<4x128xf32> to vector<4x32xf32>
    %cst_51 = arith.constant 1.000000e+00 : f32
    %156 = vector.broadcast %cst_51 : f32 to vector<4x32xf32>
    %157 = arith.addf %155, %156 : vector<4x32xf32>
    %cst_52 = arith.constant 5.000000e-01 : f32
    %158 = vector.broadcast %cst_52 : f32 to vector<4x32xf32>
    %159 = arith.mulf %158, %157 : vector<4x32xf32>
    %160 = vector.extract_strided_slice %154 {offsets = [0, 32], sizes = [4, 32], strides = [1, 1]} : vector<4x128xf32> to vector<4x32xf32>
    %cst_53 = arith.constant 1.000000e+00 : f32
    %161 = vector.broadcast %cst_53 : f32 to vector<4x32xf32>
    %162 = arith.addf %160, %161 : vector<4x32xf32>
    %cst_54 = arith.constant 5.000000e-01 : f32
    %163 = vector.broadcast %cst_54 : f32 to vector<4x32xf32>
    %164 = arith.mulf %163, %162 : vector<4x32xf32>
    %165 = vector.extract_strided_slice %154 {offsets = [0, 64], sizes = [4, 32], strides = [1, 1]} : vector<4x128xf32> to vector<4x32xf32>
    %166 = vector.extract_strided_slice %154 {offsets = [0, 96], sizes = [4, 32], strides = [1, 1]} : vector<4x128xf32> to vector<4x32xf32>
    %cst_55 = arith.constant 1.000000e+00 : f32
    %167 = vector.broadcast %cst_55 : f32 to vector<4x32xf32>
    %168 = arith.addf %166, %167 : vector<4x32xf32>
    %cst_56 = arith.constant 5.000000e-01 : f32
    %169 = vector.broadcast %cst_56 : f32 to vector<4x32xf32>
    %170 = arith.mulf %169, %168 : vector<4x32xf32>
    %171 = arith.mulf %145, %164 : vector<4x32xf32>
    %172 = arith.mulf %159, %165 : vector<4x32xf32>
    %173 = arith.addf %171, %172 : vector<4x32xf32>
    %174 = math.tanh %173 : vector<4x32xf32>
    %175 = arith.mulf %170, %174 : vector<4x32xf32>
    %c20 = arith.constant 20 : index
    %c0_57 = arith.constant 0 : index
    %176 = vector.load %arg8[%c20, %c0_57] : memref<32x32xf32, #tpu.memory_space<vmem>>, vector<4x32xf32>
    tpu.vector_store %arg8[%c20, %c0_57], %175 {strides = array<i32>} : memref<32x32xf32, #tpu.memory_space<vmem>>, vector<4x32xf32>,
    %177 = vector.extract_strided_slice %6 {offsets = [12, 0], sizes = [2, 128], strides = [1, 1]} : vector<16x128xf32> to vector<2x128xf32>
    %178 = vector.extract_strided_slice %6 {offsets = [2, 0], sizes = [2, 128], strides = [1, 1]} : vector<16x128xf32> to vector<2x128xf32>
    %179 = tpu.concatenate %177, %178 in 0 : vector<2x128xf32>, vector<2x128xf32> -> vector<4x128xf32>
    %cst_58 = arith.constant dense<0.000000e+00> : vector<4x128xf32>
    %180 = tpu.matmul %175, %1, %cst_58 {dimension_numbers = #tpu.dot_dimension_numbers<[1], [0], [0], [1], [0, 0, 1, 1], [], []>, precision = #tpu.contract_precision<fp32>} : vector<4x32xf32>, vector<32x128xf32>, vector<4x128xf32> -> vector<4x128xf32>
    %181 = arith.addf %179, %180 : vector<4x128xf32>
    %182 = math.tanh %181 : vector<4x128xf32>
    %183 = vector.extract_strided_slice %182 {offsets = [0, 0], sizes = [4, 32], strides = [1, 1]} : vector<4x128xf32> to vector<4x32xf32>
    %cst_59 = arith.constant 1.000000e+00 : f32
    %184 = vector.broadcast %cst_59 : f32 to vector<4x32xf32>
    %185 = arith.addf %183, %184 : vector<4x32xf32>
    %cst_60 = arith.constant 5.000000e-01 : f32
    %186 = vector.broadcast %cst_60 : f32 to vector<4x32xf32>
    %187 = arith.mulf %186, %185 : vector<4x32xf32>
    %188 = vector.extract_strided_slice %182 {offsets = [0, 32], sizes = [4, 32], strides = [1, 1]} : vector<4x128xf32> to vector<4x32xf32>
    %cst_61 = arith.constant 1.000000e+00 : f32
    %189 = vector.broadcast %cst_61 : f32 to vector<4x32xf32>
    %190 = arith.addf %188, %189 : vector<4x32xf32>
    %cst_62 = arith.constant 5.000000e-01 : f32
    %191 = vector.broadcast %cst_62 : f32 to vector<4x32xf32>
    %192 = arith.mulf %191, %190 : vector<4x32xf32>
    %193 = vector.extract_strided_slice %182 {offsets = [0, 64], sizes = [4, 32], strides = [1, 1]} : vector<4x128xf32> to vector<4x32xf32>
    %194 = vector.extract_strided_slice %182 {offsets = [0, 96], sizes = [4, 32], strides = [1, 1]} : vector<4x128xf32> to vector<4x32xf32>
    %cst_63 = arith.constant 1.000000e+00 : f32
    %195 = vector.broadcast %cst_63 : f32 to vector<4x32xf32>
    %196 = arith.addf %194, %195 : vector<4x32xf32>
    %cst_64 = arith.constant 5.000000e-01 : f32
    %197 = vector.broadcast %cst_64 : f32 to vector<4x32xf32>
    %198 = arith.mulf %197, %196 : vector<4x32xf32>
    %199 = arith.mulf %173, %192 : vector<4x32xf32>
    %200 = arith.mulf %187, %193 : vector<4x32xf32>
    %201 = arith.addf %199, %200 : vector<4x32xf32>
    %202 = math.tanh %201 : vector<4x32xf32>
    %203 = arith.mulf %198, %202 : vector<4x32xf32>
    %c24 = arith.constant 24 : index
    %c0_65 = arith.constant 0 : index
    %204 = vector.load %arg8[%c24, %c0_65] : memref<32x32xf32, #tpu.memory_space<vmem>>, vector<4x32xf32>
    tpu.vector_store %arg8[%c24, %c0_65], %203 {strides = array<i32>} : memref<32x32xf32, #tpu.memory_space<vmem>>, vector<4x32xf32>,
    %205 = vector.extract_strided_slice %6 {offsets = [14, 0], sizes = [2, 128], strides = [1, 1]} : vector<16x128xf32> to vector<2x128xf32>
    %206 = vector.extract_strided_slice %6 {offsets = [0, 0], sizes = [2, 128], strides = [1, 1]} : vector<16x128xf32> to vector<2x128xf32>
    %207 = tpu.concatenate %205, %206 in 0 : vector<2x128xf32>, vector<2x128xf32> -> vector<4x128xf32>
    %cst_66 = arith.constant dense<0.000000e+00> : vector<4x128xf32>
    %208 = tpu.matmul %203, %1, %cst_66 {dimension_numbers = #tpu.dot_dimension_numbers<[1], [0], [0], [1], [0, 0, 1, 1], [], []>, precision = #tpu.contract_precision<fp32>} : vector<4x32xf32>, vector<32x128xf32>, vector<4x128xf32> -> vector<4x128xf32>
    %209 = arith.addf %207, %208 : vector<4x128xf32>
    %210 = math.tanh %209 : vector<4x128xf32>
    %211 = vector.extract_strided_slice %210 {offsets = [0, 0], sizes = [4, 32], strides = [1, 1]} : vector<4x128xf32> to vector<4x32xf32>
    %cst_67 = arith.constant 1.000000e+00 : f32
    %212 = vector.broadcast %cst_67 : f32 to vector<4x32xf32>
    %213 = arith.addf %211, %212 : vector<4x32xf32>
    %cst_68 = arith.constant 5.000000e-01 : f32
    %214 = vector.broadcast %cst_68 : f32 to vector<4x32xf32>
    %215 = arith.mulf %214, %213 : vector<4x32xf32>
    %216 = vector.extract_strided_slice %210 {offsets = [0, 32], sizes = [4, 32], strides = [1, 1]} : vector<4x128xf32> to vector<4x32xf32>
    %cst_69 = arith.constant 1.000000e+00 : f32
    %217 = vector.broadcast %cst_69 : f32 to vector<4x32xf32>
    %218 = arith.addf %216, %217 : vector<4x32xf32>
    %cst_70 = arith.constant 5.000000e-01 : f32
    %219 = vector.broadcast %cst_70 : f32 to vector<4x32xf32>
    %220 = arith.mulf %219, %218 : vector<4x32xf32>
    %221 = vector.extract_strided_slice %210 {offsets = [0, 64], sizes = [4, 32], strides = [1, 1]} : vector<4x128xf32> to vector<4x32xf32>
    %222 = vector.extract_strided_slice %210 {offsets = [0, 96], sizes = [4, 32], strides = [1, 1]} : vector<4x128xf32> to vector<4x32xf32>
    %cst_71 = arith.constant 1.000000e+00 : f32
    %223 = vector.broadcast %cst_71 : f32 to vector<4x32xf32>
    %224 = arith.addf %222, %223 : vector<4x32xf32>
    %cst_72 = arith.constant 5.000000e-01 : f32
    %225 = vector.broadcast %cst_72 : f32 to vector<4x32xf32>
    %226 = arith.mulf %225, %224 : vector<4x32xf32>
    %227 = arith.mulf %201, %220 : vector<4x32xf32>
    %228 = arith.mulf %215, %221 : vector<4x32xf32>
    %229 = arith.addf %227, %228 : vector<4x32xf32>
    %230 = math.tanh %229 : vector<4x32xf32>
    %231 = arith.mulf %226, %230 : vector<4x32xf32>
    %c28 = arith.constant 28 : index
    %c0_73 = arith.constant 0 : index
    %232 = vector.load %arg8[%c28, %c0_73] : memref<32x32xf32, #tpu.memory_space<vmem>>, vector<4x32xf32>
    tpu.vector_store %arg8[%c28, %c0_73], %231 {strides = array<i32>} : memref<32x32xf32, #tpu.memory_space<vmem>>, vector<4x32xf32>,
    %c0_74 = arith.constant 0 : index
    %c0_75 = arith.constant 0 : index
    %c0_76 = arith.constant 0 : index
    %233 = vector.load %arg3[%c0_74, %c0_75, %c0_76] : memref<1x64x128xf32, #tpu.memory_space<vmem>>, vector<1x64x128xf32>
    %234 = vector.shape_cast %233 : vector<1x64x128xf32> to vector<64x128xf32>
    %235 = vector.extract_strided_slice %234 {offsets = [0, 0], sizes = [32, 128], strides = [1, 1]} : vector<64x128xf32> to vector<32x128xf32>
    %236 = vector.extract_strided_slice %234 {offsets = [32, 0], sizes = [32, 128], strides = [1, 1]} : vector<64x128xf32> to vector<32x128xf32>
    %c0_77 = arith.constant 0 : index
    %c0_78 = arith.constant 0 : index
    %237 = vector.load %arg8[%c0_77, %c0_78] : memref<32x32xf32, #tpu.memory_space<vmem>>, vector<32x32xf32>
    %cst_79 = arith.constant dense<0.000000e+00> : vector<32x128xf32>
    %238 = tpu.matmul %237, %235, %cst_79 {dimension_numbers = #tpu.dot_dimension_numbers<[1], [0], [0], [1], [0, 0, 1, 1], [], []>, precision = #tpu.contract_precision<fp32>} : vector<32x32xf32>, vector<32x128xf32>, vector<32x128xf32> -> vector<32x128xf32>
    %c0_80 = arith.constant 0 : index
    %c0_81 = arith.constant 0 : index
    %c0_82 = arith.constant 0 : index
    %239 = vector.load %arg4[%c0_80, %c0_81, %c0_82] : memref<1x1x128xf32, #tpu.memory_space<vmem>>, vector<1x1x128xf32>
    %240 = vector.shape_cast %239 : vector<1x1x128xf32> to vector<1x128xf32>
    %241 = vector.broadcast %240 : vector<1x128xf32> to vector<32x128xf32>
    %242 = arith.addf %238, %241 : vector<32x128xf32>
    %cst_83 = arith.constant 0.000000e+00 : f32
    %243 = vector.broadcast %cst_83 : f32 to vector<4x32xf32>
    %cst_84 = arith.constant 0.000000e+00 : f32
    %244 = vector.broadcast %cst_84 : f32 to vector<4x32xf32>
    %245 = vector.extract_strided_slice %242 {offsets = [0, 0], sizes = [4, 128], strides = [1, 1]} : vector<32x128xf32> to vector<4x128xf32>
    %cst_85 = arith.constant dense<0.000000e+00> : vector<4x128xf32>
    %246 = tpu.matmul %243, %236, %cst_85 {dimension_numbers = #tpu.dot_dimension_numbers<[1], [0], [0], [1], [0, 0, 1, 1], [], []>, precision = #tpu.contract_precision<fp32>} : vector<4x32xf32>, vector<32x128xf32>, vector<4x128xf32> -> vector<4x128xf32>
    %247 = arith.addf %245, %246 : vector<4x128xf32>
    %248 = math.tanh %247 : vector<4x128xf32>
    %249 = vector.extract_strided_slice %248 {offsets = [0, 0], sizes = [4, 32], strides = [1, 1]} : vector<4x128xf32> to vector<4x32xf32>
    %cst_86 = arith.constant 1.000000e+00 : f32
    %250 = vector.broadcast %cst_86 : f32 to vector<4x32xf32>
    %251 = arith.addf %249, %250 : vector<4x32xf32>
    %cst_87 = arith.constant 5.000000e-01 : f32
    %252 = vector.broadcast %cst_87 : f32 to vector<4x32xf32>
    %253 = arith.mulf %252, %251 : vector<4x32xf32>
    %254 = vector.extract_strided_slice %248 {offsets = [0, 32], sizes = [4, 32], strides = [1, 1]} : vector<4x128xf32> to vector<4x32xf32>
    %cst_88 = arith.constant 1.000000e+00 : f32
    %255 = vector.broadcast %cst_88 : f32 to vector<4x32xf32>
    %256 = arith.addf %254, %255 : vector<4x32xf32>
    %cst_89 = arith.constant 5.000000e-01 : f32
    %257 = vector.broadcast %cst_89 : f32 to vector<4x32xf32>
    %258 = arith.mulf %257, %256 : vector<4x32xf32>
    %259 = vector.extract_strided_slice %248 {offsets = [0, 64], sizes = [4, 32], strides = [1, 1]} : vector<4x128xf32> to vector<4x32xf32>
    %260 = vector.extract_strided_slice %248 {offsets = [0, 96], sizes = [4, 32], strides = [1, 1]} : vector<4x128xf32> to vector<4x32xf32>
    %cst_90 = arith.constant 1.000000e+00 : f32
    %261 = vector.broadcast %cst_90 : f32 to vector<4x32xf32>
    %262 = arith.addf %260, %261 : vector<4x32xf32>
    %cst_91 = arith.constant 5.000000e-01 : f32
    %263 = vector.broadcast %cst_91 : f32 to vector<4x32xf32>
    %264 = arith.mulf %263, %262 : vector<4x32xf32>
    %265 = arith.mulf %244, %258 : vector<4x32xf32>
    %266 = arith.mulf %253, %259 : vector<4x32xf32>
    %267 = arith.addf %265, %266 : vector<4x32xf32>
    %268 = math.tanh %267 : vector<4x32xf32>
    %269 = arith.mulf %264, %268 : vector<4x32xf32>
    %270 = vector.extract_strided_slice %269 {offsets = [2, 0], sizes = [2, 32], strides = [1, 1]} : vector<4x32xf32> to vector<2x32xf32>
    %271 = vector.extract_strided_slice %242 {offsets = [4, 0], sizes = [4, 128], strides = [1, 1]} : vector<32x128xf32> to vector<4x128xf32>
    %cst_92 = arith.constant dense<0.000000e+00> : vector<4x128xf32>
    %272 = tpu.matmul %269, %236, %cst_92 {dimension_numbers = #tpu.dot_dimension_numbers<[1], [0], [0], [1], [0, 0, 1, 1], [], []>, precision = #tpu.contract_precision<fp32>} : vector<4x32xf32>, vector<32x128xf32>, vector<4x128xf32> -> vector<4x128xf32>
    %273 = arith.addf %271, %272 : vector<4x128xf32>
    %274 = math.tanh %273 : vector<4x128xf32>
    %275 = vector.extract_strided_slice %274 {offsets = [0, 0], sizes = [4, 32], strides = [1, 1]} : vector<4x128xf32> to vector<4x32xf32>
    %cst_93 = arith.constant 1.000000e+00 : f32
    %276 = vector.broadcast %cst_93 : f32 to vector<4x32xf32>
    %277 = arith.addf %275, %276 : vector<4x32xf32>
    %cst_94 = arith.constant 5.000000e-01 : f32
    %278 = vector.broadcast %cst_94 : f32 to vector<4x32xf32>
    %279 = arith.mulf %278, %277 : vector<4x32xf32>
    %280 = vector.extract_strided_slice %274 {offsets = [0, 32], sizes = [4, 32], strides = [1, 1]} : vector<4x128xf32> to vector<4x32xf32>
    %cst_95 = arith.constant 1.000000e+00 : f32
    %281 = vector.broadcast %cst_95 : f32 to vector<4x32xf32>
    %282 = arith.addf %280, %281 : vector<4x32xf32>
    %cst_96 = arith.constant 5.000000e-01 : f32
    %283 = vector.broadcast %cst_96 : f32 to vector<4x32xf32>
    %284 = arith.mulf %283, %282 : vector<4x32xf32>
    %285 = vector.extract_strided_slice %274 {offsets = [0, 64], sizes = [4, 32], strides = [1, 1]} : vector<4x128xf32> to vector<4x32xf32>
    %286 = vector.extract_strided_slice %274 {offsets = [0, 96], sizes = [4, 32], strides = [1, 1]} : vector<4x128xf32> to vector<4x32xf32>
    %cst_97 = arith.constant 1.000000e+00 : f32
    %287 = vector.broadcast %cst_97 : f32 to vector<4x32xf32>
    %288 = arith.addf %286, %287 : vector<4x32xf32>
    %cst_98 = arith.constant 5.000000e-01 : f32
    %289 = vector.broadcast %cst_98 : f32 to vector<4x32xf32>
    %290 = arith.mulf %289, %288 : vector<4x32xf32>
    %291 = arith.mulf %267, %284 : vector<4x32xf32>
    %292 = arith.mulf %279, %285 : vector<4x32xf32>
    %293 = arith.addf %291, %292 : vector<4x32xf32>
    %294 = math.tanh %293 : vector<4x32xf32>
    %295 = arith.mulf %290, %294 : vector<4x32xf32>
    %296 = vector.extract_strided_slice %242 {offsets = [8, 0], sizes = [4, 128], strides = [1, 1]} : vector<32x128xf32> to vector<4x128xf32>
    %cst_99 = arith.constant dense<0.000000e+00> : vector<4x128xf32>
    %297 = tpu.matmul %295, %236, %cst_99 {dimension_numbers = #tpu.dot_dimension_numbers<[1], [0], [0], [1], [0, 0, 1, 1], [], []>, precision = #tpu.contract_precision<fp32>} : vector<4x32xf32>, vector<32x128xf32>, vector<4x128xf32> -> vector<4x128xf32>
    %298 = arith.addf %296, %297 : vector<4x128xf32>
    %299 = math.tanh %298 : vector<4x128xf32>
    %300 = vector.extract_strided_slice %299 {offsets = [0, 0], sizes = [4, 32], strides = [1, 1]} : vector<4x128xf32> to vector<4x32xf32>
    %cst_100 = arith.constant 1.000000e+00 : f32
    %301 = vector.broadcast %cst_100 : f32 to vector<4x32xf32>
    %302 = arith.addf %300, %301 : vector<4x32xf32>
    %cst_101 = arith.constant 5.000000e-01 : f32
    %303 = vector.broadcast %cst_101 : f32 to vector<4x32xf32>
    %304 = arith.mulf %303, %302 : vector<4x32xf32>
    %305 = vector.extract_strided_slice %299 {offsets = [0, 32], sizes = [4, 32], strides = [1, 1]} : vector<4x128xf32> to vector<4x32xf32>
    %cst_102 = arith.constant 1.000000e+00 : f32
    %306 = vector.broadcast %cst_102 : f32 to vector<4x32xf32>
    %307 = arith.addf %305, %306 : vector<4x32xf32>
    %cst_103 = arith.constant 5.000000e-01 : f32
    %308 = vector.broadcast %cst_103 : f32 to vector<4x32xf32>
    %309 = arith.mulf %308, %307 : vector<4x32xf32>
    %310 = vector.extract_strided_slice %299 {offsets = [0, 64], sizes = [4, 32], strides = [1, 1]} : vector<4x128xf32> to vector<4x32xf32>
    %311 = vector.extract_strided_slice %299 {offsets = [0, 96], sizes = [4, 32], strides = [1, 1]} : vector<4x128xf32> to vector<4x32xf32>
    %cst_104 = arith.constant 1.000000e+00 : f32
    %312 = vector.broadcast %cst_104 : f32 to vector<4x32xf32>
    %313 = arith.addf %311, %312 : vector<4x32xf32>
    %cst_105 = arith.constant 5.000000e-01 : f32
    %314 = vector.broadcast %cst_105 : f32 to vector<4x32xf32>
    %315 = arith.mulf %314, %313 : vector<4x32xf32>
    %316 = arith.mulf %293, %309 : vector<4x32xf32>
    %317 = arith.mulf %304, %310 : vector<4x32xf32>
    %318 = arith.addf %316, %317 : vector<4x32xf32>
    %319 = math.tanh %318 : vector<4x32xf32>
    %320 = arith.mulf %315, %319 : vector<4x32xf32>
    %321 = vector.extract_strided_slice %242 {offsets = [12, 0], sizes = [4, 128], strides = [1, 1]} : vector<32x128xf32> to vector<4x128xf32>
    %cst_106 = arith.constant dense<0.000000e+00> : vector<4x128xf32>
    %322 = tpu.matmul %320, %236, %cst_106 {dimension_numbers = #tpu.dot_dimension_numbers<[1], [0], [0], [1], [0, 0, 1, 1], [], []>, precision = #tpu.contract_precision<fp32>} : vector<4x32xf32>, vector<32x128xf32>, vector<4x128xf32> -> vector<4x128xf32>
    %323 = arith.addf %321, %322 : vector<4x128xf32>
    %324 = math.tanh %323 : vector<4x128xf32>
    %325 = vector.extract_strided_slice %324 {offsets = [0, 0], sizes = [4, 32], strides = [1, 1]} : vector<4x128xf32> to vector<4x32xf32>
    %cst_107 = arith.constant 1.000000e+00 : f32
    %326 = vector.broadcast %cst_107 : f32 to vector<4x32xf32>
    %327 = arith.addf %325, %326 : vector<4x32xf32>
    %cst_108 = arith.constant 5.000000e-01 : f32
    %328 = vector.broadcast %cst_108 : f32 to vector<4x32xf32>
    %329 = arith.mulf %328, %327 : vector<4x32xf32>
    %330 = vector.extract_strided_slice %324 {offsets = [0, 32], sizes = [4, 32], strides = [1, 1]} : vector<4x128xf32> to vector<4x32xf32>
    %cst_109 = arith.constant 1.000000e+00 : f32
    %331 = vector.broadcast %cst_109 : f32 to vector<4x32xf32>
    %332 = arith.addf %330, %331 : vector<4x32xf32>
    %cst_110 = arith.constant 5.000000e-01 : f32
    %333 = vector.broadcast %cst_110 : f32 to vector<4x32xf32>
    %334 = arith.mulf %333, %332 : vector<4x32xf32>
    %335 = vector.extract_strided_slice %324 {offsets = [0, 64], sizes = [4, 32], strides = [1, 1]} : vector<4x128xf32> to vector<4x32xf32>
    %336 = vector.extract_strided_slice %324 {offsets = [0, 96], sizes = [4, 32], strides = [1, 1]} : vector<4x128xf32> to vector<4x32xf32>
    %cst_111 = arith.constant 1.000000e+00 : f32
    %337 = vector.broadcast %cst_111 : f32 to vector<4x32xf32>
    %338 = arith.addf %336, %337 : vector<4x32xf32>
    %cst_112 = arith.constant 5.000000e-01 : f32
    %339 = vector.broadcast %cst_112 : f32 to vector<4x32xf32>
    %340 = arith.mulf %339, %338 : vector<4x32xf32>
    %341 = arith.mulf %318, %334 : vector<4x32xf32>
    %342 = arith.mulf %329, %335 : vector<4x32xf32>
    %343 = arith.addf %341, %342 : vector<4x32xf32>
    %344 = math.tanh %343 : vector<4x32xf32>
    %345 = arith.mulf %340, %344 : vector<4x32xf32>
    %346 = vector.extract_strided_slice %242 {offsets = [16, 0], sizes = [4, 128], strides = [1, 1]} : vector<32x128xf32> to vector<4x128xf32>
    %cst_113 = arith.constant dense<0.000000e+00> : vector<4x128xf32>
    %347 = tpu.matmul %345, %236, %cst_113 {dimension_numbers = #tpu.dot_dimension_numbers<[1], [0], [0], [1], [0, 0, 1, 1], [], []>, precision = #tpu.contract_precision<fp32>} : vector<4x32xf32>, vector<32x128xf32>, vector<4x128xf32> -> vector<4x128xf32>
    %348 = arith.addf %346, %347 : vector<4x128xf32>
    %349 = math.tanh %348 : vector<4x128xf32>
    %350 = vector.extract_strided_slice %349 {offsets = [0, 0], sizes = [4, 32], strides = [1, 1]} : vector<4x128xf32> to vector<4x32xf32>
    %cst_114 = arith.constant 1.000000e+00 : f32
    %351 = vector.broadcast %cst_114 : f32 to vector<4x32xf32>
    %352 = arith.addf %350, %351 : vector<4x32xf32>
    %cst_115 = arith.constant 5.000000e-01 : f32
    %353 = vector.broadcast %cst_115 : f32 to vector<4x32xf32>
    %354 = arith.mulf %353, %352 : vector<4x32xf32>
    %355 = vector.extract_strided_slice %349 {offsets = [0, 32], sizes = [4, 32], strides = [1, 1]} : vector<4x128xf32> to vector<4x32xf32>
    %cst_116 = arith.constant 1.000000e+00 : f32
    %356 = vector.broadcast %cst_116 : f32 to vector<4x32xf32>
    %357 = arith.addf %355, %356 : vector<4x32xf32>
    %cst_117 = arith.constant 5.000000e-01 : f32
    %358 = vector.broadcast %cst_117 : f32 to vector<4x32xf32>
    %359 = arith.mulf %358, %357 : vector<4x32xf32>
    %360 = vector.extract_strided_slice %349 {offsets = [0, 64], sizes = [4, 32], strides = [1, 1]} : vector<4x128xf32> to vector<4x32xf32>
    %361 = vector.extract_strided_slice %349 {offsets = [0, 96], sizes = [4, 32], strides = [1, 1]} : vector<4x128xf32> to vector<4x32xf32>
    %cst_118 = arith.constant 1.000000e+00 : f32
    %362 = vector.broadcast %cst_118 : f32 to vector<4x32xf32>
    %363 = arith.addf %361, %362 : vector<4x32xf32>
    %cst_119 = arith.constant 5.000000e-01 : f32
    %364 = vector.broadcast %cst_119 : f32 to vector<4x32xf32>
    %365 = arith.mulf %364, %363 : vector<4x32xf32>
    %366 = arith.mulf %343, %359 : vector<4x32xf32>
    %367 = arith.mulf %354, %360 : vector<4x32xf32>
    %368 = arith.addf %366, %367 : vector<4x32xf32>
    %369 = math.tanh %368 : vector<4x32xf32>
    %370 = arith.mulf %365, %369 : vector<4x32xf32>
    %371 = vector.extract_strided_slice %242 {offsets = [20, 0], sizes = [4, 128], strides = [1, 1]} : vector<32x128xf32> to vector<4x128xf32>
    %cst_120 = arith.constant dense<0.000000e+00> : vector<4x128xf32>
    %372 = tpu.matmul %370, %236, %cst_120 {dimension_numbers = #tpu.dot_dimension_numbers<[1], [0], [0], [1], [0, 0, 1, 1], [], []>, precision = #tpu.contract_precision<fp32>} : vector<4x32xf32>, vector<32x128xf32>, vector<4x128xf32> -> vector<4x128xf32>
    %373 = arith.addf %371, %372 : vector<4x128xf32>
    %374 = math.tanh %373 : vector<4x128xf32>
    %375 = vector.extract_strided_slice %374 {offsets = [0, 0], sizes = [4, 32], strides = [1, 1]} : vector<4x128xf32> to vector<4x32xf32>
    %cst_121 = arith.constant 1.000000e+00 : f32
    %376 = vector.broadcast %cst_121 : f32 to vector<4x32xf32>
    %377 = arith.addf %375, %376 : vector<4x32xf32>
    %cst_122 = arith.constant 5.000000e-01 : f32
    %378 = vector.broadcast %cst_122 : f32 to vector<4x32xf32>
    %379 = arith.mulf %378, %377 : vector<4x32xf32>
    %380 = vector.extract_strided_slice %374 {offsets = [0, 32], sizes = [4, 32], strides = [1, 1]} : vector<4x128xf32> to vector<4x32xf32>
    %cst_123 = arith.constant 1.000000e+00 : f32
    %381 = vector.broadcast %cst_123 : f32 to vector<4x32xf32>
    %382 = arith.addf %380, %381 : vector<4x32xf32>
    %cst_124 = arith.constant 5.000000e-01 : f32
    %383 = vector.broadcast %cst_124 : f32 to vector<4x32xf32>
    %384 = arith.mulf %383, %382 : vector<4x32xf32>
    %385 = vector.extract_strided_slice %374 {offsets = [0, 64], sizes = [4, 32], strides = [1, 1]} : vector<4x128xf32> to vector<4x32xf32>
    %386 = vector.extract_strided_slice %374 {offsets = [0, 96], sizes = [4, 32], strides = [1, 1]} : vector<4x128xf32> to vector<4x32xf32>
    %cst_125 = arith.constant 1.000000e+00 : f32
    %387 = vector.broadcast %cst_125 : f32 to vector<4x32xf32>
    %388 = arith.addf %386, %387 : vector<4x32xf32>
    %cst_126 = arith.constant 5.000000e-01 : f32
    %389 = vector.broadcast %cst_126 : f32 to vector<4x32xf32>
    %390 = arith.mulf %389, %388 : vector<4x32xf32>
    %391 = arith.mulf %368, %384 : vector<4x32xf32>
    %392 = arith.mulf %379, %385 : vector<4x32xf32>
    %393 = arith.addf %391, %392 : vector<4x32xf32>
    %394 = math.tanh %393 : vector<4x32xf32>
    %395 = arith.mulf %390, %394 : vector<4x32xf32>
    %396 = vector.extract_strided_slice %242 {offsets = [24, 0], sizes = [4, 128], strides = [1, 1]} : vector<32x128xf32> to vector<4x128xf32>
    %cst_127 = arith.constant dense<0.000000e+00> : vector<4x128xf32>
    %397 = tpu.matmul %395, %236, %cst_127 {dimension_numbers = #tpu.dot_dimension_numbers<[1], [0], [0], [1], [0, 0, 1, 1], [], []>, precision = #tpu.contract_precision<fp32>} : vector<4x32xf32>, vector<32x128xf32>, vector<4x128xf32> -> vector<4x128xf32>
    %398 = arith.addf %396, %397 : vector<4x128xf32>
    %399 = math.tanh %398 : vector<4x128xf32>
    %400 = vector.extract_strided_slice %399 {offsets = [0, 0], sizes = [4, 32], strides = [1, 1]} : vector<4x128xf32> to vector<4x32xf32>
    %cst_128 = arith.constant 1.000000e+00 : f32
    %401 = vector.broadcast %cst_128 : f32 to vector<4x32xf32>
    %402 = arith.addf %400, %401 : vector<4x32xf32>
    %cst_129 = arith.constant 5.000000e-01 : f32
    %403 = vector.broadcast %cst_129 : f32 to vector<4x32xf32>
    %404 = arith.mulf %403, %402 : vector<4x32xf32>
    %405 = vector.extract_strided_slice %399 {offsets = [0, 32], sizes = [4, 32], strides = [1, 1]} : vector<4x128xf32> to vector<4x32xf32>
    %cst_130 = arith.constant 1.000000e+00 : f32
    %406 = vector.broadcast %cst_130 : f32 to vector<4x32xf32>
    %407 = arith.addf %405, %406 : vector<4x32xf32>
    %cst_131 = arith.constant 5.000000e-01 : f32
    %408 = vector.broadcast %cst_131 : f32 to vector<4x32xf32>
    %409 = arith.mulf %408, %407 : vector<4x32xf32>
    %410 = vector.extract_strided_slice %399 {offsets = [0, 64], sizes = [4, 32], strides = [1, 1]} : vector<4x128xf32> to vector<4x32xf32>
    %411 = vector.extract_strided_slice %399 {offsets = [0, 96], sizes = [4, 32], strides = [1, 1]} : vector<4x128xf32> to vector<4x32xf32>
    %cst_132 = arith.constant 1.000000e+00 : f32
    %412 = vector.broadcast %cst_132 : f32 to vector<4x32xf32>
    %413 = arith.addf %411, %412 : vector<4x32xf32>
    %cst_133 = arith.constant 5.000000e-01 : f32
    %414 = vector.broadcast %cst_133 : f32 to vector<4x32xf32>
    %415 = arith.mulf %414, %413 : vector<4x32xf32>
    %416 = arith.mulf %393, %409 : vector<4x32xf32>
    %417 = arith.mulf %404, %410 : vector<4x32xf32>
    %418 = arith.addf %416, %417 : vector<4x32xf32>
    %419 = math.tanh %418 : vector<4x32xf32>
    %420 = arith.mulf %415, %419 : vector<4x32xf32>
    %421 = vector.extract_strided_slice %242 {offsets = [28, 0], sizes = [4, 128], strides = [1, 1]} : vector<32x128xf32> to vector<4x128xf32>
    %cst_134 = arith.constant dense<0.000000e+00> : vector<4x128xf32>
    %422 = tpu.matmul %420, %236, %cst_134 {dimension_numbers = #tpu.dot_dimension_numbers<[1], [0], [0], [1], [0, 0, 1, 1], [], []>, precision = #tpu.contract_precision<fp32>} : vector<4x32xf32>, vector<32x128xf32>, vector<4x128xf32> -> vector<4x128xf32>
    %423 = arith.addf %421, %422 : vector<4x128xf32>
    %424 = math.tanh %423 : vector<4x128xf32>
    %425 = vector.extract_strided_slice %424 {offsets = [0, 0], sizes = [4, 32], strides = [1, 1]} : vector<4x128xf32> to vector<4x32xf32>
    %cst_135 = arith.constant 1.000000e+00 : f32
    %426 = vector.broadcast %cst_135 : f32 to vector<4x32xf32>
    %427 = arith.addf %425, %426 : vector<4x32xf32>
    %cst_136 = arith.constant 5.000000e-01 : f32
    %428 = vector.broadcast %cst_136 : f32 to vector<4x32xf32>
    %429 = arith.mulf %428, %427 : vector<4x32xf32>
    %430 = vector.extract_strided_slice %424 {offsets = [0, 32], sizes = [4, 32], strides = [1, 1]} : vector<4x128xf32> to vector<4x32xf32>
    %cst_137 = arith.constant 1.000000e+00 : f32
    %431 = vector.broadcast %cst_137 : f32 to vector<4x32xf32>
    %432 = arith.addf %430, %431 : vector<4x32xf32>
    %cst_138 = arith.constant 5.000000e-01 : f32
    %433 = vector.broadcast %cst_138 : f32 to vector<4x32xf32>
    %434 = arith.mulf %433, %432 : vector<4x32xf32>
    %435 = vector.extract_strided_slice %424 {offsets = [0, 64], sizes = [4, 32], strides = [1, 1]} : vector<4x128xf32> to vector<4x32xf32>
    %436 = vector.extract_strided_slice %424 {offsets = [0, 96], sizes = [4, 32], strides = [1, 1]} : vector<4x128xf32> to vector<4x32xf32>
    %cst_139 = arith.constant 1.000000e+00 : f32
    %437 = vector.broadcast %cst_139 : f32 to vector<4x32xf32>
    %438 = arith.addf %436, %437 : vector<4x32xf32>
    %cst_140 = arith.constant 5.000000e-01 : f32
    %439 = vector.broadcast %cst_140 : f32 to vector<4x32xf32>
    %440 = arith.mulf %439, %438 : vector<4x32xf32>
    %441 = arith.mulf %418, %434 : vector<4x32xf32>
    %442 = arith.mulf %429, %435 : vector<4x32xf32>
    %443 = arith.addf %441, %442 : vector<4x32xf32>
    %444 = math.tanh %443 : vector<4x32xf32>
    %445 = arith.mulf %440, %444 : vector<4x32xf32>
    %446 = vector.extract_strided_slice %445 {offsets = [0, 0], sizes = [2, 32], strides = [1, 1]} : vector<4x32xf32> to vector<2x32xf32>
    %c0_141 = arith.constant 0 : index
    %c0_142 = arith.constant 0 : index
    %447 = vector.load %arg5[%c0_141, %c0_142] : memref<64x10xf32, #tpu.memory_space<vmem>>, vector<32x10xf32>
    %cst_143 = arith.constant dense<0.000000e+00> : vector<2x10xf32>
    %448 = tpu.matmul %446, %447, %cst_143 {dimension_numbers = #tpu.dot_dimension_numbers<[1], [0], [0], [1], [0, 0, 1, 1], [], []>, precision = #tpu.contract_precision<fp32>} : vector<2x32xf32>, vector<32x10xf32>, vector<2x10xf32> -> vector<2x10xf32>
    %c32 = arith.constant 32 : index
    %c0_144 = arith.constant 0 : index
    %449 = vector.load %arg5[%c32, %c0_144] : memref<64x10xf32, #tpu.memory_space<vmem>>, vector<32x10xf32>
    %cst_145 = arith.constant dense<0.000000e+00> : vector<2x10xf32>
    %450 = tpu.matmul %270, %449, %cst_145 {dimension_numbers = #tpu.dot_dimension_numbers<[1], [0], [0], [1], [0, 0, 1, 1], [], []>, precision = #tpu.contract_precision<fp32>} : vector<2x32xf32>, vector<32x10xf32>, vector<2x10xf32> -> vector<2x10xf32>
    %451 = arith.addf %448, %450 : vector<2x10xf32>
    %c0_146 = arith.constant 0 : index
    %c0_147 = arith.constant 0 : index
    %452 = vector.load %arg6[%c0_146, %c0_147] : memref<1x10xf32, #tpu.memory_space<vmem>>, vector<1x10xf32>
    %453 = vector.broadcast %452 : vector<1x10xf32> to vector<2x10xf32>
    %454 = arith.addf %451, %453 : vector<2x10xf32>
    %c0_148 = arith.constant 0 : index
    %c0_149 = arith.constant 0 : index
    %455 = vector.load %arg7[%c0_148, %c0_149] : memref<2x10xf32, #tpu.memory_space<vmem>>, vector<2x10xf32>
    tpu.vector_store %arg7[%c0_148, %c0_149], %454 {strides = array<i32>} : memref<2x10xf32, #tpu.memory_space<vmem>>, vector<2x10xf32>,
    return
  }
}

</mosaic_0001>

<llo_original>
// kernel: bidir_recurrent_model.1
$region0: #{bidir_recurrent_model.1}
  #allocation0 [shape = 'u32[]', space=smem, size = 0x4, offset = 0x4, fixed_abs, tag = 'smem constant byte address 0x4 - core index']
  #allocation1 [shape = 'u32[144,128]{1,0:T(1,128)}', space=vmem, size = 0x12000, scoped, tag = 'internal scratch']
  #allocation2 [shape = 'f32[32,32]{1,0:T(8,128)}', space=vmem, size = 0x4000, scoped, tag = 'scratch operand']
  %s0 = inlined_call_operand.vmem [shape: f32[16,16], index: 0, kind: input, shape index: {}]
  %s1 = inlined_call_operand.vmem [shape: f32[48,128], index: 1, kind: input, shape index: {}]
  %s2 = inlined_call_operand.vmem [shape: f32[1,128], index: 2, kind: input, shape index: {}]
  %s3 = inlined_call_operand.vmem [shape: f32[1,64,128], index: 3, kind: input, shape index: {}]
  %s4 = inlined_call_operand.vmem [shape: f32[1,1,128], index: 4, kind: input, shape index: {}]
  %s5 = inlined_call_operand.vmem [shape: f32[64,10], index: 5, kind: input, shape index: {}]
  %s6 = inlined_call_operand.vmem [shape: f32[1,10], index: 6, kind: input, shape index: {}]
  %s7 = inlined_call_operand.hbm [shape: f32[2,10], index: 7, kind: output, shape index: {}]
  %s8 = sld [smem:[#allocation0]]
  $region38: #{bidir_recurrent_model.1} parent=0
    _
  %s10 = ssub.s32 1, %s8
  %s11 = scalar_select 0, %s10, %s8
  $region1: #{bidir_recurrent_model.1} parent=0
    #allocation3 [shape = 'u8[1024]{0}', space=vmem, size = 0x400, scoped, tag = 'output window, operand 0, single buffered']
    #allocation4 [shape = 's32[1]{0}', space=sflag, size = 0x4, scoped, tag = 'scoped memory for bidir_recurrent_model.1']
    %12 = vsyncpa [#allocation4], 0
    // Predicated region
    $region2: #{bidir_recurrent_model.1} parent=1 // pred_check
      _
    $region3: #{bidir_recurrent_model.1} parent=1 // pred_check_branch
      %14 = sbr.rel (0) target = $region5
    $region4: #{bidir_recurrent_model.1} parent=1 // pred_region
      _
    $region5: #{bidir_recurrent_model.1} parent=1 // pred_fallthru
      _
    // Predicated region
    $region6: #{bidir_recurrent_model.1} parent=1 // pred_check
      _
    $region7: #{bidir_recurrent_model.1} parent=1 // pred_check_branch
      %16 = sbr.rel (0) target = $region9
    $region8: #{bidir_recurrent_model.1} parent=1 // pred_region
      _
    $region9: #{bidir_recurrent_model.1} parent=1 // pred_fallthru
      _
    // Predicated region
    $region10: #{bidir_recurrent_model.1} parent=1 // pred_check
      _
    $region11: #{bidir_recurrent_model.1} parent=1 // pred_check_branch
      %18 = sbr.rel (0) target = $region13
    $region12: #{bidir_recurrent_model.1} parent=1 // pred_region
      _
    $region13: #{bidir_recurrent_model.1} parent=1 // pred_fallthru
      _
    // Predicated region
    $region14: #{bidir_recurrent_model.1} parent=1 // pred_check
      _
    $region15: #{bidir_recurrent_model.1} parent=1 // pred_check_branch
      %20 = sbr.rel (0) target = $region17
    $region16: #{bidir_recurrent_model.1} parent=1 // pred_region
      _
    $region17: #{bidir_recurrent_model.1} parent=1 // pred_fallthru
      _
    // Predicated region
    $region18: #{bidir_recurrent_model.1} parent=1 // pred_check
      _
    $region19: #{bidir_recurrent_model.1} parent=1 // pred_check_branch
      %22 = sbr.rel (0) target = $region21
    $region20: #{bidir_recurrent_model.1} parent=1 // pred_region
      _
    $region21: #{bidir_recurrent_model.1} parent=1 // pred_fallthru
      _
    // Predicated region
    $region22: #{bidir_recurrent_model.1} parent=1 // pred_check
      _
    $region23: #{bidir_recurrent_model.1} parent=1 // pred_check_branch
      %24 = sbr.rel (0) target = $region25
    $region24: #{bidir_recurrent_model.1} parent=1 // pred_region
      _
    $region25: #{bidir_recurrent_model.1} parent=1 // pred_fallthru
      _
    // Predicated region
    $region26: #{bidir_recurrent_model.1} parent=1 // pred_check
      _
    $region27: #{bidir_recurrent_model.1} parent=1 // pred_check_branch
      %26 = sbr.rel (0) target = $region29
    $region28: #{bidir_recurrent_model.1} parent=1 // pred_region
      _
    $region29: #{bidir_recurrent_model.1} parent=1 // pred_fallthru
      _
    %v27 = vld [vmem:[%s1] sm:$0xff]
    %v28 = vld [vmem:[%s1 + $0x8] sm:$0xff]
    %v29 = vld [vmem:[%s1 + $0x10] sm:$0xff]
    %v30 = vld [vmem:[%s1 + $0x18] sm:$0xff]
    %v31 = vld [vmem:[%s1 + $0x20] sm:$0xff]
    %v32 = vld [vmem:[%s1 + $0x28] sm:$0xff]
    %v33 = vld [vmem:[%s0] sm:$0xff]
    %v34 = vld [vmem:[%s0 + $0x8] sm:$0xff]
    %v35 = vld [vmem:[%s2] sm:$0x1]
    %v37 = vlaneseq
    %v38 = vshrl.u32 %v37, 7
    %v39 = vsub.s32 0, %v38
    %v40 = vrot.slane %v35, %v39
    %vm42 = vcmask 130048
    %v44 = vsel %vm42, %v33, 0
    %v47 = vsel %vm42, %v34, 0
    %49 = vmatprep.subr.mxu0 0.0
    %50 = vmatpush1.msra.mxu0 0.0
    %51 = vmatprep.subr.mxu0 0.0
    %52 = vmatpush1.msra.mxu0 0.0
    %53 = vmatprep.subr.mxu0 0.0
    %54 = vmatpush1.msra.mxu0 0.0
    %55 = vmatprep.subr.mxu0 0.0
    %56 = vmatpush1.msra.mxu0 0.0
    %57 = vmatprep.subr.mxu0 0.0
    %58 = vmatpush1.msra.mxu0 0.0
    %59 = vmatprep.subr.mxu0 0.0
    %60 = vmatpush1.msra.mxu0 0.0
    %61 = vmatprep.subr.mxu0 0.0
    %62 = vmatpush1.msra.mxu0 0.0
    %63 = vmatprep.subr.mxu0 0.0
    %64 = vmatpush1.msra.mxu0 0.0
    %65 = vmatprep.subr.mxu0 0.0
    %66 = vmatpush1.msra.mxu0 0.0
    %67 = vmatprep.subr.mxu0 0.0
    %68 = vmatpush1.msra.mxu0 0.0
    %69 = vmatprep.subr.mxu0 0.0
    %70 = vmatpush1.msra.mxu0 0.0
    %71 = vmatprep.subr.mxu0 0.0
    %72 = vmatpush1.msra.mxu0 0.0
    %73 = vmatprep.subr.mxu0 0.0
    %74 = vmatpush1.msra.mxu0 0.0
    %75 = vmatprep.subr.mxu0 0.0
    %76 = vmatpush1.msra.mxu0 0.0
    %77 = vmatprep.subr.mxu0 0.0
    %v78 = vand.u32 %v28, 4294901760
    %79 = vmatpush1.msra.mxu0 %v78
    %80 = vmatprep.subr.mxu0 0.0
    %v81 = vand.u32 %v27, 4294901760
    %82 = vmatpush1.msra.mxu0 %v81
    %83 = vmatprep.subr.mxu0 0.0
    %84 = vmatpush2.msra.mxu0 0.0
    %85 = vmatprep.subr.mxu0 0.0
    %86 = vmatpush2.msra.mxu0 0.0
    %87 = vmatprep.subr.mxu0 0.0
    %88 = vmatpush2.msra.mxu0 0.0
    %89 = vmatprep.subr.mxu0 0.0
    %90 = vmatpush2.msra.mxu0 0.0
    %91 = vmatprep.subr.mxu0 0.0
    %92 = vmatpush2.msra.mxu0 0.0
    %93 = vmatprep.subr.mxu0 0.0
    %94 = vmatpush2.msra.mxu0 0.0
    %95 = vmatprep.subr.mxu0 0.0
    %96 = vmatpush2.msra.mxu0 0.0
    %97 = vmatprep.subr.mxu0 0.0
    %98 = vmatpush2.msra.mxu0 0.0
    %99 = vmatprep.subr.mxu0 0.0
    %100 = vmatpush2.msra.mxu0 0.0
    %101 = vmatprep.subr.mxu0 0.0
    %102 = vmatpush2.msra.mxu0 0.0
    %103 = vmatprep.subr.mxu0 0.0
    %104 = vmatpush2.msra.mxu0 0.0
    %105 = vmatprep.subr.mxu0 0.0
    %106 = vmatpush2.msra.mxu0 0.0
    %107 = vmatprep.subr.mxu0 0.0
    %108 = vmatpush2.msra.mxu0 0.0
    %109 = vmatprep.subr.mxu0 0.0
    %110 = vmatpush2.msra.mxu0 0.0
    %111 = vmatprep.subr.mxu0 0.0
    %112 = vmatpush2.msra.mxu0 0.0
    %113 = vmatprep.subr.mxu0 0.0
    %114 = vmatpush2.msra.mxu0 0.0
    %115 = vmatprep.mubr.f32.mxu0 0.0
    %v116 = vand.u32 %v44, 4294901760
    %v117 = vsub.f32 %v44, %v116
    %v118 = vand.u32 %v117, 4294901760
    %v119 = vsub.f32 %v117, %v118
    %v120 = vand.u32 %v119, 4294901760
    %121 = vmatmul.mubr.f32.gmra.mxu0 %v120
    %v122 = vpop.f32.mrf.mxu0
    %v123 = vadd.f32 %v40, %v122
    %v124 = vpop.f32.mrf.mxu0
    %125 = vmatprep.mubr.f32.mxu0 0.0
    %v126 = vand.u32 %v47, 4294901760
    %v127 = vsub.f32 %v47, %v126
    %v128 = vand.u32 %v127, 4294901760
    %v129 = vsub.f32 %v127, %v128
    %v130 = vand.u32 %v129, 4294901760
    %131 = vmatmul.mubr.f32.gmra.mxu0 %v130
    %v132 = vpop.f32.mrf.mxu0
    %v133 = vadd.f32 %v40, %v132
    %v134 = vpop.f32.mrf.mxu0
    %135 = vdwg.mxu0
    %136 = vmatprep.subr.mxu0 0.0
    %137 = vmatpush1.msra.mxu0 0.0
    %138 = vmatprep.subr.mxu0 0.0
    %139 = vmatpush1.msra.mxu0 0.0
    %140 = vmatprep.subr.mxu0 0.0
    %141 = vmatpush1.msra.mxu0 0.0
    %142 = vmatprep.subr.mxu0 0.0
    %143 = vmatpush1.msra.mxu0 0.0
    %144 = vmatprep.subr.mxu0 0.0
    %145 = vmatpush1.msra.mxu0 0.0
    %146 = vmatprep.subr.mxu0 0.0
    %147 = vmatpush1.msra.mxu0 0.0
    %148 = vmatprep.subr.mxu0 0.0
    %149 = vmatpush1.msra.mxu0 0.0
    %150 = vmatprep.subr.mxu0 0.0
    %151 = vmatpush1.msra.mxu0 0.0
    %152 = vmatprep.subr.mxu0 0.0
    %153 = vmatpush1.msra.mxu0 0.0
    %154 = vmatprep.subr.mxu0 0.0
    %155 = vmatpush1.msra.mxu0 0.0
    %156 = vmatprep.subr.mxu0 0.0
    %157 = vmatpush1.msra.mxu0 0.0
    %158 = vmatprep.subr.mxu0 0.0
    %159 = vmatpush1.msra.mxu0 0.0
    %160 = vmatprep.subr.mxu0 0.0
    %161 = vmatpush1.msra.mxu0 0.0
    %162 = vmatprep.subr.mxu0 0.0
    %163 = vmatpush1.msra.mxu0 0.0
    %164 = vmatprep.subr.mxu0 0.0
    %v165 = vand.u32 %v28, 4294901760
    %v166 = vsub.f32 %v28, %v165
    %v167 = vand.u32 %v166, 4294901760
    %v168 = vsub.f32 %v166, %v167
    %v169 = vand.u32 %v168, 4294901760
    %170 = vmatpush1.msra.mxu0 %v169
    %171 = vmatprep.subr.mxu0 0.0
    %v172 = vand.u32 %v27, 4294901760
    %v173 = vsub.f32 %v27, %v172
    %v174 = vand.u32 %v173, 4294901760
    %v175 = vsub.f32 %v173, %v174
    %v176 = vand.u32 %v175, 4294901760
    %177 = vmatpush1.msra.mxu0 %v176
    %178 = vmatprep.subr.mxu0 0.0
    %179 = vmatpush2.msra.mxu0 0.0
    %180 = vmatprep.subr.mxu0 0.0
    %181 = vmatpush2.msra.mxu0 0.0
    %182 = vmatprep.subr.mxu0 0.0
    %183 = vmatpush2.msra.mxu0 0.0
    %184 = vmatprep.subr.mxu0 0.0
    %185 = vmatpush2.msra.mxu0 0.0
    %186 = vmatprep.subr.mxu0 0.0
    %187 = vmatpush2.msra.mxu0 0.0
    %188 = vmatprep.subr.mxu0 0.0
    %189 = vmatpush2.msra.mxu0 0.0
    %190 = vmatprep.subr.mxu0 0.0
    %191 = vmatpush2.msra.mxu0 0.0
    %192 = vmatprep.subr.mxu0 0.0
    %193 = vmatpush2.msra.mxu0 0.0
    %194 = vmatprep.subr.mxu0 0.0
    %195 = vmatpush2.msra.mxu0 0.0
    %196 = vmatprep.subr.mxu0 0.0
    %197 = vmatpush2.msra.mxu0 0.0
    %198 = vmatprep.subr.mxu0 0.0
    %199 = vmatpush2.msra.mxu0 0.0
    %200 = vmatprep.subr.mxu0 0.0
    %201 = vmatpush2.msra.mxu0 0.0
    %202 = vmatprep.subr.mxu0 0.0
    %203 = vmatpush2.msra.mxu0 0.0
    %204 = vmatprep.subr.mxu0 0.0
    %205 = vmatpush2.msra.mxu0 0.0
    %206 = vmatprep.subr.mxu0 0.0
    %207 = vmatpush2.msra.mxu0 0.0
    %208 = vmatprep.subr.mxu0 0.0
    %209 = vmatpush2.msra.mxu0 0.0
    %210 = vmatprep.mubr.f32.mxu0 0.0
    %v211 = vand.u32 %v44, 4294901760
    %212 = vmatmul.mubr.f32.gmra.mxu0 %v211
    %v213 = vpop.f32.mrf.mxu0
    %v214 = vadd.f32 %v123, %v213
    %v215 = vpop.f32.mrf.mxu0
    %216 = vmatprep.mubr.f32.mxu0 0.0
    %v217 = vand.u32 %v47, 4294901760
    %218 = vmatmul.mubr.f32.gmra.mxu0 %v217
    %v219 = vpop.f32.mrf.mxu0
    %v220 = vadd.f32 %v133, %v219
    %v221 = vpop.f32.mrf.mxu0
    %222 = vdwg.mxu0
    %223 = vmatprep.subr.mxu0 0.0
    %224 = vmatpush1.msra.mxu0 0.0
    %225 = vmatprep.subr.mxu0 0.0
    %226 = vmatpush1.msra.mxu0 0.0
    %227 = vmatprep.subr.mxu0 0.0
    %228 = vmatpush1.msra.mxu0 0.0
    %229 = vmatprep.subr.mxu0 0.0
    %230 = vmatpush1.msra.mxu0 0.0
    %231 = vmatprep.subr.mxu0 0.0
    %232 = vmatpush1.msra.mxu0 0.0
    %233 = vmatprep.subr.mxu0 0.0
    %234 = vmatpush1.msra.mxu0 0.0
    %235 = vmatprep.subr.mxu0 0.0
    %236 = vmatpush1.msra.mxu0 0.0
    %237 = vmatprep.subr.mxu0 0.0
    %238 = vmatpush1.msra.mxu0 0.0
    %239 = vmatprep.subr.mxu0 0.0
    %240 = vmatpush1.msra.mxu0 0.0
    %241 = vmatprep.subr.mxu0 0.0
    %242 = vmatpush1.msra.mxu0 0.0
    %243 = vmatprep.subr.mxu0 0.0
    %244 = vmatpush1.msra.mxu0 0.0
    %245 = vmatprep.subr.mxu0 0.0
    %246 = vmatpush1.msra.mxu0 0.0
    %247 = vmatprep.subr.mxu0 0.0
    %248 = vmatpush1.msra.mxu0 0.0
    %249 = vmatprep.subr.mxu0 0.0
    %250 = vmatpush1.msra.mxu0 0.0
    %251 = vmatprep.subr.mxu0 0.0
    %v252 = vand.u32 %v28, 4294901760
    %v253 = vsub.f32 %v28, %v252
    %254 = vmatpush1.msra.mxu0 %v253
    %255 = vmatprep.subr.mxu0 0.0
    %v256 = vand.u32 %v27, 4294901760
    %v257 = vsub.f32 %v27, %v256
    %258 = vmatpush1.msra.mxu0 %v257
    %259 = vmatprep.subr.mxu0 0.0
    %260 = vmatpush2.msra.mxu0 0.0
    %261 = vmatprep.subr.mxu0 0.0
    %262 = vmatpush2.msra.mxu0 0.0
    %263 = vmatprep.subr.mxu0 0.0
    %264 = vmatpush2.msra.mxu0 0.0
    %265 = vmatprep.subr.mxu0 0.0
    %266 = vmatpush2.msra.mxu0 0.0
    %267 = vmatprep.subr.mxu0 0.0
    %268 = vmatpush2.msra.mxu0 0.0
    %269 = vmatprep.subr.mxu0 0.0
    %270 = vmatpush2.msra.mxu0 0.0
    %271 = vmatprep.subr.mxu0 0.0
    %272 = vmatpush2.msra.mxu0 0.0
    %273 = vmatprep.subr.mxu0 0.0
    %274 = vmatpush2.msra.mxu0 0.0
    %275 = vmatprep.subr.mxu0 0.0
    %276 = vmatpush2.msra.mxu0 0.0
    %277 = vmatprep.subr.mxu0 0.0
    %278 = vmatpush2.msra.mxu0 0.0
    %279 = vmatprep.subr.mxu0 0.0
    %280 = vmatpush2.msra.mxu0 0.0
    %281 = vmatprep.subr.mxu0 0.0
    %282 = vmatpush2.msra.mxu0 0.0
    %283 = vmatprep.subr.mxu0 0.0
    %284 = vmatpush2.msra.mxu0 0.0
    %285 = vmatprep.subr.mxu0 0.0
    %286 = vmatpush2.msra.mxu0 0.0
    %287 = vmatprep.subr.mxu0 0.0
    %288 = vmatpush2.msra.mxu0 0.0
    %289 = vmatprep.subr.mxu0 0.0
    %290 = vmatpush2.msra.mxu0 0.0
    %291 = vmatprep.mubr.f32.mxu0 0.0
    %v292 = vand.u32 %v44, 4294901760
    %v293 = vsub.f32 %v44, %v292
    %294 = vmatmul.mubr.f32.gmra.mxu0 %v293
    %v295 = vpop.f32.mrf.mxu0
    %v296 = vadd.f32 %v214, %v295
    %v297 = vpop.f32.mrf.mxu0
    %298 = vmatprep.mubr.f32.mxu0 0.0
    %v299 = vand.u32 %v47, 4294901760
    %v300 = vsub.f32 %v47, %v299
    %301 = vmatmul.mubr.f32.gmra.mxu0 %v300
    %v302 = vpop.f32.mrf.mxu0
    %v303 = vadd.f32 %v220, %v302
    %v304 = vpop.f32.mrf.mxu0
    %305 = vdwg.mxu0
    %306 = vmatprep.subr.mxu0 0.0
    %307 = vmatpush1.msra.mxu0 0.0
    %308 = vmatprep.subr.mxu0 0.0
    %309 = vmatpush1.msra.mxu0 0.0
    %310 = vmatprep.subr.mxu0 0.0
    %311 = vmatpush1.msra.mxu0 0.0
    %312 = vmatprep.subr.mxu0 0.0
    %313 = vmatpush1.msra.mxu0 0.0
    %314 = vmatprep.subr.mxu0 0.0
    %315 = vmatpush1.msra.mxu0 0.0
    %316 = vmatprep.subr.mxu0 0.0
    %317 = vmatpush1.msra.mxu0 0.0
    %318 = vmatprep.subr.mxu0 0.0
    %319 = vmatpush1.msra.mxu0 0.0
    %320 = vmatprep.subr.mxu0 0.0
    %321 = vmatpush1.msra.mxu0 0.0
    %322 = vmatprep.subr.mxu0 0.0
    %323 = vmatpush1.msra.mxu0 0.0
    %324 = vmatprep.subr.mxu0 0.0
    %325 = vmatpush1.msra.mxu0 0.0
    %326 = vmatprep.subr.mxu0 0.0
    %327 = vmatpush1.msra.mxu0 0.0
    %328 = vmatprep.subr.mxu0 0.0
    %329 = vmatpush1.msra.mxu0 0.0
    %330 = vmatprep.subr.mxu0 0.0
    %331 = vmatpush1.msra.mxu0 0.0
    %332 = vmatprep.subr.mxu0 0.0
    %333 = vmatpush1.msra.mxu0 0.0
    %334 = vmatprep.subr.mxu0 0.0
    %v335 = vand.u32 %v28, 4294901760
    %336 = vmatpush1.msra.mxu0 %v335
    %337 = vmatprep.subr.mxu0 0.0
    %v338 = vand.u32 %v27, 4294901760
    %339 = vmatpush1.msra.mxu0 %v338
    %340 = vmatprep.subr.mxu0 0.0
    %341 = vmatpush2.msra.mxu0 0.0
    %342 = vmatprep.subr.mxu0 0.0
    %343 = vmatpush2.msra.mxu0 0.0
    %344 = vmatprep.subr.mxu0 0.0
    %345 = vmatpush2.msra.mxu0 0.0
    %346 = vmatprep.subr.mxu0 0.0
    %347 = vmatpush2.msra.mxu0 0.0
    %348 = vmatprep.subr.mxu0 0.0
    %349 = vmatpush2.msra.mxu0 0.0
    %350 = vmatprep.subr.mxu0 0.0
    %351 = vmatpush2.msra.mxu0 0.0
    %352 = vmatprep.subr.mxu0 0.0
    %353 = vmatpush2.msra.mxu0 0.0
    %354 = vmatprep.subr.mxu0 0.0
    %355 = vmatpush2.msra.mxu0 0.0
    %356 = vmatprep.subr.mxu0 0.0
    %357 = vmatpush2.msra.mxu0 0.0
    %358 = vmatprep.subr.mxu0 0.0
    %359 = vmatpush2.msra.mxu0 0.0
    %360 = vmatprep.subr.mxu0 0.0
    %361 = vmatpush2.msra.mxu0 0.0
    %362 = vmatprep.subr.mxu0 0.0
    %363 = vmatpush2.msra.mxu0 0.0
    %364 = vmatprep.subr.mxu0 0.0
    %365 = vmatpush2.msra.mxu0 0.0
    %366 = vmatprep.subr.mxu0 0.0
    %367 = vmatpush2.msra.mxu0 0.0
    %368 = vmatprep.subr.mxu0 0.0
    %369 = vmatpush2.msra.mxu0 0.0
    %370 = vmatprep.subr.mxu0 0.0
    %371 = vmatpush2.msra.mxu0 0.0
    %372 = vmatprep.mubr.f32.mxu0 0.0
    %v373 = vand.u32 %v44, 4294901760
    %v374 = vsub.f32 %v44, %v373
    %v375 = vand.u32 %v374, 4294901760
    %376 = vmatmul.mubr.f32.gmra.mxu0 %v375
    %v377 = vpop.f32.mrf.mxu0
    %v378 = vadd.f32 %v296, %v377
    %v379 = vpop.f32.mrf.mxu0
    %380 = vmatprep.mubr.f32.mxu0 0.0
    %v381 = vand.u32 %v47, 4294901760
    %v382 = vsub.f32 %v47, %v381
    %v383 = vand.u32 %v382, 4294901760
    %384 = vmatmul.mubr.f32.gmra.mxu0 %v383
    %v385 = vpop.f32.mrf.mxu0
    %v386 = vadd.f32 %v303, %v385
    %v387 = vpop.f32.mrf.mxu0
    %388 = vdwg.mxu0
    %389 = vmatprep.subr.mxu0 0.0
    %390 = vmatpush1.msra.mxu0 0.0
    %391 = vmatprep.subr.mxu0 0.0
    %392 = vmatpush1.msra.mxu0 0.0
    %393 = vmatprep.subr.mxu0 0.0
    %394 = vmatpush1.msra.mxu0 0.0
    %395 = vmatprep.subr.mxu0 0.0
    %396 = vmatpush1.msra.mxu0 0.0
    %397 = vmatprep.subr.mxu0 0.0
    %398 = vmatpush1.msra.mxu0 0.0
    %399 = vmatprep.subr.mxu0 0.0
    %400 = vmatpush1.msra.mxu0 0.0
    %401 = vmatprep.subr.mxu0 0.0
    %402 = vmatpush1.msra.mxu0 0.0
    %403 = vmatprep.subr.mxu0 0.0
    %404 = vmatpush1.msra.mxu0 0.0
    %405 = vmatprep.subr.mxu0 0.0
    %406 = vmatpush1.msra.mxu0 0.0
    %407 = vmatprep.subr.mxu0 0.0
    %408 = vmatpush1.msra.mxu0 0.0
    %409 = vmatprep.subr.mxu0 0.0
    %410 = vmatpush1.msra.mxu0 0.0
    %411 = vmatprep.subr.mxu0 0.0
    %412 = vmatpush1.msra.mxu0 0.0
    %413 = vmatprep.subr.mxu0 0.0
    %414 = vmatpush1.msra.mxu0 0.0
    %415 = vmatprep.subr.mxu0 0.0
    %416 = vmatpush1.msra.mxu0 0.0
    %417 = vmatprep.subr.mxu0 0.0
    %v418 = vand.u32 %v28, 4294901760
    %v419 = vsub.f32 %v28, %v418
    %v420 = vand.u32 %v419, 4294901760
    %421 = vmatpush1.msra.mxu0 %v420
    %422 = vmatprep.subr.mxu0 0.0
    %v423 = vand.u32 %v27, 4294901760
    %v424 = vsub.f32 %v27, %v423
    %v425 = vand.u32 %v424, 4294901760
    %426 = vmatpush1.msra.mxu0 %v425
    %427 = vmatprep.subr.mxu0 0.0
    %428 = vmatpush2.msra.mxu0 0.0
    %429 = vmatprep.subr.mxu0 0.0
    %430 = vmatpush2.msra.mxu0 0.0
    %431 = vmatprep.subr.mxu0 0.0
    %432 = vmatpush2.msra.mxu0 0.0
    %433 = vmatprep.subr.mxu0 0.0
    %434 = vmatpush2.msra.mxu0 0.0
    %435 = vmatprep.subr.mxu0 0.0
    %436 = vmatpush2.msra.mxu0 0.0
    %437 = vmatprep.subr.mxu0 0.0
    %438 = vmatpush2.msra.mxu0 0.0
    %439 = vmatprep.subr.mxu0 0.0
    %440 = vmatpush2.msra.mxu0 0.0
    %441 = vmatprep.subr.mxu0 0.0
    %442 = vmatpush2.msra.mxu0 0.0
    %443 = vmatprep.subr.mxu0 0.0
    %444 = vmatpush2.msra.mxu0 0.0
    %445 = vmatprep.subr.mxu0 0.0
    %446 = vmatpush2.msra.mxu0 0.0
    %447 = vmatprep.subr.mxu0 0.0
    %448 = vmatpush2.msra.mxu0 0.0
    %449 = vmatprep.subr.mxu0 0.0
    %450 = vmatpush2.msra.mxu0 0.0
    %451 = vmatprep.subr.mxu0 0.0
    %452 = vmatpush2.msra.mxu0 0.0
    %453 = vmatprep.subr.mxu0 0.0
    %454 = vmatpush2.msra.mxu0 0.0
    %455 = vmatprep.subr.mxu0 0.0
    %456 = vmatpush2.msra.mxu0 0.0
    %457 = vmatprep.subr.mxu0 0.0
    %458 = vmatpush2.msra.mxu0 0.0
    %459 = vmatprep.mubr.f32.mxu0 0.0
    %v460 = vand.u32 %v44, 4294901760
    %461 = vmatmul.mubr.f32.gmra.mxu0 %v460
    %v462 = vpop.f32.mrf.mxu0
    %v463 = vadd.f32 %v378, %v462
    %v464 = vpop.f32.mrf.mxu0
    %465 = vmatprep.mubr.f32.mxu0 0.0
    %v466 = vand.u32 %v47, 4294901760
    %467 = vmatmul.mubr.f32.gmra.mxu0 %v466
    %v468 = vpop.f32.mrf.mxu0
    %v469 = vadd.f32 %v386, %v468
    %v470 = vpop.f32.mrf.mxu0
    %471 = vdwg.mxu0
    %472 = vmatprep.subr.mxu0 0.0
    %473 = vmatpush1.msra.mxu0 0.0
    %474 = vmatprep.subr.mxu0 0.0
    %475 = vmatpush1.msra.mxu0 0.0
    %476 = vmatprep.subr.mxu0 0.0
    %477 = vmatpush1.msra.mxu0 0.0
    %478 = vmatprep.subr.mxu0 0.0
    %479 = vmatpush1.msra.mxu0 0.0
    %480 = vmatprep.subr.mxu0 0.0
    %481 = vmatpush1.msra.mxu0 0.0
    %482 = vmatprep.subr.mxu0 0.0
    %483 = vmatpush1.msra.mxu0 0.0
    %484 = vmatprep.subr.mxu0 0.0
    %485 = vmatpush1.msra.mxu0 0.0
    %486 = vmatprep.subr.mxu0 0.0
    %487 = vmatpush1.msra.mxu0 0.0
    %488 = vmatprep.subr.mxu0 0.0
    %489 = vmatpush1.msra.mxu0 0.0
    %490 = vmatprep.subr.mxu0 0.0
    %491 = vmatpush1.msra.mxu0 0.0
    %492 = vmatprep.subr.mxu0 0.0
    %493 = vmatpush1.msra.mxu0 0.0
    %494 = vmatprep.subr.mxu0 0.0
    %495 = vmatpush1.msra.mxu0 0.0
    %496 = vmatprep.subr.mxu0 0.0
    %497 = vmatpush1.msra.mxu0 0.0
    %498 = vmatprep.subr.mxu0 0.0
    %499 = vmatpush1.msra.mxu0 0.0
    %500 = vmatprep.subr.mxu0 0.0
    %v501 = vand.u32 %v28, 4294901760
    %502 = vmatpush1.msra.mxu0 %v501
    %503 = vmatprep.subr.mxu0 0.0
    %v504 = vand.u32 %v27, 4294901760
    %505 = vmatpush1.msra.mxu0 %v504
    %506 = vmatprep.subr.mxu0 0.0
    %507 = vmatpush2.msra.mxu0 0.0
    %508 = vmatprep.subr.mxu0 0.0
    %509 = vmatpush2.msra.mxu0 0.0
    %510 = vmatprep.subr.mxu0 0.0
    %511 = vmatpush2.msra.mxu0 0.0
    %512 = vmatprep.subr.mxu0 0.0
    %513 = vmatpush2.msra.mxu0 0.0
    %514 = vmatprep.subr.mxu0 0.0
    %515 = vmatpush2.msra.mxu0 0.0
    %516 = vmatprep.subr.mxu0 0.0
    %517 = vmatpush2.msra.mxu0 0.0
    %518 = vmatprep.subr.mxu0 0.0
    %519 = vmatpush2.msra.mxu0 0.0
    %520 = vmatprep.subr.mxu0 0.0
    %521 = vmatpush2.msra.mxu0 0.0
    %522 = vmatprep.subr.mxu0 0.0
    %523 = vmatpush2.msra.mxu0 0.0
    %524 = vmatprep.subr.mxu0 0.0
    %525 = vmatpush2.msra.mxu0 0.0
    %526 = vmatprep.subr.mxu0 0.0
    %527 = vmatpush2.msra.mxu0 0.0
    %528 = vmatprep.subr.mxu0 0.0
    %529 = vmatpush2.msra.mxu0 0.0
    %530 = vmatprep.subr.mxu0 0.0
    %531 = vmatpush2.msra.mxu0 0.0
    %532 = vmatprep.subr.mxu0 0.0
    %533 = vmatpush2.msra.mxu0 0.0
    %534 = vmatprep.subr.mxu0 0.0
    %535 = vmatpush2.msra.mxu0 0.0
    %536 = vmatprep.subr.mxu0 0.0
    %537 = vmatpush2.msra.mxu0 0.0
    %538 = vmatprep.mubr.f32.mxu0 0.0
    %v539 = vand.u32 %v44, 4294901760
    %540 = vmatmul.mubr.f32.gmra.mxu0 %v539
    %v541 = vpop.f32.mrf.mxu0
    %v542 = vadd.f32 %v463, %v541
    %v543 = vpop.f32.mrf.mxu0
    %544 = vmatprep.mubr.f32.mxu0 0.0
    %v545 = vand.u32 %v47, 4294901760
    %546 = vmatmul.mubr.f32.gmra.mxu0 %v545
    %v547 = vpop.f32.mrf.mxu0
    %v548 = vadd.f32 %v469, %v547
    %v549 = vpop.f32.mrf.mxu0
    %550 = vdwg.mxu0
    %v552 = vrot.slane %v548, 4
    %vm554 = vcmask 1041408
    %v555 = vsel %vm554, %v542, %v552
    %vm556 = vcmask 261120
    %v558 = vsel %vm556, 0.0, 0
    %560 = vmatprep.subr.mxu0 0.0
    %561 = vmatpush1.msra.mxu0 0.0
    %562 = vmatprep.subr.mxu0 0.0
    %563 = vmatpush1.msra.mxu0 0.0
    %564 = vmatprep.subr.mxu0 0.0
    %565 = vmatpush1.msra.mxu0 0.0
    %566 = vmatprep.subr.mxu0 0.0
    %567 = vmatpush1.msra.mxu0 0.0
    %568 = vmatprep.subr.mxu0 0.0
    %569 = vmatpush1.msra.mxu0 0.0
    %570 = vmatprep.subr.mxu0 0.0
    %571 = vmatpush1.msra.mxu0 0.0
    %572 = vmatprep.subr.mxu0 0.0
    %573 = vmatpush1.msra.mxu0 0.0
    %574 = vmatprep.subr.mxu0 0.0
    %575 = vmatpush1.msra.mxu0 0.0
    %576 = vmatprep.subr.mxu0 0.0
    %577 = vmatpush1.msra.mxu0 0.0
    %578 = vmatprep.subr.mxu0 0.0
    %579 = vmatpush1.msra.mxu0 0.0
    %580 = vmatprep.subr.mxu0 0.0
    %581 = vmatpush1.msra.mxu0 0.0
    %582 = vmatprep.subr.mxu0 0.0
    %583 = vmatpush1.msra.mxu0 0.0
    %584 = vmatprep.subr.mxu0 0.0
    %v585 = vand.u32 %v32, 4294901760
    %586 = vmatpush1.msra.mxu0 %v585
    %587 = vmatprep.subr.mxu0 0.0
    %v588 = vand.u32 %v31, 4294901760
    %589 = vmatpush1.msra.mxu0 %v588
    %590 = vmatprep.subr.mxu0 0.0
    %v591 = vand.u32 %v30, 4294901760
    %592 = vmatpush1.msra.mxu0 %v591
    %593 = vmatprep.subr.mxu0 0.0
    %v594 = vand.u32 %v29, 4294901760
    %595 = vmatpush1.msra.mxu0 %v594
    %596 = vmatprep.subr.mxu0 0.0
    %597 = vmatpush2.msra.mxu0 0.0
    %598 = vmatprep.subr.mxu0 0.0
    %599 = vmatpush2.msra.mxu0 0.0
    %600 = vmatprep.subr.mxu0 0.0
    %601 = vmatpush2.msra.mxu0 0.0
    %602 = vmatprep.subr.mxu0 0.0
    %603 = vmatpush2.msra.mxu0 0.0
    %604 = vmatprep.subr.mxu0 0.0
    %605 = vmatpush2.msra.mxu0 0.0
    %606 = vmatprep.subr.mxu0 0.0
    %607 = vmatpush2.msra.mxu0 0.0
    %608 = vmatprep.subr.mxu0 0.0
    %609 = vmatpush2.msra.mxu0 0.0
    %610 = vmatprep.subr.mxu0 0.0
    %611 = vmatpush2.msra.mxu0 0.0
    %612 = vmatprep.subr.mxu0 0.0
    %613 = vmatpush2.msra.mxu0 0.0
    %614 = vmatprep.subr.mxu0 0.0
    %615 = vmatpush2.msra.mxu0 0.0
    %616 = vmatprep.subr.mxu0 0.0
    %617 = vmatpush2.msra.mxu0 0.0
    %618 = vmatprep.subr.mxu0 0.0
    %619 = vmatpush2.msra.mxu0 0.0
    %620 = vmatprep.subr.mxu0 0.0
    %621 = vmatpush2.msra.mxu0 0.0
    %622 = vmatprep.subr.mxu0 0.0
    %623 = vmatpush2.msra.mxu0 0.0
    %624 = vmatprep.subr.mxu0 0.0
    %625 = vmatpush2.msra.mxu0 0.0
    %626 = vmatprep.subr.mxu0 0.0
    %627 = vmatpush2.msra.mxu0 0.0
    %628 = vmatprep.mubr.f32.mxu0 0.0
    %v629 = vand.u32 %v558, 4294901760
    %v630 = vsub.f32 %v558, %v629
    %v631 = vand.u32 %v630, 4294901760
    %v632 = vsub.f32 %v630, %v631
    %v633 = vand.u32 %v632, 4294901760
    %634 = vmatmul.mubr.f32.gmra.mxu0 %v633
    %v635 = vpop.f32.mrf.mxu0
    %v636 = vadd.f32 0.0, %v635
    %v637 = vpop.f32.mrf.mxu0
    %638 = vdwg.mxu0
    %639 = vmatprep.subr.mxu0 0.0
    %640 = vmatpush1.msra.mxu0 0.0
    %641 = vmatprep.subr.mxu0 0.0
    %642 = vmatpush1.msra.mxu0 0.0
    %643 = vmatprep.subr.mxu0 0.0
    %644 = vmatpush1.msra.mxu0 0.0
    %645 = vmatprep.subr.mxu0 0.0
    %646 = vmatpush1.msra.mxu0 0.0
    %647 = vmatprep.subr.mxu0 0.0
    %648 = vmatpush1.msra.mxu0 0.0
    %649 = vmatprep.subr.mxu0 0.0
    %650 = vmatpush1.msra.mxu0 0.0
    %651 = vmatprep.subr.mxu0 0.0
    %652 = vmatpush1.msra.mxu0 0.0
    %653 = vmatprep.subr.mxu0 0.0
    %654 = vmatpush1.msra.mxu0 0.0
    %655 = vmatprep.subr.mxu0 0.0
    %656 = vmatpush1.msra.mxu0 0.0
    %657 = vmatprep.subr.mxu0 0.0
    %658 = vmatpush1.msra.mxu0 0.0
    %659 = vmatprep.subr.mxu0 0.0
    %660 = vmatpush1.msra.mxu0 0.0
    %661 = vmatprep.subr.mxu0 0.0
    %662 = vmatpush1.msra.mxu0 0.0
    %663 = vmatprep.subr.mxu0 0.0
    %v664 = vand.u32 %v32, 4294901760
    %v665 = vsub.f32 %v32, %v664
    %v666 = vand.u32 %v665, 4294901760
    %v667 = vsub.f32 %v665, %v666
    %v668 = vand.u32 %v667, 4294901760
    %669 = vmatpush1.msra.mxu0 %v668
    %670 = vmatprep.subr.mxu0 0.0
    %v671 = vand.u32 %v31, 4294901760
    %v672 = vsub.f32 %v31, %v671
    %v673 = vand.u32 %v672, 4294901760
    %v674 = vsub.f32 %v672, %v673
    %v675 = vand.u32 %v674, 4294901760
    %676 = vmatpush1.msra.mxu0 %v675
    %677 = vmatprep.subr.mxu0 0.0
    %v678 = vand.u32 %v30, 4294901760
    %v679 = vsub.f32 %v30, %v678
    %v680 = vand.u32 %v679, 4294901760
    %v681 = vsub.f32 %v679, %v680
    %v682 = vand.u32 %v681, 4294901760
    %683 = vmatpush1.msra.mxu0 %v682
    %684 = vmatprep.subr.mxu0 0.0
    %v685 = vand.u32 %v29, 4294901760
    %v686 = vsub.f32 %v29, %v685
    %v687 = vand.u32 %v686, 4294901760
    %v688 = vsub.f32 %v686, %v687
    %v689 = vand.u32 %v688, 4294901760
    %690 = vmatpush1.msra.mxu0 %v689
    %691 = vmatprep.subr.mxu0 0.0
    %692 = vmatpush2.msra.mxu0 0.0
    %693 = vmatprep.subr.mxu0 0.0
    %694 = vmatpush2.msra.mxu0 0.0
    %695 = vmatprep.subr.mxu0 0.0
    %696 = vmatpush2.msra.mxu0 0.0
    %697 = vmatprep.subr.mxu0 0.0
    %698 = vmatpush2.msra.mxu0 0.0
    %699 = vmatprep.subr.mxu0 0.0
    %700 = vmatpush2.msra.mxu0 0.0
    %701 = vmatprep.subr.mxu0 0.0
    %702 = vmatpush2.msra.mxu0 0.0
    %703 = vmatprep.subr.mxu0 0.0
    %704 = vmatpush2.msra.mxu0 0.0
    %705 = vmatprep.subr.mxu0 0.0
    %706 = vmatpush2.msra.mxu0 0.0
    %707 = vmatprep.subr.mxu0 0.0
    %708 = vmatpush2.msra.mxu0 0.0
    %709 = vmatprep.subr.mxu0 0.0
    %710 = vmatpush2.msra.mxu0 0.0
    %711 = vmatprep.subr.mxu0 0.0
    %712 = vmatpush2.msra.mxu0 0.0
    %713 = vmatprep.subr.mxu0 0.0
    %714 = vmatpush2.msra.mxu0 0.0
    %715 = vmatprep.subr.mxu0 0.0
    %716 = vmatpush2.msra.mxu0 0.0
    %717 = vmatprep.subr.mxu0 0.0
    %718 = vmatpush2.msra.mxu0 0.0
    %719 = vmatprep.subr.mxu0 0.0
    %720 = vmatpush2.msra.mxu0 0.0
    %721 = vmatprep.subr.mxu0 0.0
    %722 = vmatpush2.msra.mxu0 0.0
    %723 = vmatprep.mubr.f32.mxu0 0.0
    %v724 = vand.u32 %v558, 4294901760
    %725 = vmatmul.mubr.f32.gmra.mxu0 %v724
    %v726 = vpop.f32.mrf.mxu0
    %v727 = vadd.f32 %v636, %v726
    %v728 = vpop.f32.mrf.mxu0
    %729 = vdwg.mxu0
    %730 = vmatprep.subr.mxu0 0.0
    %731 = vmatpush1.msra.mxu0 0.0
    %732 = vmatprep.subr.mxu0 0.0
    %733 = vmatpush1.msra.mxu0 0.0
    %734 = vmatprep.subr.mxu0 0.0
    %735 = vmatpush1.msra.mxu0 0.0
    %736 = vmatprep.subr.mxu0 0.0
    %737 = vmatpush1.msra.mxu0 0.0
    %738 = vmatprep.subr.mxu0 0.0
    %739 = vmatpush1.msra.mxu0 0.0
    %740 = vmatprep.subr.mxu0 0.0
    %741 = vmatpush1.msra.mxu0 0.0
    %742 = vmatprep.subr.mxu0 0.0
    %743 = vmatpush1.msra.mxu0 0.0
    %744 = vmatprep.subr.mxu0 0.0
    %745 = vmatpush1.msra.mxu0 0.0
    %746 = vmatprep.subr.mxu0 0.0
    %747 = vmatpush1.msra.mxu0 0.0
    %748 = vmatprep.subr.mxu0 0.0
    %749 = vmatpush1.msra.mxu0 0.0
    %750 = vmatprep.subr.mxu0 0.0
    %751 = vmatpush1.msra.mxu0 0.0
    %752 = vmatprep.subr.mxu0 0.0
    %753 = vmatpush1.msra.mxu0 0.0
    %754 = vmatprep.subr.mxu0 0.0
    %v755 = vand.u32 %v32, 4294901760
    %v756 = vsub.f32 %v32, %v755
    %757 = vmatpush1.msra.mxu0 %v756
    %758 = vmatprep.subr.mxu0 0.0
    %v759 = vand.u32 %v31, 4294901760
    %v760 = vsub.f32 %v31, %v759
    %761 = vmatpush1.msra.mxu0 %v760
    %762 = vmatprep.subr.mxu0 0.0
    %v763 = vand.u32 %v30, 4294901760
    %v764 = vsub.f32 %v30, %v763
    %765 = vmatpush1.msra.mxu0 %v764
    %766 = vmatprep.subr.mxu0 0.0
    %v767 = vand.u32 %v29, 4294901760
    %v768 = vsub.f32 %v29, %v767
    %769 = vmatpush1.msra.mxu0 %v768
    %770 = vmatprep.subr.mxu0 0.0
    %771 = vmatpush2.msra.mxu0 0.0
    %772 = vmatprep.subr.mxu0 0.0
    %773 = vmatpush2.msra.mxu0 0.0
    %774 = vmatprep.subr.mxu0 0.0
    %775 = vmatpush2.msra.mxu0 0.0
    %776 = vmatprep.subr.mxu0 0.0
    %777 = vmatpush2.msra.mxu0 0.0
    %778 = vmatprep.subr.mxu0 0.0
    %779 = vmatpush2.msra.mxu0 0.0
    %780 = vmatprep.subr.mxu0 0.0
    %781 = vmatpush2.msra.mxu0 0.0
    %782 = vmatprep.subr.mxu0 0.0
    %783 = vmatpush2.msra.mxu0 0.0
    %784 = vmatprep.subr.mxu0 0.0
    %785 = vmatpush2.msra.mxu0 0.0
    %786 = vmatprep.subr.mxu0 0.0
    %787 = vmatpush2.msra.mxu0 0.0
    %788 = vmatprep.subr.mxu0 0.0
    %789 = vmatpush2.msra.mxu0 0.0
    %790 = vmatprep.subr.mxu0 0.0
    %791 = vmatpush2.msra.mxu0 0.0
    %792 = vmatprep.subr.mxu0 0.0
    %793 = vmatpush2.msra.mxu0 0.0
    %794 = vmatprep.subr.mxu0 0.0
    %795 = vmatpush2.msra.mxu0 0.0
    %796 = vmatprep.subr.mxu0 0.0
    %797 = vmatpush2.msra.mxu0 0.0
    %798 = vmatprep.subr.mxu0 0.0
    %799 = vmatpush2.msra.mxu0 0.0
    %800 = vmatprep.subr.mxu0 0.0
    %801 = vmatpush2.msra.mxu0 0.0
    %802 = vmatprep.mubr.f32.mxu0 0.0
    %v803 = vand.u32 %v558, 4294901760
    %v804 = vsub.f32 %v558, %v803
    %805 = vmatmul.mubr.f32.gmra.mxu0 %v804
    %v806 = vpop.f32.mrf.mxu0
    %v807 = vadd.f32 %v727, %v806
    %v808 = vpop.f32.mrf.mxu0
    %809 = vdwg.mxu0
    %810 = vmatprep.subr.mxu0 0.0
    %811 = vmatpush1.msra.mxu0 0.0
    %812 = vmatprep.subr.mxu0 0.0
    %813 = vmatpush1.msra.mxu0 0.0
    %814 = vmatprep.subr.mxu0 0.0
    %815 = vmatpush1.msra.mxu0 0.0
    %816 = vmatprep.subr.mxu0 0.0
    %817 = vmatpush1.msra.mxu0 0.0
    %818 = vmatprep.subr.mxu0 0.0
    %819 = vmatpush1.msra.mxu0 0.0
    %820 = vmatprep.subr.mxu0 0.0
    %821 = vmatpush1.msra.mxu0 0.0
    %822 = vmatprep.subr.mxu0 0.0
    %823 = vmatpush1.msra.mxu0 0.0
    %824 = vmatprep.subr.mxu0 0.0
    %825 = vmatpush1.msra.mxu0 0.0
    %826 = vmatprep.subr.mxu0 0.0
    %827 = vmatpush1.msra.mxu0 0.0
    %828 = vmatprep.subr.mxu0 0.0
    %829 = vmatpush1.msra.mxu0 0.0
    %830 = vmatprep.subr.mxu0 0.0
    %831 = vmatpush1.msra.mxu0 0.0
    %832 = vmatprep.subr.mxu0 0.0
    %833 = vmatpush1.msra.mxu0 0.0
    %834 = vmatprep.subr.mxu0 0.0
    %v835 = vand.u32 %v32, 4294901760
    %836 = vmatpush1.msra.mxu0 %v835
    %837 = vmatprep.subr.mxu0 0.0
    %v838 = vand.u32 %v31, 4294901760
    %839 = vmatpush1.msra.mxu0 %v838
    %840 = vmatprep.subr.mxu0 0.0
    %v841 = vand.u32 %v30, 4294901760
    %842 = vmatpush1.msra.mxu0 %v841
    %843 = vmatprep.subr.mxu0 0.0
    %v844 = vand.u32 %v29, 4294901760
    %845 = vmatpush1.msra.mxu0 %v844
    %846 = vmatprep.subr.mxu0 0.0
    %847 = vmatpush2.msra.mxu0 0.0
    %848 = vmatprep.subr.mxu0 0.0
    %849 = vmatpush2.msra.mxu0 0.0
    %850 = vmatprep.subr.mxu0 0.0
    %851 = vmatpush2.msra.mxu0 0.0
    %852 = vmatprep.subr.mxu0 0.0
    %853 = vmatpush2.msra.mxu0 0.0
    %854 = vmatprep.subr.mxu0 0.0
    %855 = vmatpush2.msra.mxu0 0.0
    %856 = vmatprep.subr.mxu0 0.0
    %857 = vmatpush2.msra.mxu0 0.0
    %858 = vmatprep.subr.mxu0 0.0
    %859 = vmatpush2.msra.mxu0 0.0
    %860 = vmatprep.subr.mxu0 0.0
    %861 = vmatpush2.msra.mxu0 0.0
    %862 = vmatprep.subr.mxu0 0.0
    %863 = vmatpush2.msra.mxu0 0.0
    %864 = vmatprep.subr.mxu0 0.0
    %865 = vmatpush2.msra.mxu0 0.0
    %866 = vmatprep.subr.mxu0 0.0
    %867 = vmatpush2.msra.mxu0 0.0
    %868 = vmatprep.subr.mxu0 0.0
    %869 = vmatpush2.msra.mxu0 0.0
    %870 = vmatprep.subr.mxu0 0.0
    %871 = vmatpush2.msra.mxu0 0.0
    %872 = vmatprep.subr.mxu0 0.0
    %873 = vmatpush2.msra.mxu0 0.0
    %874 = vmatprep.subr.mxu0 0.0
    %875 = vmatpush2.msra.mxu0 0.0
    %876 = vmatprep.subr.mxu0 0.0
    %877 = vmatpush2.msra.mxu0 0.0
    %878 = vmatprep.mubr.f32.mxu0 0.0
    %v879 = vand.u32 %v558, 4294901760
    %v880 = vsub.f32 %v558, %v879
    %v881 = vand.u32 %v880, 4294901760
    %882 = vmatmul.mubr.f32.gmra.mxu0 %v881
    %v883 = vpop.f32.mrf.mxu0
    %v884 = vadd.f32 %v807, %v883
    %v885 = vpop.f32.mrf.mxu0
    %886 = vdwg.mxu0
    %887 = vmatprep.subr.mxu0 0.0
    %888 = vmatpush1.msra.mxu0 0.0
    %889 = vmatprep.subr.mxu0 0.0
    %890 = vmatpush1.msra.mxu0 0.0
    %891 = vmatprep.subr.mxu0 0.0
    %892 = vmatpush1.msra.mxu0 0.0
    %893 = vmatprep.subr.mxu0 0.0
    %894 = vmatpush1.msra.mxu0 0.0
    %895 = vmatprep.subr.mxu0 0.0
    %896 = vmatpush1.msra.mxu0 0.0
    %897 = vmatprep.subr.mxu0 0.0
    %898 = vmatpush1.msra.mxu0 0.0
    %899 = vmatprep.subr.mxu0 0.0
    %900 = vmatpush1.msra.mxu0 0.0
    %901 = vmatprep.subr.mxu0 0.0
    %902 = vmatpush1.msra.mxu0 0.0
    %903 = vmatprep.subr.mxu0 0.0
    %904 = vmatpush1.msra.mxu0 0.0
    %905 = vmatprep.subr.mxu0 0.0
    %906 = vmatpush1.msra.mxu0 0.0
    %907 = vmatprep.subr.mxu0 0.0
    %908 = vmatpush1.msra.mxu0 0.0
    %909 = vmatprep.subr.mxu0 0.0
    %910 = vmatpush1.msra.mxu0 0.0
    %911 = vmatprep.subr.mxu0 0.0
    %v912 = vand.u32 %v32, 4294901760
    %v913 = vsub.f32 %v32, %v912
    %v914 = vand.u32 %v913, 4294901760
    %915 = vmatpush1.msra.mxu0 %v914
    %916 = vmatprep.subr.mxu0 0.0
    %v917 = vand.u32 %v31, 4294901760
    %v918 = vsub.f32 %v31, %v917
    %v919 = vand.u32 %v918, 4294901760
    %920 = vmatpush1.msra.mxu0 %v919
    %921 = vmatprep.subr.mxu0 0.0
    %v922 = vand.u32 %v30, 4294901760
    %v923 = vsub.f32 %v30, %v922
    %v924 = vand.u32 %v923, 4294901760
    %925 = vmatpush1.msra.mxu0 %v924
    %926 = vmatprep.subr.mxu0 0.0
    %v927 = vand.u32 %v29, 4294901760
    %v928 = vsub.f32 %v29, %v927
    %v929 = vand.u32 %v928, 4294901760
    %930 = vmatpush1.msra.mxu0 %v929
    %931 = vmatprep.subr.mxu0 0.0
    %932 = vmatpush2.msra.mxu0 0.0
    %933 = vmatprep.subr.mxu0 0.0
    %934 = vmatpush2.msra.mxu0 0.0
    %935 = vmatprep.subr.mxu0 0.0
    %936 = vmatpush2.msra.mxu0 0.0
    %937 = vmatprep.subr.mxu0 0.0
    %938 = vmatpush2.msra.mxu0 0.0
    %939 = vmatprep.subr.mxu0 0.0
    %940 = vmatpush2.msra.mxu0 0.0
    %941 = vmatprep.subr.mxu0 0.0
    %942 = vmatpush2.msra.mxu0 0.0
    %943 = vmatprep.subr.mxu0 0.0
    %944 = vmatpush2.msra.mxu0 0.0
    %945 = vmatprep.subr.mxu0 0.0
    %946 = vmatpush2.msra.mxu0 0.0
    %947 = vmatprep.subr.mxu0 0.0
    %948 = vmatpush2.msra.mxu0 0.0
    %949 = vmatprep.subr.mxu0 0.0
    %950 = vmatpush2.msra.mxu0 0.0
    %951 = vmatprep.subr.mxu0 0.0
    %952 = vmatpush2.msra.mxu0 0.0
    %953 = vmatprep.subr.mxu0 0.0
    %954 = vmatpush2.msra.mxu0 0.0
    %955 = vmatprep.subr.mxu0 0.0
    %956 = vmatpush2.msra.mxu0 0.0
    %957 = vmatprep.subr.mxu0 0.0
    %958 = vmatpush2.msra.mxu0 0.0
    %959 = vmatprep.subr.mxu0 0.0
    %960 = vmatpush2.msra.mxu0 0.0
    %961 = vmatprep.subr.mxu0 0.0
    %962 = vmatpush2.msra.mxu0 0.0
    %963 = vmatprep.mubr.f32.mxu0 0.0
    %v964 = vand.u32 %v558, 4294901760
    %965 = vmatmul.mubr.f32.gmra.mxu0 %v964
    %v966 = vpop.f32.mrf.mxu0
    %v967 = vadd.f32 %v884, %v966
    %v968 = vpop.f32.mrf.mxu0
    %969 = vdwg.mxu0
    %970 = vmatprep.subr.mxu0 0.0
    %971 = vmatpush1.msra.mxu0 0.0
    %972 = vmatprep.subr.mxu0 0.0
    %973 = vmatpush1.msra.mxu0 0.0
    %974 = vmatprep.subr.mxu0 0.0
    %975 = vmatpush1.msra.mxu0 0.0
    %976 = vmatprep.subr.mxu0 0.0
    %977 = vmatpush1.msra.mxu0 0.0
    %978 = vmatprep.subr.mxu0 0.0
    %979 = vmatpush1.msra.mxu0 0.0
    %980 = vmatprep.subr.mxu0 0.0
    %981 = vmatpush1.msra.mxu0 0.0
    %982 = vmatprep.subr.mxu0 0.0
    %983 = vmatpush1.msra.mxu0 0.0
    %984 = vmatprep.subr.mxu0 0.0
    %985 = vmatpush1.msra.mxu0 0.0
    %986 = vmatprep.subr.mxu0 0.0
    %987 = vmatpush1.msra.mxu0 0.0
    %988 = vmatprep.subr.mxu0 0.0
    %989 = vmatpush1.msra.mxu0 0.0
    %990 = vmatprep.subr.mxu0 0.0
    %991 = vmatpush1.msra.mxu0 0.0
    %992 = vmatprep.subr.mxu0 0.0
    %993 = vmatpush1.msra.mxu0 0.0
    %994 = vmatprep.subr.mxu0 0.0
    %v995 = vand.u32 %v32, 4294901760
    %996 = vmatpush1.msra.mxu0 %v995
    %997 = vmatprep.subr.mxu0 0.0
    %v998 = vand.u32 %v31, 4294901760
    %999 = vmatpush1.msra.mxu0 %v998
    %1000 = vmatprep.subr.mxu0 0.0
    %v1001 = vand.u32 %v30, 4294901760
    %1002 = vmatpush1.msra.mxu0 %v1001
    %1003 = vmatprep.subr.mxu0 0.0
    %v1004 = vand.u32 %v29, 4294901760
    %1005 = vmatpush1.msra.mxu0 %v1004
    %1006 = vmatprep.subr.mxu0 0.0
    %1007 = vmatpush2.msra.mxu0 0.0
    %1008 = vmatprep.subr.mxu0 0.0
    %1009 = vmatpush2.msra.mxu0 0.0
    %1010 = vmatprep.subr.mxu0 0.0
    %1011 = vmatpush2.msra.mxu0 0.0
    %1012 = vmatprep.subr.mxu0 0.0
    %1013 = vmatpush2.msra.mxu0 0.0
    %1014 = vmatprep.subr.mxu0 0.0
    %1015 = vmatpush2.msra.mxu0 0.0
    %1016 = vmatprep.subr.mxu0 0.0
    %1017 = vmatpush2.msra.mxu0 0.0
    %1018 = vmatprep.subr.mxu0 0.0
    %1019 = vmatpush2.msra.mxu0 0.0
    %1020 = vmatprep.subr.mxu0 0.0
    %1021 = vmatpush2.msra.mxu0 0.0
    %1022 = vmatprep.subr.mxu0 0.0
    %1023 = vmatpush2.msra.mxu0 0.0
    %1024 = vmatprep.subr.mxu0 0.0
    %1025 = vmatpush2.msra.mxu0 0.0
    %1026 = vmatprep.subr.mxu0 0.0
    %1027 = vmatpush2.msra.mxu0 0.0
    %1028 = vmatprep.subr.mxu0 0.0
    %1029 = vmatpush2.msra.mxu0 0.0
    %1030 = vmatprep.subr.mxu0 0.0
    %1031 = vmatpush2.msra.mxu0 0.0
    %1032 = vmatprep.subr.mxu0 0.0
    %1033 = vmatpush2.msra.mxu0 0.0
    %1034 = vmatprep.subr.mxu0 0.0
    %1035 = vmatpush2.msra.mxu0 0.0
    %1036 = vmatprep.subr.mxu0 0.0
    %1037 = vmatpush2.msra.mxu0 0.0
    %1038 = vmatprep.mubr.f32.mxu0 0.0
    %v1039 = vand.u32 %v558, 4294901760
    %1040 = vmatmul.mubr.f32.gmra.mxu0 %v1039
    %v1041 = vpop.f32.mrf.mxu0
    %v1042 = vadd.f32 %v967, %v1041
    %v1043 = vpop.f32.mrf.mxu0
    %1044 = vdwg.mxu0
    %v1045 = vadd.f32 %v555, %v1042
    %v1046 = vtanh.pop %v1045
    %v1047 = vadd.f32 %v1046, 1.0
    %v1048 = vmul.f32 %v1047, 0.5
    %v1049 = vmul.f32 %v1048, 0.0
    %1051 = vrot.lane.b32.xlu0 %v1046, 64
    %v1052 = vpop.permute.xlu0 %1051
    %v1054 = vmul.f32 %v1048, %v1052
    %1056 = vrot.lane.b32.xlu0 %v1054, 32
    %v1057 = vpop.permute.xlu0 %1056
    %v1059 = vadd.f32 %v1049, %v1057
    %v1060 = vtanh.pop %v1059
    %1062 = vrot.lane.b32.xlu0 %v1060, 64
    %v1063 = vpop.permute.xlu0 %1062
    %v1065 = vmul.f32 %v1048, %v1063
    %1067 = vrot.lane.b32.xlu0 %v1065, 32
    %v1068 = vpop.permute.xlu0 %1067
    %vm1070 = vcmask 257024
    %1071 = vst.msk [vmem:[#allocation2] sm:$0xf] %vm1070, %v1068
    %v1073 = vrot.slane %v542, 2
    %v1075 = vrot.slane %v548, 2
    %v1077 = vsel %vm554, %v1073, %v1075
    %v1078 = vsel %vm556, %v1068, 0
    %1080 = vmatprep.subr.mxu0 0.0
    %1081 = vmatpush1.msra.mxu0 0.0
    %1082 = vmatprep.subr.mxu0 0.0
    %1083 = vmatpush1.msra.mxu0 0.0
    %1084 = vmatprep.subr.mxu0 0.0
    %1085 = vmatpush1.msra.mxu0 0.0
    %1086 = vmatprep.subr.mxu0 0.0
    %1087 = vmatpush1.msra.mxu0 0.0
    %1088 = vmatprep.subr.mxu0 0.0
    %1089 = vmatpush1.msra.mxu0 0.0
    %1090 = vmatprep.subr.mxu0 0.0
    %1091 = vmatpush1.msra.mxu0 0.0
    %1092 = vmatprep.subr.mxu0 0.0
    %1093 = vmatpush1.msra.mxu0 0.0
    %1094 = vmatprep.subr.mxu0 0.0
    %1095 = vmatpush1.msra.mxu0 0.0
    %1096 = vmatprep.subr.mxu0 0.0
    %1097 = vmatpush1.msra.mxu0 0.0
    %1098 = vmatprep.subr.mxu0 0.0
    %1099 = vmatpush1.msra.mxu0 0.0
    %1100 = vmatprep.subr.mxu0 0.0
    %1101 = vmatpush1.msra.mxu0 0.0
    %1102 = vmatprep.subr.mxu0 0.0
    %1103 = vmatpush1.msra.mxu0 0.0
    %1104 = vmatprep.subr.mxu0 0.0
    %v1105 = vand.u32 %v32, 4294901760
    %1106 = vmatpush1.msra.mxu0 %v1105
    %1107 = vmatprep.subr.mxu0 0.0
    %v1108 = vand.u32 %v31, 4294901760
    %1109 = vmatpush1.msra.mxu0 %v1108
    %1110 = vmatprep.subr.mxu0 0.0
    %v1111 = vand.u32 %v30, 4294901760
    %1112 = vmatpush1.msra.mxu0 %v1111
    %1113 = vmatprep.subr.mxu0 0.0
    %v1114 = vand.u32 %v29, 4294901760
    %1115 = vmatpush1.msra.mxu0 %v1114
    %1116 = vmatprep.subr.mxu0 0.0
    %1117 = vmatpush2.msra.mxu0 0.0
    %1118 = vmatprep.subr.mxu0 0.0
    %1119 = vmatpush2.msra.mxu0 0.0
    %1120 = vmatprep.subr.mxu0 0.0
    %1121 = vmatpush2.msra.mxu0 0.0
    %1122 = vmatprep.subr.mxu0 0.0
    %1123 = vmatpush2.msra.mxu0 0.0
    %1124 = vmatprep.subr.mxu0 0.0
    %1125 = vmatpush2.msra.mxu0 0.0
    %1126 = vmatprep.subr.mxu0 0.0
    %1127 = vmatpush2.msra.mxu0 0.0
    %1128 = vmatprep.subr.mxu0 0.0
    %1129 = vmatpush2.msra.mxu0 0.0
    %1130 = vmatprep.subr.mxu0 0.0
    %1131 = vmatpush2.msra.mxu0 0.0
    %1132 = vmatprep.subr.mxu0 0.0
    %1133 = vmatpush2.msra.mxu0 0.0
    %1134 = vmatprep.subr.mxu0 0.0
    %1135 = vmatpush2.msra.mxu0 0.0
    %1136 = vmatprep.subr.mxu0 0.0
    %1137 = vmatpush2.msra.mxu0 0.0
    %1138 = vmatprep.subr.mxu0 0.0
    %1139 = vmatpush2.msra.mxu0 0.0
    %1140 = vmatprep.subr.mxu0 0.0
    %1141 = vmatpush2.msra.mxu0 0.0
    %1142 = vmatprep.subr.mxu0 0.0
    %1143 = vmatpush2.msra.mxu0 0.0
    %1144 = vmatprep.subr.mxu0 0.0
    %1145 = vmatpush2.msra.mxu0 0.0
    %1146 = vmatprep.subr.mxu0 0.0
    %1147 = vmatpush2.msra.mxu0 0.0
    %1148 = vmatprep.mubr.f32.mxu0 0.0
    %v1149 = vand.u32 %v1078, 4294901760
    %v1150 = vsub.f32 %v1078, %v1149
    %v1151 = vand.u32 %v1150, 4294901760
    %v1152 = vsub.f32 %v1150, %v1151
    %v1153 = vand.u32 %v1152, 4294901760
    %1154 = vmatmul.mubr.f32.gmra.mxu0 %v1153
    %v1155 = vpop.f32.mrf.mxu0
    %v1156 = vadd.f32 0.0, %v1155
    %v1157 = vpop.f32.mrf.mxu0
    %1158 = vdwg.mxu0
    %1159 = vmatprep.subr.mxu0 0.0
    %1160 = vmatpush1.msra.mxu0 0.0
    %1161 = vmatprep.subr.mxu0 0.0
    %1162 = vmatpush1.msra.mxu0 0.0
    %1163 = vmatprep.subr.mxu0 0.0
    %1164 = vmatpush1.msra.mxu0 0.0
    %1165 = vmatprep.subr.mxu0 0.0
    %1166 = vmatpush1.msra.mxu0 0.0
    %1167 = vmatprep.subr.mxu0 0.0
    %1168 = vmatpush1.msra.mxu0 0.0
    %1169 = vmatprep.subr.mxu0 0.0
    %1170 = vmatpush1.msra.mxu0 0.0
    %1171 = vmatprep.subr.mxu0 0.0
    %1172 = vmatpush1.msra.mxu0 0.0
    %1173 = vmatprep.subr.mxu0 0.0
    %1174 = vmatpush1.msra.mxu0 0.0
    %1175 = vmatprep.subr.mxu0 0.0
    %1176 = vmatpush1.msra.mxu0 0.0
    %1177 = vmatprep.subr.mxu0 0.0
    %1178 = vmatpush1.msra.mxu0 0.0
    %1179 = vmatprep.subr.mxu0 0.0
    %1180 = vmatpush1.msra.mxu0 0.0
    %1181 = vmatprep.subr.mxu0 0.0
    %1182 = vmatpush1.msra.mxu0 0.0
    %1183 = vmatprep.subr.mxu0 0.0
    %v1184 = vand.u32 %v32, 4294901760
    %v1185 = vsub.f32 %v32, %v1184
    %v1186 = vand.u32 %v1185, 4294901760
    %v1187 = vsub.f32 %v1185, %v1186
    %v1188 = vand.u32 %v1187, 4294901760
    %1189 = vmatpush1.msra.mxu0 %v1188
    %1190 = vmatprep.subr.mxu0 0.0
    %v1191 = vand.u32 %v31, 4294901760
    %v1192 = vsub.f32 %v31, %v1191
    %v1193 = vand.u32 %v1192, 4294901760
    %v1194 = vsub.f32 %v1192, %v1193
    %v1195 = vand.u32 %v1194, 4294901760
    %1196 = vmatpush1.msra.mxu0 %v1195
    %1197 = vmatprep.subr.mxu0 0.0
    %v1198 = vand.u32 %v30, 4294901760
    %v1199 = vsub.f32 %v30, %v1198
    %v1200 = vand.u32 %v1199, 4294901760
    %v1201 = vsub.f32 %v1199, %v1200
    %v1202 = vand.u32 %v1201, 4294901760
    %1203 = vmatpush1.msra.mxu0 %v1202
    %1204 = vmatprep.subr.mxu0 0.0
    %v1205 = vand.u32 %v29, 4294901760
    %v1206 = vsub.f32 %v29, %v1205
    %v1207 = vand.u32 %v1206, 4294901760
    %v1208 = vsub.f32 %v1206, %v1207
    %v1209 = vand.u32 %v1208, 4294901760
    %1210 = vmatpush1.msra.mxu0 %v1209
    %1211 = vmatprep.subr.mxu0 0.0
    %1212 = vmatpush2.msra.mxu0 0.0
    %1213 = vmatprep.subr.mxu0 0.0
    %1214 = vmatpush2.msra.mxu0 0.0
    %1215 = vmatprep.subr.mxu0 0.0
    %1216 = vmatpush2.msra.mxu0 0.0
    %1217 = vmatprep.subr.mxu0 0.0
    %1218 = vmatpush2.msra.mxu0 0.0
    %1219 = vmatprep.subr.mxu0 0.0
    %1220 = vmatpush2.msra.mxu0 0.0
    %1221 = vmatprep.subr.mxu0 0.0
    %1222 = vmatpush2.msra.mxu0 0.0
    %1223 = vmatprep.subr.mxu0 0.0
    %1224 = vmatpush2.msra.mxu0 0.0
    %1225 = vmatprep.subr.mxu0 0.0
    %1226 = vmatpush2.msra.mxu0 0.0
    %1227 = vmatprep.subr.mxu0 0.0
    %1228 = vmatpush2.msra.mxu0 0.0
    %1229 = vmatprep.subr.mxu0 0.0
    %1230 = vmatpush2.msra.mxu0 0.0
    %1231 = vmatprep.subr.mxu0 0.0
    %1232 = vmatpush2.msra.mxu0 0.0
    %1233 = vmatprep.subr.mxu0 0.0
    %1234 = vmatpush2.msra.mxu0 0.0
    %1235 = vmatprep.subr.mxu0 0.0
    %1236 = vmatpush2.msra.mxu0 0.0
    %1237 = vmatprep.subr.mxu0 0.0
    %1238 = vmatpush2.msra.mxu0 0.0
    %1239 = vmatprep.subr.mxu0 0.0
    %1240 = vmatpush2.msra.mxu0 0.0
    %1241 = vmatprep.subr.mxu0 0.0
    %1242 = vmatpush2.msra.mxu0 0.0
    %1243 = vmatprep.mubr.f32.mxu0 0.0
    %v1244 = vand.u32 %v1078, 4294901760
    %1245 = vmatmul.mubr.f32.gmra.mxu0 %v1244
    %v1246 = vpop.f32.mrf.mxu0
    %v1247 = vadd.f32 %v1156, %v1246
    %v1248 = vpop.f32.mrf.mxu0
    %1249 = vdwg.mxu0
    %1250 = vmatprep.subr.mxu0 0.0
    %1251 = vmatpush1.msra.mxu0 0.0
    %1252 = vmatprep.subr.mxu0 0.0
    %1253 = vmatpush1.msra.mxu0 0.0
    %1254 = vmatprep.subr.mxu0 0.0
    %1255 = vmatpush1.msra.mxu0 0.0
    %1256 = vmatprep.subr.mxu0 0.0
    %1257 = vmatpush1.msra.mxu0 0.0
    %1258 = vmatprep.subr.mxu0 0.0
    %1259 = vmatpush1.msra.mxu0 0.0
    %1260 = vmatprep.subr.mxu0 0.0
    %1261 = vmatpush1.msra.mxu0 0.0
    %1262 = vmatprep.subr.mxu0 0.0
    %1263 = vmatpush1.msra.mxu0 0.0
    %1264 = vmatprep.subr.mxu0 0.0
    %1265 = vmatpush1.msra.mxu0 0.0
    %1266 = vmatprep.subr.mxu0 0.0
    %1267 = vmatpush1.msra.mxu0 0.0
    %1268 = vmatprep.subr.mxu0 0.0
    %1269 = vmatpush1.msra.mxu0 0.0
    %1270 = vmatprep.subr.mxu0 0.0
    %1271 = vmatpush1.msra.mxu0 0.0
    %1272 = vmatprep.subr.mxu0 0.0
    %1273 = vmatpush1.msra.mxu0 0.0
    %1274 = vmatprep.subr.mxu0 0.0
    %v1275 = vand.u32 %v32, 4294901760
    %v1276 = vsub.f32 %v32, %v1275
    %1277 = vmatpush1.msra.mxu0 %v1276
    %1278 = vmatprep.subr.mxu0 0.0
    %v1279 = vand.u32 %v31, 4294901760
    %v1280 = vsub.f32 %v31, %v1279
    %1281 = vmatpush1.msra.mxu0 %v1280
    %1282 = vmatprep.subr.mxu0 0.0
    %v1283 = vand.u32 %v30, 4294901760
    %v1284 = vsub.f32 %v30, %v1283
    %1285 = vmatpush1.msra.mxu0 %v1284
    %1286 = vmatprep.subr.mxu0 0.0
    %v1287 = vand.u32 %v29, 4294901760
    %v1288 = vsub.f32 %v29, %v1287
    %1289 = vmatpush1.msra.mxu0 %v1288
    %1290 = vmatprep.subr.mxu0 0.0
    %1291 = vmatpush2.msra.mxu0 0.0
    %1292 = vmatprep.subr.mxu0 0.0
    %1293 = vmatpush2.msra.mxu0 0.0
    %1294 = vmatprep.subr.mxu0 0.0
    %1295 = vmatpush2.msra.mxu0 0.0
    %1296 = vmatprep.subr.mxu0 0.0
    %1297 = vmatpush2.msra.mxu0 0.0
    %1298 = vmatprep.subr.mxu0 0.0
    %1299 = vmatpush2.msra.mxu0 0.0
    %1300 = vmatprep.subr.mxu0 0.0
    %1301 = vmatpush2.msra.mxu0 0.0
    %1302 = vmatprep.subr.mxu0 0.0
    %1303 = vmatpush2.msra.mxu0 0.0
    %1304 = vmatprep.subr.mxu0 0.0
    %1305 = vmatpush2.msra.mxu0 0.0
    %1306 = vmatprep.subr.mxu0 0.0
    %1307 = vmatpush2.msra.mxu0 0.0
    %1308 = vmatprep.subr.mxu0 0.0
    %1309 = vmatpush2.msra.mxu0 0.0
    %1310 = vmatprep.subr.mxu0 0.0
    %1311 = vmatpush2.msra.mxu0 0.0
    %1312 = vmatprep.subr.mxu0 0.0
    %1313 = vmatpush2.msra.mxu0 0.0
    %1314 = vmatprep.subr.mxu0 0.0
    %1315 = vmatpush2.msra.mxu0 0.0
    %1316 = vmatprep.subr.mxu0 0.0
    %1317 = vmatpush2.msra.mxu0 0.0
    %1318 = vmatprep.subr.mxu0 0.0
    %1319 = vmatpush2.msra.mxu0 0.0
    %1320 = vmatprep.subr.mxu0 0.0
    %1321 = vmatpush2.msra.mxu0 0.0
    %1322 = vmatprep.mubr.f32.mxu0 0.0
    %v1323 = vand.u32 %v1078, 4294901760
    %v1324 = vsub.f32 %v1078, %v1323
    %1325 = vmatmul.mubr.f32.gmra.mxu0 %v1324
    %v1326 = vpop.f32.mrf.mxu0
    %v1327 = vadd.f32 %v1247, %v1326
    %v1328 = vpop.f32.mrf.mxu0
    %1329 = vdwg.mxu0
    %1330 = vmatprep.subr.mxu0 0.0
    %1331 = vmatpush1.msra.mxu0 0.0
    %1332 = vmatprep.subr.mxu0 0.0
    %1333 = vmatpush1.msra.mxu0 0.0
    %1334 = vmatprep.subr.mxu0 0.0
    %1335 = vmatpush1.msra.mxu0 0.0
    %1336 = vmatprep.subr.mxu0 0.0
    %1337 = vmatpush1.msra.mxu0 0.0
    %1338 = vmatprep.subr.mxu0 0.0
    %1339 = vmatpush1.msra.mxu0 0.0
    %1340 = vmatprep.subr.mxu0 0.0
    %1341 = vmatpush1.msra.mxu0 0.0
    %1342 = vmatprep.subr.mxu0 0.0
    %1343 = vmatpush1.msra.mxu0 0.0
    %1344 = vmatprep.subr.mxu0 0.0
    %1345 = vmatpush1.msra.mxu0 0.0
    %1346 = vmatprep.subr.mxu0 0.0
    %1347 = vmatpush1.msra.mxu0 0.0
    %1348 = vmatprep.subr.mxu0 0.0
    %1349 = vmatpush1.msra.mxu0 0.0
    %1350 = vmatprep.subr.mxu0 0.0
    %1351 = vmatpush1.msra.mxu0 0.0
    %1352 = vmatprep.subr.mxu0 0.0
    %1353 = vmatpush1.msra.mxu0 0.0
    %1354 = vmatprep.subr.mxu0 0.0
    %v1355 = vand.u32 %v32, 4294901760
    %1356 = vmatpush1.msra.mxu0 %v1355
    %1357 = vmatprep.subr.mxu0 0.0
    %v1358 = vand.u32 %v31, 4294901760
    %1359 = vmatpush1.msra.mxu0 %v1358
    %1360 = vmatprep.subr.mxu0 0.0
    %v1361 = vand.u32 %v30, 4294901760
    %1362 = vmatpush1.msra.mxu0 %v1361
    %1363 = vmatprep.subr.mxu0 0.0
    %v1364 = vand.u32 %v29, 4294901760
    %1365 = vmatpush1.msra.mxu0 %v1364
    %1366 = vmatprep.subr.mxu0 0.0
    %1367 = vmatpush2.msra.mxu0 0.0
    %1368 = vmatprep.subr.mxu0 0.0
    %1369 = vmatpush2.msra.mxu0 0.0
    %1370 = vmatprep.subr.mxu0 0.0
    %1371 = vmatpush2.msra.mxu0 0.0
    %1372 = vmatprep.subr.mxu0 0.0
    %1373 = vmatpush2.msra.mxu0 0.0
    %1374 = vmatprep.subr.mxu0 0.0
    %1375 = vmatpush2.msra.mxu0 0.0
    %1376 = vmatprep.subr.mxu0 0.0
    %1377 = vmatpush2.msra.mxu0 0.0
    %1378 = vmatprep.subr.mxu0 0.0
    %1379 = vmatpush2.msra.mxu0 0.0
    %1380 = vmatprep.subr.mxu0 0.0
    %1381 = vmatpush2.msra.mxu0 0.0
    %1382 = vmatprep.subr.mxu0 0.0
    %1383 = vmatpush2.msra.mxu0 0.0
    %1384 = vmatprep.subr.mxu0 0.0
    %1385 = vmatpush2.msra.mxu0 0.0
    %1386 = vmatprep.subr.mxu0 0.0
    %1387 = vmatpush2.msra.mxu0 0.0
    %1388 = vmatprep.subr.mxu0 0.0
    %1389 = vmatpush2.msra.mxu0 0.0
    %1390 = vmatprep.subr.mxu0 0.0
    %1391 = vmatpush2.msra.mxu0 0.0
    %1392 = vmatprep.subr.mxu0 0.0
    %1393 = vmatpush2.msra.mxu0 0.0
    %1394 = vmatprep.subr.mxu0 0.0
    %1395 = vmatpush2.msra.mxu0 0.0
    %1396 = vmatprep.subr.mxu0 0.0
    %1397 = vmatpush2.msra.mxu0 0.0
    %1398 = vmatprep.mubr.f32.mxu0 0.0
    %v1399 = vand.u32 %v1078, 4294901760
    %v1400 = vsub.f32 %v1078, %v1399
    %v1401 = vand.u32 %v1400, 4294901760
    %1402 = vmatmul.mubr.f32.gmra.mxu0 %v1401
    %v1403 = vpop.f32.mrf.mxu0
    %v1404 = vadd.f32 %v1327, %v1403
    %v1405 = vpop.f32.mrf.mxu0
    %1406 = vdwg.mxu0
    %1407 = vmatprep.subr.mxu0 0.0
    %1408 = vmatpush1.msra.mxu0 0.0
    %1409 = vmatprep.subr.mxu0 0.0
    %1410 = vmatpush1.msra.mxu0 0.0
    %1411 = vmatprep.subr.mxu0 0.0
    %1412 = vmatpush1.msra.mxu0 0.0
    %1413 = vmatprep.subr.mxu0 0.0
    %1414 = vmatpush1.msra.mxu0 0.0
    %1415 = vmatprep.subr.mxu0 0.0
    %1416 = vmatpush1.msra.mxu0 0.0
    %1417 = vmatprep.subr.mxu0 0.0
    %1418 = vmatpush1.msra.mxu0 0.0
    %1419 = vmatprep.subr.mxu0 0.0
    %1420 = vmatpush1.msra.mxu0 0.0
    %1421 = vmatprep.subr.mxu0 0.0
    %1422 = vmatpush1.msra.mxu0 0.0
    %1423 = vmatprep.subr.mxu0 0.0
    %1424 = vmatpush1.msra.mxu0 0.0
    %1425 = vmatprep.subr.mxu0 0.0
    %1426 = vmatpush1.msra.mxu0 0.0
    %1427 = vmatprep.subr.mxu0 0.0
    %1428 = vmatpush1.msra.mxu0 0.0
    %1429 = vmatprep.subr.mxu0 0.0
    %1430 = vmatpush1.msra.mxu0 0.0
    %1431 = vmatprep.subr.mxu0 0.0
    %v1432 = vand.u32 %v32, 4294901760
    %v1433 = vsub.f32 %v32, %v1432
    %v1434 = vand.u32 %v1433, 4294901760
    %1435 = vmatpush1.msra.mxu0 %v1434
    %1436 = vmatprep.subr.mxu0 0.0
    %v1437 = vand.u32 %v31, 4294901760
    %v1438 = vsub.f32 %v31, %v1437
    %v1439 = vand.u32 %v1438, 4294901760
    %1440 = vmatpush1.msra.mxu0 %v1439
    %1441 = vmatprep.subr.mxu0 0.0
    %v1442 = vand.u32 %v30, 4294901760
    %v1443 = vsub.f32 %v30, %v1442
    %v1444 = vand.u32 %v1443, 4294901760
    %1445 = vmatpush1.msra.mxu0 %v1444
    %1446 = vmatprep.subr.mxu0 0.0
    %v1447 = vand.u32 %v29, 4294901760
    %v1448 = vsub.f32 %v29, %v1447
    %v1449 = vand.u32 %v1448, 4294901760
    %1450 = vmatpush1.msra.mxu0 %v1449
    %1451 = vmatprep.subr.mxu0 0.0
    %1452 = vmatpush2.msra.mxu0 0.0
    %1453 = vmatprep.subr.mxu0 0.0
    %1454 = vmatpush2.msra.mxu0 0.0
    %1455 = vmatprep.subr.mxu0 0.0
    %1456 = vmatpush2.msra.mxu0 0.0
    %1457 = vmatprep.subr.mxu0 0.0
    %1458 = vmatpush2.msra.mxu0 0.0
    %1459 = vmatprep.subr.mxu0 0.0
    %1460 = vmatpush2.msra.mxu0 0.0
    %1461 = vmatprep.subr.mxu0 0.0
    %1462 = vmatpush2.msra.mxu0 0.0
    %1463 = vmatprep.subr.mxu0 0.0
    %1464 = vmatpush2.msra.mxu0 0.0
    %1465 = vmatprep.subr.mxu0 0.0
    %1466 = vmatpush2.msra.mxu0 0.0
    %1467 = vmatprep.subr.mxu0 0.0
    %1468 = vmatpush2.msra.mxu0 0.0
    %1469 = vmatprep.subr.mxu0 0.0
    %1470 = vmatpush2.msra.mxu0 0.0
    %1471 = vmatprep.subr.mxu0 0.0
    %1472 = vmatpush2.msra.mxu0 0.0
    %1473 = vmatprep.subr.mxu0 0.0
    %1474 = vmatpush2.msra.mxu0 0.0
    %1475 = vmatprep.subr.mxu0 0.0
    %1476 = vmatpush2.msra.mxu0 0.0
    %1477 = vmatprep.subr.mxu0 0.0
    %1478 = vmatpush2.msra.mxu0 0.0
    %1479 = vmatprep.subr.mxu0 0.0
    %1480 = vmatpush2.msra.mxu0 0.0
    %1481 = vmatprep.subr.mxu0 0.0
    %1482 = vmatpush2.msra.mxu0 0.0
    %1483 = vmatprep.mubr.f32.mxu0 0.0
    %v1484 = vand.u32 %v1078, 4294901760
    %1485 = vmatmul.mubr.f32.gmra.mxu0 %v1484
    %v1486 = vpop.f32.mrf.mxu0
    %v1487 = vadd.f32 %v1404, %v1486
    %v1488 = vpop.f32.mrf.mxu0
    %1489 = vdwg.mxu0
    %1490 = vmatprep.subr.mxu0 0.0
    %1491 = vmatpush1.msra.mxu0 0.0
    %1492 = vmatprep.subr.mxu0 0.0
    %1493 = vmatpush1.msra.mxu0 0.0
    %1494 = vmatprep.subr.mxu0 0.0
    %1495 = vmatpush1.msra.mxu0 0.0
    %1496 = vmatprep.subr.mxu0 0.0
    %1497 = vmatpush1.msra.mxu0 0.0
    %1498 = vmatprep.subr.mxu0 0.0
    %1499 = vmatpush1.msra.mxu0 0.0
    %1500 = vmatprep.subr.mxu0 0.0
    %1501 = vmatpush1.msra.mxu0 0.0
    %1502 = vmatprep.subr.mxu0 0.0
    %1503 = vmatpush1.msra.mxu0 0.0
    %1504 = vmatprep.subr.mxu0 0.0
    %1505 = vmatpush1.msra.mxu0 0.0
    %1506 = vmatprep.subr.mxu0 0.0
    %1507 = vmatpush1.msra.mxu0 0.0
    %1508 = vmatprep.subr.mxu0 0.0
    %1509 = vmatpush1.msra.mxu0 0.0
    %1510 = vmatprep.subr.mxu0 0.0
    %1511 = vmatpush1.msra.mxu0 0.0
    %1512 = vmatprep.subr.mxu0 0.0
    %1513 = vmatpush1.msra.mxu0 0.0
    %1514 = vmatprep.subr.mxu0 0.0
    %v1515 = vand.u32 %v32, 4294901760
    %1516 = vmatpush1.msra.mxu0 %v1515
    %1517 = vmatprep.subr.mxu0 0.0
    %v1518 = vand.u32 %v31, 4294901760
    %1519 = vmatpush1.msra.mxu0 %v1518
    %1520 = vmatprep.subr.mxu0 0.0
    %v1521 = vand.u32 %v30, 4294901760
    %1522 = vmatpush1.msra.mxu0 %v1521
    %1523 = vmatprep.subr.mxu0 0.0
    %v1524 = vand.u32 %v29, 4294901760
    %1525 = vmatpush1.msra.mxu0 %v1524
    %1526 = vmatprep.subr.mxu0 0.0
    %1527 = vmatpush2.msra.mxu0 0.0
    %1528 = vmatprep.subr.mxu0 0.0
    %1529 = vmatpush2.msra.mxu0 0.0
    %1530 = vmatprep.subr.mxu0 0.0
    %1531 = vmatpush2.msra.mxu0 0.0
    %1532 = vmatprep.subr.mxu0 0.0
    %1533 = vmatpush2.msra.mxu0 0.0
    %1534 = vmatprep.subr.mxu0 0.0
    %1535 = vmatpush2.msra.mxu0 0.0
    %1536 = vmatprep.subr.mxu0 0.0
    %1537 = vmatpush2.msra.mxu0 0.0
    %1538 = vmatprep.subr.mxu0 0.0
    %1539 = vmatpush2.msra.mxu0 0.0
    %1540 = vmatprep.subr.mxu0 0.0
    %1541 = vmatpush2.msra.mxu0 0.0
    %1542 = vmatprep.subr.mxu0 0.0
    %1543 = vmatpush2.msra.mxu0 0.0
    %1544 = vmatprep.subr.mxu0 0.0
    %1545 = vmatpush2.msra.mxu0 0.0
    %1546 = vmatprep.subr.mxu0 0.0
    %1547 = vmatpush2.msra.mxu0 0.0
    %1548 = vmatprep.subr.mxu0 0.0
    %1549 = vmatpush2.msra.mxu0 0.0
    %1550 = vmatprep.subr.mxu0 0.0
    %1551 = vmatpush2.msra.mxu0 0.0
    %1552 = vmatprep.subr.mxu0 0.0
    %1553 = vmatpush2.msra.mxu0 0.0
    %1554 = vmatprep.subr.mxu0 0.0
    %1555 = vmatpush2.msra.mxu0 0.0
    %1556 = vmatprep.subr.mxu0 0.0
    %1557 = vmatpush2.msra.mxu0 0.0
    %1558 = vmatprep.mubr.f32.mxu0 0.0
    %v1559 = vand.u32 %v1078, 4294901760
    %1560 = vmatmul.mubr.f32.gmra.mxu0 %v1559
    %v1561 = vpop.f32.mrf.mxu0
    %v1562 = vadd.f32 %v1487, %v1561
    %v1563 = vpop.f32.mrf.mxu0
    %1564 = vdwg.mxu0
    %v1565 = vadd.f32 %v1077, %v1562
    %v1566 = vtanh.pop %v1565
    %v1567 = vadd.f32 %v1566, 1.0
    %v1568 = vmul.f32 %v1567, 0.5
    %v1569 = vmul.f32 %v1059, %v1568
    %1571 = vrot.lane.b32.xlu0 %v1566, 64
    %v1572 = vpop.permute.xlu0 %1571
    %v1574 = vmul.f32 %v1568, %v1572
    %1576 = vrot.lane.b32.xlu0 %v1574, 32
    %v1577 = vpop.permute.xlu0 %1576
    %v1579 = vadd.f32 %v1569, %v1577
    %v1580 = vtanh.pop %v1579
    %1582 = vrot.lane.b32.xlu0 %v1580, 64
    %v1583 = vpop.permute.xlu0 %1582
    %v1585 = vmul.f32 %v1568, %v1583
    %1587 = vrot.lane.b32.xlu0 %v1585, 32
    %v1588 = vpop.permute.xlu0 %1587
    %1590 = vst.msk [vmem:[#allocation2 + $0x4] sm:$0xf] %vm1070, %v1588
    %v1591 = vrot.slane %v542, 4
    %v1593 = vsel %vm554, %v1591, %v548
    %v1594 = vsel %vm556, %v1588, 0
    %1596 = vmatprep.subr.mxu0 0.0
    %1597 = vmatpush1.msra.mxu0 0.0
    %1598 = vmatprep.subr.mxu0 0.0
    %1599 = vmatpush1.msra.mxu0 0.0
    %1600 = vmatprep.subr.mxu0 0.0
    %1601 = vmatpush1.msra.mxu0 0.0
    %1602 = vmatprep.subr.mxu0 0.0
    %1603 = vmatpush1.msra.mxu0 0.0
    %1604 = vmatprep.subr.mxu0 0.0
    %1605 = vmatpush1.msra.mxu0 0.0
    %1606 = vmatprep.subr.mxu0 0.0
    %1607 = vmatpush1.msra.mxu0 0.0
    %1608 = vmatprep.subr.mxu0 0.0
    %1609 = vmatpush1.msra.mxu0 0.0
    %1610 = vmatprep.subr.mxu0 0.0
    %1611 = vmatpush1.msra.mxu0 0.0
    %1612 = vmatprep.subr.mxu0 0.0
    %1613 = vmatpush1.msra.mxu0 0.0
    %1614 = vmatprep.subr.mxu0 0.0
    %1615 = vmatpush1.msra.mxu0 0.0
    %1616 = vmatprep.subr.mxu0 0.0
    %1617 = vmatpush1.msra.mxu0 0.0
    %1618 = vmatprep.subr.mxu0 0.0
    %1619 = vmatpush1.msra.mxu0 0.0
    %1620 = vmatprep.subr.mxu0 0.0
    %v1621 = vand.u32 %v32, 4294901760
    %1622 = vmatpush1.msra.mxu0 %v1621
    %1623 = vmatprep.subr.mxu0 0.0
    %v1624 = vand.u32 %v31, 4294901760
    %1625 = vmatpush1.msra.mxu0 %v1624
    %1626 = vmatprep.subr.mxu0 0.0
    %v1627 = vand.u32 %v30, 4294901760
    %1628 = vmatpush1.msra.mxu0 %v1627
    %1629 = vmatprep.subr.mxu0 0.0
    %v1630 = vand.u32 %v29, 4294901760
    %1631 = vmatpush1.msra.mxu0 %v1630
    %1632 = vmatprep.subr.mxu0 0.0
    %1633 = vmatpush2.msra.mxu0 0.0
    %1634 = vmatprep.subr.mxu0 0.0
    %1635 = vmatpush2.msra.mxu0 0.0
    %1636 = vmatprep.subr.mxu0 0.0
    %1637 = vmatpush2.msra.mxu0 0.0
    %1638 = vmatprep.subr.mxu0 0.0
    %1639 = vmatpush2.msra.mxu0 0.0
    %1640 = vmatprep.subr.mxu0 0.0
    %1641 = vmatpush2.msra.mxu0 0.0
    %1642 = vmatprep.subr.mxu0 0.0
    %1643 = vmatpush2.msra.mxu0 0.0
    %1644 = vmatprep.subr.mxu0 0.0
    %1645 = vmatpush2.msra.mxu0 0.0
    %1646 = vmatprep.subr.mxu0 0.0
    %1647 = vmatpush2.msra.mxu0 0.0
    %1648 = vmatprep.subr.mxu0 0.0
    %1649 = vmatpush2.msra.mxu0 0.0
    %1650 = vmatprep.subr.mxu0 0.0
    %1651 = vmatpush2.msra.mxu0 0.0
    %1652 = vmatprep.subr.mxu0 0.0
    %1653 = vmatpush2.msra.mxu0 0.0
    %1654 = vmatprep.subr.mxu0 0.0
    %1655 = vmatpush2.msra.mxu0 0.0
    %1656 = vmatprep.subr.mxu0 0.0
    %1657 = vmatpush2.msra.mxu0 0.0
    %1658 = vmatprep.subr.mxu0 0.0
    %1659 = vmatpush2.msra.mxu0 0.0
    %1660 = vmatprep.subr.mxu0 0.0
    %1661 = vmatpush2.msra.mxu0 0.0
    %1662 = vmatprep.subr.mxu0 0.0
    %1663 = vmatpush2.msra.mxu0 0.0
    %1664 = vmatprep.mubr.f32.mxu0 0.0
    %v1665 = vand.u32 %v1594, 4294901760
    %v1666 = vsub.f32 %v1594, %v1665
    %v1667 = vand.u32 %v1666, 4294901760
    %v1668 = vsub.f32 %v1666, %v1667
    %v1669 = vand.u32 %v1668, 4294901760
    %1670 = vmatmul.mubr.f32.gmra.mxu0 %v1669
    %v1671 = vpop.f32.mrf.mxu0
    %v1672 = vadd.f32 0.0, %v1671
    %v1673 = vpop.f32.mrf.mxu0
    %1674 = vdwg.mxu0
    %1675 = vmatprep.subr.mxu0 0.0
    %1676 = vmatpush1.msra.mxu0 0.0
    %1677 = vmatprep.subr.mxu0 0.0
    %1678 = vmatpush1.msra.mxu0 0.0
    %1679 = vmatprep.subr.mxu0 0.0
    %1680 = vmatpush1.msra.mxu0 0.0
    %1681 = vmatprep.subr.mxu0 0.0
    %1682 = vmatpush1.msra.mxu0 0.0
    %1683 = vmatprep.subr.mxu0 0.0
    %1684 = vmatpush1.msra.mxu0 0.0
    %1685 = vmatprep.subr.mxu0 0.0
    %1686 = vmatpush1.msra.mxu0 0.0
    %1687 = vmatprep.subr.mxu0 0.0
    %1688 = vmatpush1.msra.mxu0 0.0
    %1689 = vmatprep.subr.mxu0 0.0
    %1690 = vmatpush1.msra.mxu0 0.0
    %1691 = vmatprep.subr.mxu0 0.0
    %1692 = vmatpush1.msra.mxu0 0.0
    %1693 = vmatprep.subr.mxu0 0.0
    %1694 = vmatpush1.msra.mxu0 0.0
    %1695 = vmatprep.subr.mxu0 0.0
    %1696 = vmatpush1.msra.mxu0 0.0
    %1697 = vmatprep.subr.mxu0 0.0
    %1698 = vmatpush1.msra.mxu0 0.0
    %1699 = vmatprep.subr.mxu0 0.0
    %v1700 = vand.u32 %v32, 4294901760
    %v1701 = vsub.f32 %v32, %v1700
    %v1702 = vand.u32 %v1701, 4294901760
    %v1703 = vsub.f32 %v1701, %v1702
    %v1704 = vand.u32 %v1703, 4294901760
    %1705 = vmatpush1.msra.mxu0 %v1704
    %1706 = vmatprep.subr.mxu0 0.0
    %v1707 = vand.u32 %v31, 4294901760
    %v1708 = vsub.f32 %v31, %v1707
    %v1709 = vand.u32 %v1708, 4294901760
    %v1710 = vsub.f32 %v1708, %v1709
    %v1711 = vand.u32 %v1710, 4294901760
    %1712 = vmatpush1.msra.mxu0 %v1711
    %1713 = vmatprep.subr.mxu0 0.0
    %v1714 = vand.u32 %v30, 4294901760
    %v1715 = vsub.f32 %v30, %v1714
    %v1716 = vand.u32 %v1715, 4294901760
    %v1717 = vsub.f32 %v1715, %v1716
    %v1718 = vand.u32 %v1717, 4294901760
    %1719 = vmatpush1.msra.mxu0 %v1718
    %1720 = vmatprep.subr.mxu0 0.0
    %v1721 = vand.u32 %v29, 4294901760
    %v1722 = vsub.f32 %v29, %v1721
    %v1723 = vand.u32 %v1722, 4294901760
    %v1724 = vsub.f32 %v1722, %v1723
    %v1725 = vand.u32 %v1724, 4294901760
    %1726 = vmatpush1.msra.mxu0 %v1725
    %1727 = vmatprep.subr.mxu0 0.0
    %1728 = vmatpush2.msra.mxu0 0.0
    %1729 = vmatprep.subr.mxu0 0.0
    %1730 = vmatpush2.msra.mxu0 0.0
    %1731 = vmatprep.subr.mxu0 0.0
    %1732 = vmatpush2.msra.mxu0 0.0
    %1733 = vmatprep.subr.mxu0 0.0
    %1734 = vmatpush2.msra.mxu0 0.0
    %1735 = vmatprep.subr.mxu0 0.0
    %1736 = vmatpush2.msra.mxu0 0.0
    %1737 = vmatprep.subr.mxu0 0.0
    %1738 = vmatpush2.msra.mxu0 0.0
    %1739 = vmatprep.subr.mxu0 0.0
    %1740 = vmatpush2.msra.mxu0 0.0
    %1741 = vmatprep.subr.mxu0 0.0
    %1742 = vmatpush2.msra.mxu0 0.0
    %1743 = vmatprep.subr.mxu0 0.0
    %1744 = vmatpush2.msra.mxu0 0.0
    %1745 = vmatprep.subr.mxu0 0.0
    %1746 = vmatpush2.msra.mxu0 0.0
    %1747 = vmatprep.subr.mxu0 0.0
    %1748 = vmatpush2.msra.mxu0 0.0
    %1749 = vmatprep.subr.mxu0 0.0
    %1750 = vmatpush2.msra.mxu0 0.0
    %1751 = vmatprep.subr.mxu0 0.0
    %1752 = vmatpush2.msra.mxu0 0.0
    %1753 = vmatprep.subr.mxu0 0.0
    %1754 = vmatpush2.msra.mxu0 0.0
    %1755 = vmatprep.subr.mxu0 0.0
    %1756 = vmatpush2.msra.mxu0 0.0
    %1757 = vmatprep.subr.mxu0 0.0
    %1758 = vmatpush2.msra.mxu0 0.0
    %1759 = vmatprep.mubr.f32.mxu0 0.0
    %v1760 = vand.u32 %v1594, 4294901760
    %1761 = vmatmul.mubr.f32.gmra.mxu0 %v1760
    %v1762 = vpop.f32.mrf.mxu0
    %v1763 = vadd.f32 %v1672, %v1762
    %v1764 = vpop.f32.mrf.mxu0
    %1765 = vdwg.mxu0
    %1766 = vmatprep.subr.mxu0 0.0
    %1767 = vmatpush1.msra.mxu0 0.0
    %1768 = vmatprep.subr.mxu0 0.0
    %1769 = vmatpush1.msra.mxu0 0.0
    %1770 = vmatprep.subr.mxu0 0.0
    %1771 = vmatpush1.msra.mxu0 0.0
    %1772 = vmatprep.subr.mxu0 0.0
    %1773 = vmatpush1.msra.mxu0 0.0
    %1774 = vmatprep.subr.mxu0 0.0
    %1775 = vmatpush1.msra.mxu0 0.0
    %1776 = vmatprep.subr.mxu0 0.0
    %1777 = vmatpush1.msra.mxu0 0.0
    %1778 = vmatprep.subr.mxu0 0.0
    %1779 = vmatpush1.msra.mxu0 0.0
    %1780 = vmatprep.subr.mxu0 0.0
    %1781 = vmatpush1.msra.mxu0 0.0
    %1782 = vmatprep.subr.mxu0 0.0
    %1783 = vmatpush1.msra.mxu0 0.0
    %1784 = vmatprep.subr.mxu0 0.0
    %1785 = vmatpush1.msra.mxu0 0.0
    %1786 = vmatprep.subr.mxu0 0.0
    %1787 = vmatpush1.msra.mxu0 0.0
    %1788 = vmatprep.subr.mxu0 0.0
    %1789 = vmatpush1.msra.mxu0 0.0
    %1790 = vmatprep.subr.mxu0 0.0
    %v1791 = vand.u32 %v32, 4294901760
    %v1792 = vsub.f32 %v32, %v1791
    %1793 = vmatpush1.msra.mxu0 %v1792
    %1794 = vmatprep.subr.mxu0 0.0
    %v1795 = vand.u32 %v31, 4294901760
    %v1796 = vsub.f32 %v31, %v1795
    %1797 = vmatpush1.msra.mxu0 %v1796
    %1798 = vmatprep.subr.mxu0 0.0
    %v1799 = vand.u32 %v30, 4294901760
    %v1800 = vsub.f32 %v30, %v1799
    %1801 = vmatpush1.msra.mxu0 %v1800
    %1802 = vmatprep.subr.mxu0 0.0
    %v1803 = vand.u32 %v29, 4294901760
    %v1804 = vsub.f32 %v29, %v1803
    %1805 = vmatpush1.msra.mxu0 %v1804
    %1806 = vmatprep.subr.mxu0 0.0
    %1807 = vmatpush2.msra.mxu0 0.0
    %1808 = vmatprep.subr.mxu0 0.0
    %1809 = vmatpush2.msra.mxu0 0.0
    %1810 = vmatprep.subr.mxu0 0.0
    %1811 = vmatpush2.msra.mxu0 0.0
    %1812 = vmatprep.subr.mxu0 0.0
    %1813 = vmatpush2.msra.mxu0 0.0
    %1814 = vmatprep.subr.mxu0 0.0
    %1815 = vmatpush2.msra.mxu0 0.0
    %1816 = vmatprep.subr.mxu0 0.0
    %1817 = vmatpush2.msra.mxu0 0.0
    %1818 = vmatprep.subr.mxu0 0.0
    %1819 = vmatpush2.msra.mxu0 0.0
    %1820 = vmatprep.subr.mxu0 0.0
    %1821 = vmatpush2.msra.mxu0 0.0
    %1822 = vmatprep.subr.mxu0 0.0
    %1823 = vmatpush2.msra.mxu0 0.0
    %1824 = vmatprep.subr.mxu0 0.0
    %1825 = vmatpush2.msra.mxu0 0.0
    %1826 = vmatprep.subr.mxu0 0.0
    %1827 = vmatpush2.msra.mxu0 0.0
    %1828 = vmatprep.subr.mxu0 0.0
    %1829 = vmatpush2.msra.mxu0 0.0
    %1830 = vmatprep.subr.mxu0 0.0
    %1831 = vmatpush2.msra.mxu0 0.0
    %1832 = vmatprep.subr.mxu0 0.0
    %1833 = vmatpush2.msra.mxu0 0.0
    %1834 = vmatprep.subr.mxu0 0.0
    %1835 = vmatpush2.msra.mxu0 0.0
    %1836 = vmatprep.subr.mxu0 0.0
    %1837 = vmatpush2.msra.mxu0 0.0
    %1838 = vmatprep.mubr.f32.mxu0 0.0
    %v1839 = vand.u32 %v1594, 4294901760
    %v1840 = vsub.f32 %v1594, %v1839
    %1841 = vmatmul.mubr.f32.gmra.mxu0 %v1840
    %v1842 = vpop.f32.mrf.mxu0
    %v1843 = vadd.f32 %v1763, %v1842
    %v1844 = vpop.f32.mrf.mxu0
    %1845 = vdwg.mxu0
    %1846 = vmatprep.subr.mxu0 0.0
    %1847 = vmatpush1.msra.mxu0 0.0
    %1848 = vmatprep.subr.mxu0 0.0
    %1849 = vmatpush1.msra.mxu0 0.0
    %1850 = vmatprep.subr.mxu0 0.0
    %1851 = vmatpush1.msra.mxu0 0.0
    %1852 = vmatprep.subr.mxu0 0.0
    %1853 = vmatpush1.msra.mxu0 0.0
    %1854 = vmatprep.subr.mxu0 0.0
    %1855 = vmatpush1.msra.mxu0 0.0
    %1856 = vmatprep.subr.mxu0 0.0
    %1857 = vmatpush1.msra.mxu0 0.0
    %1858 = vmatprep.subr.mxu0 0.0
    %1859 = vmatpush1.msra.mxu0 0.0
    %1860 = vmatprep.subr.mxu0 0.0
    %1861 = vmatpush1.msra.mxu0 0.0
    %1862 = vmatprep.subr.mxu0 0.0
    %1863 = vmatpush1.msra.mxu0 0.0
    %1864 = vmatprep.subr.mxu0 0.0
    %1865 = vmatpush1.msra.mxu0 0.0
    %1866 = vmatprep.subr.mxu0 0.0
    %1867 = vmatpush1.msra.mxu0 0.0
    %1868 = vmatprep.subr.mxu0 0.0
    %1869 = vmatpush1.msra.mxu0 0.0
    %1870 = vmatprep.subr.mxu0 0.0
    %v1871 = vand.u32 %v32, 4294901760
    %1872 = vmatpush1.msra.mxu0 %v1871
    %1873 = vmatprep.subr.mxu0 0.0
    %v1874 = vand.u32 %v31, 4294901760
    %1875 = vmatpush1.msra.mxu0 %v1874
    %1876 = vmatprep.subr.mxu0 0.0
    %v1877 = vand.u32 %v30, 4294901760
    %1878 = vmatpush1.msra.mxu0 %v1877
    %1879 = vmatprep.subr.mxu0 0.0
    %v1880 = vand.u32 %v29, 4294901760
    %1881 = vmatpush1.msra.mxu0 %v1880
    %1882 = vmatprep.subr.mxu0 0.0
    %1883 = vmatpush2.msra.mxu0 0.0
    %1884 = vmatprep.subr.mxu0 0.0
    %1885 = vmatpush2.msra.mxu0 0.0
    %1886 = vmatprep.subr.mxu0 0.0
    %1887 = vmatpush2.msra.mxu0 0.0
    %1888 = vmatprep.subr.mxu0 0.0
    %1889 = vmatpush2.msra.mxu0 0.0
    %1890 = vmatprep.subr.mxu0 0.0
    %1891 = vmatpush2.msra.mxu0 0.0
    %1892 = vmatprep.subr.mxu0 0.0
    %1893 = vmatpush2.msra.mxu0 0.0
    %1894 = vmatprep.subr.mxu0 0.0
    %1895 = vmatpush2.msra.mxu0 0.0
    %1896 = vmatprep.subr.mxu0 0.0
    %1897 = vmatpush2.msra.mxu0 0.0
    %1898 = vmatprep.subr.mxu0 0.0
    %1899 = vmatpush2.msra.mxu0 0.0
    %1900 = vmatprep.subr.mxu0 0.0
    %1901 = vmatpush2.msra.mxu0 0.0
    %1902 = vmatprep.subr.mxu0 0.0
    %1903 = vmatpush2.msra.mxu0 0.0
    %1904 = vmatprep.subr.mxu0 0.0
    %1905 = vmatpush2.msra.mxu0 0.0
    %1906 = vmatprep.subr.mxu0 0.0
    %1907 = vmatpush2.msra.mxu0 0.0
    %1908 = vmatprep.subr.mxu0 0.0
    %1909 = vmatpush2.msra.mxu0 0.0
    %1910 = vmatprep.subr.mxu0 0.0
    %1911 = vmatpush2.msra.mxu0 0.0
    %1912 = vmatprep.subr.mxu0 0.0
    %1913 = vmatpush2.msra.mxu0 0.0
    %1914 = vmatprep.mubr.f32.mxu0 0.0
    %v1915 = vand.u32 %v1594, 4294901760
    %v1916 = vsub.f32 %v1594, %v1915
    %v1917 = vand.u32 %v1916, 4294901760
    %1918 = vmatmul.mubr.f32.gmra.mxu0 %v1917
    %v1919 = vpop.f32.mrf.mxu0
    %v1920 = vadd.f32 %v1843, %v1919
    %v1921 = vpop.f32.mrf.mxu0
    %1922 = vdwg.mxu0
    %1923 = vmatprep.subr.mxu0 0.0
    %1924 = vmatpush1.msra.mxu0 0.0
    %1925 = vmatprep.subr.mxu0 0.0
    %1926 = vmatpush1.msra.mxu0 0.0
    %1927 = vmatprep.subr.mxu0 0.0
    %1928 = vmatpush1.msra.mxu0 0.0
    %1929 = vmatprep.subr.mxu0 0.0
    %1930 = vmatpush1.msra.mxu0 0.0
    %1931 = vmatprep.subr.mxu0 0.0
    %1932 = vmatpush1.msra.mxu0 0.0
    %1933 = vmatprep.subr.mxu0 0.0
    %1934 = vmatpush1.msra.mxu0 0.0
    %1935 = vmatprep.subr.mxu0 0.0
    %1936 = vmatpush1.msra.mxu0 0.0
    %1937 = vmatprep.subr.mxu0 0.0
    %1938 = vmatpush1.msra.mxu0 0.0
    %1939 = vmatprep.subr.mxu0 0.0
    %1940 = vmatpush1.msra.mxu0 0.0
    %1941 = vmatprep.subr.mxu0 0.0
    %1942 = vmatpush1.msra.mxu0 0.0
    %1943 = vmatprep.subr.mxu0 0.0
    %1944 = vmatpush1.msra.mxu0 0.0
    %1945 = vmatprep.subr.mxu0 0.0
    %1946 = vmatpush1.msra.mxu0 0.0
    %1947 = vmatprep.subr.mxu0 0.0
    %v1948 = vand.u32 %v32, 4294901760
    %v1949 = vsub.f32 %v32, %v1948
    %v1950 = vand.u32 %v1949, 4294901760
    %1951 = vmatpush1.msra.mxu0 %v1950
    %1952 = vmatprep.subr.mxu0 0.0
    %v1953 = vand.u32 %v31, 4294901760
    %v1954 = vsub.f32 %v31, %v1953
    %v1955 = vand.u32 %v1954, 4294901760
    %1956 = vmatpush1.msra.mxu0 %v1955
    %1957 = vmatprep.subr.mxu0 0.0
    %v1958 = vand.u32 %v30, 4294901760
    %v1959 = vsub.f32 %v30, %v1958
    %v1960 = vand.u32 %v1959, 4294901760
    %1961 = vmatpush1.msra.mxu0 %v1960
    %1962 = vmatprep.subr.mxu0 0.0
    %v1963 = vand.u32 %v29, 4294901760
    %v1964 = vsub.f32 %v29, %v1963
    %v1965 = vand.u32 %v1964, 4294901760
    %1966 = vmatpush1.msra.mxu0 %v1965
    %1967 = vmatprep.subr.mxu0 0.0
    %1968 = vmatpush2.msra.mxu0 0.0
    %1969 = vmatprep.subr.mxu0 0.0
    %1970 = vmatpush2.msra.mxu0 0.0
    %1971 = vmatprep.subr.mxu0 0.0
    %1972 = vmatpush2.msra.mxu0 0.0
    %1973 = vmatprep.subr.mxu0 0.0
    %1974 = vmatpush2.msra.mxu0 0.0
    %1975 = vmatprep.subr.mxu0 0.0
    %1976 = vmatpush2.msra.mxu0 0.0
    %1977 = vmatprep.subr.mxu0 0.0
    %1978 = vmatpush2.msra.mxu0 0.0
    %1979 = vmatprep.subr.mxu0 0.0
    %1980 = vmatpush2.msra.mxu0 0.0
    %1981 = vmatprep.subr.mxu0 0.0
    %1982 = vmatpush2.msra.mxu0 0.0
    %1983 = vmatprep.subr.mxu0 0.0
    %1984 = vmatpush2.msra.mxu0 0.0
    %1985 = vmatprep.subr.mxu0 0.0
    %1986 = vmatpush2.msra.mxu0 0.0
    %1987 = vmatprep.subr.mxu0 0.0
    %1988 = vmatpush2.msra.mxu0 0.0
    %1989 = vmatprep.subr.mxu0 0.0
    %1990 = vmatpush2.msra.mxu0 0.0
    %1991 = vmatprep.subr.mxu0 0.0
    %1992 = vmatpush2.msra.mxu0 0.0
    %1993 = vmatprep.subr.mxu0 0.0
    %1994 = vmatpush2.msra.mxu0 0.0
    %1995 = vmatprep.subr.mxu0 0.0
    %1996 = vmatpush2.msra.mxu0 0.0
    %1997 = vmatprep.subr.mxu0 0.0
    %1998 = vmatpush2.msra.mxu0 0.0
    %1999 = vmatprep.mubr.f32.mxu0 0.0
    %v2000 = vand.u32 %v1594, 4294901760
    %2001 = vmatmul.mubr.f32.gmra.mxu0 %v2000
    %v2002 = vpop.f32.mrf.mxu0
    %v2003 = vadd.f32 %v1920, %v2002
    %v2004 = vpop.f32.mrf.mxu0
    %2005 = vdwg.mxu0
    %2006 = vmatprep.subr.mxu0 0.0
    %2007 = vmatpush1.msra.mxu0 0.0
    %2008 = vmatprep.subr.mxu0 0.0
    %2009 = vmatpush1.msra.mxu0 0.0
    %2010 = vmatprep.subr.mxu0 0.0
    %2011 = vmatpush1.msra.mxu0 0.0
    %2012 = vmatprep.subr.mxu0 0.0
    %2013 = vmatpush1.msra.mxu0 0.0
    %2014 = vmatprep.subr.mxu0 0.0
    %2015 = vmatpush1.msra.mxu0 0.0
    %2016 = vmatprep.subr.mxu0 0.0
    %2017 = vmatpush1.msra.mxu0 0.0
    %2018 = vmatprep.subr.mxu0 0.0
    %2019 = vmatpush1.msra.mxu0 0.0
    %2020 = vmatprep.subr.mxu0 0.0
    %2021 = vmatpush1.msra.mxu0 0.0
    %2022 = vmatprep.subr.mxu0 0.0
    %2023 = vmatpush1.msra.mxu0 0.0
    %2024 = vmatprep.subr.mxu0 0.0
    %2025 = vmatpush1.msra.mxu0 0.0
    %2026 = vmatprep.subr.mxu0 0.0
    %2027 = vmatpush1.msra.mxu0 0.0
    %2028 = vmatprep.subr.mxu0 0.0
    %2029 = vmatpush1.msra.mxu0 0.0
    %2030 = vmatprep.subr.mxu0 0.0
    %v2031 = vand.u32 %v32, 4294901760
    %2032 = vmatpush1.msra.mxu0 %v2031
    %2033 = vmatprep.subr.mxu0 0.0
    %v2034 = vand.u32 %v31, 4294901760
    %2035 = vmatpush1.msra.mxu0 %v2034
    %2036 = vmatprep.subr.mxu0 0.0
    %v2037 = vand.u32 %v30, 4294901760
    %2038 = vmatpush1.msra.mxu0 %v2037
    %2039 = vmatprep.subr.mxu0 0.0
    %v2040 = vand.u32 %v29, 4294901760
    %2041 = vmatpush1.msra.mxu0 %v2040
    %2042 = vmatprep.subr.mxu0 0.0
    %2043 = vmatpush2.msra.mxu0 0.0
    %2044 = vmatprep.subr.mxu0 0.0
    %2045 = vmatpush2.msra.mxu0 0.0
    %2046 = vmatprep.subr.mxu0 0.0
    %2047 = vmatpush2.msra.mxu0 0.0
    %2048 = vmatprep.subr.mxu0 0.0
    %2049 = vmatpush2.msra.mxu0 0.0
    %2050 = vmatprep.subr.mxu0 0.0
    %2051 = vmatpush2.msra.mxu0 0.0
    %2052 = vmatprep.subr.mxu0 0.0
    %2053 = vmatpush2.msra.mxu0 0.0
    %2054 = vmatprep.subr.mxu0 0.0
    %2055 = vmatpush2.msra.mxu0 0.0
    %2056 = vmatprep.subr.mxu0 0.0
    %2057 = vmatpush2.msra.mxu0 0.0
    %2058 = vmatprep.subr.mxu0 0.0
    %2059 = vmatpush2.msra.mxu0 0.0
    %2060 = vmatprep.subr.mxu0 0.0
    %2061 = vmatpush2.msra.mxu0 0.0
    %2062 = vmatprep.subr.mxu0 0.0
    %2063 = vmatpush2.msra.mxu0 0.0
    %2064 = vmatprep.subr.mxu0 0.0
    %2065 = vmatpush2.msra.mxu0 0.0
    %2066 = vmatprep.subr.mxu0 0.0
    %2067 = vmatpush2.msra.mxu0 0.0
    %2068 = vmatprep.subr.mxu0 0.0
    %2069 = vmatpush2.msra.mxu0 0.0
    %2070 = vmatprep.subr.mxu0 0.0
    %2071 = vmatpush2.msra.mxu0 0.0
    %2072 = vmatprep.subr.mxu0 0.0
    %2073 = vmatpush2.msra.mxu0 0.0
    %2074 = vmatprep.mubr.f32.mxu0 0.0
    %v2075 = vand.u32 %v1594, 4294901760
    %2076 = vmatmul.mubr.f32.gmra.mxu0 %v2075
    %v2077 = vpop.f32.mrf.mxu0
    %v2078 = vadd.f32 %v2003, %v2077
    %v2079 = vpop.f32.mrf.mxu0
    %2080 = vdwg.mxu0
    %v2081 = vadd.f32 %v1593, %v2078
    %v2082 = vtanh.pop %v2081
    %v2083 = vadd.f32 %v2082, 1.0
    %v2084 = vmul.f32 %v2083, 0.5
    %v2085 = vmul.f32 %v1579, %v2084
    %2087 = vrot.lane.b32.xlu0 %v2082, 64
    %v2088 = vpop.permute.xlu0 %2087
    %v2090 = vmul.f32 %v2084, %v2088
    %2092 = vrot.lane.b32.xlu0 %v2090, 32
    %v2093 = vpop.permute.xlu0 %2092
    %v2095 = vadd.f32 %v2085, %v2093
    %v2096 = vtanh.pop %v2095
    %2098 = vrot.lane.b32.xlu0 %v2096, 64
    %v2099 = vpop.permute.xlu0 %2098
    %v2101 = vmul.f32 %v2084, %v2099
    %2103 = vrot.lane.b32.xlu0 %v2101, 32
    %v2104 = vpop.permute.xlu0 %2103
    %2106 = vst.msk [vmem:[#allocation2 + $0x8] sm:$0xf] %vm1070, %v2104
    %v2107 = vrot.slane %v542, 6
    %v2109 = vrot.slane %v548, 6
    %v2111 = vsel %vm554, %v2107, %v2109
    %v2112 = vsel %vm556, %v2104, 0
    %2114 = vmatprep.subr.mxu0 0.0
    %2115 = vmatpush1.msra.mxu0 0.0
    %2116 = vmatprep.subr.mxu0 0.0
    %2117 = vmatpush1.msra.mxu0 0.0
    %2118 = vmatprep.subr.mxu0 0.0
    %2119 = vmatpush1.msra.mxu0 0.0
    %2120 = vmatprep.subr.mxu0 0.0
    %2121 = vmatpush1.msra.mxu0 0.0
    %2122 = vmatprep.subr.mxu0 0.0
    %2123 = vmatpush1.msra.mxu0 0.0
    %2124 = vmatprep.subr.mxu0 0.0
    %2125 = vmatpush1.msra.mxu0 0.0
    %2126 = vmatprep.subr.mxu0 0.0
    %2127 = vmatpush1.msra.mxu0 0.0
    %2128 = vmatprep.subr.mxu0 0.0
    %2129 = vmatpush1.msra.mxu0 0.0
    %2130 = vmatprep.subr.mxu0 0.0
    %2131 = vmatpush1.msra.mxu0 0.0
    %2132 = vmatprep.subr.mxu0 0.0
    %2133 = vmatpush1.msra.mxu0 0.0
    %2134 = vmatprep.subr.mxu0 0.0
    %2135 = vmatpush1.msra.mxu0 0.0
    %2136 = vmatprep.subr.mxu0 0.0
    %2137 = vmatpush1.msra.mxu0 0.0
    %2138 = vmatprep.subr.mxu0 0.0
    %v2139 = vand.u32 %v32, 4294901760
    %2140 = vmatpush1.msra.mxu0 %v2139
    %2141 = vmatprep.subr.mxu0 0.0
    %v2142 = vand.u32 %v31, 4294901760
    %2143 = vmatpush1.msra.mxu0 %v2142
    %2144 = vmatprep.subr.mxu0 0.0
    %v2145 = vand.u32 %v30, 4294901760
    %2146 = vmatpush1.msra.mxu0 %v2145
    %2147 = vmatprep.subr.mxu0 0.0
    %v2148 = vand.u32 %v29, 4294901760
    %2149 = vmatpush1.msra.mxu0 %v2148
    %2150 = vmatprep.subr.mxu0 0.0
    %2151 = vmatpush2.msra.mxu0 0.0
    %2152 = vmatprep.subr.mxu0 0.0
    %2153 = vmatpush2.msra.mxu0 0.0
    %2154 = vmatprep.subr.mxu0 0.0
    %2155 = vmatpush2.msra.mxu0 0.0
    %2156 = vmatprep.subr.mxu0 0.0
    %2157 = vmatpush2.msra.mxu0 0.0
    %2158 = vmatprep.subr.mxu0 0.0
    %2159 = vmatpush2.msra.mxu0 0.0
    %2160 = vmatprep.subr.mxu0 0.0
    %2161 = vmatpush2.msra.mxu0 0.0
    %2162 = vmatprep.subr.mxu0 0.0
    %2163 = vmatpush2.msra.mxu0 0.0
    %2164 = vmatprep.subr.mxu0 0.0
    %2165 = vmatpush2.msra.mxu0 0.0
    %2166 = vmatprep.subr.mxu0 0.0
    %2167 = vmatpush2.msra.mxu0 0.0
    %2168 = vmatprep.subr.mxu0 0.0
    %2169 = vmatpush2.msra.mxu0 0.0
    %2170 = vmatprep.subr.mxu0 0.0
    %2171 = vmatpush2.msra.mxu0 0.0
    %2172 = vmatprep.subr.mxu0 0.0
    %2173 = vmatpush2.msra.mxu0 0.0
    %2174 = vmatprep.subr.mxu0 0.0
    %2175 = vmatpush2.msra.mxu0 0.0
    %2176 = vmatprep.subr.mxu0 0.0
    %2177 = vmatpush2.msra.mxu0 0.0
    %2178 = vmatprep.subr.mxu0 0.0
    %2179 = vmatpush2.msra.mxu0 0.0
    %2180 = vmatprep.subr.mxu0 0.0
    %2181 = vmatpush2.msra.mxu0 0.0
    %2182 = vmatprep.mubr.f32.mxu0 0.0
    %v2183 = vand.u32 %v2112, 4294901760
    %v2184 = vsub.f32 %v2112, %v2183
    %v2185 = vand.u32 %v2184, 4294901760
    %v2186 = vsub.f32 %v2184, %v2185
    %v2187 = vand.u32 %v2186, 4294901760
    %2188 = vmatmul.mubr.f32.gmra.mxu0 %v2187
    %v2189 = vpop.f32.mrf.mxu0
    %v2190 = vadd.f32 0.0, %v2189
    %v2191 = vpop.f32.mrf.mxu0
    %2192 = vdwg.mxu0
    %2193 = vmatprep.subr.mxu0 0.0
    %2194 = vmatpush1.msra.mxu0 0.0
    %2195 = vmatprep.subr.mxu0 0.0
    %2196 = vmatpush1.msra.mxu0 0.0
    %2197 = vmatprep.subr.mxu0 0.0
    %2198 = vmatpush1.msra.mxu0 0.0
    %2199 = vmatprep.subr.mxu0 0.0
    %2200 = vmatpush1.msra.mxu0 0.0
    %2201 = vmatprep.subr.mxu0 0.0
    %2202 = vmatpush1.msra.mxu0 0.0
    %2203 = vmatprep.subr.mxu0 0.0
    %2204 = vmatpush1.msra.mxu0 0.0
    %2205 = vmatprep.subr.mxu0 0.0
    %2206 = vmatpush1.msra.mxu0 0.0
    %2207 = vmatprep.subr.mxu0 0.0
    %2208 = vmatpush1.msra.mxu0 0.0
    %2209 = vmatprep.subr.mxu0 0.0
    %2210 = vmatpush1.msra.mxu0 0.0
    %2211 = vmatprep.subr.mxu0 0.0
    %2212 = vmatpush1.msra.mxu0 0.0
    %2213 = vmatprep.subr.mxu0 0.0
    %2214 = vmatpush1.msra.mxu0 0.0
    %2215 = vmatprep.subr.mxu0 0.0
    %2216 = vmatpush1.msra.mxu0 0.0
    %2217 = vmatprep.subr.mxu0 0.0
    %v2218 = vand.u32 %v32, 4294901760
    %v2219 = vsub.f32 %v32, %v2218
    %v2220 = vand.u32 %v2219, 4294901760
    %v2221 = vsub.f32 %v2219, %v2220
    %v2222 = vand.u32 %v2221, 4294901760
    %2223 = vmatpush1.msra.mxu0 %v2222
    %2224 = vmatprep.subr.mxu0 0.0
    %v2225 = vand.u32 %v31, 4294901760
    %v2226 = vsub.f32 %v31, %v2225
    %v2227 = vand.u32 %v2226, 4294901760
    %v2228 = vsub.f32 %v2226, %v2227
    %v2229 = vand.u32 %v2228, 4294901760
    %2230 = vmatpush1.msra.mxu0 %v2229
    %2231 = vmatprep.subr.mxu0 0.0
    %v2232 = vand.u32 %v30, 4294901760
    %v2233 = vsub.f32 %v30, %v2232
    %v2234 = vand.u32 %v2233, 4294901760
    %v2235 = vsub.f32 %v2233, %v2234
    %v2236 = vand.u32 %v2235, 4294901760
    %2237 = vmatpush1.msra.mxu0 %v2236
    %2238 = vmatprep.subr.mxu0 0.0
    %v2239 = vand.u32 %v29, 4294901760
    %v2240 = vsub.f32 %v29, %v2239
    %v2241 = vand.u32 %v2240, 4294901760
    %v2242 = vsub.f32 %v2240, %v2241
    %v2243 = vand.u32 %v2242, 4294901760
    %2244 = vmatpush1.msra.mxu0 %v2243
    %2245 = vmatprep.subr.mxu0 0.0
    %2246 = vmatpush2.msra.mxu0 0.0
    %2247 = vmatprep.subr.mxu0 0.0
    %2248 = vmatpush2.msra.mxu0 0.0
    %2249 = vmatprep.subr.mxu0 0.0
    %2250 = vmatpush2.msra.mxu0 0.0
    %2251 = vmatprep.subr.mxu0 0.0
    %2252 = vmatpush2.msra.mxu0 0.0
    %2253 = vmatprep.subr.mxu0 0.0
    %2254 = vmatpush2.msra.mxu0 0.0
    %2255 = vmatprep.subr.mxu0 0.0
    %2256 = vmatpush2.msra.mxu0 0.0
    %2257 = vmatprep.subr.mxu0 0.0
    %2258 = vmatpush2.msra.mxu0 0.0
    %2259 = vmatprep.subr.mxu0 0.0
    %2260 = vmatpush2.msra.mxu0 0.0
    %2261 = vmatprep.subr.mxu0 0.0
    %2262 = vmatpush2.msra.mxu0 0.0
    %2263 = vmatprep.subr.mxu0 0.0
    %2264 = vmatpush2.msra.mxu0 0.0
    %2265 = vmatprep.subr.mxu0 0.0
    %2266 = vmatpush2.msra.mxu0 0.0
    %2267 = vmatprep.subr.mxu0 0.0
    %2268 = vmatpush2.msra.mxu0 0.0
    %2269 = vmatprep.subr.mxu0 0.0
    %2270 = vmatpush2.msra.mxu0 0.0
    %2271 = vmatprep.subr.mxu0 0.0
    %2272 = vmatpush2.msra.mxu0 0.0
    %2273 = vmatprep.subr.mxu0 0.0
    %2274 = vmatpush2.msra.mxu0 0.0
    %2275 = vmatprep.subr.mxu0 0.0
    %2276 = vmatpush2.msra.mxu0 0.0
    %2277 = vmatprep.mubr.f32.mxu0 0.0
    %v2278 = vand.u32 %v2112, 4294901760
    %2279 = vmatmul.mubr.f32.gmra.mxu0 %v2278
    %v2280 = vpop.f32.mrf.mxu0
    %v2281 = vadd.f32 %v2190, %v2280
    %v2282 = vpop.f32.mrf.mxu0
    %2283 = vdwg.mxu0
    %2284 = vmatprep.subr.mxu0 0.0
    %2285 = vmatpush1.msra.mxu0 0.0
    %2286 = vmatprep.subr.mxu0 0.0
    %2287 = vmatpush1.msra.mxu0 0.0
    %2288 = vmatprep.subr.mxu0 0.0
    %2289 = vmatpush1.msra.mxu0 0.0
    %2290 = vmatprep.subr.mxu0 0.0
    %2291 = vmatpush1.msra.mxu0 0.0
    %2292 = vmatprep.subr.mxu0 0.0
    %2293 = vmatpush1.msra.mxu0 0.0
    %2294 = vmatprep.subr.mxu0 0.0
    %2295 = vmatpush1.msra.mxu0 0.0
    %2296 = vmatprep.subr.mxu0 0.0
    %2297 = vmatpush1.msra.mxu0 0.0
    %2298 = vmatprep.subr.mxu0 0.0
    %2299 = vmatpush1.msra.mxu0 0.0
    %2300 = vmatprep.subr.mxu0 0.0
    %2301 = vmatpush1.msra.mxu0 0.0
    %2302 = vmatprep.subr.mxu0 0.0
    %2303 = vmatpush1.msra.mxu0 0.0
    %2304 = vmatprep.subr.mxu0 0.0
    %2305 = vmatpush1.msra.mxu0 0.0
    %2306 = vmatprep.subr.mxu0 0.0
    %2307 = vmatpush1.msra.mxu0 0.0
    %2308 = vmatprep.subr.mxu0 0.0
    %v2309 = vand.u32 %v32, 4294901760
    %v2310 = vsub.f32 %v32, %v2309
    %2311 = vmatpush1.msra.mxu0 %v2310
    %2312 = vmatprep.subr.mxu0 0.0
    %v2313 = vand.u32 %v31, 4294901760
    %v2314 = vsub.f32 %v31, %v2313
    %2315 = vmatpush1.msra.mxu0 %v2314
    %2316 = vmatprep.subr.mxu0 0.0
    %v2317 = vand.u32 %v30, 4294901760
    %v2318 = vsub.f32 %v30, %v2317
    %2319 = vmatpush1.msra.mxu0 %v2318
    %2320 = vmatprep.subr.mxu0 0.0
    %v2321 = vand.u32 %v29, 4294901760
    %v2322 = vsub.f32 %v29, %v2321
    %2323 = vmatpush1.msra.mxu0 %v2322
    %2324 = vmatprep.subr.mxu0 0.0
    %2325 = vmatpush2.msra.mxu0 0.0
    %2326 = vmatprep.subr.mxu0 0.0
    %2327 = vmatpush2.msra.mxu0 0.0
    %2328 = vmatprep.subr.mxu0 0.0
    %2329 = vmatpush2.msra.mxu0 0.0
    %2330 = vmatprep.subr.mxu0 0.0
    %2331 = vmatpush2.msra.mxu0 0.0
    %2332 = vmatprep.subr.mxu0 0.0
    %2333 = vmatpush2.msra.mxu0 0.0
    %2334 = vmatprep.subr.mxu0 0.0
    %2335 = vmatpush2.msra.mxu0 0.0
    %2336 = vmatprep.subr.mxu0 0.0
    %2337 = vmatpush2.msra.mxu0 0.0
    %2338 = vmatprep.subr.mxu0 0.0
    %2339 = vmatpush2.msra.mxu0 0.0
    %2340 = vmatprep.subr.mxu0 0.0
    %2341 = vmatpush2.msra.mxu0 0.0
    %2342 = vmatprep.subr.mxu0 0.0
    %2343 = vmatpush2.msra.mxu0 0.0
    %2344 = vmatprep.subr.mxu0 0.0
    %2345 = vmatpush2.msra.mxu0 0.0
    %2346 = vmatprep.subr.mxu0 0.0
    %2347 = vmatpush2.msra.mxu0 0.0
    %2348 = vmatprep.subr.mxu0 0.0
    %2349 = vmatpush2.msra.mxu0 0.0
    %2350 = vmatprep.subr.mxu0 0.0
    %2351 = vmatpush2.msra.mxu0 0.0
    %2352 = vmatprep.subr.mxu0 0.0
    %2353 = vmatpush2.msra.mxu0 0.0
    %2354 = vmatprep.subr.mxu0 0.0
    %2355 = vmatpush2.msra.mxu0 0.0
    %2356 = vmatprep.mubr.f32.mxu0 0.0
    %v2357 = vand.u32 %v2112, 4294901760
    %v2358 = vsub.f32 %v2112, %v2357
    %2359 = vmatmul.mubr.f32.gmra.mxu0 %v2358
    %v2360 = vpop.f32.mrf.mxu0
    %v2361 = vadd.f32 %v2281, %v2360
    %v2362 = vpop.f32.mrf.mxu0
    %2363 = vdwg.mxu0
    %2364 = vmatprep.subr.mxu0 0.0
    %2365 = vmatpush1.msra.mxu0 0.0
    %2366 = vmatprep.subr.mxu0 0.0
    %2367 = vmatpush1.msra.mxu0 0.0
    %2368 = vmatprep.subr.mxu0 0.0
    %2369 = vmatpush1.msra.mxu0 0.0
    %2370 = vmatprep.subr.mxu0 0.0
    %2371 = vmatpush1.msra.mxu0 0.0
    %2372 = vmatprep.subr.mxu0 0.0
    %2373 = vmatpush1.msra.mxu0 0.0
    %2374 = vmatprep.subr.mxu0 0.0
    %2375 = vmatpush1.msra.mxu0 0.0
    %2376 = vmatprep.subr.mxu0 0.0
    %2377 = vmatpush1.msra.mxu0 0.0
    %2378 = vmatprep.subr.mxu0 0.0
    %2379 = vmatpush1.msra.mxu0 0.0
    %2380 = vmatprep.subr.mxu0 0.0
    %2381 = vmatpush1.msra.mxu0 0.0
    %2382 = vmatprep.subr.mxu0 0.0
    %2383 = vmatpush1.msra.mxu0 0.0
    %2384 = vmatprep.subr.mxu0 0.0
    %2385 = vmatpush1.msra.mxu0 0.0
    %2386 = vmatprep.subr.mxu0 0.0
    %2387 = vmatpush1.msra.mxu0 0.0
    %2388 = vmatprep.subr.mxu0 0.0
    %v2389 = vand.u32 %v32, 4294901760
    %2390 = vmatpush1.msra.mxu0 %v2389
    %2391 = vmatprep.subr.mxu0 0.0
    %v2392 = vand.u32 %v31, 4294901760
    %2393 = vmatpush1.msra.mxu0 %v2392
    %2394 = vmatprep.subr.mxu0 0.0
    %v2395 = vand.u32 %v30, 4294901760
    %2396 = vmatpush1.msra.mxu0 %v2395
    %2397 = vmatprep.subr.mxu0 0.0
    %v2398 = vand.u32 %v29, 4294901760
    %2399 = vmatpush1.msra.mxu0 %v2398
    %2400 = vmatprep.subr.mxu0 0.0
    %2401 = vmatpush2.msra.mxu0 0.0
    %2402 = vmatprep.subr.mxu0 0.0
    %2403 = vmatpush2.msra.mxu0 0.0
    %2404 = vmatprep.subr.mxu0 0.0
    %2405 = vmatpush2.msra.mxu0 0.0
    %2406 = vmatprep.subr.mxu0 0.0
    %2407 = vmatpush2.msra.mxu0 0.0
    %2408 = vmatprep.subr.mxu0 0.0
    %2409 = vmatpush2.msra.mxu0 0.0
    %2410 = vmatprep.subr.mxu0 0.0
    %2411 = vmatpush2.msra.mxu0 0.0
    %2412 = vmatprep.subr.mxu0 0.0
    %2413 = vmatpush2.msra.mxu0 0.0
    %2414 = vmatprep.subr.mxu0 0.0
    %2415 = vmatpush2.msra.mxu0 0.0
    %2416 = vmatprep.subr.mxu0 0.0
    %2417 = vmatpush2.msra.mxu0 0.0
    %2418 = vmatprep.subr.mxu0 0.0
    %2419 = vmatpush2.msra.mxu0 0.0
    %2420 = vmatprep.subr.mxu0 0.0
    %2421 = vmatpush2.msra.mxu0 0.0
    %2422 = vmatprep.subr.mxu0 0.0
    %2423 = vmatpush2.msra.mxu0 0.0
    %2424 = vmatprep.subr.mxu0 0.0
    %2425 = vmatpush2.msra.mxu0 0.0
    %2426 = vmatprep.subr.mxu0 0.0
    %2427 = vmatpush2.msra.mxu0 0.0
    %2428 = vmatprep.subr.mxu0 0.0
    %2429 = vmatpush2.msra.mxu0 0.0
    %2430 = vmatprep.subr.mxu0 0.0
    %2431 = vmatpush2.msra.mxu0 0.0
    %2432 = vmatprep.mubr.f32.mxu0 0.0
    %v2433 = vand.u32 %v2112, 4294901760
    %v2434 = vsub.f32 %v2112, %v2433
    %v2435 = vand.u32 %v2434, 4294901760
    %2436 = vmatmul.mubr.f32.gmra.mxu0 %v2435
    %v2437 = vpop.f32.mrf.mxu0
    %v2438 = vadd.f32 %v2361, %v2437
    %v2439 = vpop.f32.mrf.mxu0
    %2440 = vdwg.mxu0
    %2441 = vmatprep.subr.mxu0 0.0
    %2442 = vmatpush1.msra.mxu0 0.0
    %2443 = vmatprep.subr.mxu0 0.0
    %2444 = vmatpush1.msra.mxu0 0.0
    %2445 = vmatprep.subr.mxu0 0.0
    %2446 = vmatpush1.msra.mxu0 0.0
    %2447 = vmatprep.subr.mxu0 0.0
    %2448 = vmatpush1.msra.mxu0 0.0
    %2449 = vmatprep.subr.mxu0 0.0
    %2450 = vmatpush1.msra.mxu0 0.0
    %2451 = vmatprep.subr.mxu0 0.0
    %2452 = vmatpush1.msra.mxu0 0.0
    %2453 = vmatprep.subr.mxu0 0.0
    %2454 = vmatpush1.msra.mxu0 0.0
    %2455 = vmatprep.subr.mxu0 0.0
    %2456 = vmatpush1.msra.mxu0 0.0
    %2457 = vmatprep.subr.mxu0 0.0
    %2458 = vmatpush1.msra.mxu0 0.0
    %2459 = vmatprep.subr.mxu0 0.0
    %2460 = vmatpush1.msra.mxu0 0.0
    %2461 = vmatprep.subr.mxu0 0.0
    %2462 = vmatpush1.msra.mxu0 0.0
    %2463 = vmatprep.subr.mxu0 0.0
    %2464 = vmatpush1.msra.mxu0 0.0
    %2465 = vmatprep.subr.mxu0 0.0
    %v2466 = vand.u32 %v32, 4294901760
    %v2467 = vsub.f32 %v32, %v2466
    %v2468 = vand.u32 %v2467, 4294901760
    %2469 = vmatpush1.msra.mxu0 %v2468
    %2470 = vmatprep.subr.mxu0 0.0
    %v2471 = vand.u32 %v31, 4294901760
    %v2472 = vsub.f32 %v31, %v2471
    %v2473 = vand.u32 %v2472, 4294901760
    %2474 = vmatpush1.msra.mxu0 %v2473
    %2475 = vmatprep.subr.mxu0 0.0
    %v2476 = vand.u32 %v30, 4294901760
    %v2477 = vsub.f32 %v30, %v2476
    %v2478 = vand.u32 %v2477, 4294901760
    %2479 = vmatpush1.msra.mxu0 %v2478
    %2480 = vmatprep.subr.mxu0 0.0
    %v2481 = vand.u32 %v29, 4294901760
    %v2482 = vsub.f32 %v29, %v2481
    %v2483 = vand.u32 %v2482, 4294901760
    %2484 = vmatpush1.msra.mxu0 %v2483
    %2485 = vmatprep.subr.mxu0 0.0
    %2486 = vmatpush2.msra.mxu0 0.0
    %2487 = vmatprep.subr.mxu0 0.0
    %2488 = vmatpush2.msra.mxu0 0.0
    %2489 = vmatprep.subr.mxu0 0.0
    %2490 = vmatpush2.msra.mxu0 0.0
    %2491 = vmatprep.subr.mxu0 0.0
    %2492 = vmatpush2.msra.mxu0 0.0
    %2493 = vmatprep.subr.mxu0 0.0
    %2494 = vmatpush2.msra.mxu0 0.0
    %2495 = vmatprep.subr.mxu0 0.0
    %2496 = vmatpush2.msra.mxu0 0.0
    %2497 = vmatprep.subr.mxu0 0.0
    %2498 = vmatpush2.msra.mxu0 0.0
    %2499 = vmatprep.subr.mxu0 0.0
    %2500 = vmatpush2.msra.mxu0 0.0
    %2501 = vmatprep.subr.mxu0 0.0
    %2502 = vmatpush2.msra.mxu0 0.0
    %2503 = vmatprep.subr.mxu0 0.0
    %2504 = vmatpush2.msra.mxu0 0.0
    %2505 = vmatprep.subr.mxu0 0.0
    %2506 = vmatpush2.msra.mxu0 0.0
    %2507 = vmatprep.subr.mxu0 0.0
    %2508 = vmatpush2.msra.mxu0 0.0
    %2509 = vmatprep.subr.mxu0 0.0
    %2510 = vmatpush2.msra.mxu0 0.0
    %2511 = vmatprep.subr.mxu0 0.0
    %2512 = vmatpush2.msra.mxu0 0.0
    %2513 = vmatprep.subr.mxu0 0.0
    %2514 = vmatpush2.msra.mxu0 0.0
    %2515 = vmatprep.subr.mxu0 0.0
    %2516 = vmatpush2.msra.mxu0 0.0
    %2517 = vmatprep.mubr.f32.mxu0 0.0
    %v2518 = vand.u32 %v2112, 4294901760
    %2519 = vmatmul.mubr.f32.gmra.mxu0 %v2518
    %v2520 = vpop.f32.mrf.mxu0
    %v2521 = vadd.f32 %v2438, %v2520
    %v2522 = vpop.f32.mrf.mxu0
    %2523 = vdwg.mxu0
    %2524 = vmatprep.subr.mxu0 0.0
    %2525 = vmatpush1.msra.mxu0 0.0
    %2526 = vmatprep.subr.mxu0 0.0
    %2527 = vmatpush1.msra.mxu0 0.0
    %2528 = vmatprep.subr.mxu0 0.0
    %2529 = vmatpush1.msra.mxu0 0.0
    %2530 = vmatprep.subr.mxu0 0.0
    %2531 = vmatpush1.msra.mxu0 0.0
    %2532 = vmatprep.subr.mxu0 0.0
    %2533 = vmatpush1.msra.mxu0 0.0
    %2534 = vmatprep.subr.mxu0 0.0
    %2535 = vmatpush1.msra.mxu0 0.0
    %2536 = vmatprep.subr.mxu0 0.0
    %2537 = vmatpush1.msra.mxu0 0.0
    %2538 = vmatprep.subr.mxu0 0.0
    %2539 = vmatpush1.msra.mxu0 0.0
    %2540 = vmatprep.subr.mxu0 0.0
    %2541 = vmatpush1.msra.mxu0 0.0
    %2542 = vmatprep.subr.mxu0 0.0
    %2543 = vmatpush1.msra.mxu0 0.0
    %2544 = vmatprep.subr.mxu0 0.0
    %2545 = vmatpush1.msra.mxu0 0.0
    %2546 = vmatprep.subr.mxu0 0.0
    %2547 = vmatpush1.msra.mxu0 0.0
    %2548 = vmatprep.subr.mxu0 0.0
    %v2549 = vand.u32 %v32, 4294901760
    %2550 = vmatpush1.msra.mxu0 %v2549
    %2551 = vmatprep.subr.mxu0 0.0
    %v2552 = vand.u32 %v31, 4294901760
    %2553 = vmatpush1.msra.mxu0 %v2552
    %2554 = vmatprep.subr.mxu0 0.0
    %v2555 = vand.u32 %v30, 4294901760
    %2556 = vmatpush1.msra.mxu0 %v2555
    %2557 = vmatprep.subr.mxu0 0.0
    %v2558 = vand.u32 %v29, 4294901760
    %2559 = vmatpush1.msra.mxu0 %v2558
    %2560 = vmatprep.subr.mxu0 0.0
    %2561 = vmatpush2.msra.mxu0 0.0
    %2562 = vmatprep.subr.mxu0 0.0
    %2563 = vmatpush2.msra.mxu0 0.0
    %2564 = vmatprep.subr.mxu0 0.0
    %2565 = vmatpush2.msra.mxu0 0.0
    %2566 = vmatprep.subr.mxu0 0.0
    %2567 = vmatpush2.msra.mxu0 0.0
    %2568 = vmatprep.subr.mxu0 0.0
    %2569 = vmatpush2.msra.mxu0 0.0
    %2570 = vmatprep.subr.mxu0 0.0
    %2571 = vmatpush2.msra.mxu0 0.0
    %2572 = vmatprep.subr.mxu0 0.0
    %2573 = vmatpush2.msra.mxu0 0.0
    %2574 = vmatprep.subr.mxu0 0.0
    %2575 = vmatpush2.msra.mxu0 0.0
    %2576 = vmatprep.subr.mxu0 0.0
    %2577 = vmatpush2.msra.mxu0 0.0
    %2578 = vmatprep.subr.mxu0 0.0
    %2579 = vmatpush2.msra.mxu0 0.0
    %2580 = vmatprep.subr.mxu0 0.0
    %2581 = vmatpush2.msra.mxu0 0.0
    %2582 = vmatprep.subr.mxu0 0.0
    %2583 = vmatpush2.msra.mxu0 0.0
    %2584 = vmatprep.subr.mxu0 0.0
    %2585 = vmatpush2.msra.mxu0 0.0
    %2586 = vmatprep.subr.mxu0 0.0
    %2587 = vmatpush2.msra.mxu0 0.0
    %2588 = vmatprep.subr.mxu0 0.0
    %2589 = vmatpush2.msra.mxu0 0.0
    %2590 = vmatprep.subr.mxu0 0.0
    %2591 = vmatpush2.msra.mxu0 0.0
    %2592 = vmatprep.mubr.f32.mxu0 0.0
    %v2593 = vand.u32 %v2112, 4294901760
    %2594 = vmatmul.mubr.f32.gmra.mxu0 %v2593
    %v2595 = vpop.f32.mrf.mxu0
    %v2596 = vadd.f32 %v2521, %v2595
    %v2597 = vpop.f32.mrf.mxu0
    %2598 = vdwg.mxu0
    %v2599 = vadd.f32 %v2111, %v2596
    %v2600 = vtanh.pop %v2599
    %v2601 = vadd.f32 %v2600, 1.0
    %v2602 = vmul.f32 %v2601, 0.5
    %v2603 = vmul.f32 %v2095, %v2602
    %2605 = vrot.lane.b32.xlu0 %v2600, 64
    %v2606 = vpop.permute.xlu0 %2605
    %v2608 = vmul.f32 %v2602, %v2606
    %2610 = vrot.lane.b32.xlu0 %v2608, 32
    %v2611 = vpop.permute.xlu0 %2610
    %v2613 = vadd.f32 %v2603, %v2611
    %v2614 = vtanh.pop %v2613
    %2616 = vrot.lane.b32.xlu0 %v2614, 64
    %v2617 = vpop.permute.xlu0 %2616
    %v2619 = vmul.f32 %v2602, %v2617
    %2621 = vrot.lane.b32.xlu0 %v2619, 32
    %v2622 = vpop.permute.xlu0 %2621
    %2624 = vst.msk [vmem:[#allocation2 + $0xc] sm:$0xf] %vm1070, %v2622
    %v2625 = vsel %vm554, %v548, %v1591
    %v2626 = vsel %vm556, %v2622, 0
    %2628 = vmatprep.subr.mxu0 0.0
    %2629 = vmatpush1.msra.mxu0 0.0
    %2630 = vmatprep.subr.mxu0 0.0
    %2631 = vmatpush1.msra.mxu0 0.0
    %2632 = vmatprep.subr.mxu0 0.0
    %2633 = vmatpush1.msra.mxu0 0.0
    %2634 = vmatprep.subr.mxu0 0.0
    %2635 = vmatpush1.msra.mxu0 0.0
    %2636 = vmatprep.subr.mxu0 0.0
    %2637 = vmatpush1.msra.mxu0 0.0
    %2638 = vmatprep.subr.mxu0 0.0
    %2639 = vmatpush1.msra.mxu0 0.0
    %2640 = vmatprep.subr.mxu0 0.0
    %2641 = vmatpush1.msra.mxu0 0.0
    %2642 = vmatprep.subr.mxu0 0.0
    %2643 = vmatpush1.msra.mxu0 0.0
    %2644 = vmatprep.subr.mxu0 0.0
    %2645 = vmatpush1.msra.mxu0 0.0
    %2646 = vmatprep.subr.mxu0 0.0
    %2647 = vmatpush1.msra.mxu0 0.0
    %2648 = vmatprep.subr.mxu0 0.0
    %2649 = vmatpush1.msra.mxu0 0.0
    %2650 = vmatprep.subr.mxu0 0.0
    %2651 = vmatpush1.msra.mxu0 0.0
    %2652 = vmatprep.subr.mxu0 0.0
    %v2653 = vand.u32 %v32, 4294901760
    %2654 = vmatpush1.msra.mxu0 %v2653
    %2655 = vmatprep.subr.mxu0 0.0
    %v2656 = vand.u32 %v31, 4294901760
    %2657 = vmatpush1.msra.mxu0 %v2656
    %2658 = vmatprep.subr.mxu0 0.0
    %v2659 = vand.u32 %v30, 4294901760
    %2660 = vmatpush1.msra.mxu0 %v2659
    %2661 = vmatprep.subr.mxu0 0.0
    %v2662 = vand.u32 %v29, 4294901760
    %2663 = vmatpush1.msra.mxu0 %v2662
    %2664 = vmatprep.subr.mxu0 0.0
    %2665 = vmatpush2.msra.mxu0 0.0
    %2666 = vmatprep.subr.mxu0 0.0
    %2667 = vmatpush2.msra.mxu0 0.0
    %2668 = vmatprep.subr.mxu0 0.0
    %2669 = vmatpush2.msra.mxu0 0.0
    %2670 = vmatprep.subr.mxu0 0.0
    %2671 = vmatpush2.msra.mxu0 0.0
    %2672 = vmatprep.subr.mxu0 0.0
    %2673 = vmatpush2.msra.mxu0 0.0
    %2674 = vmatprep.subr.mxu0 0.0
    %2675 = vmatpush2.msra.mxu0 0.0
    %2676 = vmatprep.subr.mxu0 0.0
    %2677 = vmatpush2.msra.mxu0 0.0
    %2678 = vmatprep.subr.mxu0 0.0
    %2679 = vmatpush2.msra.mxu0 0.0
    %2680 = vmatprep.subr.mxu0 0.0
    %2681 = vmatpush2.msra.mxu0 0.0
    %2682 = vmatprep.subr.mxu0 0.0
    %2683 = vmatpush2.msra.mxu0 0.0
    %2684 = vmatprep.subr.mxu0 0.0
    %2685 = vmatpush2.msra.mxu0 0.0
    %2686 = vmatprep.subr.mxu0 0.0
    %2687 = vmatpush2.msra.mxu0 0.0
    %2688 = vmatprep.subr.mxu0 0.0
    %2689 = vmatpush2.msra.mxu0 0.0
    %2690 = vmatprep.subr.mxu0 0.0
    %2691 = vmatpush2.msra.mxu0 0.0
    %2692 = vmatprep.subr.mxu0 0.0
    %2693 = vmatpush2.msra.mxu0 0.0
    %2694 = vmatprep.subr.mxu0 0.0
    %2695 = vmatpush2.msra.mxu0 0.0
    %2696 = vmatprep.mubr.f32.mxu0 0.0
    %v2697 = vand.u32 %v2626, 4294901760
    %v2698 = vsub.f32 %v2626, %v2697
    %v2699 = vand.u32 %v2698, 4294901760
    %v2700 = vsub.f32 %v2698, %v2699
    %v2701 = vand.u32 %v2700, 4294901760
    %2702 = vmatmul.mubr.f32.gmra.mxu0 %v2701
    %v2703 = vpop.f32.mrf.mxu0
    %v2704 = vadd.f32 0.0, %v2703
    %v2705 = vpop.f32.mrf.mxu0
    %2706 = vdwg.mxu0
    %2707 = vmatprep.subr.mxu0 0.0
    %2708 = vmatpush1.msra.mxu0 0.0
    %2709 = vmatprep.subr.mxu0 0.0
    %2710 = vmatpush1.msra.mxu0 0.0
    %2711 = vmatprep.subr.mxu0 0.0
    %2712 = vmatpush1.msra.mxu0 0.0
    %2713 = vmatprep.subr.mxu0 0.0
    %2714 = vmatpush1.msra.mxu0 0.0
    %2715 = vmatprep.subr.mxu0 0.0
    %2716 = vmatpush1.msra.mxu0 0.0
    %2717 = vmatprep.subr.mxu0 0.0
    %2718 = vmatpush1.msra.mxu0 0.0
    %2719 = vmatprep.subr.mxu0 0.0
    %2720 = vmatpush1.msra.mxu0 0.0
    %2721 = vmatprep.subr.mxu0 0.0
    %2722 = vmatpush1.msra.mxu0 0.0
    %2723 = vmatprep.subr.mxu0 0.0
    %2724 = vmatpush1.msra.mxu0 0.0
    %2725 = vmatprep.subr.mxu0 0.0
    %2726 = vmatpush1.msra.mxu0 0.0
    %2727 = vmatprep.subr.mxu0 0.0
    %2728 = vmatpush1.msra.mxu0 0.0
    %2729 = vmatprep.subr.mxu0 0.0
    %2730 = vmatpush1.msra.mxu0 0.0
    %2731 = vmatprep.subr.mxu0 0.0
    %v2732 = vand.u32 %v32, 4294901760
    %v2733 = vsub.f32 %v32, %v2732
    %v2734 = vand.u32 %v2733, 4294901760
    %v2735 = vsub.f32 %v2733, %v2734
    %v2736 = vand.u32 %v2735, 4294901760
    %2737 = vmatpush1.msra.mxu0 %v2736
    %2738 = vmatprep.subr.mxu0 0.0
    %v2739 = vand.u32 %v31, 4294901760
    %v2740 = vsub.f32 %v31, %v2739
    %v2741 = vand.u32 %v2740, 4294901760
    %v2742 = vsub.f32 %v2740, %v2741
    %v2743 = vand.u32 %v2742, 4294901760
    %2744 = vmatpush1.msra.mxu0 %v2743
    %2745 = vmatprep.subr.mxu0 0.0
    %v2746 = vand.u32 %v30, 4294901760
    %v2747 = vsub.f32 %v30, %v2746
    %v2748 = vand.u32 %v2747, 4294901760
    %v2749 = vsub.f32 %v2747, %v2748
    %v2750 = vand.u32 %v2749, 4294901760
    %2751 = vmatpush1.msra.mxu0 %v2750
    %2752 = vmatprep.subr.mxu0 0.0
    %v2753 = vand.u32 %v29, 4294901760
    %v2754 = vsub.f32 %v29, %v2753
    %v2755 = vand.u32 %v2754, 4294901760
    %v2756 = vsub.f32 %v2754, %v2755
    %v2757 = vand.u32 %v2756, 4294901760
    %2758 = vmatpush1.msra.mxu0 %v2757
    %2759 = vmatprep.subr.mxu0 0.0
    %2760 = vmatpush2.msra.mxu0 0.0
    %2761 = vmatprep.subr.mxu0 0.0
    %2762 = vmatpush2.msra.mxu0 0.0
    %2763 = vmatprep.subr.mxu0 0.0
    %2764 = vmatpush2.msra.mxu0 0.0
    %2765 = vmatprep.subr.mxu0 0.0
    %2766 = vmatpush2.msra.mxu0 0.0
    %2767 = vmatprep.subr.mxu0 0.0
    %2768 = vmatpush2.msra.mxu0 0.0
    %2769 = vmatprep.subr.mxu0 0.0
    %2770 = vmatpush2.msra.mxu0 0.0
    %2771 = vmatprep.subr.mxu0 0.0
    %2772 = vmatpush2.msra.mxu0 0.0
    %2773 = vmatprep.subr.mxu0 0.0
    %2774 = vmatpush2.msra.mxu0 0.0
    %2775 = vmatprep.subr.mxu0 0.0
    %2776 = vmatpush2.msra.mxu0 0.0
    %2777 = vmatprep.subr.mxu0 0.0
    %2778 = vmatpush2.msra.mxu0 0.0
    %2779 = vmatprep.subr.mxu0 0.0
    %2780 = vmatpush2.msra.mxu0 0.0
    %2781 = vmatprep.subr.mxu0 0.0
    %2782 = vmatpush2.msra.mxu0 0.0
    %2783 = vmatprep.subr.mxu0 0.0
    %2784 = vmatpush2.msra.mxu0 0.0
    %2785 = vmatprep.subr.mxu0 0.0
    %2786 = vmatpush2.msra.mxu0 0.0
    %2787 = vmatprep.subr.mxu0 0.0
    %2788 = vmatpush2.msra.mxu0 0.0
    %2789 = vmatprep.subr.mxu0 0.0
    %2790 = vmatpush2.msra.mxu0 0.0
    %2791 = vmatprep.mubr.f32.mxu0 0.0
    %v2792 = vand.u32 %v2626, 4294901760
    %2793 = vmatmul.mubr.f32.gmra.mxu0 %v2792
    %v2794 = vpop.f32.mrf.mxu0
    %v2795 = vadd.f32 %v2704, %v2794
    %v2796 = vpop.f32.mrf.mxu0
    %2797 = vdwg.mxu0
    %2798 = vmatprep.subr.mxu0 0.0
    %2799 = vmatpush1.msra.mxu0 0.0
    %2800 = vmatprep.subr.mxu0 0.0
    %2801 = vmatpush1.msra.mxu0 0.0
    %2802 = vmatprep.subr.mxu0 0.0
    %2803 = vmatpush1.msra.mxu0 0.0
    %2804 = vmatprep.subr.mxu0 0.0
    %2805 = vmatpush1.msra.mxu0 0.0
    %2806 = vmatprep.subr.mxu0 0.0
    %2807 = vmatpush1.msra.mxu0 0.0
    %2808 = vmatprep.subr.mxu0 0.0
    %2809 = vmatpush1.msra.mxu0 0.0
    %2810 = vmatprep.subr.mxu0 0.0
    %2811 = vmatpush1.msra.mxu0 0.0
    %2812 = vmatprep.subr.mxu0 0.0
    %2813 = vmatpush1.msra.mxu0 0.0
    %2814 = vmatprep.subr.mxu0 0.0
    %2815 = vmatpush1.msra.mxu0 0.0
    %2816 = vmatprep.subr.mxu0 0.0
    %2817 = vmatpush1.msra.mxu0 0.0
    %2818 = vmatprep.subr.mxu0 0.0
    %2819 = vmatpush1.msra.mxu0 0.0
    %2820 = vmatprep.subr.mxu0 0.0
    %2821 = vmatpush1.msra.mxu0 0.0
    %2822 = vmatprep.subr.mxu0 0.0
    %v2823 = vand.u32 %v32, 4294901760
    %v2824 = vsub.f32 %v32, %v2823
    %2825 = vmatpush1.msra.mxu0 %v2824
    %2826 = vmatprep.subr.mxu0 0.0
    %v2827 = vand.u32 %v31, 4294901760
    %v2828 = vsub.f32 %v31, %v2827
    %2829 = vmatpush1.msra.mxu0 %v2828
    %2830 = vmatprep.subr.mxu0 0.0
    %v2831 = vand.u32 %v30, 4294901760
    %v2832 = vsub.f32 %v30, %v2831
    %2833 = vmatpush1.msra.mxu0 %v2832
    %2834 = vmatprep.subr.mxu0 0.0
    %v2835 = vand.u32 %v29, 4294901760
    %v2836 = vsub.f32 %v29, %v2835
    %2837 = vmatpush1.msra.mxu0 %v2836
    %2838 = vmatprep.subr.mxu0 0.0
    %2839 = vmatpush2.msra.mxu0 0.0
    %2840 = vmatprep.subr.mxu0 0.0
    %2841 = vmatpush2.msra.mxu0 0.0
    %2842 = vmatprep.subr.mxu0 0.0
    %2843 = vmatpush2.msra.mxu0 0.0
    %2844 = vmatprep.subr.mxu0 0.0
    %2845 = vmatpush2.msra.mxu0 0.0
    %2846 = vmatprep.subr.mxu0 0.0
    %2847 = vmatpush2.msra.mxu0 0.0
    %2848 = vmatprep.subr.mxu0 0.0
    %2849 = vmatpush2.msra.mxu0 0.0
    %2850 = vmatprep.subr.mxu0 0.0
    %2851 = vmatpush2.msra.mxu0 0.0
    %2852 = vmatprep.subr.mxu0 0.0
    %2853 = vmatpush2.msra.mxu0 0.0
    %2854 = vmatprep.subr.mxu0 0.0
    %2855 = vmatpush2.msra.mxu0 0.0
    %2856 = vmatprep.subr.mxu0 0.0
    %2857 = vmatpush2.msra.mxu0 0.0
    %2858 = vmatprep.subr.mxu0 0.0
    %2859 = vmatpush2.msra.mxu0 0.0
    %2860 = vmatprep.subr.mxu0 0.0
    %2861 = vmatpush2.msra.mxu0 0.0
    %2862 = vmatprep.subr.mxu0 0.0
    %2863 = vmatpush2.msra.mxu0 0.0
    %2864 = vmatprep.subr.mxu0 0.0
    %2865 = vmatpush2.msra.mxu0 0.0
    %2866 = vmatprep.subr.mxu0 0.0
    %2867 = vmatpush2.msra.mxu0 0.0
    %2868 = vmatprep.subr.mxu0 0.0
    %2869 = vmatpush2.msra.mxu0 0.0
    %2870 = vmatprep.mubr.f32.mxu0 0.0
    %v2871 = vand.u32 %v2626, 4294901760
    %v2872 = vsub.f32 %v2626, %v2871
    %2873 = vmatmul.mubr.f32.gmra.mxu0 %v2872
    %v2874 = vpop.f32.mrf.mxu0
    %v2875 = vadd.f32 %v2795, %v2874
    %v2876 = vpop.f32.mrf.mxu0
    %2877 = vdwg.mxu0
    %2878 = vmatprep.subr.mxu0 0.0
    %2879 = vmatpush1.msra.mxu0 0.0
    %2880 = vmatprep.subr.mxu0 0.0
    %2881 = vmatpush1.msra.mxu0 0.0
    %2882 = vmatprep.subr.mxu0 0.0
    %2883 = vmatpush1.msra.mxu0 0.0
    %2884 = vmatprep.subr.mxu0 0.0
    %2885 = vmatpush1.msra.mxu0 0.0
    %2886 = vmatprep.subr.mxu0 0.0
    %2887 = vmatpush1.msra.mxu0 0.0
    %2888 = vmatprep.subr.mxu0 0.0
    %2889 = vmatpush1.msra.mxu0 0.0
    %2890 = vmatprep.subr.mxu0 0.0
    %2891 = vmatpush1.msra.mxu0 0.0
    %2892 = vmatprep.subr.mxu0 0.0
    %2893 = vmatpush1.msra.mxu0 0.0
    %2894 = vmatprep.subr.mxu0 0.0
    %2895 = vmatpush1.msra.mxu0 0.0
    %2896 = vmatprep.subr.mxu0 0.0
    %2897 = vmatpush1.msra.mxu0 0.0
    %2898 = vmatprep.subr.mxu0 0.0
    %2899 = vmatpush1.msra.mxu0 0.0
    %2900 = vmatprep.subr.mxu0 0.0
    %2901 = vmatpush1.msra.mxu0 0.0
    %2902 = vmatprep.subr.mxu0 0.0
    %v2903 = vand.u32 %v32, 4294901760
    %2904 = vmatpush1.msra.mxu0 %v2903
    %2905 = vmatprep.subr.mxu0 0.0
    %v2906 = vand.u32 %v31, 4294901760
    %2907 = vmatpush1.msra.mxu0 %v2906
    %2908 = vmatprep.subr.mxu0 0.0
    %v2909 = vand.u32 %v30, 4294901760
    %2910 = vmatpush1.msra.mxu0 %v2909
    %2911 = vmatprep.subr.mxu0 0.0
    %v2912 = vand.u32 %v29, 4294901760
    %2913 = vmatpush1.msra.mxu0 %v2912
    %2914 = vmatprep.subr.mxu0 0.0
    %2915 = vmatpush2.msra.mxu0 0.0
    %2916 = vmatprep.subr.mxu0 0.0
    %2917 = vmatpush2.msra.mxu0 0.0
    %2918 = vmatprep.subr.mxu0 0.0
    %2919 = vmatpush2.msra.mxu0 0.0
    %2920 = vmatprep.subr.mxu0 0.0
    %2921 = vmatpush2.msra.mxu0 0.0
    %2922 = vmatprep.subr.mxu0 0.0
    %2923 = vmatpush2.msra.mxu0 0.0
    %2924 = vmatprep.subr.mxu0 0.0
    %2925 = vmatpush2.msra.mxu0 0.0
    %2926 = vmatprep.subr.mxu0 0.0
    %2927 = vmatpush2.msra.mxu0 0.0
    %2928 = vmatprep.subr.mxu0 0.0
    %2929 = vmatpush2.msra.mxu0 0.0
    %2930 = vmatprep.subr.mxu0 0.0
    %2931 = vmatpush2.msra.mxu0 0.0
    %2932 = vmatprep.subr.mxu0 0.0
    %2933 = vmatpush2.msra.mxu0 0.0
    %2934 = vmatprep.subr.mxu0 0.0
    %2935 = vmatpush2.msra.mxu0 0.0
    %2936 = vmatprep.subr.mxu0 0.0
    %2937 = vmatpush2.msra.mxu0 0.0
    %2938 = vmatprep.subr.mxu0 0.0
    %2939 = vmatpush2.msra.mxu0 0.0
    %2940 = vmatprep.subr.mxu0 0.0
    %2941 = vmatpush2.msra.mxu0 0.0
    %2942 = vmatprep.subr.mxu0 0.0
    %2943 = vmatpush2.msra.mxu0 0.0
    %2944 = vmatprep.subr.mxu0 0.0
    %2945 = vmatpush2.msra.mxu0 0.0
    %2946 = vmatprep.mubr.f32.mxu0 0.0
    %v2947 = vand.u32 %v2626, 4294901760
    %v2948 = vsub.f32 %v2626, %v2947
    %v2949 = vand.u32 %v2948, 4294901760
    %2950 = vmatmul.mubr.f32.gmra.mxu0 %v2949
    %v2951 = vpop.f32.mrf.mxu0
    %v2952 = vadd.f32 %v2875, %v2951
    %v2953 = vpop.f32.mrf.mxu0
    %2954 = vdwg.mxu0
    %2955 = vmatprep.subr.mxu0 0.0
    %2956 = vmatpush1.msra.mxu0 0.0
    %2957 = vmatprep.subr.mxu0 0.0
    %2958 = vmatpush1.msra.mxu0 0.0
    %2959 = vmatprep.subr.mxu0 0.0
    %2960 = vmatpush1.msra.mxu0 0.0
    %2961 = vmatprep.subr.mxu0 0.0
    %2962 = vmatpush1.msra.mxu0 0.0
    %2963 = vmatprep.subr.mxu0 0.0
    %2964 = vmatpush1.msra.mxu0 0.0
    %2965 = vmatprep.subr.mxu0 0.0
    %2966 = vmatpush1.msra.mxu0 0.0
    %2967 = vmatprep.subr.mxu0 0.0
    %2968 = vmatpush1.msra.mxu0 0.0
    %2969 = vmatprep.subr.mxu0 0.0
    %2970 = vmatpush1.msra.mxu0 0.0
    %2971 = vmatprep.subr.mxu0 0.0
    %2972 = vmatpush1.msra.mxu0 0.0
    %2973 = vmatprep.subr.mxu0 0.0
    %2974 = vmatpush1.msra.mxu0 0.0
    %2975 = vmatprep.subr.mxu0 0.0
    %2976 = vmatpush1.msra.mxu0 0.0
    %2977 = vmatprep.subr.mxu0 0.0
    %2978 = vmatpush1.msra.mxu0 0.0
    %2979 = vmatprep.subr.mxu0 0.0
    %v2980 = vand.u32 %v32, 4294901760
    %v2981 = vsub.f32 %v32, %v2980
    %v2982 = vand.u32 %v2981, 4294901760
    %2983 = vmatpush1.msra.mxu0 %v2982
    %2984 = vmatprep.subr.mxu0 0.0
    %v2985 = vand.u32 %v31, 4294901760
    %v2986 = vsub.f32 %v31, %v2985
    %v2987 = vand.u32 %v2986, 4294901760
    %2988 = vmatpush1.msra.mxu0 %v2987
    %2989 = vmatprep.subr.mxu0 0.0
    %v2990 = vand.u32 %v30, 4294901760
    %v2991 = vsub.f32 %v30, %v2990
    %v2992 = vand.u32 %v2991, 4294901760
    %2993 = vmatpush1.msra.mxu0 %v2992
    %2994 = vmatprep.subr.mxu0 0.0
    %v2995 = vand.u32 %v29, 4294901760
    %v2996 = vsub.f32 %v29, %v2995
    %v2997 = vand.u32 %v2996, 4294901760
    %2998 = vmatpush1.msra.mxu0 %v2997
    %2999 = vmatprep.subr.mxu0 0.0
    %3000 = vmatpush2.msra.mxu0 0.0
    %3001 = vmatprep.subr.mxu0 0.0
    %3002 = vmatpush2.msra.mxu0 0.0
    %3003 = vmatprep.subr.mxu0 0.0
    %3004 = vmatpush2.msra.mxu0 0.0
    %3005 = vmatprep.subr.mxu0 0.0
    %3006 = vmatpush2.msra.mxu0 0.0
    %3007 = vmatprep.subr.mxu0 0.0
    %3008 = vmatpush2.msra.mxu0 0.0
    %3009 = vmatprep.subr.mxu0 0.0
    %3010 = vmatpush2.msra.mxu0 0.0
    %3011 = vmatprep.subr.mxu0 0.0
    %3012 = vmatpush2.msra.mxu0 0.0
    %3013 = vmatprep.subr.mxu0 0.0
    %3014 = vmatpush2.msra.mxu0 0.0
    %3015 = vmatprep.subr.mxu0 0.0
    %3016 = vmatpush2.msra.mxu0 0.0
    %3017 = vmatprep.subr.mxu0 0.0
    %3018 = vmatpush2.msra.mxu0 0.0
    %3019 = vmatprep.subr.mxu0 0.0
    %3020 = vmatpush2.msra.mxu0 0.0
    %3021 = vmatprep.subr.mxu0 0.0
    %3022 = vmatpush2.msra.mxu0 0.0
    %3023 = vmatprep.subr.mxu0 0.0
    %3024 = vmatpush2.msra.mxu0 0.0
    %3025 = vmatprep.subr.mxu0 0.0
    %3026 = vmatpush2.msra.mxu0 0.0
    %3027 = vmatprep.subr.mxu0 0.0
    %3028 = vmatpush2.msra.mxu0 0.0
    %3029 = vmatprep.subr.mxu0 0.0
    %3030 = vmatpush2.msra.mxu0 0.0
    %3031 = vmatprep.mubr.f32.mxu0 0.0
    %v3032 = vand.u32 %v2626, 4294901760
    %3033 = vmatmul.mubr.f32.gmra.mxu0 %v3032
    %v3034 = vpop.f32.mrf.mxu0
    %v3035 = vadd.f32 %v2952, %v3034
    %v3036 = vpop.f32.mrf.mxu0
    %3037 = vdwg.mxu0
    %3038 = vmatprep.subr.mxu0 0.0
    %3039 = vmatpush1.msra.mxu0 0.0
    %3040 = vmatprep.subr.mxu0 0.0
    %3041 = vmatpush1.msra.mxu0 0.0
    %3042 = vmatprep.subr.mxu0 0.0
    %3043 = vmatpush1.msra.mxu0 0.0
    %3044 = vmatprep.subr.mxu0 0.0
    %3045 = vmatpush1.msra.mxu0 0.0
    %3046 = vmatprep.subr.mxu0 0.0
    %3047 = vmatpush1.msra.mxu0 0.0
    %3048 = vmatprep.subr.mxu0 0.0
    %3049 = vmatpush1.msra.mxu0 0.0
    %3050 = vmatprep.subr.mxu0 0.0
    %3051 = vmatpush1.msra.mxu0 0.0
    %3052 = vmatprep.subr.mxu0 0.0
    %3053 = vmatpush1.msra.mxu0 0.0
    %3054 = vmatprep.subr.mxu0 0.0
    %3055 = vmatpush1.msra.mxu0 0.0
    %3056 = vmatprep.subr.mxu0 0.0
    %3057 = vmatpush1.msra.mxu0 0.0
    %3058 = vmatprep.subr.mxu0 0.0
    %3059 = vmatpush1.msra.mxu0 0.0
    %3060 = vmatprep.subr.mxu0 0.0
    %3061 = vmatpush1.msra.mxu0 0.0
    %3062 = vmatprep.subr.mxu0 0.0
    %v3063 = vand.u32 %v32, 4294901760
    %3064 = vmatpush1.msra.mxu0 %v3063
    %3065 = vmatprep.subr.mxu0 0.0
    %v3066 = vand.u32 %v31, 4294901760
    %3067 = vmatpush1.msra.mxu0 %v3066
    %3068 = vmatprep.subr.mxu0 0.0
    %v3069 = vand.u32 %v30, 4294901760
    %3070 = vmatpush1.msra.mxu0 %v3069
    %3071 = vmatprep.subr.mxu0 0.0
    %v3072 = vand.u32 %v29, 4294901760
    %3073 = vmatpush1.msra.mxu0 %v3072
    %3074 = vmatprep.subr.mxu0 0.0
    %3075 = vmatpush2.msra.mxu0 0.0
    %3076 = vmatprep.subr.mxu0 0.0
    %3077 = vmatpush2.msra.mxu0 0.0
    %3078 = vmatprep.subr.mxu0 0.0
    %3079 = vmatpush2.msra.mxu0 0.0
    %3080 = vmatprep.subr.mxu0 0.0
    %3081 = vmatpush2.msra.mxu0 0.0
    %3082 = vmatprep.subr.mxu0 0.0
    %3083 = vmatpush2.msra.mxu0 0.0
    %3084 = vmatprep.subr.mxu0 0.0
    %3085 = vmatpush2.msra.mxu0 0.0
    %3086 = vmatprep.subr.mxu0 0.0
    %3087 = vmatpush2.msra.mxu0 0.0
    %3088 = vmatprep.subr.mxu0 0.0
    %3089 = vmatpush2.msra.mxu0 0.0
    %3090 = vmatprep.subr.mxu0 0.0
    %3091 = vmatpush2.msra.mxu0 0.0
    %3092 = vmatprep.subr.mxu0 0.0
    %3093 = vmatpush2.msra.mxu0 0.0
    %3094 = vmatprep.subr.mxu0 0.0
    %3095 = vmatpush2.msra.mxu0 0.0
    %3096 = vmatprep.subr.mxu0 0.0
    %3097 = vmatpush2.msra.mxu0 0.0
    %3098 = vmatprep.subr.mxu0 0.0
    %3099 = vmatpush2.msra.mxu0 0.0
    %3100 = vmatprep.subr.mxu0 0.0
    %3101 = vmatpush2.msra.mxu0 0.0
    %3102 = vmatprep.subr.mxu0 0.0
    %3103 = vmatpush2.msra.mxu0 0.0
    %3104 = vmatprep.subr.mxu0 0.0
    %3105 = vmatpush2.msra.mxu0 0.0
    %3106 = vmatprep.mubr.f32.mxu0 0.0
    %v3107 = vand.u32 %v2626, 4294901760
    %3108 = vmatmul.mubr.f32.gmra.mxu0 %v3107
    %v3109 = vpop.f32.mrf.mxu0
    %v3110 = vadd.f32 %v3035, %v3109
    %v3111 = vpop.f32.mrf.mxu0
    %3112 = vdwg.mxu0
    %v3113 = vadd.f32 %v2625, %v3110
    %v3114 = vtanh.pop %v3113
    %v3115 = vadd.f32 %v3114, 1.0
    %v3116 = vmul.f32 %v3115, 0.5
    %v3117 = vmul.f32 %v2613, %v3116
    %3119 = vrot.lane.b32.xlu0 %v3114, 64
    %v3120 = vpop.permute.xlu0 %3119
    %v3122 = vmul.f32 %v3116, %v3120
    %3124 = vrot.lane.b32.xlu0 %v3122, 32
    %v3125 = vpop.permute.xlu0 %3124
    %v3127 = vadd.f32 %v3117, %v3125
    %v3128 = vtanh.pop %v3127
    %3130 = vrot.lane.b32.xlu0 %v3128, 64
    %v3131 = vpop.permute.xlu0 %3130
    %v3133 = vmul.f32 %v3116, %v3131
    %3135 = vrot.lane.b32.xlu0 %v3133, 32
    %v3136 = vpop.permute.xlu0 %3135
    %3138 = vst.msk [vmem:[#allocation2 + $0x10] sm:$0xf] %vm1070, %v3136
    %v3139 = vsel %vm554, %v1075, %v1073
    %v3140 = vsel %vm556, %v3136, 0
    %3142 = vmatprep.subr.mxu0 0.0
    %3143 = vmatpush1.msra.mxu0 0.0
    %3144 = vmatprep.subr.mxu0 0.0
    %3145 = vmatpush1.msra.mxu0 0.0
    %3146 = vmatprep.subr.mxu0 0.0
    %3147 = vmatpush1.msra.mxu0 0.0
    %3148 = vmatprep.subr.mxu0 0.0
    %3149 = vmatpush1.msra.mxu0 0.0
    %3150 = vmatprep.subr.mxu0 0.0
    %3151 = vmatpush1.msra.mxu0 0.0
    %3152 = vmatprep.subr.mxu0 0.0
    %3153 = vmatpush1.msra.mxu0 0.0
    %3154 = vmatprep.subr.mxu0 0.0
    %3155 = vmatpush1.msra.mxu0 0.0
    %3156 = vmatprep.subr.mxu0 0.0
    %3157 = vmatpush1.msra.mxu0 0.0
    %3158 = vmatprep.subr.mxu0 0.0
    %3159 = vmatpush1.msra.mxu0 0.0
    %3160 = vmatprep.subr.mxu0 0.0
    %3161 = vmatpush1.msra.mxu0 0.0
    %3162 = vmatprep.subr.mxu0 0.0
    %3163 = vmatpush1.msra.mxu0 0.0
    %3164 = vmatprep.subr.mxu0 0.0
    %3165 = vmatpush1.msra.mxu0 0.0
    %3166 = vmatprep.subr.mxu0 0.0
    %v3167 = vand.u32 %v32, 4294901760
    %3168 = vmatpush1.msra.mxu0 %v3167
    %3169 = vmatprep.subr.mxu0 0.0
    %v3170 = vand.u32 %v31, 4294901760
    %3171 = vmatpush1.msra.mxu0 %v3170
    %3172 = vmatprep.subr.mxu0 0.0
    %v3173 = vand.u32 %v30, 4294901760
    %3174 = vmatpush1.msra.mxu0 %v3173
    %3175 = vmatprep.subr.mxu0 0.0
    %v3176 = vand.u32 %v29, 4294901760
    %3177 = vmatpush1.msra.mxu0 %v3176
    %3178 = vmatprep.subr.mxu0 0.0
    %3179 = vmatpush2.msra.mxu0 0.0
    %3180 = vmatprep.subr.mxu0 0.0
    %3181 = vmatpush2.msra.mxu0 0.0
    %3182 = vmatprep.subr.mxu0 0.0
    %3183 = vmatpush2.msra.mxu0 0.0
    %3184 = vmatprep.subr.mxu0 0.0
    %3185 = vmatpush2.msra.mxu0 0.0
    %3186 = vmatprep.subr.mxu0 0.0
    %3187 = vmatpush2.msra.mxu0 0.0
    %3188 = vmatprep.subr.mxu0 0.0
    %3189 = vmatpush2.msra.mxu0 0.0
    %3190 = vmatprep.subr.mxu0 0.0
    %3191 = vmatpush2.msra.mxu0 0.0
    %3192 = vmatprep.subr.mxu0 0.0
    %3193 = vmatpush2.msra.mxu0 0.0
    %3194 = vmatprep.subr.mxu0 0.0
    %3195 = vmatpush2.msra.mxu0 0.0
    %3196 = vmatprep.subr.mxu0 0.0
    %3197 = vmatpush2.msra.mxu0 0.0
    %3198 = vmatprep.subr.mxu0 0.0
    %3199 = vmatpush2.msra.mxu0 0.0
    %3200 = vmatprep.subr.mxu0 0.0
    %3201 = vmatpush2.msra.mxu0 0.0
    %3202 = vmatprep.subr.mxu0 0.0
    %3203 = vmatpush2.msra.mxu0 0.0
    %3204 = vmatprep.subr.mxu0 0.0
    %3205 = vmatpush2.msra.mxu0 0.0
    %3206 = vmatprep.subr.mxu0 0.0
    %3207 = vmatpush2.msra.mxu0 0.0
    %3208 = vmatprep.subr.mxu0 0.0
    %3209 = vmatpush2.msra.mxu0 0.0
    %3210 = vmatprep.mubr.f32.mxu0 0.0
    %v3211 = vand.u32 %v3140, 4294901760
    %v3212 = vsub.f32 %v3140, %v3211
    %v3213 = vand.u32 %v3212, 4294901760
    %v3214 = vsub.f32 %v3212, %v3213
    %v3215 = vand.u32 %v3214, 4294901760
    %3216 = vmatmul.mubr.f32.gmra.mxu0 %v3215
    %v3217 = vpop.f32.mrf.mxu0
    %v3218 = vadd.f32 0.0, %v3217
    %v3219 = vpop.f32.mrf.mxu0
    %3220 = vdwg.mxu0
    %3221 = vmatprep.subr.mxu0 0.0
    %3222 = vmatpush1.msra.mxu0 0.0
    %3223 = vmatprep.subr.mxu0 0.0
    %3224 = vmatpush1.msra.mxu0 0.0
    %3225 = vmatprep.subr.mxu0 0.0
    %3226 = vmatpush1.msra.mxu0 0.0
    %3227 = vmatprep.subr.mxu0 0.0
    %3228 = vmatpush1.msra.mxu0 0.0
    %3229 = vmatprep.subr.mxu0 0.0
    %3230 = vmatpush1.msra.mxu0 0.0
    %3231 = vmatprep.subr.mxu0 0.0
    %3232 = vmatpush1.msra.mxu0 0.0
    %3233 = vmatprep.subr.mxu0 0.0
    %3234 = vmatpush1.msra.mxu0 0.0
    %3235 = vmatprep.subr.mxu0 0.0
    %3236 = vmatpush1.msra.mxu0 0.0
    %3237 = vmatprep.subr.mxu0 0.0
    %3238 = vmatpush1.msra.mxu0 0.0
    %3239 = vmatprep.subr.mxu0 0.0
    %3240 = vmatpush1.msra.mxu0 0.0
    %3241 = vmatprep.subr.mxu0 0.0
    %3242 = vmatpush1.msra.mxu0 0.0
    %3243 = vmatprep.subr.mxu0 0.0
    %3244 = vmatpush1.msra.mxu0 0.0
    %3245 = vmatprep.subr.mxu0 0.0
    %v3246 = vand.u32 %v32, 4294901760
    %v3247 = vsub.f32 %v32, %v3246
    %v3248 = vand.u32 %v3247, 4294901760
    %v3249 = vsub.f32 %v3247, %v3248
    %v3250 = vand.u32 %v3249, 4294901760
    %3251 = vmatpush1.msra.mxu0 %v3250
    %3252 = vmatprep.subr.mxu0 0.0
    %v3253 = vand.u32 %v31, 4294901760
    %v3254 = vsub.f32 %v31, %v3253
    %v3255 = vand.u32 %v3254, 4294901760
    %v3256 = vsub.f32 %v3254, %v3255
    %v3257 = vand.u32 %v3256, 4294901760
    %3258 = vmatpush1.msra.mxu0 %v3257
    %3259 = vmatprep.subr.mxu0 0.0
    %v3260 = vand.u32 %v30, 4294901760
    %v3261 = vsub.f32 %v30, %v3260
    %v3262 = vand.u32 %v3261, 4294901760
    %v3263 = vsub.f32 %v3261, %v3262
    %v3264 = vand.u32 %v3263, 4294901760
    %3265 = vmatpush1.msra.mxu0 %v3264
    %3266 = vmatprep.subr.mxu0 0.0
    %v3267 = vand.u32 %v29, 4294901760
    %v3268 = vsub.f32 %v29, %v3267
    %v3269 = vand.u32 %v3268, 4294901760
    %v3270 = vsub.f32 %v3268, %v3269
    %v3271 = vand.u32 %v3270, 4294901760
    %3272 = vmatpush1.msra.mxu0 %v3271
    %3273 = vmatprep.subr.mxu0 0.0
    %3274 = vmatpush2.msra.mxu0 0.0
    %3275 = vmatprep.subr.mxu0 0.0
    %3276 = vmatpush2.msra.mxu0 0.0
    %3277 = vmatprep.subr.mxu0 0.0
    %3278 = vmatpush2.msra.mxu0 0.0
    %3279 = vmatprep.subr.mxu0 0.0
    %3280 = vmatpush2.msra.mxu0 0.0
    %3281 = vmatprep.subr.mxu0 0.0
    %3282 = vmatpush2.msra.mxu0 0.0
    %3283 = vmatprep.subr.mxu0 0.0
    %3284 = vmatpush2.msra.mxu0 0.0
    %3285 = vmatprep.subr.mxu0 0.0
    %3286 = vmatpush2.msra.mxu0 0.0
    %3287 = vmatprep.subr.mxu0 0.0
    %3288 = vmatpush2.msra.mxu0 0.0
    %3289 = vmatprep.subr.mxu0 0.0
    %3290 = vmatpush2.msra.mxu0 0.0
    %3291 = vmatprep.subr.mxu0 0.0
    %3292 = vmatpush2.msra.mxu0 0.0
    %3293 = vmatprep.subr.mxu0 0.0
    %3294 = vmatpush2.msra.mxu0 0.0
    %3295 = vmatprep.subr.mxu0 0.0
    %3296 = vmatpush2.msra.mxu0 0.0
    %3297 = vmatprep.subr.mxu0 0.0
    %3298 = vmatpush2.msra.mxu0 0.0
    %3299 = vmatprep.subr.mxu0 0.0
    %3300 = vmatpush2.msra.mxu0 0.0
    %3301 = vmatprep.subr.mxu0 0.0
    %3302 = vmatpush2.msra.mxu0 0.0
    %3303 = vmatprep.subr.mxu0 0.0
    %3304 = vmatpush2.msra.mxu0 0.0
    %3305 = vmatprep.mubr.f32.mxu0 0.0
    %v3306 = vand.u32 %v3140, 4294901760
    %3307 = vmatmul.mubr.f32.gmra.mxu0 %v3306
    %v3308 = vpop.f32.mrf.mxu0
    %v3309 = vadd.f32 %v3218, %v3308
    %v3310 = vpop.f32.mrf.mxu0
    %3311 = vdwg.mxu0
    %3312 = vmatprep.subr.mxu0 0.0
    %3313 = vmatpush1.msra.mxu0 0.0
    %3314 = vmatprep.subr.mxu0 0.0
    %3315 = vmatpush1.msra.mxu0 0.0
    %3316 = vmatprep.subr.mxu0 0.0
    %3317 = vmatpush1.msra.mxu0 0.0
    %3318 = vmatprep.subr.mxu0 0.0
    %3319 = vmatpush1.msra.mxu0 0.0
    %3320 = vmatprep.subr.mxu0 0.0
    %3321 = vmatpush1.msra.mxu0 0.0
    %3322 = vmatprep.subr.mxu0 0.0
    %3323 = vmatpush1.msra.mxu0 0.0
    %3324 = vmatprep.subr.mxu0 0.0
    %3325 = vmatpush1.msra.mxu0 0.0
    %3326 = vmatprep.subr.mxu0 0.0
    %3327 = vmatpush1.msra.mxu0 0.0
    %3328 = vmatprep.subr.mxu0 0.0
    %3329 = vmatpush1.msra.mxu0 0.0
    %3330 = vmatprep.subr.mxu0 0.0
    %3331 = vmatpush1.msra.mxu0 0.0
    %3332 = vmatprep.subr.mxu0 0.0
    %3333 = vmatpush1.msra.mxu0 0.0
    %3334 = vmatprep.subr.mxu0 0.0
    %3335 = vmatpush1.msra.mxu0 0.0
    %3336 = vmatprep.subr.mxu0 0.0
    %v3337 = vand.u32 %v32, 4294901760
    %v3338 = vsub.f32 %v32, %v3337
    %3339 = vmatpush1.msra.mxu0 %v3338
    %3340 = vmatprep.subr.mxu0 0.0
    %v3341 = vand.u32 %v31, 4294901760
    %v3342 = vsub.f32 %v31, %v3341
    %3343 = vmatpush1.msra.mxu0 %v3342
    %3344 = vmatprep.subr.mxu0 0.0
    %v3345 = vand.u32 %v30, 4294901760
    %v3346 = vsub.f32 %v30, %v3345
    %3347 = vmatpush1.msra.mxu0 %v3346
    %3348 = vmatprep.subr.mxu0 0.0
    %v3349 = vand.u32 %v29, 4294901760
    %v3350 = vsub.f32 %v29, %v3349
    %3351 = vmatpush1.msra.mxu0 %v3350
    %3352 = vmatprep.subr.mxu0 0.0
    %3353 = vmatpush2.msra.mxu0 0.0
    %3354 = vmatprep.subr.mxu0 0.0
    %3355 = vmatpush2.msra.mxu0 0.0
    %3356 = vmatprep.subr.mxu0 0.0
    %3357 = vmatpush2.msra.mxu0 0.0
    %3358 = vmatprep.subr.mxu0 0.0
    %3359 = vmatpush2.msra.mxu0 0.0
    %3360 = vmatprep.subr.mxu0 0.0
    %3361 = vmatpush2.msra.mxu0 0.0
    %3362 = vmatprep.subr.mxu0 0.0
    %3363 = vmatpush2.msra.mxu0 0.0
    %3364 = vmatprep.subr.mxu0 0.0
    %3365 = vmatpush2.msra.mxu0 0.0
    %3366 = vmatprep.subr.mxu0 0.0
    %3367 = vmatpush2.msra.mxu0 0.0
    %3368 = vmatprep.subr.mxu0 0.0
    %3369 = vmatpush2.msra.mxu0 0.0
    %3370 = vmatprep.subr.mxu0 0.0
    %3371 = vmatpush2.msra.mxu0 0.0
    %3372 = vmatprep.subr.mxu0 0.0
    %3373 = vmatpush2.msra.mxu0 0.0
    %3374 = vmatprep.subr.mxu0 0.0
    %3375 = vmatpush2.msra.mxu0 0.0
    %3376 = vmatprep.subr.mxu0 0.0
    %3377 = vmatpush2.msra.mxu0 0.0
    %3378 = vmatprep.subr.mxu0 0.0
    %3379 = vmatpush2.msra.mxu0 0.0
    %3380 = vmatprep.subr.mxu0 0.0
    %3381 = vmatpush2.msra.mxu0 0.0
    %3382 = vmatprep.subr.mxu0 0.0
    %3383 = vmatpush2.msra.mxu0 0.0
    %3384 = vmatprep.mubr.f32.mxu0 0.0
    %v3385 = vand.u32 %v3140, 4294901760
    %v3386 = vsub.f32 %v3140, %v3385
    %3387 = vmatmul.mubr.f32.gmra.mxu0 %v3386
    %v3388 = vpop.f32.mrf.mxu0
    %v3389 = vadd.f32 %v3309, %v3388
    %v3390 = vpop.f32.mrf.mxu0
    %3391 = vdwg.mxu0
    %3392 = vmatprep.subr.mxu0 0.0
    %3393 = vmatpush1.msra.mxu0 0.0
    %3394 = vmatprep.subr.mxu0 0.0
    %3395 = vmatpush1.msra.mxu0 0.0
    %3396 = vmatprep.subr.mxu0 0.0
    %3397 = vmatpush1.msra.mxu0 0.0
    %3398 = vmatprep.subr.mxu0 0.0
    %3399 = vmatpush1.msra.mxu0 0.0
    %3400 = vmatprep.subr.mxu0 0.0
    %3401 = vmatpush1.msra.mxu0 0.0
    %3402 = vmatprep.subr.mxu0 0.0
    %3403 = vmatpush1.msra.mxu0 0.0
    %3404 = vmatprep.subr.mxu0 0.0
    %3405 = vmatpush1.msra.mxu0 0.0
    %3406 = vmatprep.subr.mxu0 0.0
    %3407 = vmatpush1.msra.mxu0 0.0
    %3408 = vmatprep.subr.mxu0 0.0
    %3409 = vmatpush1.msra.mxu0 0.0
    %3410 = vmatprep.subr.mxu0 0.0
    %3411 = vmatpush1.msra.mxu0 0.0
    %3412 = vmatprep.subr.mxu0 0.0
    %3413 = vmatpush1.msra.mxu0 0.0
    %3414 = vmatprep.subr.mxu0 0.0
    %3415 = vmatpush1.msra.mxu0 0.0
    %3416 = vmatprep.subr.mxu0 0.0
    %v3417 = vand.u32 %v32, 4294901760
    %3418 = vmatpush1.msra.mxu0 %v3417
    %3419 = vmatprep.subr.mxu0 0.0
    %v3420 = vand.u32 %v31, 4294901760
    %3421 = vmatpush1.msra.mxu0 %v3420
    %3422 = vmatprep.subr.mxu0 0.0
    %v3423 = vand.u32 %v30, 4294901760
    %3424 = vmatpush1.msra.mxu0 %v3423
    %3425 = vmatprep.subr.mxu0 0.0
    %v3426 = vand.u32 %v29, 4294901760
    %3427 = vmatpush1.msra.mxu0 %v3426
    %3428 = vmatprep.subr.mxu0 0.0
    %3429 = vmatpush2.msra.mxu0 0.0
    %3430 = vmatprep.subr.mxu0 0.0
    %3431 = vmatpush2.msra.mxu0 0.0
    %3432 = vmatprep.subr.mxu0 0.0
    %3433 = vmatpush2.msra.mxu0 0.0
    %3434 = vmatprep.subr.mxu0 0.0
    %3435 = vmatpush2.msra.mxu0 0.0
    %3436 = vmatprep.subr.mxu0 0.0
    %3437 = vmatpush2.msra.mxu0 0.0
    %3438 = vmatprep.subr.mxu0 0.0
    %3439 = vmatpush2.msra.mxu0 0.0
    %3440 = vmatprep.subr.mxu0 0.0
    %3441 = vmatpush2.msra.mxu0 0.0
    %3442 = vmatprep.subr.mxu0 0.0
    %3443 = vmatpush2.msra.mxu0 0.0
    %3444 = vmatprep.subr.mxu0 0.0
    %3445 = vmatpush2.msra.mxu0 0.0
    %3446 = vmatprep.subr.mxu0 0.0
    %3447 = vmatpush2.msra.mxu0 0.0
    %3448 = vmatprep.subr.mxu0 0.0
    %3449 = vmatpush2.msra.mxu0 0.0
    %3450 = vmatprep.subr.mxu0 0.0
    %3451 = vmatpush2.msra.mxu0 0.0
    %3452 = vmatprep.subr.mxu0 0.0
    %3453 = vmatpush2.msra.mxu0 0.0
    %3454 = vmatprep.subr.mxu0 0.0
    %3455 = vmatpush2.msra.mxu0 0.0
    %3456 = vmatprep.subr.mxu0 0.0
    %3457 = vmatpush2.msra.mxu0 0.0
    %3458 = vmatprep.subr.mxu0 0.0
    %3459 = vmatpush2.msra.mxu0 0.0
    %3460 = vmatprep.mubr.f32.mxu0 0.0
    %v3461 = vand.u32 %v3140, 4294901760
    %v3462 = vsub.f32 %v3140, %v3461
    %v3463 = vand.u32 %v3462, 4294901760
    %3464 = vmatmul.mubr.f32.gmra.mxu0 %v3463
    %v3465 = vpop.f32.mrf.mxu0
    %v3466 = vadd.f32 %v3389, %v3465
    %v3467 = vpop.f32.mrf.mxu0
    %3468 = vdwg.mxu0
    %3469 = vmatprep.subr.mxu0 0.0
    %3470 = vmatpush1.msra.mxu0 0.0
    %3471 = vmatprep.subr.mxu0 0.0
    %3472 = vmatpush1.msra.mxu0 0.0
    %3473 = vmatprep.subr.mxu0 0.0
    %3474 = vmatpush1.msra.mxu0 0.0
    %3475 = vmatprep.subr.mxu0 0.0
    %3476 = vmatpush1.msra.mxu0 0.0
    %3477 = vmatprep.subr.mxu0 0.0
    %3478 = vmatpush1.msra.mxu0 0.0
    %3479 = vmatprep.subr.mxu0 0.0
    %3480 = vmatpush1.msra.mxu0 0.0
    %3481 = vmatprep.subr.mxu0 0.0
    %3482 = vmatpush1.msra.mxu0 0.0
    %3483 = vmatprep.subr.mxu0 0.0
    %3484 = vmatpush1.msra.mxu0 0.0
    %3485 = vmatprep.subr.mxu0 0.0
    %3486 = vmatpush1.msra.mxu0 0.0
    %3487 = vmatprep.subr.mxu0 0.0
    %3488 = vmatpush1.msra.mxu0 0.0
    %3489 = vmatprep.subr.mxu0 0.0
    %3490 = vmatpush1.msra.mxu0 0.0
    %3491 = vmatprep.subr.mxu0 0.0
    %3492 = vmatpush1.msra.mxu0 0.0
    %3493 = vmatprep.subr.mxu0 0.0
    %v3494 = vand.u32 %v32, 4294901760
    %v3495 = vsub.f32 %v32, %v3494
    %v3496 = vand.u32 %v3495, 4294901760
    %3497 = vmatpush1.msra.mxu0 %v3496
    %3498 = vmatprep.subr.mxu0 0.0
    %v3499 = vand.u32 %v31, 4294901760
    %v3500 = vsub.f32 %v31, %v3499
    %v3501 = vand.u32 %v3500, 4294901760
    %3502 = vmatpush1.msra.mxu0 %v3501
    %3503 = vmatprep.subr.mxu0 0.0
    %v3504 = vand.u32 %v30, 4294901760
    %v3505 = vsub.f32 %v30, %v3504
    %v3506 = vand.u32 %v3505, 4294901760
    %3507 = vmatpush1.msra.mxu0 %v3506
    %3508 = vmatprep.subr.mxu0 0.0
    %v3509 = vand.u32 %v29, 4294901760
    %v3510 = vsub.f32 %v29, %v3509
    %v3511 = vand.u32 %v3510, 4294901760
    %3512 = vmatpush1.msra.mxu0 %v3511
    %3513 = vmatprep.subr.mxu0 0.0
    %3514 = vmatpush2.msra.mxu0 0.0
    %3515 = vmatprep.subr.mxu0 0.0
    %3516 = vmatpush2.msra.mxu0 0.0
    %3517 = vmatprep.subr.mxu0 0.0
    %3518 = vmatpush2.msra.mxu0 0.0
    %3519 = vmatprep.subr.mxu0 0.0
    %3520 = vmatpush2.msra.mxu0 0.0
    %3521 = vmatprep.subr.mxu0 0.0
    %3522 = vmatpush2.msra.mxu0 0.0
    %3523 = vmatprep.subr.mxu0 0.0
    %3524 = vmatpush2.msra.mxu0 0.0
    %3525 = vmatprep.subr.mxu0 0.0
    %3526 = vmatpush2.msra.mxu0 0.0
    %3527 = vmatprep.subr.mxu0 0.0
    %3528 = vmatpush2.msra.mxu0 0.0
    %3529 = vmatprep.subr.mxu0 0.0
    %3530 = vmatpush2.msra.mxu0 0.0
    %3531 = vmatprep.subr.mxu0 0.0
    %3532 = vmatpush2.msra.mxu0 0.0
    %3533 = vmatprep.subr.mxu0 0.0
    %3534 = vmatpush2.msra.mxu0 0.0
    %3535 = vmatprep.subr.mxu0 0.0
    %3536 = vmatpush2.msra.mxu0 0.0
    %3537 = vmatprep.subr.mxu0 0.0
    %3538 = vmatpush2.msra.mxu0 0.0
    %3539 = vmatprep.subr.mxu0 0.0
    %3540 = vmatpush2.msra.mxu0 0.0
    %3541 = vmatprep.subr.mxu0 0.0
    %3542 = vmatpush2.msra.mxu0 0.0
    %3543 = vmatprep.subr.mxu0 0.0
    %3544 = vmatpush2.msra.mxu0 0.0
    %3545 = vmatprep.mubr.f32.mxu0 0.0
    %v3546 = vand.u32 %v3140, 4294901760
    %3547 = vmatmul.mubr.f32.gmra.mxu0 %v3546
    %v3548 = vpop.f32.mrf.mxu0
    %v3549 = vadd.f32 %v3466, %v3548
    %v3550 = vpop.f32.mrf.mxu0
    %3551 = vdwg.mxu0
    %3552 = vmatprep.subr.mxu0 0.0
    %3553 = vmatpush1.msra.mxu0 0.0
    %3554 = vmatprep.subr.mxu0 0.0
    %3555 = vmatpush1.msra.mxu0 0.0
    %3556 = vmatprep.subr.mxu0 0.0
    %3557 = vmatpush1.msra.mxu0 0.0
    %3558 = vmatprep.subr.mxu0 0.0
    %3559 = vmatpush1.msra.mxu0 0.0
    %3560 = vmatprep.subr.mxu0 0.0
    %3561 = vmatpush1.msra.mxu0 0.0
    %3562 = vmatprep.subr.mxu0 0.0
    %3563 = vmatpush1.msra.mxu0 0.0
    %3564 = vmatprep.subr.mxu0 0.0
    %3565 = vmatpush1.msra.mxu0 0.0
    %3566 = vmatprep.subr.mxu0 0.0
    %3567 = vmatpush1.msra.mxu0 0.0
    %3568 = vmatprep.subr.mxu0 0.0
    %3569 = vmatpush1.msra.mxu0 0.0
    %3570 = vmatprep.subr.mxu0 0.0
    %3571 = vmatpush1.msra.mxu0 0.0
    %3572 = vmatprep.subr.mxu0 0.0
    %3573 = vmatpush1.msra.mxu0 0.0
    %3574 = vmatprep.subr.mxu0 0.0
    %3575 = vmatpush1.msra.mxu0 0.0
    %3576 = vmatprep.subr.mxu0 0.0
    %v3577 = vand.u32 %v32, 4294901760
    %3578 = vmatpush1.msra.mxu0 %v3577
    %3579 = vmatprep.subr.mxu0 0.0
    %v3580 = vand.u32 %v31, 4294901760
    %3581 = vmatpush1.msra.mxu0 %v3580
    %3582 = vmatprep.subr.mxu0 0.0
    %v3583 = vand.u32 %v30, 4294901760
    %3584 = vmatpush1.msra.mxu0 %v3583
    %3585 = vmatprep.subr.mxu0 0.0
    %v3586 = vand.u32 %v29, 4294901760
    %3587 = vmatpush1.msra.mxu0 %v3586
    %3588 = vmatprep.subr.mxu0 0.0
    %3589 = vmatpush2.msra.mxu0 0.0
    %3590 = vmatprep.subr.mxu0 0.0
    %3591 = vmatpush2.msra.mxu0 0.0
    %3592 = vmatprep.subr.mxu0 0.0
    %3593 = vmatpush2.msra.mxu0 0.0
    %3594 = vmatprep.subr.mxu0 0.0
    %3595 = vmatpush2.msra.mxu0 0.0
    %3596 = vmatprep.subr.mxu0 0.0
    %3597 = vmatpush2.msra.mxu0 0.0
    %3598 = vmatprep.subr.mxu0 0.0
    %3599 = vmatpush2.msra.mxu0 0.0
    %3600 = vmatprep.subr.mxu0 0.0
    %3601 = vmatpush2.msra.mxu0 0.0
    %3602 = vmatprep.subr.mxu0 0.0
    %3603 = vmatpush2.msra.mxu0 0.0
    %3604 = vmatprep.subr.mxu0 0.0
    %3605 = vmatpush2.msra.mxu0 0.0
    %3606 = vmatprep.subr.mxu0 0.0
    %3607 = vmatpush2.msra.mxu0 0.0
    %3608 = vmatprep.subr.mxu0 0.0
    %3609 = vmatpush2.msra.mxu0 0.0
    %3610 = vmatprep.subr.mxu0 0.0
    %3611 = vmatpush2.msra.mxu0 0.0
    %3612 = vmatprep.subr.mxu0 0.0
    %3613 = vmatpush2.msra.mxu0 0.0
    %3614 = vmatprep.subr.mxu0 0.0
    %3615 = vmatpush2.msra.mxu0 0.0
    %3616 = vmatprep.subr.mxu0 0.0
    %3617 = vmatpush2.msra.mxu0 0.0
    %3618 = vmatprep.subr.mxu0 0.0
    %3619 = vmatpush2.msra.mxu0 0.0
    %3620 = vmatprep.mubr.f32.mxu0 0.0
    %v3621 = vand.u32 %v3140, 4294901760
    %3622 = vmatmul.mubr.f32.gmra.mxu0 %v3621
    %v3623 = vpop.f32.mrf.mxu0
    %v3624 = vadd.f32 %v3549, %v3623
    %v3625 = vpop.f32.mrf.mxu0
    %3626 = vdwg.mxu0
    %v3627 = vadd.f32 %v3139, %v3624
    %v3628 = vtanh.pop %v3627
    %v3629 = vadd.f32 %v3628, 1.0
    %v3630 = vmul.f32 %v3629, 0.5
    %v3631 = vmul.f32 %v3127, %v3630
    %3633 = vrot.lane.b32.xlu0 %v3628, 64
    %v3634 = vpop.permute.xlu0 %3633
    %v3636 = vmul.f32 %v3630, %v3634
    %3638 = vrot.lane.b32.xlu0 %v3636, 32
    %v3639 = vpop.permute.xlu0 %3638
    %v3641 = vadd.f32 %v3631, %v3639
    %v3642 = vtanh.pop %v3641
    %3644 = vrot.lane.b32.xlu0 %v3642, 64
    %v3645 = vpop.permute.xlu0 %3644
    %v3647 = vmul.f32 %v3630, %v3645
    %3649 = vrot.lane.b32.xlu0 %v3647, 32
    %v3650 = vpop.permute.xlu0 %3649
    %3652 = vst.msk [vmem:[#allocation2 + $0x14] sm:$0xf] %vm1070, %v3650
    %v3653 = vsel %vm554, %v552, %v542
    %v3654 = vsel %vm556, %v3650, 0
    %3656 = vmatprep.subr.mxu0 0.0
    %3657 = vmatpush1.msra.mxu0 0.0
    %3658 = vmatprep.subr.mxu0 0.0
    %3659 = vmatpush1.msra.mxu0 0.0
    %3660 = vmatprep.subr.mxu0 0.0
    %3661 = vmatpush1.msra.mxu0 0.0
    %3662 = vmatprep.subr.mxu0 0.0
    %3663 = vmatpush1.msra.mxu0 0.0
    %3664 = vmatprep.subr.mxu0 0.0
    %3665 = vmatpush1.msra.mxu0 0.0
    %3666 = vmatprep.subr.mxu0 0.0
    %3667 = vmatpush1.msra.mxu0 0.0
    %3668 = vmatprep.subr.mxu0 0.0
    %3669 = vmatpush1.msra.mxu0 0.0
    %3670 = vmatprep.subr.mxu0 0.0
    %3671 = vmatpush1.msra.mxu0 0.0
    %3672 = vmatprep.subr.mxu0 0.0
    %3673 = vmatpush1.msra.mxu0 0.0
    %3674 = vmatprep.subr.mxu0 0.0
    %3675 = vmatpush1.msra.mxu0 0.0
    %3676 = vmatprep.subr.mxu0 0.0
    %3677 = vmatpush1.msra.mxu0 0.0
    %3678 = vmatprep.subr.mxu0 0.0
    %3679 = vmatpush1.msra.mxu0 0.0
    %3680 = vmatprep.subr.mxu0 0.0
    %v3681 = vand.u32 %v32, 4294901760
    %3682 = vmatpush1.msra.mxu0 %v3681
    %3683 = vmatprep.subr.mxu0 0.0
    %v3684 = vand.u32 %v31, 4294901760
    %3685 = vmatpush1.msra.mxu0 %v3684
    %3686 = vmatprep.subr.mxu0 0.0
    %v3687 = vand.u32 %v30, 4294901760
    %3688 = vmatpush1.msra.mxu0 %v3687
    %3689 = vmatprep.subr.mxu0 0.0
    %v3690 = vand.u32 %v29, 4294901760
    %3691 = vmatpush1.msra.mxu0 %v3690
    %3692 = vmatprep.subr.mxu0 0.0
    %3693 = vmatpush2.msra.mxu0 0.0
    %3694 = vmatprep.subr.mxu0 0.0
    %3695 = vmatpush2.msra.mxu0 0.0
    %3696 = vmatprep.subr.mxu0 0.0
    %3697 = vmatpush2.msra.mxu0 0.0
    %3698 = vmatprep.subr.mxu0 0.0
    %3699 = vmatpush2.msra.mxu0 0.0
    %3700 = vmatprep.subr.mxu0 0.0
    %3701 = vmatpush2.msra.mxu0 0.0
    %3702 = vmatprep.subr.mxu0 0.0
    %3703 = vmatpush2.msra.mxu0 0.0
    %3704 = vmatprep.subr.mxu0 0.0
    %3705 = vmatpush2.msra.mxu0 0.0
    %3706 = vmatprep.subr.mxu0 0.0
    %3707 = vmatpush2.msra.mxu0 0.0
    %3708 = vmatprep.subr.mxu0 0.0
    %3709 = vmatpush2.msra.mxu0 0.0
    %3710 = vmatprep.subr.mxu0 0.0
    %3711 = vmatpush2.msra.mxu0 0.0
    %3712 = vmatprep.subr.mxu0 0.0
    %3713 = vmatpush2.msra.mxu0 0.0
    %3714 = vmatprep.subr.mxu0 0.0
    %3715 = vmatpush2.msra.mxu0 0.0
    %3716 = vmatprep.subr.mxu0 0.0
    %3717 = vmatpush2.msra.mxu0 0.0
    %3718 = vmatprep.subr.mxu0 0.0
    %3719 = vmatpush2.msra.mxu0 0.0
    %3720 = vmatprep.subr.mxu0 0.0
    %3721 = vmatpush2.msra.mxu0 0.0
    %3722 = vmatprep.subr.mxu0 0.0
    %3723 = vmatpush2.msra.mxu0 0.0
    %3724 = vmatprep.mubr.f32.mxu0 0.0
    %v3725 = vand.u32 %v3654, 4294901760
    %v3726 = vsub.f32 %v3654, %v3725
    %v3727 = vand.u32 %v3726, 4294901760
    %v3728 = vsub.f32 %v3726, %v3727
    %v3729 = vand.u32 %v3728, 4294901760
    %3730 = vmatmul.mubr.f32.gmra.mxu0 %v3729
    %v3731 = vpop.f32.mrf.mxu0
    %v3732 = vadd.f32 0.0, %v3731
    %v3733 = vpop.f32.mrf.mxu0
    %3734 = vdwg.mxu0
    %3735 = vmatprep.subr.mxu0 0.0
    %3736 = vmatpush1.msra.mxu0 0.0
    %3737 = vmatprep.subr.mxu0 0.0
    %3738 = vmatpush1.msra.mxu0 0.0
    %3739 = vmatprep.subr.mxu0 0.0
    %3740 = vmatpush1.msra.mxu0 0.0
    %3741 = vmatprep.subr.mxu0 0.0
    %3742 = vmatpush1.msra.mxu0 0.0
    %3743 = vmatprep.subr.mxu0 0.0
    %3744 = vmatpush1.msra.mxu0 0.0
    %3745 = vmatprep.subr.mxu0 0.0
    %3746 = vmatpush1.msra.mxu0 0.0
    %3747 = vmatprep.subr.mxu0 0.0
    %3748 = vmatpush1.msra.mxu0 0.0
    %3749 = vmatprep.subr.mxu0 0.0
    %3750 = vmatpush1.msra.mxu0 0.0
    %3751 = vmatprep.subr.mxu0 0.0
    %3752 = vmatpush1.msra.mxu0 0.0
    %3753 = vmatprep.subr.mxu0 0.0
    %3754 = vmatpush1.msra.mxu0 0.0
    %3755 = vmatprep.subr.mxu0 0.0
    %3756 = vmatpush1.msra.mxu0 0.0
    %3757 = vmatprep.subr.mxu0 0.0
    %3758 = vmatpush1.msra.mxu0 0.0
    %3759 = vmatprep.subr.mxu0 0.0
    %v3760 = vand.u32 %v32, 4294901760
    %v3761 = vsub.f32 %v32, %v3760
    %v3762 = vand.u32 %v3761, 4294901760
    %v3763 = vsub.f32 %v3761, %v3762
    %v3764 = vand.u32 %v3763, 4294901760
    %3765 = vmatpush1.msra.mxu0 %v3764
    %3766 = vmatprep.subr.mxu0 0.0
    %v3767 = vand.u32 %v31, 4294901760
    %v3768 = vsub.f32 %v31, %v3767
    %v3769 = vand.u32 %v3768, 4294901760
    %v3770 = vsub.f32 %v3768, %v3769
    %v3771 = vand.u32 %v3770, 4294901760
    %3772 = vmatpush1.msra.mxu0 %v3771
    %3773 = vmatprep.subr.mxu0 0.0
    %v3774 = vand.u32 %v30, 4294901760
    %v3775 = vsub.f32 %v30, %v3774
    %v3776 = vand.u32 %v3775, 4294901760
    %v3777 = vsub.f32 %v3775, %v3776
    %v3778 = vand.u32 %v3777, 4294901760
    %3779 = vmatpush1.msra.mxu0 %v3778
    %3780 = vmatprep.subr.mxu0 0.0
    %v3781 = vand.u32 %v29, 4294901760
    %v3782 = vsub.f32 %v29, %v3781
    %v3783 = vand.u32 %v3782, 4294901760
    %v3784 = vsub.f32 %v3782, %v3783
    %v3785 = vand.u32 %v3784, 4294901760
    %3786 = vmatpush1.msra.mxu0 %v3785
    %3787 = vmatprep.subr.mxu0 0.0
    %3788 = vmatpush2.msra.mxu0 0.0
    %3789 = vmatprep.subr.mxu0 0.0
    %3790 = vmatpush2.msra.mxu0 0.0
    %3791 = vmatprep.subr.mxu0 0.0
    %3792 = vmatpush2.msra.mxu0 0.0
    %3793 = vmatprep.subr.mxu0 0.0
    %3794 = vmatpush2.msra.mxu0 0.0
    %3795 = vmatprep.subr.mxu0 0.0
    %3796 = vmatpush2.msra.mxu0 0.0
    %3797 = vmatprep.subr.mxu0 0.0
    %3798 = vmatpush2.msra.mxu0 0.0
    %3799 = vmatprep.subr.mxu0 0.0
    %3800 = vmatpush2.msra.mxu0 0.0
    %3801 = vmatprep.subr.mxu0 0.0
    %3802 = vmatpush2.msra.mxu0 0.0
    %3803 = vmatprep.subr.mxu0 0.0
    %3804 = vmatpush2.msra.mxu0 0.0
    %3805 = vmatprep.subr.mxu0 0.0
    %3806 = vmatpush2.msra.mxu0 0.0
    %3807 = vmatprep.subr.mxu0 0.0
    %3808 = vmatpush2.msra.mxu0 0.0
    %3809 = vmatprep.subr.mxu0 0.0
    %3810 = vmatpush2.msra.mxu0 0.0
    %3811 = vmatprep.subr.mxu0 0.0
    %3812 = vmatpush2.msra.mxu0 0.0
    %3813 = vmatprep.subr.mxu0 0.0
    %3814 = vmatpush2.msra.mxu0 0.0
    %3815 = vmatprep.subr.mxu0 0.0
    %3816 = vmatpush2.msra.mxu0 0.0
    %3817 = vmatprep.subr.mxu0 0.0
    %3818 = vmatpush2.msra.mxu0 0.0
    %3819 = vmatprep.mubr.f32.mxu0 0.0
    %v3820 = vand.u32 %v3654, 4294901760
    %3821 = vmatmul.mubr.f32.gmra.mxu0 %v3820
    %v3822 = vpop.f32.mrf.mxu0
    %v3823 = vadd.f32 %v3732, %v3822
    %v3824 = vpop.f32.mrf.mxu0
    %3825 = vdwg.mxu0
    %3826 = vmatprep.subr.mxu0 0.0
    %3827 = vmatpush1.msra.mxu0 0.0
    %3828 = vmatprep.subr.mxu0 0.0
    %3829 = vmatpush1.msra.mxu0 0.0
    %3830 = vmatprep.subr.mxu0 0.0
    %3831 = vmatpush1.msra.mxu0 0.0
    %3832 = vmatprep.subr.mxu0 0.0
    %3833 = vmatpush1.msra.mxu0 0.0
    %3834 = vmatprep.subr.mxu0 0.0
    %3835 = vmatpush1.msra.mxu0 0.0
    %3836 = vmatprep.subr.mxu0 0.0
    %3837 = vmatpush1.msra.mxu0 0.0
    %3838 = vmatprep.subr.mxu0 0.0
    %3839 = vmatpush1.msra.mxu0 0.0
    %3840 = vmatprep.subr.mxu0 0.0
    %3841 = vmatpush1.msra.mxu0 0.0
    %3842 = vmatprep.subr.mxu0 0.0
    %3843 = vmatpush1.msra.mxu0 0.0
    %3844 = vmatprep.subr.mxu0 0.0
    %3845 = vmatpush1.msra.mxu0 0.0
    %3846 = vmatprep.subr.mxu0 0.0
    %3847 = vmatpush1.msra.mxu0 0.0
    %3848 = vmatprep.subr.mxu0 0.0
    %3849 = vmatpush1.msra.mxu0 0.0
    %3850 = vmatprep.subr.mxu0 0.0
    %v3851 = vand.u32 %v32, 4294901760
    %v3852 = vsub.f32 %v32, %v3851
    %3853 = vmatpush1.msra.mxu0 %v3852
    %3854 = vmatprep.subr.mxu0 0.0
    %v3855 = vand.u32 %v31, 4294901760
    %v3856 = vsub.f32 %v31, %v3855
    %3857 = vmatpush1.msra.mxu0 %v3856
    %3858 = vmatprep.subr.mxu0 0.0
    %v3859 = vand.u32 %v30, 4294901760
    %v3860 = vsub.f32 %v30, %v3859
    %3861 = vmatpush1.msra.mxu0 %v3860
    %3862 = vmatprep.subr.mxu0 0.0
    %v3863 = vand.u32 %v29, 4294901760
    %v3864 = vsub.f32 %v29, %v3863
    %3865 = vmatpush1.msra.mxu0 %v3864
    %3866 = vmatprep.subr.mxu0 0.0
    %3867 = vmatpush2.msra.mxu0 0.0
    %3868 = vmatprep.subr.mxu0 0.0
    %3869 = vmatpush2.msra.mxu0 0.0
    %3870 = vmatprep.subr.mxu0 0.0
    %3871 = vmatpush2.msra.mxu0 0.0
    %3872 = vmatprep.subr.mxu0 0.0
    %3873 = vmatpush2.msra.mxu0 0.0
    %3874 = vmatprep.subr.mxu0 0.0
    %3875 = vmatpush2.msra.mxu0 0.0
    %3876 = vmatprep.subr.mxu0 0.0
    %3877 = vmatpush2.msra.mxu0 0.0
    %3878 = vmatprep.subr.mxu0 0.0
    %3879 = vmatpush2.msra.mxu0 0.0
    %3880 = vmatprep.subr.mxu0 0.0
    %3881 = vmatpush2.msra.mxu0 0.0
    %3882 = vmatprep.subr.mxu0 0.0
    %3883 = vmatpush2.msra.mxu0 0.0
    %3884 = vmatprep.subr.mxu0 0.0
    %3885 = vmatpush2.msra.mxu0 0.0
    %3886 = vmatprep.subr.mxu0 0.0
    %3887 = vmatpush2.msra.mxu0 0.0
    %3888 = vmatprep.subr.mxu0 0.0
    %3889 = vmatpush2.msra.mxu0 0.0
    %3890 = vmatprep.subr.mxu0 0.0
    %3891 = vmatpush2.msra.mxu0 0.0
    %3892 = vmatprep.subr.mxu0 0.0
    %3893 = vmatpush2.msra.mxu0 0.0
    %3894 = vmatprep.subr.mxu0 0.0
    %3895 = vmatpush2.msra.mxu0 0.0
    %3896 = vmatprep.subr.mxu0 0.0
    %3897 = vmatpush2.msra.mxu0 0.0
    %3898 = vmatprep.mubr.f32.mxu0 0.0
    %v3899 = vand.u32 %v3654, 4294901760
    %v3900 = vsub.f32 %v3654, %v3899
    %3901 = vmatmul.mubr.f32.gmra.mxu0 %v3900
    %v3902 = vpop.f32.mrf.mxu0
    %v3903 = vadd.f32 %v3823, %v3902
    %v3904 = vpop.f32.mrf.mxu0
    %3905 = vdwg.mxu0
    %3906 = vmatprep.subr.mxu0 0.0
    %3907 = vmatpush1.msra.mxu0 0.0
    %3908 = vmatprep.subr.mxu0 0.0
    %3909 = vmatpush1.msra.mxu0 0.0
    %3910 = vmatprep.subr.mxu0 0.0
    %3911 = vmatpush1.msra.mxu0 0.0
    %3912 = vmatprep.subr.mxu0 0.0
    %3913 = vmatpush1.msra.mxu0 0.0
    %3914 = vmatprep.subr.mxu0 0.0
    %3915 = vmatpush1.msra.mxu0 0.0
    %3916 = vmatprep.subr.mxu0 0.0
    %3917 = vmatpush1.msra.mxu0 0.0
    %3918 = vmatprep.subr.mxu0 0.0
    %3919 = vmatpush1.msra.mxu0 0.0
    %3920 = vmatprep.subr.mxu0 0.0
    %3921 = vmatpush1.msra.mxu0 0.0
    %3922 = vmatprep.subr.mxu0 0.0
    %3923 = vmatpush1.msra.mxu0 0.0
    %3924 = vmatprep.subr.mxu0 0.0
    %3925 = vmatpush1.msra.mxu0 0.0
    %3926 = vmatprep.subr.mxu0 0.0
    %3927 = vmatpush1.msra.mxu0 0.0
    %3928 = vmatprep.subr.mxu0 0.0
    %3929 = vmatpush1.msra.mxu0 0.0
    %3930 = vmatprep.subr.mxu0 0.0
    %v3931 = vand.u32 %v32, 4294901760
    %3932 = vmatpush1.msra.mxu0 %v3931
    %3933 = vmatprep.subr.mxu0 0.0
    %v3934 = vand.u32 %v31, 4294901760
    %3935 = vmatpush1.msra.mxu0 %v3934
    %3936 = vmatprep.subr.mxu0 0.0
    %v3937 = vand.u32 %v30, 4294901760
    %3938 = vmatpush1.msra.mxu0 %v3937
    %3939 = vmatprep.subr.mxu0 0.0
    %v3940 = vand.u32 %v29, 4294901760
    %3941 = vmatpush1.msra.mxu0 %v3940
    %3942 = vmatprep.subr.mxu0 0.0
    %3943 = vmatpush2.msra.mxu0 0.0
    %3944 = vmatprep.subr.mxu0 0.0
    %3945 = vmatpush2.msra.mxu0 0.0
    %3946 = vmatprep.subr.mxu0 0.0
    %3947 = vmatpush2.msra.mxu0 0.0
    %3948 = vmatprep.subr.mxu0 0.0
    %3949 = vmatpush2.msra.mxu0 0.0
    %3950 = vmatprep.subr.mxu0 0.0
    %3951 = vmatpush2.msra.mxu0 0.0
    %3952 = vmatprep.subr.mxu0 0.0
    %3953 = vmatpush2.msra.mxu0 0.0
    %3954 = vmatprep.subr.mxu0 0.0
    %3955 = vmatpush2.msra.mxu0 0.0
    %3956 = vmatprep.subr.mxu0 0.0
    %3957 = vmatpush2.msra.mxu0 0.0
    %3958 = vmatprep.subr.mxu0 0.0
    %3959 = vmatpush2.msra.mxu0 0.0
    %3960 = vmatprep.subr.mxu0 0.0
    %3961 = vmatpush2.msra.mxu0 0.0
    %3962 = vmatprep.subr.mxu0 0.0
    %3963 = vmatpush2.msra.mxu0 0.0
    %3964 = vmatprep.subr.mxu0 0.0
    %3965 = vmatpush2.msra.mxu0 0.0
    %3966 = vmatprep.subr.mxu0 0.0
    %3967 = vmatpush2.msra.mxu0 0.0
    %3968 = vmatprep.subr.mxu0 0.0
    %3969 = vmatpush2.msra.mxu0 0.0
    %3970 = vmatprep.subr.mxu0 0.0
    %3971 = vmatpush2.msra.mxu0 0.0
    %3972 = vmatprep.subr.mxu0 0.0
    %3973 = vmatpush2.msra.mxu0 0.0
    %3974 = vmatprep.mubr.f32.mxu0 0.0
    %v3975 = vand.u32 %v3654, 4294901760
    %v3976 = vsub.f32 %v3654, %v3975
    %v3977 = vand.u32 %v3976, 4294901760
    %3978 = vmatmul.mubr.f32.gmra.mxu0 %v3977
    %v3979 = vpop.f32.mrf.mxu0
    %v3980 = vadd.f32 %v3903, %v3979
    %v3981 = vpop.f32.mrf.mxu0
    %3982 = vdwg.mxu0
    %3983 = vmatprep.subr.mxu0 0.0
    %3984 = vmatpush1.msra.mxu0 0.0
    %3985 = vmatprep.subr.mxu0 0.0
    %3986 = vmatpush1.msra.mxu0 0.0
    %3987 = vmatprep.subr.mxu0 0.0
    %3988 = vmatpush1.msra.mxu0 0.0
    %3989 = vmatprep.subr.mxu0 0.0
    %3990 = vmatpush1.msra.mxu0 0.0
    %3991 = vmatprep.subr.mxu0 0.0
    %3992 = vmatpush1.msra.mxu0 0.0
    %3993 = vmatprep.subr.mxu0 0.0
    %3994 = vmatpush1.msra.mxu0 0.0
    %3995 = vmatprep.subr.mxu0 0.0
    %3996 = vmatpush1.msra.mxu0 0.0
    %3997 = vmatprep.subr.mxu0 0.0
    %3998 = vmatpush1.msra.mxu0 0.0
    %3999 = vmatprep.subr.mxu0 0.0
    %4000 = vmatpush1.msra.mxu0 0.0
    %4001 = vmatprep.subr.mxu0 0.0
    %4002 = vmatpush1.msra.mxu0 0.0
    %4003 = vmatprep.subr.mxu0 0.0
    %4004 = vmatpush1.msra.mxu0 0.0
    %4005 = vmatprep.subr.mxu0 0.0
    %4006 = vmatpush1.msra.mxu0 0.0
    %4007 = vmatprep.subr.mxu0 0.0
    %v4008 = vand.u32 %v32, 4294901760
    %v4009 = vsub.f32 %v32, %v4008
    %v4010 = vand.u32 %v4009, 4294901760
    %4011 = vmatpush1.msra.mxu0 %v4010
    %4012 = vmatprep.subr.mxu0 0.0
    %v4013 = vand.u32 %v31, 4294901760
    %v4014 = vsub.f32 %v31, %v4013
    %v4015 = vand.u32 %v4014, 4294901760
    %4016 = vmatpush1.msra.mxu0 %v4015
    %4017 = vmatprep.subr.mxu0 0.0
    %v4018 = vand.u32 %v30, 4294901760
    %v4019 = vsub.f32 %v30, %v4018
    %v4020 = vand.u32 %v4019, 4294901760
    %4021 = vmatpush1.msra.mxu0 %v4020
    %4022 = vmatprep.subr.mxu0 0.0
    %v4023 = vand.u32 %v29, 4294901760
    %v4024 = vsub.f32 %v29, %v4023
    %v4025 = vand.u32 %v4024, 4294901760
    %4026 = vmatpush1.msra.mxu0 %v4025
    %4027 = vmatprep.subr.mxu0 0.0
    %4028 = vmatpush2.msra.mxu0 0.0
    %4029 = vmatprep.subr.mxu0 0.0
    %4030 = vmatpush2.msra.mxu0 0.0
    %4031 = vmatprep.subr.mxu0 0.0
    %4032 = vmatpush2.msra.mxu0 0.0
    %4033 = vmatprep.subr.mxu0 0.0
    %4034 = vmatpush2.msra.mxu0 0.0
    %4035 = vmatprep.subr.mxu0 0.0
    %4036 = vmatpush2.msra.mxu0 0.0
    %4037 = vmatprep.subr.mxu0 0.0
    %4038 = vmatpush2.msra.mxu0 0.0
    %4039 = vmatprep.subr.mxu0 0.0
    %4040 = vmatpush2.msra.mxu0 0.0
    %4041 = vmatprep.subr.mxu0 0.0
    %4042 = vmatpush2.msra.mxu0 0.0
    %4043 = vmatprep.subr.mxu0 0.0
    %4044 = vmatpush2.msra.mxu0 0.0
    %4045 = vmatprep.subr.mxu0 0.0
    %4046 = vmatpush2.msra.mxu0 0.0
    %4047 = vmatprep.subr.mxu0 0.0
    %4048 = vmatpush2.msra.mxu0 0.0
    %4049 = vmatprep.subr.mxu0 0.0
    %4050 = vmatpush2.msra.mxu0 0.0
    %4051 = vmatprep.subr.mxu0 0.0
    %4052 = vmatpush2.msra.mxu0 0.0
    %4053 = vmatprep.subr.mxu0 0.0
    %4054 = vmatpush2.msra.mxu0 0.0
    %4055 = vmatprep.subr.mxu0 0.0
    %4056 = vmatpush2.msra.mxu0 0.0
    %4057 = vmatprep.subr.mxu0 0.0
    %4058 = vmatpush2.msra.mxu0 0.0
    %4059 = vmatprep.mubr.f32.mxu0 0.0
    %v4060 = vand.u32 %v3654, 4294901760
    %4061 = vmatmul.mubr.f32.gmra.mxu0 %v4060
    %v4062 = vpop.f32.mrf.mxu0
    %v4063 = vadd.f32 %v3980, %v4062
    %v4064 = vpop.f32.mrf.mxu0
    %4065 = vdwg.mxu0
    %4066 = vmatprep.subr.mxu0 0.0
    %4067 = vmatpush1.msra.mxu0 0.0
    %4068 = vmatprep.subr.mxu0 0.0
    %4069 = vmatpush1.msra.mxu0 0.0
    %4070 = vmatprep.subr.mxu0 0.0
    %4071 = vmatpush1.msra.mxu0 0.0
    %4072 = vmatprep.subr.mxu0 0.0
    %4073 = vmatpush1.msra.mxu0 0.0
    %4074 = vmatprep.subr.mxu0 0.0
    %4075 = vmatpush1.msra.mxu0 0.0
    %4076 = vmatprep.subr.mxu0 0.0
    %4077 = vmatpush1.msra.mxu0 0.0
    %4078 = vmatprep.subr.mxu0 0.0
    %4079 = vmatpush1.msra.mxu0 0.0
    %4080 = vmatprep.subr.mxu0 0.0
    %4081 = vmatpush1.msra.mxu0 0.0
    %4082 = vmatprep.subr.mxu0 0.0
    %4083 = vmatpush1.msra.mxu0 0.0
    %4084 = vmatprep.subr.mxu0 0.0
    %4085 = vmatpush1.msra.mxu0 0.0
    %4086 = vmatprep.subr.mxu0 0.0
    %4087 = vmatpush1.msra.mxu0 0.0
    %4088 = vmatprep.subr.mxu0 0.0
    %4089 = vmatpush1.msra.mxu0 0.0
    %4090 = vmatprep.subr.mxu0 0.0
    %v4091 = vand.u32 %v32, 4294901760
    %4092 = vmatpush1.msra.mxu0 %v4091
    %4093 = vmatprep.subr.mxu0 0.0
    %v4094 = vand.u32 %v31, 4294901760
    %4095 = vmatpush1.msra.mxu0 %v4094
    %4096 = vmatprep.subr.mxu0 0.0
    %v4097 = vand.u32 %v30, 4294901760
    %4098 = vmatpush1.msra.mxu0 %v4097
    %4099 = vmatprep.subr.mxu0 0.0
    %v4100 = vand.u32 %v29, 4294901760
    %4101 = vmatpush1.msra.mxu0 %v4100
    %4102 = vmatprep.subr.mxu0 0.0
    %4103 = vmatpush2.msra.mxu0 0.0
    %4104 = vmatprep.subr.mxu0 0.0
    %4105 = vmatpush2.msra.mxu0 0.0
    %4106 = vmatprep.subr.mxu0 0.0
    %4107 = vmatpush2.msra.mxu0 0.0
    %4108 = vmatprep.subr.mxu0 0.0
    %4109 = vmatpush2.msra.mxu0 0.0
    %4110 = vmatprep.subr.mxu0 0.0
    %4111 = vmatpush2.msra.mxu0 0.0
    %4112 = vmatprep.subr.mxu0 0.0
    %4113 = vmatpush2.msra.mxu0 0.0
    %4114 = vmatprep.subr.mxu0 0.0
    %4115 = vmatpush2.msra.mxu0 0.0
    %4116 = vmatprep.subr.mxu0 0.0
    %4117 = vmatpush2.msra.mxu0 0.0
    %4118 = vmatprep.subr.mxu0 0.0
    %4119 = vmatpush2.msra.mxu0 0.0
    %4120 = vmatprep.subr.mxu0 0.0
    %4121 = vmatpush2.msra.mxu0 0.0
    %4122 = vmatprep.subr.mxu0 0.0
    %4123 = vmatpush2.msra.mxu0 0.0
    %4124 = vmatprep.subr.mxu0 0.0
    %4125 = vmatpush2.msra.mxu0 0.0
    %4126 = vmatprep.subr.mxu0 0.0
    %4127 = vmatpush2.msra.mxu0 0.0
    %4128 = vmatprep.subr.mxu0 0.0
    %4129 = vmatpush2.msra.mxu0 0.0
    %4130 = vmatprep.subr.mxu0 0.0
    %4131 = vmatpush2.msra.mxu0 0.0
    %4132 = vmatprep.subr.mxu0 0.0
    %4133 = vmatpush2.msra.mxu0 0.0
    %4134 = vmatprep.mubr.f32.mxu0 0.0
    %v4135 = vand.u32 %v3654, 4294901760
    %4136 = vmatmul.mubr.f32.gmra.mxu0 %v4135
    %v4137 = vpop.f32.mrf.mxu0
    %v4138 = vadd.f32 %v4063, %v4137
    %v4139 = vpop.f32.mrf.mxu0
    %4140 = vdwg.mxu0
    %v4141 = vadd.f32 %v3653, %v4138
    %v4142 = vtanh.pop %v4141
    %v4143 = vadd.f32 %v4142, 1.0
    %v4144 = vmul.f32 %v4143, 0.5
    %v4145 = vmul.f32 %v3641, %v4144
    %4147 = vrot.lane.b32.xlu0 %v4142, 64
    %v4148 = vpop.permute.xlu0 %4147
    %v4150 = vmul.f32 %v4144, %v4148
    %4152 = vrot.lane.b32.xlu0 %v4150, 32
    %v4153 = vpop.permute.xlu0 %4152
    %v4155 = vadd.f32 %v4145, %v4153
    %v4156 = vtanh.pop %v4155
    %4158 = vrot.lane.b32.xlu0 %v4156, 64
    %v4159 = vpop.permute.xlu0 %4158
    %v4161 = vmul.f32 %v4144, %v4159
    %4163 = vrot.lane.b32.xlu0 %v4161, 32
    %v4164 = vpop.permute.xlu0 %4163
    %4166 = vst.msk [vmem:[#allocation2 + $0x18] sm:$0xf] %vm1070, %v4164
    %v4167 = vsel %vm554, %v2109, %v2107
    %v4168 = vsel %vm556, %v4164, 0
    %4170 = vmatprep.subr.mxu0 0.0
    %4171 = vmatpush1.msra.mxu0 0.0
    %4172 = vmatprep.subr.mxu0 0.0
    %4173 = vmatpush1.msra.mxu0 0.0
    %4174 = vmatprep.subr.mxu0 0.0
    %4175 = vmatpush1.msra.mxu0 0.0
    %4176 = vmatprep.subr.mxu0 0.0
    %4177 = vmatpush1.msra.mxu0 0.0
    %4178 = vmatprep.subr.mxu0 0.0
    %4179 = vmatpush1.msra.mxu0 0.0
    %4180 = vmatprep.subr.mxu0 0.0
    %4181 = vmatpush1.msra.mxu0 0.0
    %4182 = vmatprep.subr.mxu0 0.0
    %4183 = vmatpush1.msra.mxu0 0.0
    %4184 = vmatprep.subr.mxu0 0.0
    %4185 = vmatpush1.msra.mxu0 0.0
    %4186 = vmatprep.subr.mxu0 0.0
    %4187 = vmatpush1.msra.mxu0 0.0
    %4188 = vmatprep.subr.mxu0 0.0
    %4189 = vmatpush1.msra.mxu0 0.0
    %4190 = vmatprep.subr.mxu0 0.0
    %4191 = vmatpush1.msra.mxu0 0.0
    %4192 = vmatprep.subr.mxu0 0.0
    %4193 = vmatpush1.msra.mxu0 0.0
    %4194 = vmatprep.subr.mxu0 0.0
    %v4195 = vand.u32 %v32, 4294901760
    %4196 = vmatpush1.msra.mxu0 %v4195
    %4197 = vmatprep.subr.mxu0 0.0
    %v4198 = vand.u32 %v31, 4294901760
    %4199 = vmatpush1.msra.mxu0 %v4198
    %4200 = vmatprep.subr.mxu0 0.0
    %v4201 = vand.u32 %v30, 4294901760
    %4202 = vmatpush1.msra.mxu0 %v4201
    %4203 = vmatprep.subr.mxu0 0.0
    %v4204 = vand.u32 %v29, 4294901760
    %4205 = vmatpush1.msra.mxu0 %v4204
    %4206 = vmatprep.subr.mxu0 0.0
    %4207 = vmatpush2.msra.mxu0 0.0
    %4208 = vmatprep.subr.mxu0 0.0
    %4209 = vmatpush2.msra.mxu0 0.0
    %4210 = vmatprep.subr.mxu0 0.0
    %4211 = vmatpush2.msra.mxu0 0.0
    %4212 = vmatprep.subr.mxu0 0.0
    %4213 = vmatpush2.msra.mxu0 0.0
    %4214 = vmatprep.subr.mxu0 0.0
    %4215 = vmatpush2.msra.mxu0 0.0
    %4216 = vmatprep.subr.mxu0 0.0
    %4217 = vmatpush2.msra.mxu0 0.0
    %4218 = vmatprep.subr.mxu0 0.0
    %4219 = vmatpush2.msra.mxu0 0.0
    %4220 = vmatprep.subr.mxu0 0.0
    %4221 = vmatpush2.msra.mxu0 0.0
    %4222 = vmatprep.subr.mxu0 0.0
    %4223 = vmatpush2.msra.mxu0 0.0
    %4224 = vmatprep.subr.mxu0 0.0
    %4225 = vmatpush2.msra.mxu0 0.0
    %4226 = vmatprep.subr.mxu0 0.0
    %4227 = vmatpush2.msra.mxu0 0.0
    %4228 = vmatprep.subr.mxu0 0.0
    %4229 = vmatpush2.msra.mxu0 0.0
    %4230 = vmatprep.subr.mxu0 0.0
    %4231 = vmatpush2.msra.mxu0 0.0
    %4232 = vmatprep.subr.mxu0 0.0
    %4233 = vmatpush2.msra.mxu0 0.0
    %4234 = vmatprep.subr.mxu0 0.0
    %4235 = vmatpush2.msra.mxu0 0.0
    %4236 = vmatprep.subr.mxu0 0.0
    %4237 = vmatpush2.msra.mxu0 0.0
    %4238 = vmatprep.mubr.f32.mxu0 0.0
    %v4239 = vand.u32 %v4168, 4294901760
    %v4240 = vsub.f32 %v4168, %v4239
    %v4241 = vand.u32 %v4240, 4294901760
    %v4242 = vsub.f32 %v4240, %v4241
    %v4243 = vand.u32 %v4242, 4294901760
    %4244 = vmatmul.mubr.f32.gmra.mxu0 %v4243
    %v4245 = vpop.f32.mrf.mxu0
    %v4246 = vadd.f32 0.0, %v4245
    %v4247 = vpop.f32.mrf.mxu0
    %4248 = vdwg.mxu0
    %4249 = vmatprep.subr.mxu0 0.0
    %4250 = vmatpush1.msra.mxu0 0.0
    %4251 = vmatprep.subr.mxu0 0.0
    %4252 = vmatpush1.msra.mxu0 0.0
    %4253 = vmatprep.subr.mxu0 0.0
    %4254 = vmatpush1.msra.mxu0 0.0
    %4255 = vmatprep.subr.mxu0 0.0
    %4256 = vmatpush1.msra.mxu0 0.0
    %4257 = vmatprep.subr.mxu0 0.0
    %4258 = vmatpush1.msra.mxu0 0.0
    %4259 = vmatprep.subr.mxu0 0.0
    %4260 = vmatpush1.msra.mxu0 0.0
    %4261 = vmatprep.subr.mxu0 0.0
    %4262 = vmatpush1.msra.mxu0 0.0
    %4263 = vmatprep.subr.mxu0 0.0
    %4264 = vmatpush1.msra.mxu0 0.0
    %4265 = vmatprep.subr.mxu0 0.0
    %4266 = vmatpush1.msra.mxu0 0.0
    %4267 = vmatprep.subr.mxu0 0.0
    %4268 = vmatpush1.msra.mxu0 0.0
    %4269 = vmatprep.subr.mxu0 0.0
    %4270 = vmatpush1.msra.mxu0 0.0
    %4271 = vmatprep.subr.mxu0 0.0
    %4272 = vmatpush1.msra.mxu0 0.0
    %4273 = vmatprep.subr.mxu0 0.0
    %v4274 = vand.u32 %v32, 4294901760
    %v4275 = vsub.f32 %v32, %v4274
    %v4276 = vand.u32 %v4275, 4294901760
    %v4277 = vsub.f32 %v4275, %v4276
    %v4278 = vand.u32 %v4277, 4294901760
    %4279 = vmatpush1.msra.mxu0 %v4278
    %4280 = vmatprep.subr.mxu0 0.0
    %v4281 = vand.u32 %v31, 4294901760
    %v4282 = vsub.f32 %v31, %v4281
    %v4283 = vand.u32 %v4282, 4294901760
    %v4284 = vsub.f32 %v4282, %v4283
    %v4285 = vand.u32 %v4284, 4294901760
    %4286 = vmatpush1.msra.mxu0 %v4285
    %4287 = vmatprep.subr.mxu0 0.0
    %v4288 = vand.u32 %v30, 4294901760
    %v4289 = vsub.f32 %v30, %v4288
    %v4290 = vand.u32 %v4289, 4294901760
    %v4291 = vsub.f32 %v4289, %v4290
    %v4292 = vand.u32 %v4291, 4294901760
    %4293 = vmatpush1.msra.mxu0 %v4292
    %4294 = vmatprep.subr.mxu0 0.0
    %v4295 = vand.u32 %v29, 4294901760
    %v4296 = vsub.f32 %v29, %v4295
    %v4297 = vand.u32 %v4296, 4294901760
    %v4298 = vsub.f32 %v4296, %v4297
    %v4299 = vand.u32 %v4298, 4294901760
    %4300 = vmatpush1.msra.mxu0 %v4299
    %4301 = vmatprep.subr.mxu0 0.0
    %4302 = vmatpush2.msra.mxu0 0.0
    %4303 = vmatprep.subr.mxu0 0.0
    %4304 = vmatpush2.msra.mxu0 0.0
    %4305 = vmatprep.subr.mxu0 0.0
    %4306 = vmatpush2.msra.mxu0 0.0
    %4307 = vmatprep.subr.mxu0 0.0
    %4308 = vmatpush2.msra.mxu0 0.0
    %4309 = vmatprep.subr.mxu0 0.0
    %4310 = vmatpush2.msra.mxu0 0.0
    %4311 = vmatprep.subr.mxu0 0.0
    %4312 = vmatpush2.msra.mxu0 0.0
    %4313 = vmatprep.subr.mxu0 0.0
    %4314 = vmatpush2.msra.mxu0 0.0
    %4315 = vmatprep.subr.mxu0 0.0
    %4316 = vmatpush2.msra.mxu0 0.0
    %4317 = vmatprep.subr.mxu0 0.0
    %4318 = vmatpush2.msra.mxu0 0.0
    %4319 = vmatprep.subr.mxu0 0.0
    %4320 = vmatpush2.msra.mxu0 0.0
    %4321 = vmatprep.subr.mxu0 0.0
    %4322 = vmatpush2.msra.mxu0 0.0
    %4323 = vmatprep.subr.mxu0 0.0
    %4324 = vmatpush2.msra.mxu0 0.0
    %4325 = vmatprep.subr.mxu0 0.0
    %4326 = vmatpush2.msra.mxu0 0.0
    %4327 = vmatprep.subr.mxu0 0.0
    %4328 = vmatpush2.msra.mxu0 0.0
    %4329 = vmatprep.subr.mxu0 0.0
    %4330 = vmatpush2.msra.mxu0 0.0
    %4331 = vmatprep.subr.mxu0 0.0
    %4332 = vmatpush2.msra.mxu0 0.0
    %4333 = vmatprep.mubr.f32.mxu0 0.0
    %v4334 = vand.u32 %v4168, 4294901760
    %4335 = vmatmul.mubr.f32.gmra.mxu0 %v4334
    %v4336 = vpop.f32.mrf.mxu0
    %v4337 = vadd.f32 %v4246, %v4336
    %v4338 = vpop.f32.mrf.mxu0
    %4339 = vdwg.mxu0
    %4340 = vmatprep.subr.mxu0 0.0
    %4341 = vmatpush1.msra.mxu0 0.0
    %4342 = vmatprep.subr.mxu0 0.0
    %4343 = vmatpush1.msra.mxu0 0.0
    %4344 = vmatprep.subr.mxu0 0.0
    %4345 = vmatpush1.msra.mxu0 0.0
    %4346 = vmatprep.subr.mxu0 0.0
    %4347 = vmatpush1.msra.mxu0 0.0
    %4348 = vmatprep.subr.mxu0 0.0
    %4349 = vmatpush1.msra.mxu0 0.0
    %4350 = vmatprep.subr.mxu0 0.0
    %4351 = vmatpush1.msra.mxu0 0.0
    %4352 = vmatprep.subr.mxu0 0.0
    %4353 = vmatpush1.msra.mxu0 0.0
    %4354 = vmatprep.subr.mxu0 0.0
    %4355 = vmatpush1.msra.mxu0 0.0
    %4356 = vmatprep.subr.mxu0 0.0
    %4357 = vmatpush1.msra.mxu0 0.0
    %4358 = vmatprep.subr.mxu0 0.0
    %4359 = vmatpush1.msra.mxu0 0.0
    %4360 = vmatprep.subr.mxu0 0.0
    %4361 = vmatpush1.msra.mxu0 0.0
    %4362 = vmatprep.subr.mxu0 0.0
    %4363 = vmatpush1.msra.mxu0 0.0
    %4364 = vmatprep.subr.mxu0 0.0
    %v4365 = vand.u32 %v32, 4294901760
    %v4366 = vsub.f32 %v32, %v4365
    %4367 = vmatpush1.msra.mxu0 %v4366
    %4368 = vmatprep.subr.mxu0 0.0
    %v4369 = vand.u32 %v31, 4294901760
    %v4370 = vsub.f32 %v31, %v4369
    %4371 = vmatpush1.msra.mxu0 %v4370
    %4372 = vmatprep.subr.mxu0 0.0
    %v4373 = vand.u32 %v30, 4294901760
    %v4374 = vsub.f32 %v30, %v4373
    %4375 = vmatpush1.msra.mxu0 %v4374
    %4376 = vmatprep.subr.mxu0 0.0
    %v4377 = vand.u32 %v29, 4294901760
    %v4378 = vsub.f32 %v29, %v4377
    %4379 = vmatpush1.msra.mxu0 %v4378
    %4380 = vmatprep.subr.mxu0 0.0
    %4381 = vmatpush2.msra.mxu0 0.0
    %4382 = vmatprep.subr.mxu0 0.0
    %4383 = vmatpush2.msra.mxu0 0.0
    %4384 = vmatprep.subr.mxu0 0.0
    %4385 = vmatpush2.msra.mxu0 0.0
    %4386 = vmatprep.subr.mxu0 0.0
    %4387 = vmatpush2.msra.mxu0 0.0
    %4388 = vmatprep.subr.mxu0 0.0
    %4389 = vmatpush2.msra.mxu0 0.0
    %4390 = vmatprep.subr.mxu0 0.0
    %4391 = vmatpush2.msra.mxu0 0.0
    %4392 = vmatprep.subr.mxu0 0.0
    %4393 = vmatpush2.msra.mxu0 0.0
    %4394 = vmatprep.subr.mxu0 0.0
    %4395 = vmatpush2.msra.mxu0 0.0
    %4396 = vmatprep.subr.mxu0 0.0
    %4397 = vmatpush2.msra.mxu0 0.0
    %4398 = vmatprep.subr.mxu0 0.0
    %4399 = vmatpush2.msra.mxu0 0.0
    %4400 = vmatprep.subr.mxu0 0.0
    %4401 = vmatpush2.msra.mxu0 0.0
    %4402 = vmatprep.subr.mxu0 0.0
    %4403 = vmatpush2.msra.mxu0 0.0
    %4404 = vmatprep.subr.mxu0 0.0
    %4405 = vmatpush2.msra.mxu0 0.0
    %4406 = vmatprep.subr.mxu0 0.0
    %4407 = vmatpush2.msra.mxu0 0.0
    %4408 = vmatprep.subr.mxu0 0.0
    %4409 = vmatpush2.msra.mxu0 0.0
    %4410 = vmatprep.subr.mxu0 0.0
    %4411 = vmatpush2.msra.mxu0 0.0
    %4412 = vmatprep.mubr.f32.mxu0 0.0
    %v4413 = vand.u32 %v4168, 4294901760
    %v4414 = vsub.f32 %v4168, %v4413
    %4415 = vmatmul.mubr.f32.gmra.mxu0 %v4414
    %v4416 = vpop.f32.mrf.mxu0
    %v4417 = vadd.f32 %v4337, %v4416
    %v4418 = vpop.f32.mrf.mxu0
    %4419 = vdwg.mxu0
    %4420 = vmatprep.subr.mxu0 0.0
    %4421 = vmatpush1.msra.mxu0 0.0
    %4422 = vmatprep.subr.mxu0 0.0
    %4423 = vmatpush1.msra.mxu0 0.0
    %4424 = vmatprep.subr.mxu0 0.0
    %4425 = vmatpush1.msra.mxu0 0.0
    %4426 = vmatprep.subr.mxu0 0.0
    %4427 = vmatpush1.msra.mxu0 0.0
    %4428 = vmatprep.subr.mxu0 0.0
    %4429 = vmatpush1.msra.mxu0 0.0
    %4430 = vmatprep.subr.mxu0 0.0
    %4431 = vmatpush1.msra.mxu0 0.0
    %4432 = vmatprep.subr.mxu0 0.0
    %4433 = vmatpush1.msra.mxu0 0.0
    %4434 = vmatprep.subr.mxu0 0.0
    %4435 = vmatpush1.msra.mxu0 0.0
    %4436 = vmatprep.subr.mxu0 0.0
    %4437 = vmatpush1.msra.mxu0 0.0
    %4438 = vmatprep.subr.mxu0 0.0
    %4439 = vmatpush1.msra.mxu0 0.0
    %4440 = vmatprep.subr.mxu0 0.0
    %4441 = vmatpush1.msra.mxu0 0.0
    %4442 = vmatprep.subr.mxu0 0.0
    %4443 = vmatpush1.msra.mxu0 0.0
    %4444 = vmatprep.subr.mxu0 0.0
    %v4445 = vand.u32 %v32, 4294901760
    %4446 = vmatpush1.msra.mxu0 %v4445
    %4447 = vmatprep.subr.mxu0 0.0
    %v4448 = vand.u32 %v31, 4294901760
    %4449 = vmatpush1.msra.mxu0 %v4448
    %4450 = vmatprep.subr.mxu0 0.0
    %v4451 = vand.u32 %v30, 4294901760
    %4452 = vmatpush1.msra.mxu0 %v4451
    %4453 = vmatprep.subr.mxu0 0.0
    %v4454 = vand.u32 %v29, 4294901760
    %4455 = vmatpush1.msra.mxu0 %v4454
    %4456 = vmatprep.subr.mxu0 0.0
    %4457 = vmatpush2.msra.mxu0 0.0
    %4458 = vmatprep.subr.mxu0 0.0
    %4459 = vmatpush2.msra.mxu0 0.0
    %4460 = vmatprep.subr.mxu0 0.0
    %4461 = vmatpush2.msra.mxu0 0.0
    %4462 = vmatprep.subr.mxu0 0.0
    %4463 = vmatpush2.msra.mxu0 0.0
    %4464 = vmatprep.subr.mxu0 0.0
    %4465 = vmatpush2.msra.mxu0 0.0
    %4466 = vmatprep.subr.mxu0 0.0
    %4467 = vmatpush2.msra.mxu0 0.0
    %4468 = vmatprep.subr.mxu0 0.0
    %4469 = vmatpush2.msra.mxu0 0.0
    %4470 = vmatprep.subr.mxu0 0.0
    %4471 = vmatpush2.msra.mxu0 0.0
    %4472 = vmatprep.subr.mxu0 0.0
    %4473 = vmatpush2.msra.mxu0 0.0
    %4474 = vmatprep.subr.mxu0 0.0
    %4475 = vmatpush2.msra.mxu0 0.0
    %4476 = vmatprep.subr.mxu0 0.0
    %4477 = vmatpush2.msra.mxu0 0.0
    %4478 = vmatprep.subr.mxu0 0.0
    %4479 = vmatpush2.msra.mxu0 0.0
    %4480 = vmatprep.subr.mxu0 0.0
    %4481 = vmatpush2.msra.mxu0 0.0
    %4482 = vmatprep.subr.mxu0 0.0
    %4483 = vmatpush2.msra.mxu0 0.0
    %4484 = vmatprep.subr.mxu0 0.0
    %4485 = vmatpush2.msra.mxu0 0.0
    %4486 = vmatprep.subr.mxu0 0.0
    %4487 = vmatpush2.msra.mxu0 0.0
    %4488 = vmatprep.mubr.f32.mxu0 0.0
    %v4489 = vand.u32 %v4168, 4294901760
    %v4490 = vsub.f32 %v4168, %v4489
    %v4491 = vand.u32 %v4490, 4294901760
    %4492 = vmatmul.mubr.f32.gmra.mxu0 %v4491
    %v4493 = vpop.f32.mrf.mxu0
    %v4494 = vadd.f32 %v4417, %v4493
    %v4495 = vpop.f32.mrf.mxu0
    %4496 = vdwg.mxu0
    %4497 = vmatprep.subr.mxu0 0.0
    %4498 = vmatpush1.msra.mxu0 0.0
    %4499 = vmatprep.subr.mxu0 0.0
    %4500 = vmatpush1.msra.mxu0 0.0
    %4501 = vmatprep.subr.mxu0 0.0
    %4502 = vmatpush1.msra.mxu0 0.0
    %4503 = vmatprep.subr.mxu0 0.0
    %4504 = vmatpush1.msra.mxu0 0.0
    %4505 = vmatprep.subr.mxu0 0.0
    %4506 = vmatpush1.msra.mxu0 0.0
    %4507 = vmatprep.subr.mxu0 0.0
    %4508 = vmatpush1.msra.mxu0 0.0
    %4509 = vmatprep.subr.mxu0 0.0
    %4510 = vmatpush1.msra.mxu0 0.0
    %4511 = vmatprep.subr.mxu0 0.0
    %4512 = vmatpush1.msra.mxu0 0.0
    %4513 = vmatprep.subr.mxu0 0.0
    %4514 = vmatpush1.msra.mxu0 0.0
    %4515 = vmatprep.subr.mxu0 0.0
    %4516 = vmatpush1.msra.mxu0 0.0
    %4517 = vmatprep.subr.mxu0 0.0
    %4518 = vmatpush1.msra.mxu0 0.0
    %4519 = vmatprep.subr.mxu0 0.0
    %4520 = vmatpush1.msra.mxu0 0.0
    %4521 = vmatprep.subr.mxu0 0.0
    %v4522 = vand.u32 %v32, 4294901760
    %v4523 = vsub.f32 %v32, %v4522
    %v4524 = vand.u32 %v4523, 4294901760
    %4525 = vmatpush1.msra.mxu0 %v4524
    %4526 = vmatprep.subr.mxu0 0.0
    %v4527 = vand.u32 %v31, 4294901760
    %v4528 = vsub.f32 %v31, %v4527
    %v4529 = vand.u32 %v4528, 4294901760
    %4530 = vmatpush1.msra.mxu0 %v4529
    %4531 = vmatprep.subr.mxu0 0.0
    %v4532 = vand.u32 %v30, 4294901760
    %v4533 = vsub.f32 %v30, %v4532
    %v4534 = vand.u32 %v4533, 4294901760
    %4535 = vmatpush1.msra.mxu0 %v4534
    %4536 = vmatprep.subr.mxu0 0.0
    %v4537 = vand.u32 %v29, 4294901760
    %v4538 = vsub.f32 %v29, %v4537
    %v4539 = vand.u32 %v4538, 4294901760
    %4540 = vmatpush1.msra.mxu0 %v4539
    %4541 = vmatprep.subr.mxu0 0.0
    %4542 = vmatpush2.msra.mxu0 0.0
    %4543 = vmatprep.subr.mxu0 0.0
    %4544 = vmatpush2.msra.mxu0 0.0
    %4545 = vmatprep.subr.mxu0 0.0
    %4546 = vmatpush2.msra.mxu0 0.0
    %4547 = vmatprep.subr.mxu0 0.0
    %4548 = vmatpush2.msra.mxu0 0.0
    %4549 = vmatprep.subr.mxu0 0.0
    %4550 = vmatpush2.msra.mxu0 0.0
    %4551 = vmatprep.subr.mxu0 0.0
    %4552 = vmatpush2.msra.mxu0 0.0
    %4553 = vmatprep.subr.mxu0 0.0
    %4554 = vmatpush2.msra.mxu0 0.0
    %4555 = vmatprep.subr.mxu0 0.0
    %4556 = vmatpush2.msra.mxu0 0.0
    %4557 = vmatprep.subr.mxu0 0.0
    %4558 = vmatpush2.msra.mxu0 0.0
    %4559 = vmatprep.subr.mxu0 0.0
    %4560 = vmatpush2.msra.mxu0 0.0
    %4561 = vmatprep.subr.mxu0 0.0
    %4562 = vmatpush2.msra.mxu0 0.0
    %4563 = vmatprep.subr.mxu0 0.0
    %4564 = vmatpush2.msra.mxu0 0.0
    %4565 = vmatprep.subr.mxu0 0.0
    %4566 = vmatpush2.msra.mxu0 0.0
    %4567 = vmatprep.subr.mxu0 0.0
    %4568 = vmatpush2.msra.mxu0 0.0
    %4569 = vmatprep.subr.mxu0 0.0
    %4570 = vmatpush2.msra.mxu0 0.0
    %4571 = vmatprep.subr.mxu0 0.0
    %4572 = vmatpush2.msra.mxu0 0.0
    %4573 = vmatprep.mubr.f32.mxu0 0.0
    %v4574 = vand.u32 %v4168, 4294901760
    %4575 = vmatmul.mubr.f32.gmra.mxu0 %v4574
    %v4576 = vpop.f32.mrf.mxu0
    %v4577 = vadd.f32 %v4494, %v4576
    %v4578 = vpop.f32.mrf.mxu0
    %4579 = vdwg.mxu0
    %4580 = vmatprep.subr.mxu0 0.0
    %4581 = vmatpush1.msra.mxu0 0.0
    %4582 = vmatprep.subr.mxu0 0.0
    %4583 = vmatpush1.msra.mxu0 0.0
    %4584 = vmatprep.subr.mxu0 0.0
    %4585 = vmatpush1.msra.mxu0 0.0
    %4586 = vmatprep.subr.mxu0 0.0
    %4587 = vmatpush1.msra.mxu0 0.0
    %4588 = vmatprep.subr.mxu0 0.0
    %4589 = vmatpush1.msra.mxu0 0.0
    %4590 = vmatprep.subr.mxu0 0.0
    %4591 = vmatpush1.msra.mxu0 0.0
    %4592 = vmatprep.subr.mxu0 0.0
    %4593 = vmatpush1.msra.mxu0 0.0
    %4594 = vmatprep.subr.mxu0 0.0
    %4595 = vmatpush1.msra.mxu0 0.0
    %4596 = vmatprep.subr.mxu0 0.0
    %4597 = vmatpush1.msra.mxu0 0.0
    %4598 = vmatprep.subr.mxu0 0.0
    %4599 = vmatpush1.msra.mxu0 0.0
    %4600 = vmatprep.subr.mxu0 0.0
    %4601 = vmatpush1.msra.mxu0 0.0
    %4602 = vmatprep.subr.mxu0 0.0
    %4603 = vmatpush1.msra.mxu0 0.0
    %4604 = vmatprep.subr.mxu0 0.0
    %v4605 = vand.u32 %v32, 4294901760
    %4606 = vmatpush1.msra.mxu0 %v4605
    %4607 = vmatprep.subr.mxu0 0.0
    %v4608 = vand.u32 %v31, 4294901760
    %4609 = vmatpush1.msra.mxu0 %v4608
    %4610 = vmatprep.subr.mxu0 0.0
    %v4611 = vand.u32 %v30, 4294901760
    %4612 = vmatpush1.msra.mxu0 %v4611
    %4613 = vmatprep.subr.mxu0 0.0
    %v4614 = vand.u32 %v29, 4294901760
    %4615 = vmatpush1.msra.mxu0 %v4614
    %4616 = vmatprep.subr.mxu0 0.0
    %4617 = vmatpush2.msra.mxu0 0.0
    %4618 = vmatprep.subr.mxu0 0.0
    %4619 = vmatpush2.msra.mxu0 0.0
    %4620 = vmatprep.subr.mxu0 0.0
    %4621 = vmatpush2.msra.mxu0 0.0
    %4622 = vmatprep.subr.mxu0 0.0
    %4623 = vmatpush2.msra.mxu0 0.0
    %4624 = vmatprep.subr.mxu0 0.0
    %4625 = vmatpush2.msra.mxu0 0.0
    %4626 = vmatprep.subr.mxu0 0.0
    %4627 = vmatpush2.msra.mxu0 0.0
    %4628 = vmatprep.subr.mxu0 0.0
    %4629 = vmatpush2.msra.mxu0 0.0
    %4630 = vmatprep.subr.mxu0 0.0
    %4631 = vmatpush2.msra.mxu0 0.0
    %4632 = vmatprep.subr.mxu0 0.0
    %4633 = vmatpush2.msra.mxu0 0.0
    %4634 = vmatprep.subr.mxu0 0.0
    %4635 = vmatpush2.msra.mxu0 0.0
    %4636 = vmatprep.subr.mxu0 0.0
    %4637 = vmatpush2.msra.mxu0 0.0
    %4638 = vmatprep.subr.mxu0 0.0
    %4639 = vmatpush2.msra.mxu0 0.0
    %4640 = vmatprep.subr.mxu0 0.0
    %4641 = vmatpush2.msra.mxu0 0.0
    %4642 = vmatprep.subr.mxu0 0.0
    %4643 = vmatpush2.msra.mxu0 0.0
    %4644 = vmatprep.subr.mxu0 0.0
    %4645 = vmatpush2.msra.mxu0 0.0
    %4646 = vmatprep.subr.mxu0 0.0
    %4647 = vmatpush2.msra.mxu0 0.0
    %4648 = vmatprep.mubr.f32.mxu0 0.0
    %v4649 = vand.u32 %v4168, 4294901760
    %4650 = vmatmul.mubr.f32.gmra.mxu0 %v4649
    %v4651 = vpop.f32.mrf.mxu0
    %v4652 = vadd.f32 %v4577, %v4651
    %v4653 = vpop.f32.mrf.mxu0
    %4654 = vdwg.mxu0
    %v4655 = vadd.f32 %v4167, %v4652
    %v4656 = vtanh.pop %v4655
    %v4657 = vadd.f32 %v4656, 1.0
    %v4658 = vmul.f32 %v4657, 0.5
    %v4659 = vmul.f32 %v4155, %v4658
    %4661 = vrot.lane.b32.xlu0 %v4656, 64
    %v4662 = vpop.permute.xlu0 %4661
    %v4664 = vmul.f32 %v4658, %v4662
    %4666 = vrot.lane.b32.xlu0 %v4664, 32
    %v4667 = vpop.permute.xlu0 %4666
    %v4669 = vadd.f32 %v4659, %v4667
    %v4670 = vtanh.pop %v4669
    %4672 = vrot.lane.b32.xlu0 %v4670, 64
    %v4673 = vpop.permute.xlu0 %4672
    %v4675 = vmul.f32 %v4658, %v4673
    %4677 = vrot.lane.b32.xlu0 %v4675, 32
    %v4678 = vpop.permute.xlu0 %4677
    %4680 = vst.msk [vmem:[#allocation2 + $0x1c] sm:$0xf] %vm1070, %v4678
    %v4681 = vld [vmem:[%s3] sm:$0xff]
    %v4682 = vld [vmem:[%s3 + $0x8] sm:$0xff]
    %v4683 = vld [vmem:[%s3 + $0x10] sm:$0xff]
    %v4684 = vld [vmem:[%s3 + $0x18] sm:$0xff]
    %v4685 = vld [vmem:[%s3 + $0x20] sm:$0xff]
    %v4686 = vld [vmem:[%s3 + $0x28] sm:$0xff]
    %v4687 = vld [vmem:[%s3 + $0x30] sm:$0xff]
    %v4688 = vld [vmem:[%s3 + $0x38] sm:$0xff]
    %v4689 = vld [vmem:[#allocation2] sm:$0xff]
    %v4690 = vld [vmem:[#allocation2 + $0x8] sm:$0xff]
    %v4691 = vld [vmem:[#allocation2 + $0x10] sm:$0xff]
    %v4692 = vld [vmem:[#allocation2 + $0x18] sm:$0xff]
    %v4693 = vld [vmem:[%s4] sm:$0x1]
    %v4695 = vlaneseq
    %v4696 = vshrl.u32 %v4695, 7
    %v4697 = vsub.s32 0, %v4696
    %v4698 = vrot.slane %v4693, %v4697
    %v4701 = vsel %vm556, %v4689, 0
    %v4704 = vsel %vm556, %v4690, 0
    %v4707 = vsel %vm556, %v4691, 0
    %v4710 = vsel %vm556, %v4692, 0
    %4712 = vmatprep.subr.mxu0 0.0
    %4713 = vmatpush1.msra.mxu0 0.0
    %4714 = vmatprep.subr.mxu0 0.0
    %4715 = vmatpush1.msra.mxu0 0.0
    %4716 = vmatprep.subr.mxu0 0.0
    %4717 = vmatpush1.msra.mxu0 0.0
    %4718 = vmatprep.subr.mxu0 0.0
    %4719 = vmatpush1.msra.mxu0 0.0
    %4720 = vmatprep.subr.mxu0 0.0
    %4721 = vmatpush1.msra.mxu0 0.0
    %4722 = vmatprep.subr.mxu0 0.0
    %4723 = vmatpush1.msra.mxu0 0.0
    %4724 = vmatprep.subr.mxu0 0.0
    %4725 = vmatpush1.msra.mxu0 0.0
    %4726 = vmatprep.subr.mxu0 0.0
    %4727 = vmatpush1.msra.mxu0 0.0
    %4728 = vmatprep.subr.mxu0 0.0
    %4729 = vmatpush1.msra.mxu0 0.0
    %4730 = vmatprep.subr.mxu0 0.0
    %4731 = vmatpush1.msra.mxu0 0.0
    %4732 = vmatprep.subr.mxu0 0.0
    %4733 = vmatpush1.msra.mxu0 0.0
    %4734 = vmatprep.subr.mxu0 0.0
    %4735 = vmatpush1.msra.mxu0 0.0
    %4736 = vmatprep.subr.mxu0 0.0
    %v4737 = vand.u32 %v4684, 4294901760
    %4738 = vmatpush1.msra.mxu0 %v4737
    %4739 = vmatprep.subr.mxu0 0.0
    %v4740 = vand.u32 %v4683, 4294901760
    %4741 = vmatpush1.msra.mxu0 %v4740
    %4742 = vmatprep.subr.mxu0 0.0
    %v4743 = vand.u32 %v4682, 4294901760
    %4744 = vmatpush1.msra.mxu0 %v4743
    %4745 = vmatprep.subr.mxu0 0.0
    %v4746 = vand.u32 %v4681, 4294901760
    %4747 = vmatpush1.msra.mxu0 %v4746
    %4748 = vmatprep.subr.mxu0 0.0
    %4749 = vmatpush2.msra.mxu0 0.0
    %4750 = vmatprep.subr.mxu0 0.0
    %4751 = vmatpush2.msra.mxu0 0.0
    %4752 = vmatprep.subr.mxu0 0.0
    %4753 = vmatpush2.msra.mxu0 0.0
    %4754 = vmatprep.subr.mxu0 0.0
    %4755 = vmatpush2.msra.mxu0 0.0
    %4756 = vmatprep.subr.mxu0 0.0
    %4757 = vmatpush2.msra.mxu0 0.0
    %4758 = vmatprep.subr.mxu0 0.0
    %4759 = vmatpush2.msra.mxu0 0.0
    %4760 = vmatprep.subr.mxu0 0.0
    %4761 = vmatpush2.msra.mxu0 0.0
    %4762 = vmatprep.subr.mxu0 0.0
    %4763 = vmatpush2.msra.mxu0 0.0
    %4764 = vmatprep.subr.mxu0 0.0
    %4765 = vmatpush2.msra.mxu0 0.0
    %4766 = vmatprep.subr.mxu0 0.0
    %4767 = vmatpush2.msra.mxu0 0.0
    %4768 = vmatprep.subr.mxu0 0.0
    %4769 = vmatpush2.msra.mxu0 0.0
    %4770 = vmatprep.subr.mxu0 0.0
    %4771 = vmatpush2.msra.mxu0 0.0
    %4772 = vmatprep.subr.mxu0 0.0
    %4773 = vmatpush2.msra.mxu0 0.0
    %4774 = vmatprep.subr.mxu0 0.0
    %4775 = vmatpush2.msra.mxu0 0.0
    %4776 = vmatprep.subr.mxu0 0.0
    %4777 = vmatpush2.msra.mxu0 0.0
    %4778 = vmatprep.subr.mxu0 0.0
    %4779 = vmatpush2.msra.mxu0 0.0
    %4780 = vmatprep.mubr.f32.mxu0 0.0
    %v4781 = vand.u32 %v4701, 4294901760
    %v4782 = vsub.f32 %v4701, %v4781
    %v4783 = vand.u32 %v4782, 4294901760
    %v4784 = vsub.f32 %v4782, %v4783
    %v4785 = vand.u32 %v4784, 4294901760
    %4786 = vmatmul.mubr.f32.gmra.mxu0 %v4785
    %v4787 = vpop.f32.mrf.mxu0
    %v4788 = vadd.f32 %v4698, %v4787
    %v4789 = vpop.f32.mrf.mxu0
    %4790 = vmatprep.mubr.f32.mxu0 0.0
    %v4791 = vand.u32 %v4704, 4294901760
    %v4792 = vsub.f32 %v4704, %v4791
    %v4793 = vand.u32 %v4792, 4294901760
    %v4794 = vsub.f32 %v4792, %v4793
    %v4795 = vand.u32 %v4794, 4294901760
    %4796 = vmatmul.mubr.f32.gmra.mxu0 %v4795
    %v4797 = vpop.f32.mrf.mxu0
    %v4798 = vadd.f32 %v4698, %v4797
    %v4799 = vpop.f32.mrf.mxu0
    %4800 = vmatprep.mubr.f32.mxu0 0.0
    %v4801 = vand.u32 %v4707, 4294901760
    %v4802 = vsub.f32 %v4707, %v4801
    %v4803 = vand.u32 %v4802, 4294901760
    %v4804 = vsub.f32 %v4802, %v4803
    %v4805 = vand.u32 %v4804, 4294901760
    %4806 = vmatmul.mubr.f32.gmra.mxu0 %v4805
    %v4807 = vpop.f32.mrf.mxu0
    %v4808 = vadd.f32 %v4698, %v4807
    %v4809 = vpop.f32.mrf.mxu0
    %4810 = vmatprep.mubr.f32.mxu0 0.0
    %v4811 = vand.u32 %v4710, 4294901760
    %v4812 = vsub.f32 %v4710, %v4811
    %v4813 = vand.u32 %v4812, 4294901760
    %v4814 = vsub.f32 %v4812, %v4813
    %v4815 = vand.u32 %v4814, 4294901760
    %4816 = vmatmul.mubr.f32.gmra.mxu0 %v4815
    %v4817 = vpop.f32.mrf.mxu0
    %v4818 = vadd.f32 %v4698, %v4817
    %v4819 = vpop.f32.mrf.mxu0
    %4820 = vdwg.mxu0
    %4821 = vmatprep.subr.mxu0 0.0
    %4822 = vmatpush1.msra.mxu0 0.0
    %4823 = vmatprep.subr.mxu0 0.0
    %4824 = vmatpush1.msra.mxu0 0.0
    %4825 = vmatprep.subr.mxu0 0.0
    %4826 = vmatpush1.msra.mxu0 0.0
    %4827 = vmatprep.subr.mxu0 0.0
    %4828 = vmatpush1.msra.mxu0 0.0
    %4829 = vmatprep.subr.mxu0 0.0
    %4830 = vmatpush1.msra.mxu0 0.0
    %4831 = vmatprep.subr.mxu0 0.0
    %4832 = vmatpush1.msra.mxu0 0.0
    %4833 = vmatprep.subr.mxu0 0.0
    %4834 = vmatpush1.msra.mxu0 0.0
    %4835 = vmatprep.subr.mxu0 0.0
    %4836 = vmatpush1.msra.mxu0 0.0
    %4837 = vmatprep.subr.mxu0 0.0
    %4838 = vmatpush1.msra.mxu0 0.0
    %4839 = vmatprep.subr.mxu0 0.0
    %4840 = vmatpush1.msra.mxu0 0.0
    %4841 = vmatprep.subr.mxu0 0.0
    %4842 = vmatpush1.msra.mxu0 0.0
    %4843 = vmatprep.subr.mxu0 0.0
    %4844 = vmatpush1.msra.mxu0 0.0
    %4845 = vmatprep.subr.mxu0 0.0
    %v4846 = vand.u32 %v4684, 4294901760
    %v4847 = vsub.f32 %v4684, %v4846
    %v4848 = vand.u32 %v4847, 4294901760
    %v4849 = vsub.f32 %v4847, %v4848
    %v4850 = vand.u32 %v4849, 4294901760
    %4851 = vmatpush1.msra.mxu0 %v4850
    %4852 = vmatprep.subr.mxu0 0.0
    %v4853 = vand.u32 %v4683, 4294901760
    %v4854 = vsub.f32 %v4683, %v4853
    %v4855 = vand.u32 %v4854, 4294901760
    %v4856 = vsub.f32 %v4854, %v4855
    %v4857 = vand.u32 %v4856, 4294901760
    %4858 = vmatpush1.msra.mxu0 %v4857
    %4859 = vmatprep.subr.mxu0 0.0
    %v4860 = vand.u32 %v4682, 4294901760
    %v4861 = vsub.f32 %v4682, %v4860
    %v4862 = vand.u32 %v4861, 4294901760
    %v4863 = vsub.f32 %v4861, %v4862
    %v4864 = vand.u32 %v4863, 4294901760
    %4865 = vmatpush1.msra.mxu0 %v4864
    %4866 = vmatprep.subr.mxu0 0.0
    %v4867 = vand.u32 %v4681, 4294901760
    %v4868 = vsub.f32 %v4681, %v4867
    %v4869 = vand.u32 %v4868, 4294901760
    %v4870 = vsub.f32 %v4868, %v4869
    %v4871 = vand.u32 %v4870, 4294901760
    %4872 = vmatpush1.msra.mxu0 %v4871
    %4873 = vmatprep.subr.mxu0 0.0
    %4874 = vmatpush2.msra.mxu0 0.0
    %4875 = vmatprep.subr.mxu0 0.0
    %4876 = vmatpush2.msra.mxu0 0.0
    %4877 = vmatprep.subr.mxu0 0.0
    %4878 = vmatpush2.msra.mxu0 0.0
    %4879 = vmatprep.subr.mxu0 0.0
    %4880 = vmatpush2.msra.mxu0 0.0
    %4881 = vmatprep.subr.mxu0 0.0
    %4882 = vmatpush2.msra.mxu0 0.0
    %4883 = vmatprep.subr.mxu0 0.0
    %4884 = vmatpush2.msra.mxu0 0.0
    %4885 = vmatprep.subr.mxu0 0.0
    %4886 = vmatpush2.msra.mxu0 0.0
    %4887 = vmatprep.subr.mxu0 0.0
    %4888 = vmatpush2.msra.mxu0 0.0
    %4889 = vmatprep.subr.mxu0 0.0
    %4890 = vmatpush2.msra.mxu0 0.0
    %4891 = vmatprep.subr.mxu0 0.0
    %4892 = vmatpush2.msra.mxu0 0.0
    %4893 = vmatprep.subr.mxu0 0.0
    %4894 = vmatpush2.msra.mxu0 0.0
    %4895 = vmatprep.subr.mxu0 0.0
    %4896 = vmatpush2.msra.mxu0 0.0
    %4897 = vmatprep.subr.mxu0 0.0
    %4898 = vmatpush2.msra.mxu0 0.0
    %4899 = vmatprep.subr.mxu0 0.0
    %4900 = vmatpush2.msra.mxu0 0.0
    %4901 = vmatprep.subr.mxu0 0.0
    %4902 = vmatpush2.msra.mxu0 0.0
    %4903 = vmatprep.subr.mxu0 0.0
    %4904 = vmatpush2.msra.mxu0 0.0
    %4905 = vmatprep.mubr.f32.mxu0 0.0
    %v4906 = vand.u32 %v4701, 4294901760
    %4907 = vmatmul.mubr.f32.gmra.mxu0 %v4906
    %v4908 = vpop.f32.mrf.mxu0
    %v4909 = vadd.f32 %v4788, %v4908
    %v4910 = vpop.f32.mrf.mxu0
    %4911 = vmatprep.mubr.f32.mxu0 0.0
    %v4912 = vand.u32 %v4704, 4294901760
    %4913 = vmatmul.mubr.f32.gmra.mxu0 %v4912
    %v4914 = vpop.f32.mrf.mxu0
    %v4915 = vadd.f32 %v4798, %v4914
    %v4916 = vpop.f32.mrf.mxu0
    %4917 = vmatprep.mubr.f32.mxu0 0.0
    %v4918 = vand.u32 %v4707, 4294901760
    %4919 = vmatmul.mubr.f32.gmra.mxu0 %v4918
    %v4920 = vpop.f32.mrf.mxu0
    %v4921 = vadd.f32 %v4808, %v4920
    %v4922 = vpop.f32.mrf.mxu0
    %4923 = vmatprep.mubr.f32.mxu0 0.0
    %v4924 = vand.u32 %v4710, 4294901760
    %4925 = vmatmul.mubr.f32.gmra.mxu0 %v4924
    %v4926 = vpop.f32.mrf.mxu0
    %v4927 = vadd.f32 %v4818, %v4926
    %v4928 = vpop.f32.mrf.mxu0
    %4929 = vdwg.mxu0
    %4930 = vmatprep.subr.mxu0 0.0
    %4931 = vmatpush1.msra.mxu0 0.0
    %4932 = vmatprep.subr.mxu0 0.0
    %4933 = vmatpush1.msra.mxu0 0.0
    %4934 = vmatprep.subr.mxu0 0.0
    %4935 = vmatpush1.msra.mxu0 0.0
    %4936 = vmatprep.subr.mxu0 0.0
    %4937 = vmatpush1.msra.mxu0 0.0
    %4938 = vmatprep.subr.mxu0 0.0
    %4939 = vmatpush1.msra.mxu0 0.0
    %4940 = vmatprep.subr.mxu0 0.0
    %4941 = vmatpush1.msra.mxu0 0.0
    %4942 = vmatprep.subr.mxu0 0.0
    %4943 = vmatpush1.msra.mxu0 0.0
    %4944 = vmatprep.subr.mxu0 0.0
    %4945 = vmatpush1.msra.mxu0 0.0
    %4946 = vmatprep.subr.mxu0 0.0
    %4947 = vmatpush1.msra.mxu0 0.0
    %4948 = vmatprep.subr.mxu0 0.0
    %4949 = vmatpush1.msra.mxu0 0.0
    %4950 = vmatprep.subr.mxu0 0.0
    %4951 = vmatpush1.msra.mxu0 0.0
    %4952 = vmatprep.subr.mxu0 0.0
    %4953 = vmatpush1.msra.mxu0 0.0
    %4954 = vmatprep.subr.mxu0 0.0
    %v4955 = vand.u32 %v4684, 4294901760
    %v4956 = vsub.f32 %v4684, %v4955
    %4957 = vmatpush1.msra.mxu0 %v4956
    %4958 = vmatprep.subr.mxu0 0.0
    %v4959 = vand.u32 %v4683, 4294901760
    %v4960 = vsub.f32 %v4683, %v4959
    %4961 = vmatpush1.msra.mxu0 %v4960
    %4962 = vmatprep.subr.mxu0 0.0
    %v4963 = vand.u32 %v4682, 4294901760
    %v4964 = vsub.f32 %v4682, %v4963
    %4965 = vmatpush1.msra.mxu0 %v4964
    %4966 = vmatprep.subr.mxu0 0.0
    %v4967 = vand.u32 %v4681, 4294901760
    %v4968 = vsub.f32 %v4681, %v4967
    %4969 = vmatpush1.msra.mxu0 %v4968
    %4970 = vmatprep.subr.mxu0 0.0
    %4971 = vmatpush2.msra.mxu0 0.0
    %4972 = vmatprep.subr.mxu0 0.0
    %4973 = vmatpush2.msra.mxu0 0.0
    %4974 = vmatprep.subr.mxu0 0.0
    %4975 = vmatpush2.msra.mxu0 0.0
    %4976 = vmatprep.subr.mxu0 0.0
    %4977 = vmatpush2.msra.mxu0 0.0
    %4978 = vmatprep.subr.mxu0 0.0
    %4979 = vmatpush2.msra.mxu0 0.0
    %4980 = vmatprep.subr.mxu0 0.0
    %4981 = vmatpush2.msra.mxu0 0.0
    %4982 = vmatprep.subr.mxu0 0.0
    %4983 = vmatpush2.msra.mxu0 0.0
    %4984 = vmatprep.subr.mxu0 0.0
    %4985 = vmatpush2.msra.mxu0 0.0
    %4986 = vmatprep.subr.mxu0 0.0
    %4987 = vmatpush2.msra.mxu0 0.0
    %4988 = vmatprep.subr.mxu0 0.0
    %4989 = vmatpush2.msra.mxu0 0.0
    %4990 = vmatprep.subr.mxu0 0.0
    %4991 = vmatpush2.msra.mxu0 0.0
    %4992 = vmatprep.subr.mxu0 0.0
    %4993 = vmatpush2.msra.mxu0 0.0
    %4994 = vmatprep.subr.mxu0 0.0
    %4995 = vmatpush2.msra.mxu0 0.0
    %4996 = vmatprep.subr.mxu0 0.0
    %4997 = vmatpush2.msra.mxu0 0.0
    %4998 = vmatprep.subr.mxu0 0.0
    %4999 = vmatpush2.msra.mxu0 0.0
    %5000 = vmatprep.subr.mxu0 0.0
    %5001 = vmatpush2.msra.mxu0 0.0
    %5002 = vmatprep.mubr.f32.mxu0 0.0
    %v5003 = vand.u32 %v4701, 4294901760
    %v5004 = vsub.f32 %v4701, %v5003
    %5005 = vmatmul.mubr.f32.gmra.mxu0 %v5004
    %v5006 = vpop.f32.mrf.mxu0
    %v5007 = vadd.f32 %v4909, %v5006
    %v5008 = vpop.f32.mrf.mxu0
    %5009 = vmatprep.mubr.f32.mxu0 0.0
    %v5010 = vand.u32 %v4704, 4294901760
    %v5011 = vsub.f32 %v4704, %v5010
    %5012 = vmatmul.mubr.f32.gmra.mxu0 %v5011
    %v5013 = vpop.f32.mrf.mxu0
    %v5014 = vadd.f32 %v4915, %v5013
    %v5015 = vpop.f32.mrf.mxu0
    %5016 = vmatprep.mubr.f32.mxu0 0.0
    %v5017 = vand.u32 %v4707, 4294901760
    %v5018 = vsub.f32 %v4707, %v5017
    %5019 = vmatmul.mubr.f32.gmra.mxu0 %v5018
    %v5020 = vpop.f32.mrf.mxu0
    %v5021 = vadd.f32 %v4921, %v5020
    %v5022 = vpop.f32.mrf.mxu0
    %5023 = vmatprep.mubr.f32.mxu0 0.0
    %v5024 = vand.u32 %v4710, 4294901760
    %v5025 = vsub.f32 %v4710, %v5024
    %5026 = vmatmul.mubr.f32.gmra.mxu0 %v5025
    %v5027 = vpop.f32.mrf.mxu0
    %v5028 = vadd.f32 %v4927, %v5027
    %v5029 = vpop.f32.mrf.mxu0
    %5030 = vdwg.mxu0
    %5031 = vmatprep.subr.mxu0 0.0
    %5032 = vmatpush1.msra.mxu0 0.0
    %5033 = vmatprep.subr.mxu0 0.0
    %5034 = vmatpush1.msra.mxu0 0.0
    %5035 = vmatprep.subr.mxu0 0.0
    %5036 = vmatpush1.msra.mxu0 0.0
    %5037 = vmatprep.subr.mxu0 0.0
    %5038 = vmatpush1.msra.mxu0 0.0
    %5039 = vmatprep.subr.mxu0 0.0
    %5040 = vmatpush1.msra.mxu0 0.0
    %5041 = vmatprep.subr.mxu0 0.0
    %5042 = vmatpush1.msra.mxu0 0.0
    %5043 = vmatprep.subr.mxu0 0.0
    %5044 = vmatpush1.msra.mxu0 0.0
    %5045 = vmatprep.subr.mxu0 0.0
    %5046 = vmatpush1.msra.mxu0 0.0
    %5047 = vmatprep.subr.mxu0 0.0
    %5048 = vmatpush1.msra.mxu0 0.0
    %5049 = vmatprep.subr.mxu0 0.0
    %5050 = vmatpush1.msra.mxu0 0.0
    %5051 = vmatprep.subr.mxu0 0.0
    %5052 = vmatpush1.msra.mxu0 0.0
    %5053 = vmatprep.subr.mxu0 0.0
    %5054 = vmatpush1.msra.mxu0 0.0
    %5055 = vmatprep.subr.mxu0 0.0
    %v5056 = vand.u32 %v4684, 4294901760
    %5057 = vmatpush1.msra.mxu0 %v5056
    %5058 = vmatprep.subr.mxu0 0.0
    %v5059 = vand.u32 %v4683, 4294901760
    %5060 = vmatpush1.msra.mxu0 %v5059
    %5061 = vmatprep.subr.mxu0 0.0
    %v5062 = vand.u32 %v4682, 4294901760
    %5063 = vmatpush1.msra.mxu0 %v5062
    %5064 = vmatprep.subr.mxu0 0.0
    %v5065 = vand.u32 %v4681, 4294901760
    %5066 = vmatpush1.msra.mxu0 %v5065
    %5067 = vmatprep.subr.mxu0 0.0
    %5068 = vmatpush2.msra.mxu0 0.0
    %5069 = vmatprep.subr.mxu0 0.0
    %5070 = vmatpush2.msra.mxu0 0.0
    %5071 = vmatprep.subr.mxu0 0.0
    %5072 = vmatpush2.msra.mxu0 0.0
    %5073 = vmatprep.subr.mxu0 0.0
    %5074 = vmatpush2.msra.mxu0 0.0
    %5075 = vmatprep.subr.mxu0 0.0
    %5076 = vmatpush2.msra.mxu0 0.0
    %5077 = vmatprep.subr.mxu0 0.0
    %5078 = vmatpush2.msra.mxu0 0.0
    %5079 = vmatprep.subr.mxu0 0.0
    %5080 = vmatpush2.msra.mxu0 0.0
    %5081 = vmatprep.subr.mxu0 0.0
    %5082 = vmatpush2.msra.mxu0 0.0
    %5083 = vmatprep.subr.mxu0 0.0
    %5084 = vmatpush2.msra.mxu0 0.0
    %5085 = vmatprep.subr.mxu0 0.0
    %5086 = vmatpush2.msra.mxu0 0.0
    %5087 = vmatprep.subr.mxu0 0.0
    %5088 = vmatpush2.msra.mxu0 0.0
    %5089 = vmatprep.subr.mxu0 0.0
    %5090 = vmatpush2.msra.mxu0 0.0
    %5091 = vmatprep.subr.mxu0 0.0
    %5092 = vmatpush2.msra.mxu0 0.0
    %5093 = vmatprep.subr.mxu0 0.0
    %5094 = vmatpush2.msra.mxu0 0.0
    %5095 = vmatprep.subr.mxu0 0.0
    %5096 = vmatpush2.msra.mxu0 0.0
    %5097 = vmatprep.subr.mxu0 0.0
    %5098 = vmatpush2.msra.mxu0 0.0
    %5099 = vmatprep.mubr.f32.mxu0 0.0
    %v5100 = vand.u32 %v4701, 4294901760
    %v5101 = vsub.f32 %v4701, %v5100
    %v5102 = vand.u32 %v5101, 4294901760
    %5103 = vmatmul.mubr.f32.gmra.mxu0 %v5102
    %v5104 = vpop.f32.mrf.mxu0
    %v5105 = vadd.f32 %v5007, %v5104
    %v5106 = vpop.f32.mrf.mxu0
    %5107 = vmatprep.mubr.f32.mxu0 0.0
    %v5108 = vand.u32 %v4704, 4294901760
    %v5109 = vsub.f32 %v4704, %v5108
    %v5110 = vand.u32 %v5109, 4294901760
    %5111 = vmatmul.mubr.f32.gmra.mxu0 %v5110
    %v5112 = vpop.f32.mrf.mxu0
    %v5113 = vadd.f32 %v5014, %v5112
    %v5114 = vpop.f32.mrf.mxu0
    %5115 = vmatprep.mubr.f32.mxu0 0.0
    %v5116 = vand.u32 %v4707, 4294901760
    %v5117 = vsub.f32 %v4707, %v5116
    %v5118 = vand.u32 %v5117, 4294901760
    %5119 = vmatmul.mubr.f32.gmra.mxu0 %v5118
    %v5120 = vpop.f32.mrf.mxu0
    %v5121 = vadd.f32 %v5021, %v5120
    %v5122 = vpop.f32.mrf.mxu0
    %5123 = vmatprep.mubr.f32.mxu0 0.0
    %v5124 = vand.u32 %v4710, 4294901760
    %v5125 = vsub.f32 %v4710, %v5124
    %v5126 = vand.u32 %v5125, 4294901760
    %5127 = vmatmul.mubr.f32.gmra.mxu0 %v5126
    %v5128 = vpop.f32.mrf.mxu0
    %v5129 = vadd.f32 %v5028, %v5128
    %v5130 = vpop.f32.mrf.mxu0
    %5131 = vdwg.mxu0
    %5132 = vmatprep.subr.mxu0 0.0
    %5133 = vmatpush1.msra.mxu0 0.0
    %5134 = vmatprep.subr.mxu0 0.0
    %5135 = vmatpush1.msra.mxu0 0.0
    %5136 = vmatprep.subr.mxu0 0.0
    %5137 = vmatpush1.msra.mxu0 0.0
    %5138 = vmatprep.subr.mxu0 0.0
    %5139 = vmatpush1.msra.mxu0 0.0
    %5140 = vmatprep.subr.mxu0 0.0
    %5141 = vmatpush1.msra.mxu0 0.0
    %5142 = vmatprep.subr.mxu0 0.0
    %5143 = vmatpush1.msra.mxu0 0.0
    %5144 = vmatprep.subr.mxu0 0.0
    %5145 = vmatpush1.msra.mxu0 0.0
    %5146 = vmatprep.subr.mxu0 0.0
    %5147 = vmatpush1.msra.mxu0 0.0
    %5148 = vmatprep.subr.mxu0 0.0
    %5149 = vmatpush1.msra.mxu0 0.0
    %5150 = vmatprep.subr.mxu0 0.0
    %5151 = vmatpush1.msra.mxu0 0.0
    %5152 = vmatprep.subr.mxu0 0.0
    %5153 = vmatpush1.msra.mxu0 0.0
    %5154 = vmatprep.subr.mxu0 0.0
    %5155 = vmatpush1.msra.mxu0 0.0
    %5156 = vmatprep.subr.mxu0 0.0
    %v5157 = vand.u32 %v4684, 4294901760
    %v5158 = vsub.f32 %v4684, %v5157
    %v5159 = vand.u32 %v5158, 4294901760
    %5160 = vmatpush1.msra.mxu0 %v5159
    %5161 = vmatprep.subr.mxu0 0.0
    %v5162 = vand.u32 %v4683, 4294901760
    %v5163 = vsub.f32 %v4683, %v5162
    %v5164 = vand.u32 %v5163, 4294901760
    %5165 = vmatpush1.msra.mxu0 %v5164
    %5166 = vmatprep.subr.mxu0 0.0
    %v5167 = vand.u32 %v4682, 4294901760
    %v5168 = vsub.f32 %v4682, %v5167
    %v5169 = vand.u32 %v5168, 4294901760
    %5170 = vmatpush1.msra.mxu0 %v5169
    %5171 = vmatprep.subr.mxu0 0.0
    %v5172 = vand.u32 %v4681, 4294901760
    %v5173 = vsub.f32 %v4681, %v5172
    %v5174 = vand.u32 %v5173, 4294901760
    %5175 = vmatpush1.msra.mxu0 %v5174
    %5176 = vmatprep.subr.mxu0 0.0
    %5177 = vmatpush2.msra.mxu0 0.0
    %5178 = vmatprep.subr.mxu0 0.0
    %5179 = vmatpush2.msra.mxu0 0.0
    %5180 = vmatprep.subr.mxu0 0.0
    %5181 = vmatpush2.msra.mxu0 0.0
    %5182 = vmatprep.subr.mxu0 0.0
    %5183 = vmatpush2.msra.mxu0 0.0
    %5184 = vmatprep.subr.mxu0 0.0
    %5185 = vmatpush2.msra.mxu0 0.0
    %5186 = vmatprep.subr.mxu0 0.0
    %5187 = vmatpush2.msra.mxu0 0.0
    %5188 = vmatprep.subr.mxu0 0.0
    %5189 = vmatpush2.msra.mxu0 0.0
    %5190 = vmatprep.subr.mxu0 0.0
    %5191 = vmatpush2.msra.mxu0 0.0
    %5192 = vmatprep.subr.mxu0 0.0
    %5193 = vmatpush2.msra.mxu0 0.0
    %5194 = vmatprep.subr.mxu0 0.0
    %5195 = vmatpush2.msra.mxu0 0.0
    %5196 = vmatprep.subr.mxu0 0.0
    %5197 = vmatpush2.msra.mxu0 0.0
    %5198 = vmatprep.subr.mxu0 0.0
    %5199 = vmatpush2.msra.mxu0 0.0
    %5200 = vmatprep.subr.mxu0 0.0
    %5201 = vmatpush2.msra.mxu0 0.0
    %5202 = vmatprep.subr.mxu0 0.0
    %5203 = vmatpush2.msra.mxu0 0.0
    %5204 = vmatprep.subr.mxu0 0.0
    %5205 = vmatpush2.msra.mxu0 0.0
    %5206 = vmatprep.subr.mxu0 0.0
    %5207 = vmatpush2.msra.mxu0 0.0
    %5208 = vmatprep.mubr.f32.mxu0 0.0
    %v5209 = vand.u32 %v4701, 4294901760
    %5210 = vmatmul.mubr.f32.gmra.mxu0 %v5209
    %v5211 = vpop.f32.mrf.mxu0
    %v5212 = vadd.f32 %v5105, %v5211
    %v5213 = vpop.f32.mrf.mxu0
    %5214 = vmatprep.mubr.f32.mxu0 0.0
    %v5215 = vand.u32 %v4704, 4294901760
    %5216 = vmatmul.mubr.f32.gmra.mxu0 %v5215
    %v5217 = vpop.f32.mrf.mxu0
    %v5218 = vadd.f32 %v5113, %v5217
    %v5219 = vpop.f32.mrf.mxu0
    %5220 = vmatprep.mubr.f32.mxu0 0.0
    %v5221 = vand.u32 %v4707, 4294901760
    %5222 = vmatmul.mubr.f32.gmra.mxu0 %v5221
    %v5223 = vpop.f32.mrf.mxu0
    %v5224 = vadd.f32 %v5121, %v5223
    %v5225 = vpop.f32.mrf.mxu0
    %5226 = vmatprep.mubr.f32.mxu0 0.0
    %v5227 = vand.u32 %v4710, 4294901760
    %5228 = vmatmul.mubr.f32.gmra.mxu0 %v5227
    %v5229 = vpop.f32.mrf.mxu0
    %v5230 = vadd.f32 %v5129, %v5229
    %v5231 = vpop.f32.mrf.mxu0
    %5232 = vdwg.mxu0
    %5233 = vmatprep.subr.mxu0 0.0
    %5234 = vmatpush1.msra.mxu0 0.0
    %5235 = vmatprep.subr.mxu0 0.0
    %5236 = vmatpush1.msra.mxu0 0.0
    %5237 = vmatprep.subr.mxu0 0.0
    %5238 = vmatpush1.msra.mxu0 0.0
    %5239 = vmatprep.subr.mxu0 0.0
    %5240 = vmatpush1.msra.mxu0 0.0
    %5241 = vmatprep.subr.mxu0 0.0
    %5242 = vmatpush1.msra.mxu0 0.0
    %5243 = vmatprep.subr.mxu0 0.0
    %5244 = vmatpush1.msra.mxu0 0.0
    %5245 = vmatprep.subr.mxu0 0.0
    %5246 = vmatpush1.msra.mxu0 0.0
    %5247 = vmatprep.subr.mxu0 0.0
    %5248 = vmatpush1.msra.mxu0 0.0
    %5249 = vmatprep.subr.mxu0 0.0
    %5250 = vmatpush1.msra.mxu0 0.0
    %5251 = vmatprep.subr.mxu0 0.0
    %5252 = vmatpush1.msra.mxu0 0.0
    %5253 = vmatprep.subr.mxu0 0.0
    %5254 = vmatpush1.msra.mxu0 0.0
    %5255 = vmatprep.subr.mxu0 0.0
    %5256 = vmatpush1.msra.mxu0 0.0
    %5257 = vmatprep.subr.mxu0 0.0
    %v5258 = vand.u32 %v4684, 4294901760
    %5259 = vmatpush1.msra.mxu0 %v5258
    %5260 = vmatprep.subr.mxu0 0.0
    %v5261 = vand.u32 %v4683, 4294901760
    %5262 = vmatpush1.msra.mxu0 %v5261
    %5263 = vmatprep.subr.mxu0 0.0
    %v5264 = vand.u32 %v4682, 4294901760
    %5265 = vmatpush1.msra.mxu0 %v5264
    %5266 = vmatprep.subr.mxu0 0.0
    %v5267 = vand.u32 %v4681, 4294901760
    %5268 = vmatpush1.msra.mxu0 %v5267
    %5269 = vmatprep.subr.mxu0 0.0
    %5270 = vmatpush2.msra.mxu0 0.0
    %5271 = vmatprep.subr.mxu0 0.0
    %5272 = vmatpush2.msra.mxu0 0.0
    %5273 = vmatprep.subr.mxu0 0.0
    %5274 = vmatpush2.msra.mxu0 0.0
    %5275 = vmatprep.subr.mxu0 0.0
    %5276 = vmatpush2.msra.mxu0 0.0
    %5277 = vmatprep.subr.mxu0 0.0
    %5278 = vmatpush2.msra.mxu0 0.0
    %5279 = vmatprep.subr.mxu0 0.0
    %5280 = vmatpush2.msra.mxu0 0.0
    %5281 = vmatprep.subr.mxu0 0.0
    %5282 = vmatpush2.msra.mxu0 0.0
    %5283 = vmatprep.subr.mxu0 0.0
    %5284 = vmatpush2.msra.mxu0 0.0
    %5285 = vmatprep.subr.mxu0 0.0
    %5286 = vmatpush2.msra.mxu0 0.0
    %5287 = vmatprep.subr.mxu0 0.0
    %5288 = vmatpush2.msra.mxu0 0.0
    %5289 = vmatprep.subr.mxu0 0.0
    %5290 = vmatpush2.msra.mxu0 0.0
    %5291 = vmatprep.subr.mxu0 0.0
    %5292 = vmatpush2.msra.mxu0 0.0
    %5293 = vmatprep.subr.mxu0 0.0
    %5294 = vmatpush2.msra.mxu0 0.0
    %5295 = vmatprep.subr.mxu0 0.0
    %5296 = vmatpush2.msra.mxu0 0.0
    %5297 = vmatprep.subr.mxu0 0.0
    %5298 = vmatpush2.msra.mxu0 0.0
    %5299 = vmatprep.subr.mxu0 0.0
    %5300 = vmatpush2.msra.mxu0 0.0
    %5301 = vmatprep.mubr.f32.mxu0 0.0
    %v5302 = vand.u32 %v4701, 4294901760
    %5303 = vmatmul.mubr.f32.gmra.mxu0 %v5302
    %v5304 = vpop.f32.mrf.mxu0
    %v5305 = vadd.f32 %v5212, %v5304
    %v5306 = vpop.f32.mrf.mxu0
    %5307 = vmatprep.mubr.f32.mxu0 0.0
    %v5308 = vand.u32 %v4704, 4294901760
    %5309 = vmatmul.mubr.f32.gmra.mxu0 %v5308
    %v5310 = vpop.f32.mrf.mxu0
    %v5311 = vadd.f32 %v5218, %v5310
    %v5312 = vpop.f32.mrf.mxu0
    %5313 = vmatprep.mubr.f32.mxu0 0.0
    %v5314 = vand.u32 %v4707, 4294901760
    %5315 = vmatmul.mubr.f32.gmra.mxu0 %v5314
    %v5316 = vpop.f32.mrf.mxu0
    %v5317 = vadd.f32 %v5224, %v5316
    %v5318 = vpop.f32.mrf.mxu0
    %5319 = vmatprep.mubr.f32.mxu0 0.0
    %v5320 = vand.u32 %v4710, 4294901760
    %5321 = vmatmul.mubr.f32.gmra.mxu0 %v5320
    %v5322 = vpop.f32.mrf.mxu0
    %v5323 = vadd.f32 %v5230, %v5322
    %v5324 = vpop.f32.mrf.mxu0
    %5325 = vdwg.mxu0
    %5326 = vmatprep.subr.mxu0 0.0
    %5327 = vmatpush1.msra.mxu0 0.0
    %5328 = vmatprep.subr.mxu0 0.0
    %5329 = vmatpush1.msra.mxu0 0.0
    %5330 = vmatprep.subr.mxu0 0.0
    %5331 = vmatpush1.msra.mxu0 0.0
    %5332 = vmatprep.subr.mxu0 0.0
    %5333 = vmatpush1.msra.mxu0 0.0
    %5334 = vmatprep.subr.mxu0 0.0
    %5335 = vmatpush1.msra.mxu0 0.0
    %5336 = vmatprep.subr.mxu0 0.0
    %5337 = vmatpush1.msra.mxu0 0.0
    %5338 = vmatprep.subr.mxu0 0.0
    %5339 = vmatpush1.msra.mxu0 0.0
    %5340 = vmatprep.subr.mxu0 0.0
    %5341 = vmatpush1.msra.mxu0 0.0
    %5342 = vmatprep.subr.mxu0 0.0
    %5343 = vmatpush1.msra.mxu0 0.0
    %5344 = vmatprep.subr.mxu0 0.0
    %5345 = vmatpush1.msra.mxu0 0.0
    %5346 = vmatprep.subr.mxu0 0.0
    %5347 = vmatpush1.msra.mxu0 0.0
    %5348 = vmatprep.subr.mxu0 0.0
    %5349 = vmatpush1.msra.mxu0 0.0
    %5350 = vmatprep.subr.mxu0 0.0
    %v5351 = vand.u32 %v4688, 4294901760
    %5352 = vmatpush1.msra.mxu0 %v5351
    %5353 = vmatprep.subr.mxu0 0.0
    %v5354 = vand.u32 %v4687, 4294901760
    %5355 = vmatpush1.msra.mxu0 %v5354
    %5356 = vmatprep.subr.mxu0 0.0
    %v5357 = vand.u32 %v4686, 4294901760
    %5358 = vmatpush1.msra.mxu0 %v5357
    %5359 = vmatprep.subr.mxu0 0.0
    %v5360 = vand.u32 %v4685, 4294901760
    %5361 = vmatpush1.msra.mxu0 %v5360
    %5362 = vmatprep.subr.mxu0 0.0
    %5363 = vmatpush2.msra.mxu0 0.0
    %5364 = vmatprep.subr.mxu0 0.0
    %5365 = vmatpush2.msra.mxu0 0.0
    %5366 = vmatprep.subr.mxu0 0.0
    %5367 = vmatpush2.msra.mxu0 0.0
    %5368 = vmatprep.subr.mxu0 0.0
    %5369 = vmatpush2.msra.mxu0 0.0
    %5370 = vmatprep.subr.mxu0 0.0
    %5371 = vmatpush2.msra.mxu0 0.0
    %5372 = vmatprep.subr.mxu0 0.0
    %5373 = vmatpush2.msra.mxu0 0.0
    %5374 = vmatprep.subr.mxu0 0.0
    %5375 = vmatpush2.msra.mxu0 0.0
    %5376 = vmatprep.subr.mxu0 0.0
    %5377 = vmatpush2.msra.mxu0 0.0
    %5378 = vmatprep.subr.mxu0 0.0
    %5379 = vmatpush2.msra.mxu0 0.0
    %5380 = vmatprep.subr.mxu0 0.0
    %5381 = vmatpush2.msra.mxu0 0.0
    %5382 = vmatprep.subr.mxu0 0.0
    %5383 = vmatpush2.msra.mxu0 0.0
    %5384 = vmatprep.subr.mxu0 0.0
    %5385 = vmatpush2.msra.mxu0 0.0
    %5386 = vmatprep.subr.mxu0 0.0
    %5387 = vmatpush2.msra.mxu0 0.0
    %5388 = vmatprep.subr.mxu0 0.0
    %5389 = vmatpush2.msra.mxu0 0.0
    %5390 = vmatprep.subr.mxu0 0.0
    %5391 = vmatpush2.msra.mxu0 0.0
    %5392 = vmatprep.subr.mxu0 0.0
    %5393 = vmatpush2.msra.mxu0 0.0
    %5394 = vmatprep.mubr.f32.mxu0 0.0
    %v5395 = vand.u32 %v558, 4294901760
    %v5396 = vsub.f32 %v558, %v5395
    %v5397 = vand.u32 %v5396, 4294901760
    %v5398 = vsub.f32 %v5396, %v5397
    %v5399 = vand.u32 %v5398, 4294901760
    %5400 = vmatmul.mubr.f32.gmra.mxu0 %v5399
    %v5401 = vpop.f32.mrf.mxu0
    %v5402 = vadd.f32 0.0, %v5401
    %v5403 = vpop.f32.mrf.mxu0
    %5404 = vdwg.mxu0
    %5405 = vmatprep.subr.mxu0 0.0
    %5406 = vmatpush1.msra.mxu0 0.0
    %5407 = vmatprep.subr.mxu0 0.0
    %5408 = vmatpush1.msra.mxu0 0.0
    %5409 = vmatprep.subr.mxu0 0.0
    %5410 = vmatpush1.msra.mxu0 0.0
    %5411 = vmatprep.subr.mxu0 0.0
    %5412 = vmatpush1.msra.mxu0 0.0
    %5413 = vmatprep.subr.mxu0 0.0
    %5414 = vmatpush1.msra.mxu0 0.0
    %5415 = vmatprep.subr.mxu0 0.0
    %5416 = vmatpush1.msra.mxu0 0.0
    %5417 = vmatprep.subr.mxu0 0.0
    %5418 = vmatpush1.msra.mxu0 0.0
    %5419 = vmatprep.subr.mxu0 0.0
    %5420 = vmatpush1.msra.mxu0 0.0
    %5421 = vmatprep.subr.mxu0 0.0
    %5422 = vmatpush1.msra.mxu0 0.0
    %5423 = vmatprep.subr.mxu0 0.0
    %5424 = vmatpush1.msra.mxu0 0.0
    %5425 = vmatprep.subr.mxu0 0.0
    %5426 = vmatpush1.msra.mxu0 0.0
    %5427 = vmatprep.subr.mxu0 0.0
    %5428 = vmatpush1.msra.mxu0 0.0
    %5429 = vmatprep.subr.mxu0 0.0
    %v5430 = vand.u32 %v4688, 4294901760
    %v5431 = vsub.f32 %v4688, %v5430
    %v5432 = vand.u32 %v5431, 4294901760
    %v5433 = vsub.f32 %v5431, %v5432
    %v5434 = vand.u32 %v5433, 4294901760
    %5435 = vmatpush1.msra.mxu0 %v5434
    %5436 = vmatprep.subr.mxu0 0.0
    %v5437 = vand.u32 %v4687, 4294901760
    %v5438 = vsub.f32 %v4687, %v5437
    %v5439 = vand.u32 %v5438, 4294901760
    %v5440 = vsub.f32 %v5438, %v5439
    %v5441 = vand.u32 %v5440, 4294901760
    %5442 = vmatpush1.msra.mxu0 %v5441
    %5443 = vmatprep.subr.mxu0 0.0
    %v5444 = vand.u32 %v4686, 4294901760
    %v5445 = vsub.f32 %v4686, %v5444
    %v5446 = vand.u32 %v5445, 4294901760
    %v5447 = vsub.f32 %v5445, %v5446
    %v5448 = vand.u32 %v5447, 4294901760
    %5449 = vmatpush1.msra.mxu0 %v5448
    %5450 = vmatprep.subr.mxu0 0.0
    %v5451 = vand.u32 %v4685, 4294901760
    %v5452 = vsub.f32 %v4685, %v5451
    %v5453 = vand.u32 %v5452, 4294901760
    %v5454 = vsub.f32 %v5452, %v5453
    %v5455 = vand.u32 %v5454, 4294901760
    %5456 = vmatpush1.msra.mxu0 %v5455
    %5457 = vmatprep.subr.mxu0 0.0
    %5458 = vmatpush2.msra.mxu0 0.0
    %5459 = vmatprep.subr.mxu0 0.0
    %5460 = vmatpush2.msra.mxu0 0.0
    %5461 = vmatprep.subr.mxu0 0.0
    %5462 = vmatpush2.msra.mxu0 0.0
    %5463 = vmatprep.subr.mxu0 0.0
    %5464 = vmatpush2.msra.mxu0 0.0
    %5465 = vmatprep.subr.mxu0 0.0
    %5466 = vmatpush2.msra.mxu0 0.0
    %5467 = vmatprep.subr.mxu0 0.0
    %5468 = vmatpush2.msra.mxu0 0.0
    %5469 = vmatprep.subr.mxu0 0.0
    %5470 = vmatpush2.msra.mxu0 0.0
    %5471 = vmatprep.subr.mxu0 0.0
    %5472 = vmatpush2.msra.mxu0 0.0
    %5473 = vmatprep.subr.mxu0 0.0
    %5474 = vmatpush2.msra.mxu0 0.0
    %5475 = vmatprep.subr.mxu0 0.0
    %5476 = vmatpush2.msra.mxu0 0.0
    %5477 = vmatprep.subr.mxu0 0.0
    %5478 = vmatpush2.msra.mxu0 0.0
    %5479 = vmatprep.subr.mxu0 0.0
    %5480 = vmatpush2.msra.mxu0 0.0
    %5481 = vmatprep.subr.mxu0 0.0
    %5482 = vmatpush2.msra.mxu0 0.0
    %5483 = vmatprep.subr.mxu0 0.0
    %5484 = vmatpush2.msra.mxu0 0.0
    %5485 = vmatprep.subr.mxu0 0.0
    %5486 = vmatpush2.msra.mxu0 0.0
    %5487 = vmatprep.subr.mxu0 0.0
    %5488 = vmatpush2.msra.mxu0 0.0
    %5489 = vmatprep.mubr.f32.mxu0 0.0
    %v5490 = vand.u32 %v558, 4294901760
    %5491 = vmatmul.mubr.f32.gmra.mxu0 %v5490
    %v5492 = vpop.f32.mrf.mxu0
    %v5493 = vadd.f32 %v5402, %v5492
    %v5494 = vpop.f32.mrf.mxu0
    %5495 = vdwg.mxu0
    %5496 = vmatprep.subr.mxu0 0.0
    %5497 = vmatpush1.msra.mxu0 0.0
    %5498 = vmatprep.subr.mxu0 0.0
    %5499 = vmatpush1.msra.mxu0 0.0
    %5500 = vmatprep.subr.mxu0 0.0
    %5501 = vmatpush1.msra.mxu0 0.0
    %5502 = vmatprep.subr.mxu0 0.0
    %5503 = vmatpush1.msra.mxu0 0.0
    %5504 = vmatprep.subr.mxu0 0.0
    %5505 = vmatpush1.msra.mxu0 0.0
    %5506 = vmatprep.subr.mxu0 0.0
    %5507 = vmatpush1.msra.mxu0 0.0
    %5508 = vmatprep.subr.mxu0 0.0
    %5509 = vmatpush1.msra.mxu0 0.0
    %5510 = vmatprep.subr.mxu0 0.0
    %5511 = vmatpush1.msra.mxu0 0.0
    %5512 = vmatprep.subr.mxu0 0.0
    %5513 = vmatpush1.msra.mxu0 0.0
    %5514 = vmatprep.subr.mxu0 0.0
    %5515 = vmatpush1.msra.mxu0 0.0
    %5516 = vmatprep.subr.mxu0 0.0
    %5517 = vmatpush1.msra.mxu0 0.0
    %5518 = vmatprep.subr.mxu0 0.0
    %5519 = vmatpush1.msra.mxu0 0.0
    %5520 = vmatprep.subr.mxu0 0.0
    %v5521 = vand.u32 %v4688, 4294901760
    %v5522 = vsub.f32 %v4688, %v5521
    %5523 = vmatpush1.msra.mxu0 %v5522
    %5524 = vmatprep.subr.mxu0 0.0
    %v5525 = vand.u32 %v4687, 4294901760
    %v5526 = vsub.f32 %v4687, %v5525
    %5527 = vmatpush1.msra.mxu0 %v5526
    %5528 = vmatprep.subr.mxu0 0.0
    %v5529 = vand.u32 %v4686, 4294901760
    %v5530 = vsub.f32 %v4686, %v5529
    %5531 = vmatpush1.msra.mxu0 %v5530
    %5532 = vmatprep.subr.mxu0 0.0
    %v5533 = vand.u32 %v4685, 4294901760
    %v5534 = vsub.f32 %v4685, %v5533
    %5535 = vmatpush1.msra.mxu0 %v5534
    %5536 = vmatprep.subr.mxu0 0.0
    %5537 = vmatpush2.msra.mxu0 0.0
    %5538 = vmatprep.subr.mxu0 0.0
    %5539 = vmatpush2.msra.mxu0 0.0
    %5540 = vmatprep.subr.mxu0 0.0
    %5541 = vmatpush2.msra.mxu0 0.0
    %5542 = vmatprep.subr.mxu0 0.0
    %5543 = vmatpush2.msra.mxu0 0.0
    %5544 = vmatprep.subr.mxu0 0.0
    %5545 = vmatpush2.msra.mxu0 0.0
    %5546 = vmatprep.subr.mxu0 0.0
    %5547 = vmatpush2.msra.mxu0 0.0
    %5548 = vmatprep.subr.mxu0 0.0
    %5549 = vmatpush2.msra.mxu0 0.0
    %5550 = vmatprep.subr.mxu0 0.0
    %5551 = vmatpush2.msra.mxu0 0.0
    %5552 = vmatprep.subr.mxu0 0.0
    %5553 = vmatpush2.msra.mxu0 0.0
    %5554 = vmatprep.subr.mxu0 0.0
    %5555 = vmatpush2.msra.mxu0 0.0
    %5556 = vmatprep.subr.mxu0 0.0
    %5557 = vmatpush2.msra.mxu0 0.0
    %5558 = vmatprep.subr.mxu0 0.0
    %5559 = vmatpush2.msra.mxu0 0.0
    %5560 = vmatprep.subr.mxu0 0.0
    %5561 = vmatpush2.msra.mxu0 0.0
    %5562 = vmatprep.subr.mxu0 0.0
    %5563 = vmatpush2.msra.mxu0 0.0
    %5564 = vmatprep.subr.mxu0 0.0
    %5565 = vmatpush2.msra.mxu0 0.0
    %5566 = vmatprep.subr.mxu0 0.0
    %5567 = vmatpush2.msra.mxu0 0.0
    %5568 = vmatprep.mubr.f32.mxu0 0.0
    %v5569 = vand.u32 %v558, 4294901760
    %v5570 = vsub.f32 %v558, %v5569
    %5571 = vmatmul.mubr.f32.gmra.mxu0 %v5570
    %v5572 = vpop.f32.mrf.mxu0
    %v5573 = vadd.f32 %v5493, %v5572
    %v5574 = vpop.f32.mrf.mxu0
    %5575 = vdwg.mxu0
    %5576 = vmatprep.subr.mxu0 0.0
    %5577 = vmatpush1.msra.mxu0 0.0
    %5578 = vmatprep.subr.mxu0 0.0
    %5579 = vmatpush1.msra.mxu0 0.0
    %5580 = vmatprep.subr.mxu0 0.0
    %5581 = vmatpush1.msra.mxu0 0.0
    %5582 = vmatprep.subr.mxu0 0.0
    %5583 = vmatpush1.msra.mxu0 0.0
    %5584 = vmatprep.subr.mxu0 0.0
    %5585 = vmatpush1.msra.mxu0 0.0
    %5586 = vmatprep.subr.mxu0 0.0
    %5587 = vmatpush1.msra.mxu0 0.0
    %5588 = vmatprep.subr.mxu0 0.0
    %5589 = vmatpush1.msra.mxu0 0.0
    %5590 = vmatprep.subr.mxu0 0.0
    %5591 = vmatpush1.msra.mxu0 0.0
    %5592 = vmatprep.subr.mxu0 0.0
    %5593 = vmatpush1.msra.mxu0 0.0
    %5594 = vmatprep.subr.mxu0 0.0
    %5595 = vmatpush1.msra.mxu0 0.0
    %5596 = vmatprep.subr.mxu0 0.0
    %5597 = vmatpush1.msra.mxu0 0.0
    %5598 = vmatprep.subr.mxu0 0.0
    %5599 = vmatpush1.msra.mxu0 0.0
    %5600 = vmatprep.subr.mxu0 0.0
    %v5601 = vand.u32 %v4688, 4294901760
    %5602 = vmatpush1.msra.mxu0 %v5601
    %5603 = vmatprep.subr.mxu0 0.0
    %v5604 = vand.u32 %v4687, 4294901760
    %5605 = vmatpush1.msra.mxu0 %v5604
    %5606 = vmatprep.subr.mxu0 0.0
    %v5607 = vand.u32 %v4686, 4294901760
    %5608 = vmatpush1.msra.mxu0 %v5607
    %5609 = vmatprep.subr.mxu0 0.0
    %v5610 = vand.u32 %v4685, 4294901760
    %5611 = vmatpush1.msra.mxu0 %v5610
    %5612 = vmatprep.subr.mxu0 0.0
    %5613 = vmatpush2.msra.mxu0 0.0
    %5614 = vmatprep.subr.mxu0 0.0
    %5615 = vmatpush2.msra.mxu0 0.0
    %5616 = vmatprep.subr.mxu0 0.0
    %5617 = vmatpush2.msra.mxu0 0.0
    %5618 = vmatprep.subr.mxu0 0.0
    %5619 = vmatpush2.msra.mxu0 0.0
    %5620 = vmatprep.subr.mxu0 0.0
    %5621 = vmatpush2.msra.mxu0 0.0
    %5622 = vmatprep.subr.mxu0 0.0
    %5623 = vmatpush2.msra.mxu0 0.0
    %5624 = vmatprep.subr.mxu0 0.0
    %5625 = vmatpush2.msra.mxu0 0.0
    %5626 = vmatprep.subr.mxu0 0.0
    %5627 = vmatpush2.msra.mxu0 0.0
    %5628 = vmatprep.subr.mxu0 0.0
    %5629 = vmatpush2.msra.mxu0 0.0
    %5630 = vmatprep.subr.mxu0 0.0
    %5631 = vmatpush2.msra.mxu0 0.0
    %5632 = vmatprep.subr.mxu0 0.0
    %5633 = vmatpush2.msra.mxu0 0.0
    %5634 = vmatprep.subr.mxu0 0.0
    %5635 = vmatpush2.msra.mxu0 0.0
    %5636 = vmatprep.subr.mxu0 0.0
    %5637 = vmatpush2.msra.mxu0 0.0
    %5638 = vmatprep.subr.mxu0 0.0
    %5639 = vmatpush2.msra.mxu0 0.0
    %5640 = vmatprep.subr.mxu0 0.0
    %5641 = vmatpush2.msra.mxu0 0.0
    %5642 = vmatprep.subr.mxu0 0.0
    %5643 = vmatpush2.msra.mxu0 0.0
    %5644 = vmatprep.mubr.f32.mxu0 0.0
    %v5645 = vand.u32 %v558, 4294901760
    %v5646 = vsub.f32 %v558, %v5645
    %v5647 = vand.u32 %v5646, 4294901760
    %5648 = vmatmul.mubr.f32.gmra.mxu0 %v5647
    %v5649 = vpop.f32.mrf.mxu0
    %v5650 = vadd.f32 %v5573, %v5649
    %v5651 = vpop.f32.mrf.mxu0
    %5652 = vdwg.mxu0
    %5653 = vmatprep.subr.mxu0 0.0
    %5654 = vmatpush1.msra.mxu0 0.0
    %5655 = vmatprep.subr.mxu0 0.0
    %5656 = vmatpush1.msra.mxu0 0.0
    %5657 = vmatprep.subr.mxu0 0.0
    %5658 = vmatpush1.msra.mxu0 0.0
    %5659 = vmatprep.subr.mxu0 0.0
    %5660 = vmatpush1.msra.mxu0 0.0
    %5661 = vmatprep.subr.mxu0 0.0
    %5662 = vmatpush1.msra.mxu0 0.0
    %5663 = vmatprep.subr.mxu0 0.0
    %5664 = vmatpush1.msra.mxu0 0.0
    %5665 = vmatprep.subr.mxu0 0.0
    %5666 = vmatpush1.msra.mxu0 0.0
    %5667 = vmatprep.subr.mxu0 0.0
    %5668 = vmatpush1.msra.mxu0 0.0
    %5669 = vmatprep.subr.mxu0 0.0
    %5670 = vmatpush1.msra.mxu0 0.0
    %5671 = vmatprep.subr.mxu0 0.0
    %5672 = vmatpush1.msra.mxu0 0.0
    %5673 = vmatprep.subr.mxu0 0.0
    %5674 = vmatpush1.msra.mxu0 0.0
    %5675 = vmatprep.subr.mxu0 0.0
    %5676 = vmatpush1.msra.mxu0 0.0
    %5677 = vmatprep.subr.mxu0 0.0
    %v5678 = vand.u32 %v4688, 4294901760
    %v5679 = vsub.f32 %v4688, %v5678
    %v5680 = vand.u32 %v5679, 4294901760
    %5681 = vmatpush1.msra.mxu0 %v5680
    %5682 = vmatprep.subr.mxu0 0.0
    %v5683 = vand.u32 %v4687, 4294901760
    %v5684 = vsub.f32 %v4687, %v5683
    %v5685 = vand.u32 %v5684, 4294901760
    %5686 = vmatpush1.msra.mxu0 %v5685
    %5687 = vmatprep.subr.mxu0 0.0
    %v5688 = vand.u32 %v4686, 4294901760
    %v5689 = vsub.f32 %v4686, %v5688
    %v5690 = vand.u32 %v5689, 4294901760
    %5691 = vmatpush1.msra.mxu0 %v5690
    %5692 = vmatprep.subr.mxu0 0.0
    %v5693 = vand.u32 %v4685, 4294901760
    %v5694 = vsub.f32 %v4685, %v5693
    %v5695 = vand.u32 %v5694, 4294901760
    %5696 = vmatpush1.msra.mxu0 %v5695
    %5697 = vmatprep.subr.mxu0 0.0
    %5698 = vmatpush2.msra.mxu0 0.0
    %5699 = vmatprep.subr.mxu0 0.0
    %5700 = vmatpush2.msra.mxu0 0.0
    %5701 = vmatprep.subr.mxu0 0.0
    %5702 = vmatpush2.msra.mxu0 0.0
    %5703 = vmatprep.subr.mxu0 0.0
    %5704 = vmatpush2.msra.mxu0 0.0
    %5705 = vmatprep.subr.mxu0 0.0
    %5706 = vmatpush2.msra.mxu0 0.0
    %5707 = vmatprep.subr.mxu0 0.0
    %5708 = vmatpush2.msra.mxu0 0.0
    %5709 = vmatprep.subr.mxu0 0.0
    %5710 = vmatpush2.msra.mxu0 0.0
    %5711 = vmatprep.subr.mxu0 0.0
    %5712 = vmatpush2.msra.mxu0 0.0
    %5713 = vmatprep.subr.mxu0 0.0
    %5714 = vmatpush2.msra.mxu0 0.0
    %5715 = vmatprep.subr.mxu0 0.0
    %5716 = vmatpush2.msra.mxu0 0.0
    %5717 = vmatprep.subr.mxu0 0.0
    %5718 = vmatpush2.msra.mxu0 0.0
    %5719 = vmatprep.subr.mxu0 0.0
    %5720 = vmatpush2.msra.mxu0 0.0
    %5721 = vmatprep.subr.mxu0 0.0
    %5722 = vmatpush2.msra.mxu0 0.0
    %5723 = vmatprep.subr.mxu0 0.0
    %5724 = vmatpush2.msra.mxu0 0.0
    %5725 = vmatprep.subr.mxu0 0.0
    %5726 = vmatpush2.msra.mxu0 0.0
    %5727 = vmatprep.subr.mxu0 0.0
    %5728 = vmatpush2.msra.mxu0 0.0
    %5729 = vmatprep.mubr.f32.mxu0 0.0
    %v5730 = vand.u32 %v558, 4294901760
    %5731 = vmatmul.mubr.f32.gmra.mxu0 %v5730
    %v5732 = vpop.f32.mrf.mxu0
    %v5733 = vadd.f32 %v5650, %v5732
    %v5734 = vpop.f32.mrf.mxu0
    %5735 = vdwg.mxu0
    %5736 = vmatprep.subr.mxu0 0.0
    %5737 = vmatpush1.msra.mxu0 0.0
    %5738 = vmatprep.subr.mxu0 0.0
    %5739 = vmatpush1.msra.mxu0 0.0
    %5740 = vmatprep.subr.mxu0 0.0
    %5741 = vmatpush1.msra.mxu0 0.0
    %5742 = vmatprep.subr.mxu0 0.0
    %5743 = vmatpush1.msra.mxu0 0.0
    %5744 = vmatprep.subr.mxu0 0.0
    %5745 = vmatpush1.msra.mxu0 0.0
    %5746 = vmatprep.subr.mxu0 0.0
    %5747 = vmatpush1.msra.mxu0 0.0
    %5748 = vmatprep.subr.mxu0 0.0
    %5749 = vmatpush1.msra.mxu0 0.0
    %5750 = vmatprep.subr.mxu0 0.0
    %5751 = vmatpush1.msra.mxu0 0.0
    %5752 = vmatprep.subr.mxu0 0.0
    %5753 = vmatpush1.msra.mxu0 0.0
    %5754 = vmatprep.subr.mxu0 0.0
    %5755 = vmatpush1.msra.mxu0 0.0
    %5756 = vmatprep.subr.mxu0 0.0
    %5757 = vmatpush1.msra.mxu0 0.0
    %5758 = vmatprep.subr.mxu0 0.0
    %5759 = vmatpush1.msra.mxu0 0.0
    %5760 = vmatprep.subr.mxu0 0.0
    %v5761 = vand.u32 %v4688, 4294901760
    %5762 = vmatpush1.msra.mxu0 %v5761
    %5763 = vmatprep.subr.mxu0 0.0
    %v5764 = vand.u32 %v4687, 4294901760
    %5765 = vmatpush1.msra.mxu0 %v5764
    %5766 = vmatprep.subr.mxu0 0.0
    %v5767 = vand.u32 %v4686, 4294901760
    %5768 = vmatpush1.msra.mxu0 %v5767
    %5769 = vmatprep.subr.mxu0 0.0
    %v5770 = vand.u32 %v4685, 4294901760
    %5771 = vmatpush1.msra.mxu0 %v5770
    %5772 = vmatprep.subr.mxu0 0.0
    %5773 = vmatpush2.msra.mxu0 0.0
    %5774 = vmatprep.subr.mxu0 0.0
    %5775 = vmatpush2.msra.mxu0 0.0
    %5776 = vmatprep.subr.mxu0 0.0
    %5777 = vmatpush2.msra.mxu0 0.0
    %5778 = vmatprep.subr.mxu0 0.0
    %5779 = vmatpush2.msra.mxu0 0.0
    %5780 = vmatprep.subr.mxu0 0.0
    %5781 = vmatpush2.msra.mxu0 0.0
    %5782 = vmatprep.subr.mxu0 0.0
    %5783 = vmatpush2.msra.mxu0 0.0
    %5784 = vmatprep.subr.mxu0 0.0
    %5785 = vmatpush2.msra.mxu0 0.0
    %5786 = vmatprep.subr.mxu0 0.0
    %5787 = vmatpush2.msra.mxu0 0.0
    %5788 = vmatprep.subr.mxu0 0.0
    %5789 = vmatpush2.msra.mxu0 0.0
    %5790 = vmatprep.subr.mxu0 0.0
    %5791 = vmatpush2.msra.mxu0 0.0
    %5792 = vmatprep.subr.mxu0 0.0
    %5793 = vmatpush2.msra.mxu0 0.0
    %5794 = vmatprep.subr.mxu0 0.0
    %5795 = vmatpush2.msra.mxu0 0.0
    %5796 = vmatprep.subr.mxu0 0.0
    %5797 = vmatpush2.msra.mxu0 0.0
    %5798 = vmatprep.subr.mxu0 0.0
    %5799 = vmatpush2.msra.mxu0 0.0
    %5800 = vmatprep.subr.mxu0 0.0
    %5801 = vmatpush2.msra.mxu0 0.0
    %5802 = vmatprep.subr.mxu0 0.0
    %5803 = vmatpush2.msra.mxu0 0.0
    %5804 = vmatprep.mubr.f32.mxu0 0.0
    %v5805 = vand.u32 %v558, 4294901760
    %5806 = vmatmul.mubr.f32.gmra.mxu0 %v5805
    %v5807 = vpop.f32.mrf.mxu0
    %v5808 = vadd.f32 %v5733, %v5807
    %v5809 = vpop.f32.mrf.mxu0
    %5810 = vdwg.mxu0
    %v5811 = vadd.f32 %v5305, %v5808
    %v5812 = vtanh.pop %v5811
    %v5813 = vadd.f32 %v5812, 1.0
    %v5814 = vmul.f32 %v5813, 0.5
    %v5815 = vmul.f32 %v5814, 0.0
    %5817 = vrot.lane.b32.xlu0 %v5812, 64
    %v5818 = vpop.permute.xlu0 %5817
    %v5820 = vmul.f32 %v5814, %v5818
    %5822 = vrot.lane.b32.xlu0 %v5820, 32
    %v5823 = vpop.permute.xlu0 %5822
    %v5825 = vadd.f32 %v5815, %v5823
    %v5826 = vtanh.pop %v5825
    %5828 = vrot.lane.b32.xlu0 %v5826, 64
    %v5829 = vpop.permute.xlu0 %5828
    %v5831 = vmul.f32 %v5814, %v5829
    %5833 = vrot.lane.b32.xlu0 %v5831, 32
    %v5834 = vpop.permute.xlu0 %5833
    %v5835 = vsel %vm556, %v5834, 0
    %5837 = vmatprep.subr.mxu0 0.0
    %5838 = vmatpush1.msra.mxu0 0.0
    %5839 = vmatprep.subr.mxu0 0.0
    %5840 = vmatpush1.msra.mxu0 0.0
    %5841 = vmatprep.subr.mxu0 0.0
    %5842 = vmatpush1.msra.mxu0 0.0
    %5843 = vmatprep.subr.mxu0 0.0
    %5844 = vmatpush1.msra.mxu0 0.0
    %5845 = vmatprep.subr.mxu0 0.0
    %5846 = vmatpush1.msra.mxu0 0.0
    %5847 = vmatprep.subr.mxu0 0.0
    %5848 = vmatpush1.msra.mxu0 0.0
    %5849 = vmatprep.subr.mxu0 0.0
    %5850 = vmatpush1.msra.mxu0 0.0
    %5851 = vmatprep.subr.mxu0 0.0
    %5852 = vmatpush1.msra.mxu0 0.0
    %5853 = vmatprep.subr.mxu0 0.0
    %5854 = vmatpush1.msra.mxu0 0.0
    %5855 = vmatprep.subr.mxu0 0.0
    %5856 = vmatpush1.msra.mxu0 0.0
    %5857 = vmatprep.subr.mxu0 0.0
    %5858 = vmatpush1.msra.mxu0 0.0
    %5859 = vmatprep.subr.mxu0 0.0
    %5860 = vmatpush1.msra.mxu0 0.0
    %5861 = vmatprep.subr.mxu0 0.0
    %v5862 = vand.u32 %v4688, 4294901760
    %5863 = vmatpush1.msra.mxu0 %v5862
    %5864 = vmatprep.subr.mxu0 0.0
    %v5865 = vand.u32 %v4687, 4294901760
    %5866 = vmatpush1.msra.mxu0 %v5865
    %5867 = vmatprep.subr.mxu0 0.0
    %v5868 = vand.u32 %v4686, 4294901760
    %5869 = vmatpush1.msra.mxu0 %v5868
    %5870 = vmatprep.subr.mxu0 0.0
    %v5871 = vand.u32 %v4685, 4294901760
    %5872 = vmatpush1.msra.mxu0 %v5871
    %5873 = vmatprep.subr.mxu0 0.0
    %5874 = vmatpush2.msra.mxu0 0.0
    %5875 = vmatprep.subr.mxu0 0.0
    %5876 = vmatpush2.msra.mxu0 0.0
    %5877 = vmatprep.subr.mxu0 0.0
    %5878 = vmatpush2.msra.mxu0 0.0
    %5879 = vmatprep.subr.mxu0 0.0
    %5880 = vmatpush2.msra.mxu0 0.0
    %5881 = vmatprep.subr.mxu0 0.0
    %5882 = vmatpush2.msra.mxu0 0.0
    %5883 = vmatprep.subr.mxu0 0.0
    %5884 = vmatpush2.msra.mxu0 0.0
    %5885 = vmatprep.subr.mxu0 0.0
    %5886 = vmatpush2.msra.mxu0 0.0
    %5887 = vmatprep.subr.mxu0 0.0
    %5888 = vmatpush2.msra.mxu0 0.0
    %5889 = vmatprep.subr.mxu0 0.0
    %5890 = vmatpush2.msra.mxu0 0.0
    %5891 = vmatprep.subr.mxu0 0.0
    %5892 = vmatpush2.msra.mxu0 0.0
    %5893 = vmatprep.subr.mxu0 0.0
    %5894 = vmatpush2.msra.mxu0 0.0
    %5895 = vmatprep.subr.mxu0 0.0
    %5896 = vmatpush2.msra.mxu0 0.0
    %5897 = vmatprep.subr.mxu0 0.0
    %5898 = vmatpush2.msra.mxu0 0.0
    %5899 = vmatprep.subr.mxu0 0.0
    %5900 = vmatpush2.msra.mxu0 0.0
    %5901 = vmatprep.subr.mxu0 0.0
    %5902 = vmatpush2.msra.mxu0 0.0
    %5903 = vmatprep.subr.mxu0 0.0
    %5904 = vmatpush2.msra.mxu0 0.0
    %5905 = vmatprep.mubr.f32.mxu0 0.0
    %v5906 = vand.u32 %v5835, 4294901760
    %v5907 = vsub.f32 %v5835, %v5906
    %v5908 = vand.u32 %v5907, 4294901760
    %v5909 = vsub.f32 %v5907, %v5908
    %v5910 = vand.u32 %v5909, 4294901760
    %5911 = vmatmul.mubr.f32.gmra.mxu0 %v5910
    %v5912 = vpop.f32.mrf.mxu0
    %v5913 = vadd.f32 0.0, %v5912
    %v5914 = vpop.f32.mrf.mxu0
    %5915 = vdwg.mxu0
    %5916 = vmatprep.subr.mxu0 0.0
    %5917 = vmatpush1.msra.mxu0 0.0
    %5918 = vmatprep.subr.mxu0 0.0
    %5919 = vmatpush1.msra.mxu0 0.0
    %5920 = vmatprep.subr.mxu0 0.0
    %5921 = vmatpush1.msra.mxu0 0.0
    %5922 = vmatprep.subr.mxu0 0.0
    %5923 = vmatpush1.msra.mxu0 0.0
    %5924 = vmatprep.subr.mxu0 0.0
    %5925 = vmatpush1.msra.mxu0 0.0
    %5926 = vmatprep.subr.mxu0 0.0
    %5927 = vmatpush1.msra.mxu0 0.0
    %5928 = vmatprep.subr.mxu0 0.0
    %5929 = vmatpush1.msra.mxu0 0.0
    %5930 = vmatprep.subr.mxu0 0.0
    %5931 = vmatpush1.msra.mxu0 0.0
    %5932 = vmatprep.subr.mxu0 0.0
    %5933 = vmatpush1.msra.mxu0 0.0
    %5934 = vmatprep.subr.mxu0 0.0
    %5935 = vmatpush1.msra.mxu0 0.0
    %5936 = vmatprep.subr.mxu0 0.0
    %5937 = vmatpush1.msra.mxu0 0.0
    %5938 = vmatprep.subr.mxu0 0.0
    %5939 = vmatpush1.msra.mxu0 0.0
    %5940 = vmatprep.subr.mxu0 0.0
    %v5941 = vand.u32 %v4688, 4294901760
    %v5942 = vsub.f32 %v4688, %v5941
    %v5943 = vand.u32 %v5942, 4294901760
    %v5944 = vsub.f32 %v5942, %v5943
    %v5945 = vand.u32 %v5944, 4294901760
    %5946 = vmatpush1.msra.mxu0 %v5945
    %5947 = vmatprep.subr.mxu0 0.0
    %v5948 = vand.u32 %v4687, 4294901760
    %v5949 = vsub.f32 %v4687, %v5948
    %v5950 = vand.u32 %v5949, 4294901760
    %v5951 = vsub.f32 %v5949, %v5950
    %v5952 = vand.u32 %v5951, 4294901760
    %5953 = vmatpush1.msra.mxu0 %v5952
    %5954 = vmatprep.subr.mxu0 0.0
    %v5955 = vand.u32 %v4686, 4294901760
    %v5956 = vsub.f32 %v4686, %v5955
    %v5957 = vand.u32 %v5956, 4294901760
    %v5958 = vsub.f32 %v5956, %v5957
    %v5959 = vand.u32 %v5958, 4294901760
    %5960 = vmatpush1.msra.mxu0 %v5959
    %5961 = vmatprep.subr.mxu0 0.0
    %v5962 = vand.u32 %v4685, 4294901760
    %v5963 = vsub.f32 %v4685, %v5962
    %v5964 = vand.u32 %v5963, 4294901760
    %v5965 = vsub.f32 %v5963, %v5964
    %v5966 = vand.u32 %v5965, 4294901760
    %5967 = vmatpush1.msra.mxu0 %v5966
    %5968 = vmatprep.subr.mxu0 0.0
    %5969 = vmatpush2.msra.mxu0 0.0
    %5970 = vmatprep.subr.mxu0 0.0
    %5971 = vmatpush2.msra.mxu0 0.0
    %5972 = vmatprep.subr.mxu0 0.0
    %5973 = vmatpush2.msra.mxu0 0.0
    %5974 = vmatprep.subr.mxu0 0.0
    %5975 = vmatpush2.msra.mxu0 0.0
    %5976 = vmatprep.subr.mxu0 0.0
    %5977 = vmatpush2.msra.mxu0 0.0
    %5978 = vmatprep.subr.mxu0 0.0
    %5979 = vmatpush2.msra.mxu0 0.0
    %5980 = vmatprep.subr.mxu0 0.0
    %5981 = vmatpush2.msra.mxu0 0.0
    %5982 = vmatprep.subr.mxu0 0.0
    %5983 = vmatpush2.msra.mxu0 0.0
    %5984 = vmatprep.subr.mxu0 0.0
    %5985 = vmatpush2.msra.mxu0 0.0
    %5986 = vmatprep.subr.mxu0 0.0
    %5987 = vmatpush2.msra.mxu0 0.0
    %5988 = vmatprep.subr.mxu0 0.0
    %5989 = vmatpush2.msra.mxu0 0.0
    %5990 = vmatprep.subr.mxu0 0.0
    %5991 = vmatpush2.msra.mxu0 0.0
    %5992 = vmatprep.subr.mxu0 0.0
    %5993 = vmatpush2.msra.mxu0 0.0
    %5994 = vmatprep.subr.mxu0 0.0
    %5995 = vmatpush2.msra.mxu0 0.0
    %5996 = vmatprep.subr.mxu0 0.0
    %5997 = vmatpush2.msra.mxu0 0.0
    %5998 = vmatprep.subr.mxu0 0.0
    %5999 = vmatpush2.msra.mxu0 0.0
    %6000 = vmatprep.mubr.f32.mxu0 0.0
    %v6001 = vand.u32 %v5835, 4294901760
    %6002 = vmatmul.mubr.f32.gmra.mxu0 %v6001
    %v6003 = vpop.f32.mrf.mxu0
    %v6004 = vadd.f32 %v5913, %v6003
    %v6005 = vpop.f32.mrf.mxu0
    %6006 = vdwg.mxu0
    %6007 = vmatprep.subr.mxu0 0.0
    %6008 = vmatpush1.msra.mxu0 0.0
    %6009 = vmatprep.subr.mxu0 0.0
    %6010 = vmatpush1.msra.mxu0 0.0
    %6011 = vmatprep.subr.mxu0 0.0
    %6012 = vmatpush1.msra.mxu0 0.0
    %6013 = vmatprep.subr.mxu0 0.0
    %6014 = vmatpush1.msra.mxu0 0.0
    %6015 = vmatprep.subr.mxu0 0.0
    %6016 = vmatpush1.msra.mxu0 0.0
    %6017 = vmatprep.subr.mxu0 0.0
    %6018 = vmatpush1.msra.mxu0 0.0
    %6019 = vmatprep.subr.mxu0 0.0
    %6020 = vmatpush1.msra.mxu0 0.0
    %6021 = vmatprep.subr.mxu0 0.0
    %6022 = vmatpush1.msra.mxu0 0.0
    %6023 = vmatprep.subr.mxu0 0.0
    %6024 = vmatpush1.msra.mxu0 0.0
    %6025 = vmatprep.subr.mxu0 0.0
    %6026 = vmatpush1.msra.mxu0 0.0
    %6027 = vmatprep.subr.mxu0 0.0
    %6028 = vmatpush1.msra.mxu0 0.0
    %6029 = vmatprep.subr.mxu0 0.0
    %6030 = vmatpush1.msra.mxu0 0.0
    %6031 = vmatprep.subr.mxu0 0.0
    %v6032 = vand.u32 %v4688, 4294901760
    %v6033 = vsub.f32 %v4688, %v6032
    %6034 = vmatpush1.msra.mxu0 %v6033
    %6035 = vmatprep.subr.mxu0 0.0
    %v6036 = vand.u32 %v4687, 4294901760
    %v6037 = vsub.f32 %v4687, %v6036
    %6038 = vmatpush1.msra.mxu0 %v6037
    %6039 = vmatprep.subr.mxu0 0.0
    %v6040 = vand.u32 %v4686, 4294901760
    %v6041 = vsub.f32 %v4686, %v6040
    %6042 = vmatpush1.msra.mxu0 %v6041
    %6043 = vmatprep.subr.mxu0 0.0
    %v6044 = vand.u32 %v4685, 4294901760
    %v6045 = vsub.f32 %v4685, %v6044
    %6046 = vmatpush1.msra.mxu0 %v6045
    %6047 = vmatprep.subr.mxu0 0.0
    %6048 = vmatpush2.msra.mxu0 0.0
    %6049 = vmatprep.subr.mxu0 0.0
    %6050 = vmatpush2.msra.mxu0 0.0
    %6051 = vmatprep.subr.mxu0 0.0
    %6052 = vmatpush2.msra.mxu0 0.0
    %6053 = vmatprep.subr.mxu0 0.0
    %6054 = vmatpush2.msra.mxu0 0.0
    %6055 = vmatprep.subr.mxu0 0.0
    %6056 = vmatpush2.msra.mxu0 0.0
    %6057 = vmatprep.subr.mxu0 0.0
    %6058 = vmatpush2.msra.mxu0 0.0
    %6059 = vmatprep.subr.mxu0 0.0
    %6060 = vmatpush2.msra.mxu0 0.0
    %6061 = vmatprep.subr.mxu0 0.0
    %6062 = vmatpush2.msra.mxu0 0.0
    %6063 = vmatprep.subr.mxu0 0.0
    %6064 = vmatpush2.msra.mxu0 0.0
    %6065 = vmatprep.subr.mxu0 0.0
    %6066 = vmatpush2.msra.mxu0 0.0
    %6067 = vmatprep.subr.mxu0 0.0
    %6068 = vmatpush2.msra.mxu0 0.0
    %6069 = vmatprep.subr.mxu0 0.0
    %6070 = vmatpush2.msra.mxu0 0.0
    %6071 = vmatprep.subr.mxu0 0.0
    %6072 = vmatpush2.msra.mxu0 0.0
    %6073 = vmatprep.subr.mxu0 0.0
    %6074 = vmatpush2.msra.mxu0 0.0
    %6075 = vmatprep.subr.mxu0 0.0
    %6076 = vmatpush2.msra.mxu0 0.0
    %6077 = vmatprep.subr.mxu0 0.0
    %6078 = vmatpush2.msra.mxu0 0.0
    %6079 = vmatprep.mubr.f32.mxu0 0.0
    %v6080 = vand.u32 %v5835, 4294901760
    %v6081 = vsub.f32 %v5835, %v6080
    %6082 = vmatmul.mubr.f32.gmra.mxu0 %v6081
    %v6083 = vpop.f32.mrf.mxu0
    %v6084 = vadd.f32 %v6004, %v6083
    %v6085 = vpop.f32.mrf.mxu0
    %6086 = vdwg.mxu0
    %6087 = vmatprep.subr.mxu0 0.0
    %6088 = vmatpush1.msra.mxu0 0.0
    %6089 = vmatprep.subr.mxu0 0.0
    %6090 = vmatpush1.msra.mxu0 0.0
    %6091 = vmatprep.subr.mxu0 0.0
    %6092 = vmatpush1.msra.mxu0 0.0
    %6093 = vmatprep.subr.mxu0 0.0
    %6094 = vmatpush1.msra.mxu0 0.0
    %6095 = vmatprep.subr.mxu0 0.0
    %6096 = vmatpush1.msra.mxu0 0.0
    %6097 = vmatprep.subr.mxu0 0.0
    %6098 = vmatpush1.msra.mxu0 0.0
    %6099 = vmatprep.subr.mxu0 0.0
    %6100 = vmatpush1.msra.mxu0 0.0
    %6101 = vmatprep.subr.mxu0 0.0
    %6102 = vmatpush1.msra.mxu0 0.0
    %6103 = vmatprep.subr.mxu0 0.0
    %6104 = vmatpush1.msra.mxu0 0.0
    %6105 = vmatprep.subr.mxu0 0.0
    %6106 = vmatpush1.msra.mxu0 0.0
    %6107 = vmatprep.subr.mxu0 0.0
    %6108 = vmatpush1.msra.mxu0 0.0
    %6109 = vmatprep.subr.mxu0 0.0
    %6110 = vmatpush1.msra.mxu0 0.0
    %6111 = vmatprep.subr.mxu0 0.0
    %v6112 = vand.u32 %v4688, 4294901760
    %6113 = vmatpush1.msra.mxu0 %v6112
    %6114 = vmatprep.subr.mxu0 0.0
    %v6115 = vand.u32 %v4687, 4294901760
    %6116 = vmatpush1.msra.mxu0 %v6115
    %6117 = vmatprep.subr.mxu0 0.0
    %v6118 = vand.u32 %v4686, 4294901760
    %6119 = vmatpush1.msra.mxu0 %v6118
    %6120 = vmatprep.subr.mxu0 0.0
    %v6121 = vand.u32 %v4685, 4294901760
    %6122 = vmatpush1.msra.mxu0 %v6121
    %6123 = vmatprep.subr.mxu0 0.0
    %6124 = vmatpush2.msra.mxu0 0.0
    %6125 = vmatprep.subr.mxu0 0.0
    %6126 = vmatpush2.msra.mxu0 0.0
    %6127 = vmatprep.subr.mxu0 0.0
    %6128 = vmatpush2.msra.mxu0 0.0
    %6129 = vmatprep.subr.mxu0 0.0
    %6130 = vmatpush2.msra.mxu0 0.0
    %6131 = vmatprep.subr.mxu0 0.0
    %6132 = vmatpush2.msra.mxu0 0.0
    %6133 = vmatprep.subr.mxu0 0.0
    %6134 = vmatpush2.msra.mxu0 0.0
    %6135 = vmatprep.subr.mxu0 0.0
    %6136 = vmatpush2.msra.mxu0 0.0
    %6137 = vmatprep.subr.mxu0 0.0
    %6138 = vmatpush2.msra.mxu0 0.0
    %6139 = vmatprep.subr.mxu0 0.0
    %6140 = vmatpush2.msra.mxu0 0.0
    %6141 = vmatprep.subr.mxu0 0.0
    %6142 = vmatpush2.msra.mxu0 0.0
    %6143 = vmatprep.subr.mxu0 0.0
    %6144 = vmatpush2.msra.mxu0 0.0
    %6145 = vmatprep.subr.mxu0 0.0
    %6146 = vmatpush2.msra.mxu0 0.0
    %6147 = vmatprep.subr.mxu0 0.0
    %6148 = vmatpush2.msra.mxu0 0.0
    %6149 = vmatprep.subr.mxu0 0.0
    %6150 = vmatpush2.msra.mxu0 0.0
    %6151 = vmatprep.subr.mxu0 0.0
    %6152 = vmatpush2.msra.mxu0 0.0
    %6153 = vmatprep.subr.mxu0 0.0
    %6154 = vmatpush2.msra.mxu0 0.0
    %6155 = vmatprep.mubr.f32.mxu0 0.0
    %v6156 = vand.u32 %v5835, 4294901760
    %v6157 = vsub.f32 %v5835, %v6156
    %v6158 = vand.u32 %v6157, 4294901760
    %6159 = vmatmul.mubr.f32.gmra.mxu0 %v6158
    %v6160 = vpop.f32.mrf.mxu0
    %v6161 = vadd.f32 %v6084, %v6160
    %v6162 = vpop.f32.mrf.mxu0
    %6163 = vdwg.mxu0
    %6164 = vmatprep.subr.mxu0 0.0
    %6165 = vmatpush1.msra.mxu0 0.0
    %6166 = vmatprep.subr.mxu0 0.0
    %6167 = vmatpush1.msra.mxu0 0.0
    %6168 = vmatprep.subr.mxu0 0.0
    %6169 = vmatpush1.msra.mxu0 0.0
    %6170 = vmatprep.subr.mxu0 0.0
    %6171 = vmatpush1.msra.mxu0 0.0
    %6172 = vmatprep.subr.mxu0 0.0
    %6173 = vmatpush1.msra.mxu0 0.0
    %6174 = vmatprep.subr.mxu0 0.0
    %6175 = vmatpush1.msra.mxu0 0.0
    %6176 = vmatprep.subr.mxu0 0.0
    %6177 = vmatpush1.msra.mxu0 0.0
    %6178 = vmatprep.subr.mxu0 0.0
    %6179 = vmatpush1.msra.mxu0 0.0
    %6180 = vmatprep.subr.mxu0 0.0
    %6181 = vmatpush1.msra.mxu0 0.0
    %6182 = vmatprep.subr.mxu0 0.0
    %6183 = vmatpush1.msra.mxu0 0.0
    %6184 = vmatprep.subr.mxu0 0.0
    %6185 = vmatpush1.msra.mxu0 0.0
    %6186 = vmatprep.subr.mxu0 0.0
    %6187 = vmatpush1.msra.mxu0 0.0
    %6188 = vmatprep.subr.mxu0 0.0
    %v6189 = vand.u32 %v4688, 4294901760
    %v6190 = vsub.f32 %v4688, %v6189
    %v6191 = vand.u32 %v6190, 4294901760
    %6192 = vmatpush1.msra.mxu0 %v6191
    %6193 = vmatprep.subr.mxu0 0.0
    %v6194 = vand.u32 %v4687, 4294901760
    %v6195 = vsub.f32 %v4687, %v6194
    %v6196 = vand.u32 %v6195, 4294901760
    %6197 = vmatpush1.msra.mxu0 %v6196
    %6198 = vmatprep.subr.mxu0 0.0
    %v6199 = vand.u32 %v4686, 4294901760
    %v6200 = vsub.f32 %v4686, %v6199
    %v6201 = vand.u32 %v6200, 4294901760
    %6202 = vmatpush1.msra.mxu0 %v6201
    %6203 = vmatprep.subr.mxu0 0.0
    %v6204 = vand.u32 %v4685, 4294901760
    %v6205 = vsub.f32 %v4685, %v6204
    %v6206 = vand.u32 %v6205, 4294901760
    %6207 = vmatpush1.msra.mxu0 %v6206
    %6208 = vmatprep.subr.mxu0 0.0
    %6209 = vmatpush2.msra.mxu0 0.0
    %6210 = vmatprep.subr.mxu0 0.0
    %6211 = vmatpush2.msra.mxu0 0.0
    %6212 = vmatprep.subr.mxu0 0.0
    %6213 = vmatpush2.msra.mxu0 0.0
    %6214 = vmatprep.subr.mxu0 0.0
    %6215 = vmatpush2.msra.mxu0 0.0
    %6216 = vmatprep.subr.mxu0 0.0
    %6217 = vmatpush2.msra.mxu0 0.0
    %6218 = vmatprep.subr.mxu0 0.0
    %6219 = vmatpush2.msra.mxu0 0.0
    %6220 = vmatprep.subr.mxu0 0.0
    %6221 = vmatpush2.msra.mxu0 0.0
    %6222 = vmatprep.subr.mxu0 0.0
    %6223 = vmatpush2.msra.mxu0 0.0
    %6224 = vmatprep.subr.mxu0 0.0
    %6225 = vmatpush2.msra.mxu0 0.0
    %6226 = vmatprep.subr.mxu0 0.0
    %6227 = vmatpush2.msra.mxu0 0.0
    %6228 = vmatprep.subr.mxu0 0.0
    %6229 = vmatpush2.msra.mxu0 0.0
    %6230 = vmatprep.subr.mxu0 0.0
    %6231 = vmatpush2.msra.mxu0 0.0
    %6232 = vmatprep.subr.mxu0 0.0
    %6233 = vmatpush2.msra.mxu0 0.0
    %6234 = vmatprep.subr.mxu0 0.0
    %6235 = vmatpush2.msra.mxu0 0.0
    %6236 = vmatprep.subr.mxu0 0.0
    %6237 = vmatpush2.msra.mxu0 0.0
    %6238 = vmatprep.subr.mxu0 0.0
    %6239 = vmatpush2.msra.mxu0 0.0
    %6240 = vmatprep.mubr.f32.mxu0 0.0
    %v6241 = vand.u32 %v5835, 4294901760
    %6242 = vmatmul.mubr.f32.gmra.mxu0 %v6241
    %v6243 = vpop.f32.mrf.mxu0
    %v6244 = vadd.f32 %v6161, %v6243
    %v6245 = vpop.f32.mrf.mxu0
    %6246 = vdwg.mxu0
    %6247 = vmatprep.subr.mxu0 0.0
    %6248 = vmatpush1.msra.mxu0 0.0
    %6249 = vmatprep.subr.mxu0 0.0
    %6250 = vmatpush1.msra.mxu0 0.0
    %6251 = vmatprep.subr.mxu0 0.0
    %6252 = vmatpush1.msra.mxu0 0.0
    %6253 = vmatprep.subr.mxu0 0.0
    %6254 = vmatpush1.msra.mxu0 0.0
    %6255 = vmatprep.subr.mxu0 0.0
    %6256 = vmatpush1.msra.mxu0 0.0
    %6257 = vmatprep.subr.mxu0 0.0
    %6258 = vmatpush1.msra.mxu0 0.0
    %6259 = vmatprep.subr.mxu0 0.0
    %6260 = vmatpush1.msra.mxu0 0.0
    %6261 = vmatprep.subr.mxu0 0.0
    %6262 = vmatpush1.msra.mxu0 0.0
    %6263 = vmatprep.subr.mxu0 0.0
    %6264 = vmatpush1.msra.mxu0 0.0
    %6265 = vmatprep.subr.mxu0 0.0
    %6266 = vmatpush1.msra.mxu0 0.0
    %6267 = vmatprep.subr.mxu0 0.0
    %6268 = vmatpush1.msra.mxu0 0.0
    %6269 = vmatprep.subr.mxu0 0.0
    %6270 = vmatpush1.msra.mxu0 0.0
    %6271 = vmatprep.subr.mxu0 0.0
    %v6272 = vand.u32 %v4688, 4294901760
    %6273 = vmatpush1.msra.mxu0 %v6272
    %6274 = vmatprep.subr.mxu0 0.0
    %v6275 = vand.u32 %v4687, 4294901760
    %6276 = vmatpush1.msra.mxu0 %v6275
    %6277 = vmatprep.subr.mxu0 0.0
    %v6278 = vand.u32 %v4686, 4294901760
    %6279 = vmatpush1.msra.mxu0 %v6278
    %6280 = vmatprep.subr.mxu0 0.0
    %v6281 = vand.u32 %v4685, 4294901760
    %6282 = vmatpush1.msra.mxu0 %v6281
    %6283 = vmatprep.subr.mxu0 0.0
    %6284 = vmatpush2.msra.mxu0 0.0
    %6285 = vmatprep.subr.mxu0 0.0
    %6286 = vmatpush2.msra.mxu0 0.0
    %6287 = vmatprep.subr.mxu0 0.0
    %6288 = vmatpush2.msra.mxu0 0.0
    %6289 = vmatprep.subr.mxu0 0.0
    %6290 = vmatpush2.msra.mxu0 0.0
    %6291 = vmatprep.subr.mxu0 0.0
    %6292 = vmatpush2.msra.mxu0 0.0
    %6293 = vmatprep.subr.mxu0 0.0
    %6294 = vmatpush2.msra.mxu0 0.0
    %6295 = vmatprep.subr.mxu0 0.0
    %6296 = vmatpush2.msra.mxu0 0.0
    %6297 = vmatprep.subr.mxu0 0.0
    %6298 = vmatpush2.msra.mxu0 0.0
    %6299 = vmatprep.subr.mxu0 0.0
    %6300 = vmatpush2.msra.mxu0 0.0
    %6301 = vmatprep.subr.mxu0 0.0
    %6302 = vmatpush2.msra.mxu0 0.0
    %6303 = vmatprep.subr.mxu0 0.0
    %6304 = vmatpush2.msra.mxu0 0.0
    %6305 = vmatprep.subr.mxu0 0.0
    %6306 = vmatpush2.msra.mxu0 0.0
    %6307 = vmatprep.subr.mxu0 0.0
    %6308 = vmatpush2.msra.mxu0 0.0
    %6309 = vmatprep.subr.mxu0 0.0
    %6310 = vmatpush2.msra.mxu0 0.0
    %6311 = vmatprep.subr.mxu0 0.0
    %6312 = vmatpush2.msra.mxu0 0.0
    %6313 = vmatprep.subr.mxu0 0.0
    %6314 = vmatpush2.msra.mxu0 0.0
    %6315 = vmatprep.mubr.f32.mxu0 0.0
    %v6316 = vand.u32 %v5835, 4294901760
    %6317 = vmatmul.mubr.f32.gmra.mxu0 %v6316
    %v6318 = vpop.f32.mrf.mxu0
    %v6319 = vadd.f32 %v6244, %v6318
    %v6320 = vpop.f32.mrf.mxu0
    %6321 = vdwg.mxu0
    %v6323 = vrot.slane %v6319, 4
    %v6325 = vadd.f32 %v5305, %v6323
    %v6326 = vtanh.pop %v6325
    %v6327 = vadd.f32 %v6326, 1.0
    %v6328 = vmul.f32 %v6327, 0.5
    %v6330 = vrot.slane %v6328, 4
    %v6332 = vmul.f32 %v5825, %v6330
    %6334 = vrot.lane.b32.xlu0 %v6326, 64
    %v6335 = vpop.permute.xlu0 %6334
    %v6337 = vmul.f32 %v6328, %v6335
    %v6339 = vrot.slane %v6337, 4
    %6340 = vrot.lane.b32.xlu0 %v6339, 32
    %v6341 = vpop.permute.xlu0 %6340
    %v6343 = vadd.f32 %v6332, %v6341
    %v6344 = vtanh.pop %v6343
    %v6346 = vrot.slane %v6344, 4
    %6347 = vrot.lane.b32.xlu0 %v6346, 64
    %v6348 = vpop.permute.xlu0 %6347
    %v6350 = vmul.f32 %v6328, %v6348
    %v6352 = vrot.slane %v6350, 4
    %6353 = vrot.lane.b32.xlu0 %v6352, 32
    %v6354 = vpop.permute.xlu0 %6353
    %v6355 = vsel %vm556, %v6354, 0
    %6357 = vmatprep.subr.mxu0 0.0
    %6358 = vmatpush1.msra.mxu0 0.0
    %6359 = vmatprep.subr.mxu0 0.0
    %6360 = vmatpush1.msra.mxu0 0.0
    %6361 = vmatprep.subr.mxu0 0.0
    %6362 = vmatpush1.msra.mxu0 0.0
    %6363 = vmatprep.subr.mxu0 0.0
    %6364 = vmatpush1.msra.mxu0 0.0
    %6365 = vmatprep.subr.mxu0 0.0
    %6366 = vmatpush1.msra.mxu0 0.0
    %6367 = vmatprep.subr.mxu0 0.0
    %6368 = vmatpush1.msra.mxu0 0.0
    %6369 = vmatprep.subr.mxu0 0.0
    %6370 = vmatpush1.msra.mxu0 0.0
    %6371 = vmatprep.subr.mxu0 0.0
    %6372 = vmatpush1.msra.mxu0 0.0
    %6373 = vmatprep.subr.mxu0 0.0
    %6374 = vmatpush1.msra.mxu0 0.0
    %6375 = vmatprep.subr.mxu0 0.0
    %6376 = vmatpush1.msra.mxu0 0.0
    %6377 = vmatprep.subr.mxu0 0.0
    %6378 = vmatpush1.msra.mxu0 0.0
    %6379 = vmatprep.subr.mxu0 0.0
    %6380 = vmatpush1.msra.mxu0 0.0
    %6381 = vmatprep.subr.mxu0 0.0
    %v6382 = vand.u32 %v4688, 4294901760
    %6383 = vmatpush1.msra.mxu0 %v6382
    %6384 = vmatprep.subr.mxu0 0.0
    %v6385 = vand.u32 %v4687, 4294901760
    %6386 = vmatpush1.msra.mxu0 %v6385
    %6387 = vmatprep.subr.mxu0 0.0
    %v6388 = vand.u32 %v4686, 4294901760
    %6389 = vmatpush1.msra.mxu0 %v6388
    %6390 = vmatprep.subr.mxu0 0.0
    %v6391 = vand.u32 %v4685, 4294901760
    %6392 = vmatpush1.msra.mxu0 %v6391
    %6393 = vmatprep.subr.mxu0 0.0
    %6394 = vmatpush2.msra.mxu0 0.0
    %6395 = vmatprep.subr.mxu0 0.0
    %6396 = vmatpush2.msra.mxu0 0.0
    %6397 = vmatprep.subr.mxu0 0.0
    %6398 = vmatpush2.msra.mxu0 0.0
    %6399 = vmatprep.subr.mxu0 0.0
    %6400 = vmatpush2.msra.mxu0 0.0
    %6401 = vmatprep.subr.mxu0 0.0
    %6402 = vmatpush2.msra.mxu0 0.0
    %6403 = vmatprep.subr.mxu0 0.0
    %6404 = vmatpush2.msra.mxu0 0.0
    %6405 = vmatprep.subr.mxu0 0.0
    %6406 = vmatpush2.msra.mxu0 0.0
    %6407 = vmatprep.subr.mxu0 0.0
    %6408 = vmatpush2.msra.mxu0 0.0
    %6409 = vmatprep.subr.mxu0 0.0
    %6410 = vmatpush2.msra.mxu0 0.0
    %6411 = vmatprep.subr.mxu0 0.0
    %6412 = vmatpush2.msra.mxu0 0.0
    %6413 = vmatprep.subr.mxu0 0.0
    %6414 = vmatpush2.msra.mxu0 0.0
    %6415 = vmatprep.subr.mxu0 0.0
    %6416 = vmatpush2.msra.mxu0 0.0
    %6417 = vmatprep.subr.mxu0 0.0
    %6418 = vmatpush2.msra.mxu0 0.0
    %6419 = vmatprep.subr.mxu0 0.0
    %6420 = vmatpush2.msra.mxu0 0.0
    %6421 = vmatprep.subr.mxu0 0.0
    %6422 = vmatpush2.msra.mxu0 0.0
    %6423 = vmatprep.subr.mxu0 0.0
    %6424 = vmatpush2.msra.mxu0 0.0
    %6425 = vmatprep.mubr.f32.mxu0 0.0
    %v6426 = vand.u32 %v6355, 4294901760
    %v6427 = vsub.f32 %v6355, %v6426
    %v6428 = vand.u32 %v6427, 4294901760
    %v6429 = vsub.f32 %v6427, %v6428
    %v6430 = vand.u32 %v6429, 4294901760
    %6431 = vmatmul.mubr.f32.gmra.mxu0 %v6430
    %v6432 = vpop.f32.mrf.mxu0
    %v6433 = vadd.f32 0.0, %v6432
    %v6434 = vpop.f32.mrf.mxu0
    %6435 = vdwg.mxu0
    %6436 = vmatprep.subr.mxu0 0.0
    %6437 = vmatpush1.msra.mxu0 0.0
    %6438 = vmatprep.subr.mxu0 0.0
    %6439 = vmatpush1.msra.mxu0 0.0
    %6440 = vmatprep.subr.mxu0 0.0
    %6441 = vmatpush1.msra.mxu0 0.0
    %6442 = vmatprep.subr.mxu0 0.0
    %6443 = vmatpush1.msra.mxu0 0.0
    %6444 = vmatprep.subr.mxu0 0.0
    %6445 = vmatpush1.msra.mxu0 0.0
    %6446 = vmatprep.subr.mxu0 0.0
    %6447 = vmatpush1.msra.mxu0 0.0
    %6448 = vmatprep.subr.mxu0 0.0
    %6449 = vmatpush1.msra.mxu0 0.0
    %6450 = vmatprep.subr.mxu0 0.0
    %6451 = vmatpush1.msra.mxu0 0.0
    %6452 = vmatprep.subr.mxu0 0.0
    %6453 = vmatpush1.msra.mxu0 0.0
    %6454 = vmatprep.subr.mxu0 0.0
    %6455 = vmatpush1.msra.mxu0 0.0
    %6456 = vmatprep.subr.mxu0 0.0
    %6457 = vmatpush1.msra.mxu0 0.0
    %6458 = vmatprep.subr.mxu0 0.0
    %6459 = vmatpush1.msra.mxu0 0.0
    %6460 = vmatprep.subr.mxu0 0.0
    %v6461 = vand.u32 %v4688, 4294901760
    %v6462 = vsub.f32 %v4688, %v6461
    %v6463 = vand.u32 %v6462, 4294901760
    %v6464 = vsub.f32 %v6462, %v6463
    %v6465 = vand.u32 %v6464, 4294901760
    %6466 = vmatpush1.msra.mxu0 %v6465
    %6467 = vmatprep.subr.mxu0 0.0
    %v6468 = vand.u32 %v4687, 4294901760
    %v6469 = vsub.f32 %v4687, %v6468
    %v6470 = vand.u32 %v6469, 4294901760
    %v6471 = vsub.f32 %v6469, %v6470
    %v6472 = vand.u32 %v6471, 4294901760
    %6473 = vmatpush1.msra.mxu0 %v6472
    %6474 = vmatprep.subr.mxu0 0.0
    %v6475 = vand.u32 %v4686, 4294901760
    %v6476 = vsub.f32 %v4686, %v6475
    %v6477 = vand.u32 %v6476, 4294901760
    %v6478 = vsub.f32 %v6476, %v6477
    %v6479 = vand.u32 %v6478, 4294901760
    %6480 = vmatpush1.msra.mxu0 %v6479
    %6481 = vmatprep.subr.mxu0 0.0
    %v6482 = vand.u32 %v4685, 4294901760
    %v6483 = vsub.f32 %v4685, %v6482
    %v6484 = vand.u32 %v6483, 4294901760
    %v6485 = vsub.f32 %v6483, %v6484
    %v6486 = vand.u32 %v6485, 4294901760
    %6487 = vmatpush1.msra.mxu0 %v6486
    %6488 = vmatprep.subr.mxu0 0.0
    %6489 = vmatpush2.msra.mxu0 0.0
    %6490 = vmatprep.subr.mxu0 0.0
    %6491 = vmatpush2.msra.mxu0 0.0
    %6492 = vmatprep.subr.mxu0 0.0
    %6493 = vmatpush2.msra.mxu0 0.0
    %6494 = vmatprep.subr.mxu0 0.0
    %6495 = vmatpush2.msra.mxu0 0.0
    %6496 = vmatprep.subr.mxu0 0.0
    %6497 = vmatpush2.msra.mxu0 0.0
    %6498 = vmatprep.subr.mxu0 0.0
    %6499 = vmatpush2.msra.mxu0 0.0
    %6500 = vmatprep.subr.mxu0 0.0
    %6501 = vmatpush2.msra.mxu0 0.0
    %6502 = vmatprep.subr.mxu0 0.0
    %6503 = vmatpush2.msra.mxu0 0.0
    %6504 = vmatprep.subr.mxu0 0.0
    %6505 = vmatpush2.msra.mxu0 0.0
    %6506 = vmatprep.subr.mxu0 0.0
    %6507 = vmatpush2.msra.mxu0 0.0
    %6508 = vmatprep.subr.mxu0 0.0
    %6509 = vmatpush2.msra.mxu0 0.0
    %6510 = vmatprep.subr.mxu0 0.0
    %6511 = vmatpush2.msra.mxu0 0.0
    %6512 = vmatprep.subr.mxu0 0.0
    %6513 = vmatpush2.msra.mxu0 0.0
    %6514 = vmatprep.subr.mxu0 0.0
    %6515 = vmatpush2.msra.mxu0 0.0
    %6516 = vmatprep.subr.mxu0 0.0
    %6517 = vmatpush2.msra.mxu0 0.0
    %6518 = vmatprep.subr.mxu0 0.0
    %6519 = vmatpush2.msra.mxu0 0.0
    %6520 = vmatprep.mubr.f32.mxu0 0.0
    %v6521 = vand.u32 %v6355, 4294901760
    %6522 = vmatmul.mubr.f32.gmra.mxu0 %v6521
    %v6523 = vpop.f32.mrf.mxu0
    %v6524 = vadd.f32 %v6433, %v6523
    %v6525 = vpop.f32.mrf.mxu0
    %6526 = vdwg.mxu0
    %6527 = vmatprep.subr.mxu0 0.0
    %6528 = vmatpush1.msra.mxu0 0.0
    %6529 = vmatprep.subr.mxu0 0.0
    %6530 = vmatpush1.msra.mxu0 0.0
    %6531 = vmatprep.subr.mxu0 0.0
    %6532 = vmatpush1.msra.mxu0 0.0
    %6533 = vmatprep.subr.mxu0 0.0
    %6534 = vmatpush1.msra.mxu0 0.0
    %6535 = vmatprep.subr.mxu0 0.0
    %6536 = vmatpush1.msra.mxu0 0.0
    %6537 = vmatprep.subr.mxu0 0.0
    %6538 = vmatpush1.msra.mxu0 0.0
    %6539 = vmatprep.subr.mxu0 0.0
    %6540 = vmatpush1.msra.mxu0 0.0
    %6541 = vmatprep.subr.mxu0 0.0
    %6542 = vmatpush1.msra.mxu0 0.0
    %6543 = vmatprep.subr.mxu0 0.0
    %6544 = vmatpush1.msra.mxu0 0.0
    %6545 = vmatprep.subr.mxu0 0.0
    %6546 = vmatpush1.msra.mxu0 0.0
    %6547 = vmatprep.subr.mxu0 0.0
    %6548 = vmatpush1.msra.mxu0 0.0
    %6549 = vmatprep.subr.mxu0 0.0
    %6550 = vmatpush1.msra.mxu0 0.0
    %6551 = vmatprep.subr.mxu0 0.0
    %v6552 = vand.u32 %v4688, 4294901760
    %v6553 = vsub.f32 %v4688, %v6552
    %6554 = vmatpush1.msra.mxu0 %v6553
    %6555 = vmatprep.subr.mxu0 0.0
    %v6556 = vand.u32 %v4687, 4294901760
    %v6557 = vsub.f32 %v4687, %v6556
    %6558 = vmatpush1.msra.mxu0 %v6557
    %6559 = vmatprep.subr.mxu0 0.0
    %v6560 = vand.u32 %v4686, 4294901760
    %v6561 = vsub.f32 %v4686, %v6560
    %6562 = vmatpush1.msra.mxu0 %v6561
    %6563 = vmatprep.subr.mxu0 0.0
    %v6564 = vand.u32 %v4685, 4294901760
    %v6565 = vsub.f32 %v4685, %v6564
    %6566 = vmatpush1.msra.mxu0 %v6565
    %6567 = vmatprep.subr.mxu0 0.0
    %6568 = vmatpush2.msra.mxu0 0.0
    %6569 = vmatprep.subr.mxu0 0.0
    %6570 = vmatpush2.msra.mxu0 0.0
    %6571 = vmatprep.subr.mxu0 0.0
    %6572 = vmatpush2.msra.mxu0 0.0
    %6573 = vmatprep.subr.mxu0 0.0
    %6574 = vmatpush2.msra.mxu0 0.0
    %6575 = vmatprep.subr.mxu0 0.0
    %6576 = vmatpush2.msra.mxu0 0.0
    %6577 = vmatprep.subr.mxu0 0.0
    %6578 = vmatpush2.msra.mxu0 0.0
    %6579 = vmatprep.subr.mxu0 0.0
    %6580 = vmatpush2.msra.mxu0 0.0
    %6581 = vmatprep.subr.mxu0 0.0
    %6582 = vmatpush2.msra.mxu0 0.0
    %6583 = vmatprep.subr.mxu0 0.0
    %6584 = vmatpush2.msra.mxu0 0.0
    %6585 = vmatprep.subr.mxu0 0.0
    %6586 = vmatpush2.msra.mxu0 0.0
    %6587 = vmatprep.subr.mxu0 0.0
    %6588 = vmatpush2.msra.mxu0 0.0
    %6589 = vmatprep.subr.mxu0 0.0
    %6590 = vmatpush2.msra.mxu0 0.0
    %6591 = vmatprep.subr.mxu0 0.0
    %6592 = vmatpush2.msra.mxu0 0.0
    %6593 = vmatprep.subr.mxu0 0.0
    %6594 = vmatpush2.msra.mxu0 0.0
    %6595 = vmatprep.subr.mxu0 0.0
    %6596 = vmatpush2.msra.mxu0 0.0
    %6597 = vmatprep.subr.mxu0 0.0
    %6598 = vmatpush2.msra.mxu0 0.0
    %6599 = vmatprep.mubr.f32.mxu0 0.0
    %v6600 = vand.u32 %v6355, 4294901760
    %v6601 = vsub.f32 %v6355, %v6600
    %6602 = vmatmul.mubr.f32.gmra.mxu0 %v6601
    %v6603 = vpop.f32.mrf.mxu0
    %v6604 = vadd.f32 %v6524, %v6603
    %v6605 = vpop.f32.mrf.mxu0
    %6606 = vdwg.mxu0
    %6607 = vmatprep.subr.mxu0 0.0
    %6608 = vmatpush1.msra.mxu0 0.0
    %6609 = vmatprep.subr.mxu0 0.0
    %6610 = vmatpush1.msra.mxu0 0.0
    %6611 = vmatprep.subr.mxu0 0.0
    %6612 = vmatpush1.msra.mxu0 0.0
    %6613 = vmatprep.subr.mxu0 0.0
    %6614 = vmatpush1.msra.mxu0 0.0
    %6615 = vmatprep.subr.mxu0 0.0
    %6616 = vmatpush1.msra.mxu0 0.0
    %6617 = vmatprep.subr.mxu0 0.0
    %6618 = vmatpush1.msra.mxu0 0.0
    %6619 = vmatprep.subr.mxu0 0.0
    %6620 = vmatpush1.msra.mxu0 0.0
    %6621 = vmatprep.subr.mxu0 0.0
    %6622 = vmatpush1.msra.mxu0 0.0
    %6623 = vmatprep.subr.mxu0 0.0
    %6624 = vmatpush1.msra.mxu0 0.0
    %6625 = vmatprep.subr.mxu0 0.0
    %6626 = vmatpush1.msra.mxu0 0.0
    %6627 = vmatprep.subr.mxu0 0.0
    %6628 = vmatpush1.msra.mxu0 0.0
    %6629 = vmatprep.subr.mxu0 0.0
    %6630 = vmatpush1.msra.mxu0 0.0
    %6631 = vmatprep.subr.mxu0 0.0
    %v6632 = vand.u32 %v4688, 4294901760
    %6633 = vmatpush1.msra.mxu0 %v6632
    %6634 = vmatprep.subr.mxu0 0.0
    %v6635 = vand.u32 %v4687, 4294901760
    %6636 = vmatpush1.msra.mxu0 %v6635
    %6637 = vmatprep.subr.mxu0 0.0
    %v6638 = vand.u32 %v4686, 4294901760
    %6639 = vmatpush1.msra.mxu0 %v6638
    %6640 = vmatprep.subr.mxu0 0.0
    %v6641 = vand.u32 %v4685, 4294901760
    %6642 = vmatpush1.msra.mxu0 %v6641
    %6643 = vmatprep.subr.mxu0 0.0
    %6644 = vmatpush2.msra.mxu0 0.0
    %6645 = vmatprep.subr.mxu0 0.0
    %6646 = vmatpush2.msra.mxu0 0.0
    %6647 = vmatprep.subr.mxu0 0.0
    %6648 = vmatpush2.msra.mxu0 0.0
    %6649 = vmatprep.subr.mxu0 0.0
    %6650 = vmatpush2.msra.mxu0 0.0
    %6651 = vmatprep.subr.mxu0 0.0
    %6652 = vmatpush2.msra.mxu0 0.0
    %6653 = vmatprep.subr.mxu0 0.0
    %6654 = vmatpush2.msra.mxu0 0.0
    %6655 = vmatprep.subr.mxu0 0.0
    %6656 = vmatpush2.msra.mxu0 0.0
    %6657 = vmatprep.subr.mxu0 0.0
    %6658 = vmatpush2.msra.mxu0 0.0
    %6659 = vmatprep.subr.mxu0 0.0
    %6660 = vmatpush2.msra.mxu0 0.0
    %6661 = vmatprep.subr.mxu0 0.0
    %6662 = vmatpush2.msra.mxu0 0.0
    %6663 = vmatprep.subr.mxu0 0.0
    %6664 = vmatpush2.msra.mxu0 0.0
    %6665 = vmatprep.subr.mxu0 0.0
    %6666 = vmatpush2.msra.mxu0 0.0
    %6667 = vmatprep.subr.mxu0 0.0
    %6668 = vmatpush2.msra.mxu0 0.0
    %6669 = vmatprep.subr.mxu0 0.0
    %6670 = vmatpush2.msra.mxu0 0.0
    %6671 = vmatprep.subr.mxu0 0.0
    %6672 = vmatpush2.msra.mxu0 0.0
    %6673 = vmatprep.subr.mxu0 0.0
    %6674 = vmatpush2.msra.mxu0 0.0
    %6675 = vmatprep.mubr.f32.mxu0 0.0
    %v6676 = vand.u32 %v6355, 4294901760
    %v6677 = vsub.f32 %v6355, %v6676
    %v6678 = vand.u32 %v6677, 4294901760
    %6679 = vmatmul.mubr.f32.gmra.mxu0 %v6678
    %v6680 = vpop.f32.mrf.mxu0
    %v6681 = vadd.f32 %v6604, %v6680
    %v6682 = vpop.f32.mrf.mxu0
    %6683 = vdwg.mxu0
    %6684 = vmatprep.subr.mxu0 0.0
    %6685 = vmatpush1.msra.mxu0 0.0
    %6686 = vmatprep.subr.mxu0 0.0
    %6687 = vmatpush1.msra.mxu0 0.0
    %6688 = vmatprep.subr.mxu0 0.0
    %6689 = vmatpush1.msra.mxu0 0.0
    %6690 = vmatprep.subr.mxu0 0.0
    %6691 = vmatpush1.msra.mxu0 0.0
    %6692 = vmatprep.subr.mxu0 0.0
    %6693 = vmatpush1.msra.mxu0 0.0
    %6694 = vmatprep.subr.mxu0 0.0
    %6695 = vmatpush1.msra.mxu0 0.0
    %6696 = vmatprep.subr.mxu0 0.0
    %6697 = vmatpush1.msra.mxu0 0.0
    %6698 = vmatprep.subr.mxu0 0.0
    %6699 = vmatpush1.msra.mxu0 0.0
    %6700 = vmatprep.subr.mxu0 0.0
    %6701 = vmatpush1.msra.mxu0 0.0
    %6702 = vmatprep.subr.mxu0 0.0
    %6703 = vmatpush1.msra.mxu0 0.0
    %6704 = vmatprep.subr.mxu0 0.0
    %6705 = vmatpush1.msra.mxu0 0.0
    %6706 = vmatprep.subr.mxu0 0.0
    %6707 = vmatpush1.msra.mxu0 0.0
    %6708 = vmatprep.subr.mxu0 0.0
    %v6709 = vand.u32 %v4688, 4294901760
    %v6710 = vsub.f32 %v4688, %v6709
    %v6711 = vand.u32 %v6710, 4294901760
    %6712 = vmatpush1.msra.mxu0 %v6711
    %6713 = vmatprep.subr.mxu0 0.0
    %v6714 = vand.u32 %v4687, 4294901760
    %v6715 = vsub.f32 %v4687, %v6714
    %v6716 = vand.u32 %v6715, 4294901760
    %6717 = vmatpush1.msra.mxu0 %v6716
    %6718 = vmatprep.subr.mxu0 0.0
    %v6719 = vand.u32 %v4686, 4294901760
    %v6720 = vsub.f32 %v4686, %v6719
    %v6721 = vand.u32 %v6720, 4294901760
    %6722 = vmatpush1.msra.mxu0 %v6721
    %6723 = vmatprep.subr.mxu0 0.0
    %v6724 = vand.u32 %v4685, 4294901760
    %v6725 = vsub.f32 %v4685, %v6724
    %v6726 = vand.u32 %v6725, 4294901760
    %6727 = vmatpush1.msra.mxu0 %v6726
    %6728 = vmatprep.subr.mxu0 0.0
    %6729 = vmatpush2.msra.mxu0 0.0
    %6730 = vmatprep.subr.mxu0 0.0
    %6731 = vmatpush2.msra.mxu0 0.0
    %6732 = vmatprep.subr.mxu0 0.0
    %6733 = vmatpush2.msra.mxu0 0.0
    %6734 = vmatprep.subr.mxu0 0.0
    %6735 = vmatpush2.msra.mxu0 0.0
    %6736 = vmatprep.subr.mxu0 0.0
    %6737 = vmatpush2.msra.mxu0 0.0
    %6738 = vmatprep.subr.mxu0 0.0
    %6739 = vmatpush2.msra.mxu0 0.0
    %6740 = vmatprep.subr.mxu0 0.0
    %6741 = vmatpush2.msra.mxu0 0.0
    %6742 = vmatprep.subr.mxu0 0.0
    %6743 = vmatpush2.msra.mxu0 0.0
    %6744 = vmatprep.subr.mxu0 0.0
    %6745 = vmatpush2.msra.mxu0 0.0
    %6746 = vmatprep.subr.mxu0 0.0
    %6747 = vmatpush2.msra.mxu0 0.0
    %6748 = vmatprep.subr.mxu0 0.0
    %6749 = vmatpush2.msra.mxu0 0.0
    %6750 = vmatprep.subr.mxu0 0.0
    %6751 = vmatpush2.msra.mxu0 0.0
    %6752 = vmatprep.subr.mxu0 0.0
    %6753 = vmatpush2.msra.mxu0 0.0
    %6754 = vmatprep.subr.mxu0 0.0
    %6755 = vmatpush2.msra.mxu0 0.0
    %6756 = vmatprep.subr.mxu0 0.0
    %6757 = vmatpush2.msra.mxu0 0.0
    %6758 = vmatprep.subr.mxu0 0.0
    %6759 = vmatpush2.msra.mxu0 0.0
    %6760 = vmatprep.mubr.f32.mxu0 0.0
    %v6761 = vand.u32 %v6355, 4294901760
    %6762 = vmatmul.mubr.f32.gmra.mxu0 %v6761
    %v6763 = vpop.f32.mrf.mxu0
    %v6764 = vadd.f32 %v6681, %v6763
    %v6765 = vpop.f32.mrf.mxu0
    %6766 = vdwg.mxu0
    %6767 = vmatprep.subr.mxu0 0.0
    %6768 = vmatpush1.msra.mxu0 0.0
    %6769 = vmatprep.subr.mxu0 0.0
    %6770 = vmatpush1.msra.mxu0 0.0
    %6771 = vmatprep.subr.mxu0 0.0
    %6772 = vmatpush1.msra.mxu0 0.0
    %6773 = vmatprep.subr.mxu0 0.0
    %6774 = vmatpush1.msra.mxu0 0.0
    %6775 = vmatprep.subr.mxu0 0.0
    %6776 = vmatpush1.msra.mxu0 0.0
    %6777 = vmatprep.subr.mxu0 0.0
    %6778 = vmatpush1.msra.mxu0 0.0
    %6779 = vmatprep.subr.mxu0 0.0
    %6780 = vmatpush1.msra.mxu0 0.0
    %6781 = vmatprep.subr.mxu0 0.0
    %6782 = vmatpush1.msra.mxu0 0.0
    %6783 = vmatprep.subr.mxu0 0.0
    %6784 = vmatpush1.msra.mxu0 0.0
    %6785 = vmatprep.subr.mxu0 0.0
    %6786 = vmatpush1.msra.mxu0 0.0
    %6787 = vmatprep.subr.mxu0 0.0
    %6788 = vmatpush1.msra.mxu0 0.0
    %6789 = vmatprep.subr.mxu0 0.0
    %6790 = vmatpush1.msra.mxu0 0.0
    %6791 = vmatprep.subr.mxu0 0.0
    %v6792 = vand.u32 %v4688, 4294901760
    %6793 = vmatpush1.msra.mxu0 %v6792
    %6794 = vmatprep.subr.mxu0 0.0
    %v6795 = vand.u32 %v4687, 4294901760
    %6796 = vmatpush1.msra.mxu0 %v6795
    %6797 = vmatprep.subr.mxu0 0.0
    %v6798 = vand.u32 %v4686, 4294901760
    %6799 = vmatpush1.msra.mxu0 %v6798
    %6800 = vmatprep.subr.mxu0 0.0
    %v6801 = vand.u32 %v4685, 4294901760
    %6802 = vmatpush1.msra.mxu0 %v6801
    %6803 = vmatprep.subr.mxu0 0.0
    %6804 = vmatpush2.msra.mxu0 0.0
    %6805 = vmatprep.subr.mxu0 0.0
    %6806 = vmatpush2.msra.mxu0 0.0
    %6807 = vmatprep.subr.mxu0 0.0
    %6808 = vmatpush2.msra.mxu0 0.0
    %6809 = vmatprep.subr.mxu0 0.0
    %6810 = vmatpush2.msra.mxu0 0.0
    %6811 = vmatprep.subr.mxu0 0.0
    %6812 = vmatpush2.msra.mxu0 0.0
    %6813 = vmatprep.subr.mxu0 0.0
    %6814 = vmatpush2.msra.mxu0 0.0
    %6815 = vmatprep.subr.mxu0 0.0
    %6816 = vmatpush2.msra.mxu0 0.0
    %6817 = vmatprep.subr.mxu0 0.0
    %6818 = vmatpush2.msra.mxu0 0.0
    %6819 = vmatprep.subr.mxu0 0.0
    %6820 = vmatpush2.msra.mxu0 0.0
    %6821 = vmatprep.subr.mxu0 0.0
    %6822 = vmatpush2.msra.mxu0 0.0
    %6823 = vmatprep.subr.mxu0 0.0
    %6824 = vmatpush2.msra.mxu0 0.0
    %6825 = vmatprep.subr.mxu0 0.0
    %6826 = vmatpush2.msra.mxu0 0.0
    %6827 = vmatprep.subr.mxu0 0.0
    %6828 = vmatpush2.msra.mxu0 0.0
    %6829 = vmatprep.subr.mxu0 0.0
    %6830 = vmatpush2.msra.mxu0 0.0
    %6831 = vmatprep.subr.mxu0 0.0
    %6832 = vmatpush2.msra.mxu0 0.0
    %6833 = vmatprep.subr.mxu0 0.0
    %6834 = vmatpush2.msra.mxu0 0.0
    %6835 = vmatprep.mubr.f32.mxu0 0.0
    %v6836 = vand.u32 %v6355, 4294901760
    %6837 = vmatmul.mubr.f32.gmra.mxu0 %v6836
    %v6838 = vpop.f32.mrf.mxu0
    %v6839 = vadd.f32 %v6764, %v6838
    %v6840 = vpop.f32.mrf.mxu0
    %6841 = vdwg.mxu0
    %v6842 = vadd.f32 %v5311, %v6839
    %v6843 = vtanh.pop %v6842
    %v6844 = vadd.f32 %v6843, 1.0
    %v6845 = vmul.f32 %v6844, 0.5
    %v6846 = vmul.f32 %v6343, %v6845
    %6848 = vrot.lane.b32.xlu0 %v6843, 64
    %v6849 = vpop.permute.xlu0 %6848
    %v6851 = vmul.f32 %v6845, %v6849
    %6853 = vrot.lane.b32.xlu0 %v6851, 32
    %v6854 = vpop.permute.xlu0 %6853
    %v6856 = vadd.f32 %v6846, %v6854
    %v6857 = vtanh.pop %v6856
    %6859 = vrot.lane.b32.xlu0 %v6857, 64
    %v6860 = vpop.permute.xlu0 %6859
    %v6862 = vmul.f32 %v6845, %v6860
    %6864 = vrot.lane.b32.xlu0 %v6862, 32
    %v6865 = vpop.permute.xlu0 %6864
    %v6866 = vsel %vm556, %v6865, 0
    %6868 = vmatprep.subr.mxu0 0.0
    %6869 = vmatpush1.msra.mxu0 0.0
    %6870 = vmatprep.subr.mxu0 0.0
    %6871 = vmatpush1.msra.mxu0 0.0
    %6872 = vmatprep.subr.mxu0 0.0
    %6873 = vmatpush1.msra.mxu0 0.0
    %6874 = vmatprep.subr.mxu0 0.0
    %6875 = vmatpush1.msra.mxu0 0.0
    %6876 = vmatprep.subr.mxu0 0.0
    %6877 = vmatpush1.msra.mxu0 0.0
    %6878 = vmatprep.subr.mxu0 0.0
    %6879 = vmatpush1.msra.mxu0 0.0
    %6880 = vmatprep.subr.mxu0 0.0
    %6881 = vmatpush1.msra.mxu0 0.0
    %6882 = vmatprep.subr.mxu0 0.0
    %6883 = vmatpush1.msra.mxu0 0.0
    %6884 = vmatprep.subr.mxu0 0.0
    %6885 = vmatpush1.msra.mxu0 0.0
    %6886 = vmatprep.subr.mxu0 0.0
    %6887 = vmatpush1.msra.mxu0 0.0
    %6888 = vmatprep.subr.mxu0 0.0
    %6889 = vmatpush1.msra.mxu0 0.0
    %6890 = vmatprep.subr.mxu0 0.0
    %6891 = vmatpush1.msra.mxu0 0.0
    %6892 = vmatprep.subr.mxu0 0.0
    %v6893 = vand.u32 %v4688, 4294901760
    %6894 = vmatpush1.msra.mxu0 %v6893
    %6895 = vmatprep.subr.mxu0 0.0
    %v6896 = vand.u32 %v4687, 4294901760
    %6897 = vmatpush1.msra.mxu0 %v6896
    %6898 = vmatprep.subr.mxu0 0.0
    %v6899 = vand.u32 %v4686, 4294901760
    %6900 = vmatpush1.msra.mxu0 %v6899
    %6901 = vmatprep.subr.mxu0 0.0
    %v6902 = vand.u32 %v4685, 4294901760
    %6903 = vmatpush1.msra.mxu0 %v6902
    %6904 = vmatprep.subr.mxu0 0.0
    %6905 = vmatpush2.msra.mxu0 0.0
    %6906 = vmatprep.subr.mxu0 0.0
    %6907 = vmatpush2.msra.mxu0 0.0
    %6908 = vmatprep.subr.mxu0 0.0
    %6909 = vmatpush2.msra.mxu0 0.0
    %6910 = vmatprep.subr.mxu0 0.0
    %6911 = vmatpush2.msra.mxu0 0.0
    %6912 = vmatprep.subr.mxu0 0.0
    %6913 = vmatpush2.msra.mxu0 0.0
    %6914 = vmatprep.subr.mxu0 0.0
    %6915 = vmatpush2.msra.mxu0 0.0
    %6916 = vmatprep.subr.mxu0 0.0
    %6917 = vmatpush2.msra.mxu0 0.0
    %6918 = vmatprep.subr.mxu0 0.0
    %6919 = vmatpush2.msra.mxu0 0.0
    %6920 = vmatprep.subr.mxu0 0.0
    %6921 = vmatpush2.msra.mxu0 0.0
    %6922 = vmatprep.subr.mxu0 0.0
    %6923 = vmatpush2.msra.mxu0 0.0
    %6924 = vmatprep.subr.mxu0 0.0
    %6925 = vmatpush2.msra.mxu0 0.0
    %6926 = vmatprep.subr.mxu0 0.0
    %6927 = vmatpush2.msra.mxu0 0.0
    %6928 = vmatprep.subr.mxu0 0.0
    %6929 = vmatpush2.msra.mxu0 0.0
    %6930 = vmatprep.subr.mxu0 0.0
    %6931 = vmatpush2.msra.mxu0 0.0
    %6932 = vmatprep.subr.mxu0 0.0
    %6933 = vmatpush2.msra.mxu0 0.0
    %6934 = vmatprep.subr.mxu0 0.0
    %6935 = vmatpush2.msra.mxu0 0.0
    %6936 = vmatprep.mubr.f32.mxu0 0.0
    %v6937 = vand.u32 %v6866, 4294901760
    %v6938 = vsub.f32 %v6866, %v6937
    %v6939 = vand.u32 %v6938, 4294901760
    %v6940 = vsub.f32 %v6938, %v6939
    %v6941 = vand.u32 %v6940, 4294901760
    %6942 = vmatmul.mubr.f32.gmra.mxu0 %v6941
    %v6943 = vpop.f32.mrf.mxu0
    %v6944 = vadd.f32 0.0, %v6943
    %v6945 = vpop.f32.mrf.mxu0
    %6946 = vdwg.mxu0
    %6947 = vmatprep.subr.mxu0 0.0
    %6948 = vmatpush1.msra.mxu0 0.0
    %6949 = vmatprep.subr.mxu0 0.0
    %6950 = vmatpush1.msra.mxu0 0.0
    %6951 = vmatprep.subr.mxu0 0.0
    %6952 = vmatpush1.msra.mxu0 0.0
    %6953 = vmatprep.subr.mxu0 0.0
    %6954 = vmatpush1.msra.mxu0 0.0
    %6955 = vmatprep.subr.mxu0 0.0
    %6956 = vmatpush1.msra.mxu0 0.0
    %6957 = vmatprep.subr.mxu0 0.0
    %6958 = vmatpush1.msra.mxu0 0.0
    %6959 = vmatprep.subr.mxu0 0.0
    %6960 = vmatpush1.msra.mxu0 0.0
    %6961 = vmatprep.subr.mxu0 0.0
    %6962 = vmatpush1.msra.mxu0 0.0
    %6963 = vmatprep.subr.mxu0 0.0
    %6964 = vmatpush1.msra.mxu0 0.0
    %6965 = vmatprep.subr.mxu0 0.0
    %6966 = vmatpush1.msra.mxu0 0.0
    %6967 = vmatprep.subr.mxu0 0.0
    %6968 = vmatpush1.msra.mxu0 0.0
    %6969 = vmatprep.subr.mxu0 0.0
    %6970 = vmatpush1.msra.mxu0 0.0
    %6971 = vmatprep.subr.mxu0 0.0
    %v6972 = vand.u32 %v4688, 4294901760
    %v6973 = vsub.f32 %v4688, %v6972
    %v6974 = vand.u32 %v6973, 4294901760
    %v6975 = vsub.f32 %v6973, %v6974
    %v6976 = vand.u32 %v6975, 4294901760
    %6977 = vmatpush1.msra.mxu0 %v6976
    %6978 = vmatprep.subr.mxu0 0.0
    %v6979 = vand.u32 %v4687, 4294901760
    %v6980 = vsub.f32 %v4687, %v6979
    %v6981 = vand.u32 %v6980, 4294901760
    %v6982 = vsub.f32 %v6980, %v6981
    %v6983 = vand.u32 %v6982, 4294901760
    %6984 = vmatpush1.msra.mxu0 %v6983
    %6985 = vmatprep.subr.mxu0 0.0
    %v6986 = vand.u32 %v4686, 4294901760
    %v6987 = vsub.f32 %v4686, %v6986
    %v6988 = vand.u32 %v6987, 4294901760
    %v6989 = vsub.f32 %v6987, %v6988
    %v6990 = vand.u32 %v6989, 4294901760
    %6991 = vmatpush1.msra.mxu0 %v6990
    %6992 = vmatprep.subr.mxu0 0.0
    %v6993 = vand.u32 %v4685, 4294901760
    %v6994 = vsub.f32 %v4685, %v6993
    %v6995 = vand.u32 %v6994, 4294901760
    %v6996 = vsub.f32 %v6994, %v6995
    %v6997 = vand.u32 %v6996, 4294901760
    %6998 = vmatpush1.msra.mxu0 %v6997
    %6999 = vmatprep.subr.mxu0 0.0
    %7000 = vmatpush2.msra.mxu0 0.0
    %7001 = vmatprep.subr.mxu0 0.0
    %7002 = vmatpush2.msra.mxu0 0.0
    %7003 = vmatprep.subr.mxu0 0.0
    %7004 = vmatpush2.msra.mxu0 0.0
    %7005 = vmatprep.subr.mxu0 0.0
    %7006 = vmatpush2.msra.mxu0 0.0
    %7007 = vmatprep.subr.mxu0 0.0
    %7008 = vmatpush2.msra.mxu0 0.0
    %7009 = vmatprep.subr.mxu0 0.0
    %7010 = vmatpush2.msra.mxu0 0.0
    %7011 = vmatprep.subr.mxu0 0.0
    %7012 = vmatpush2.msra.mxu0 0.0
    %7013 = vmatprep.subr.mxu0 0.0
    %7014 = vmatpush2.msra.mxu0 0.0
    %7015 = vmatprep.subr.mxu0 0.0
    %7016 = vmatpush2.msra.mxu0 0.0
    %7017 = vmatprep.subr.mxu0 0.0
    %7018 = vmatpush2.msra.mxu0 0.0
    %7019 = vmatprep.subr.mxu0 0.0
    %7020 = vmatpush2.msra.mxu0 0.0
    %7021 = vmatprep.subr.mxu0 0.0
    %7022 = vmatpush2.msra.mxu0 0.0
    %7023 = vmatprep.subr.mxu0 0.0
    %7024 = vmatpush2.msra.mxu0 0.0
    %7025 = vmatprep.subr.mxu0 0.0
    %7026 = vmatpush2.msra.mxu0 0.0
    %7027 = vmatprep.subr.mxu0 0.0
    %7028 = vmatpush2.msra.mxu0 0.0
    %7029 = vmatprep.subr.mxu0 0.0
    %7030 = vmatpush2.msra.mxu0 0.0
    %7031 = vmatprep.mubr.f32.mxu0 0.0
    %v7032 = vand.u32 %v6866, 4294901760
    %7033 = vmatmul.mubr.f32.gmra.mxu0 %v7032
    %v7034 = vpop.f32.mrf.mxu0
    %v7035 = vadd.f32 %v6944, %v7034
    %v7036 = vpop.f32.mrf.mxu0
    %7037 = vdwg.mxu0
    %7038 = vmatprep.subr.mxu0 0.0
    %7039 = vmatpush1.msra.mxu0 0.0
    %7040 = vmatprep.subr.mxu0 0.0
    %7041 = vmatpush1.msra.mxu0 0.0
    %7042 = vmatprep.subr.mxu0 0.0
    %7043 = vmatpush1.msra.mxu0 0.0
    %7044 = vmatprep.subr.mxu0 0.0
    %7045 = vmatpush1.msra.mxu0 0.0
    %7046 = vmatprep.subr.mxu0 0.0
    %7047 = vmatpush1.msra.mxu0 0.0
    %7048 = vmatprep.subr.mxu0 0.0
    %7049 = vmatpush1.msra.mxu0 0.0
    %7050 = vmatprep.subr.mxu0 0.0
    %7051 = vmatpush1.msra.mxu0 0.0
    %7052 = vmatprep.subr.mxu0 0.0
    %7053 = vmatpush1.msra.mxu0 0.0
    %7054 = vmatprep.subr.mxu0 0.0
    %7055 = vmatpush1.msra.mxu0 0.0
    %7056 = vmatprep.subr.mxu0 0.0
    %7057 = vmatpush1.msra.mxu0 0.0
    %7058 = vmatprep.subr.mxu0 0.0
    %7059 = vmatpush1.msra.mxu0 0.0
    %7060 = vmatprep.subr.mxu0 0.0
    %7061 = vmatpush1.msra.mxu0 0.0
    %7062 = vmatprep.subr.mxu0 0.0
    %v7063 = vand.u32 %v4688, 4294901760
    %v7064 = vsub.f32 %v4688, %v7063
    %7065 = vmatpush1.msra.mxu0 %v7064
    %7066 = vmatprep.subr.mxu0 0.0
    %v7067 = vand.u32 %v4687, 4294901760
    %v7068 = vsub.f32 %v4687, %v7067
    %7069 = vmatpush1.msra.mxu0 %v7068
    %7070 = vmatprep.subr.mxu0 0.0
    %v7071 = vand.u32 %v4686, 4294901760
    %v7072 = vsub.f32 %v4686, %v7071
    %7073 = vmatpush1.msra.mxu0 %v7072
    %7074 = vmatprep.subr.mxu0 0.0
    %v7075 = vand.u32 %v4685, 4294901760
    %v7076 = vsub.f32 %v4685, %v7075
    %7077 = vmatpush1.msra.mxu0 %v7076
    %7078 = vmatprep.subr.mxu0 0.0
    %7079 = vmatpush2.msra.mxu0 0.0
    %7080 = vmatprep.subr.mxu0 0.0
    %7081 = vmatpush2.msra.mxu0 0.0
    %7082 = vmatprep.subr.mxu0 0.0
    %7083 = vmatpush2.msra.mxu0 0.0
    %7084 = vmatprep.subr.mxu0 0.0
    %7085 = vmatpush2.msra.mxu0 0.0
    %7086 = vmatprep.subr.mxu0 0.0
    %7087 = vmatpush2.msra.mxu0 0.0
    %7088 = vmatprep.subr.mxu0 0.0
    %7089 = vmatpush2.msra.mxu0 0.0
    %7090 = vmatprep.subr.mxu0 0.0
    %7091 = vmatpush2.msra.mxu0 0.0
    %7092 = vmatprep.subr.mxu0 0.0
    %7093 = vmatpush2.msra.mxu0 0.0
    %7094 = vmatprep.subr.mxu0 0.0
    %7095 = vmatpush2.msra.mxu0 0.0
    %7096 = vmatprep.subr.mxu0 0.0
    %7097 = vmatpush2.msra.mxu0 0.0
    %7098 = vmatprep.subr.mxu0 0.0
    %7099 = vmatpush2.msra.mxu0 0.0
    %7100 = vmatprep.subr.mxu0 0.0
    %7101 = vmatpush2.msra.mxu0 0.0
    %7102 = vmatprep.subr.mxu0 0.0
    %7103 = vmatpush2.msra.mxu0 0.0
    %7104 = vmatprep.subr.mxu0 0.0
    %7105 = vmatpush2.msra.mxu0 0.0
    %7106 = vmatprep.subr.mxu0 0.0
    %7107 = vmatpush2.msra.mxu0 0.0
    %7108 = vmatprep.subr.mxu0 0.0
    %7109 = vmatpush2.msra.mxu0 0.0
    %7110 = vmatprep.mubr.f32.mxu0 0.0
    %v7111 = vand.u32 %v6866, 4294901760
    %v7112 = vsub.f32 %v6866, %v7111
    %7113 = vmatmul.mubr.f32.gmra.mxu0 %v7112
    %v7114 = vpop.f32.mrf.mxu0
    %v7115 = vadd.f32 %v7035, %v7114
    %v7116 = vpop.f32.mrf.mxu0
    %7117 = vdwg.mxu0
    %7118 = vmatprep.subr.mxu0 0.0
    %7119 = vmatpush1.msra.mxu0 0.0
    %7120 = vmatprep.subr.mxu0 0.0
    %7121 = vmatpush1.msra.mxu0 0.0
    %7122 = vmatprep.subr.mxu0 0.0
    %7123 = vmatpush1.msra.mxu0 0.0
    %7124 = vmatprep.subr.mxu0 0.0
    %7125 = vmatpush1.msra.mxu0 0.0
    %7126 = vmatprep.subr.mxu0 0.0
    %7127 = vmatpush1.msra.mxu0 0.0
    %7128 = vmatprep.subr.mxu0 0.0
    %7129 = vmatpush1.msra.mxu0 0.0
    %7130 = vmatprep.subr.mxu0 0.0
    %7131 = vmatpush1.msra.mxu0 0.0
    %7132 = vmatprep.subr.mxu0 0.0
    %7133 = vmatpush1.msra.mxu0 0.0
    %7134 = vmatprep.subr.mxu0 0.0
    %7135 = vmatpush1.msra.mxu0 0.0
    %7136 = vmatprep.subr.mxu0 0.0
    %7137 = vmatpush1.msra.mxu0 0.0
    %7138 = vmatprep.subr.mxu0 0.0
    %7139 = vmatpush1.msra.mxu0 0.0
    %7140 = vmatprep.subr.mxu0 0.0
    %7141 = vmatpush1.msra.mxu0 0.0
    %7142 = vmatprep.subr.mxu0 0.0
    %v7143 = vand.u32 %v4688, 4294901760
    %7144 = vmatpush1.msra.mxu0 %v7143
    %7145 = vmatprep.subr.mxu0 0.0
    %v7146 = vand.u32 %v4687, 4294901760
    %7147 = vmatpush1.msra.mxu0 %v7146
    %7148 = vmatprep.subr.mxu0 0.0
    %v7149 = vand.u32 %v4686, 4294901760
    %7150 = vmatpush1.msra.mxu0 %v7149
    %7151 = vmatprep.subr.mxu0 0.0
    %v7152 = vand.u32 %v4685, 4294901760
    %7153 = vmatpush1.msra.mxu0 %v7152
    %7154 = vmatprep.subr.mxu0 0.0
    %7155 = vmatpush2.msra.mxu0 0.0
    %7156 = vmatprep.subr.mxu0 0.0
    %7157 = vmatpush2.msra.mxu0 0.0
    %7158 = vmatprep.subr.mxu0 0.0
    %7159 = vmatpush2.msra.mxu0 0.0
    %7160 = vmatprep.subr.mxu0 0.0
    %7161 = vmatpush2.msra.mxu0 0.0
    %7162 = vmatprep.subr.mxu0 0.0
    %7163 = vmatpush2.msra.mxu0 0.0
    %7164 = vmatprep.subr.mxu0 0.0
    %7165 = vmatpush2.msra.mxu0 0.0
    %7166 = vmatprep.subr.mxu0 0.0
    %7167 = vmatpush2.msra.mxu0 0.0
    %7168 = vmatprep.subr.mxu0 0.0
    %7169 = vmatpush2.msra.mxu0 0.0
    %7170 = vmatprep.subr.mxu0 0.0
    %7171 = vmatpush2.msra.mxu0 0.0
    %7172 = vmatprep.subr.mxu0 0.0
    %7173 = vmatpush2.msra.mxu0 0.0
    %7174 = vmatprep.subr.mxu0 0.0
    %7175 = vmatpush2.msra.mxu0 0.0
    %7176 = vmatprep.subr.mxu0 0.0
    %7177 = vmatpush2.msra.mxu0 0.0
    %7178 = vmatprep.subr.mxu0 0.0
    %7179 = vmatpush2.msra.mxu0 0.0
    %7180 = vmatprep.subr.mxu0 0.0
    %7181 = vmatpush2.msra.mxu0 0.0
    %7182 = vmatprep.subr.mxu0 0.0
    %7183 = vmatpush2.msra.mxu0 0.0
    %7184 = vmatprep.subr.mxu0 0.0
    %7185 = vmatpush2.msra.mxu0 0.0
    %7186 = vmatprep.mubr.f32.mxu0 0.0
    %v7187 = vand.u32 %v6866, 4294901760
    %v7188 = vsub.f32 %v6866, %v7187
    %v7189 = vand.u32 %v7188, 4294901760
    %7190 = vmatmul.mubr.f32.gmra.mxu0 %v7189
    %v7191 = vpop.f32.mrf.mxu0
    %v7192 = vadd.f32 %v7115, %v7191
    %v7193 = vpop.f32.mrf.mxu0
    %7194 = vdwg.mxu0
    %7195 = vmatprep.subr.mxu0 0.0
    %7196 = vmatpush1.msra.mxu0 0.0
    %7197 = vmatprep.subr.mxu0 0.0
    %7198 = vmatpush1.msra.mxu0 0.0
    %7199 = vmatprep.subr.mxu0 0.0
    %7200 = vmatpush1.msra.mxu0 0.0
    %7201 = vmatprep.subr.mxu0 0.0
    %7202 = vmatpush1.msra.mxu0 0.0
    %7203 = vmatprep.subr.mxu0 0.0
    %7204 = vmatpush1.msra.mxu0 0.0
    %7205 = vmatprep.subr.mxu0 0.0
    %7206 = vmatpush1.msra.mxu0 0.0
    %7207 = vmatprep.subr.mxu0 0.0
    %7208 = vmatpush1.msra.mxu0 0.0
    %7209 = vmatprep.subr.mxu0 0.0
    %7210 = vmatpush1.msra.mxu0 0.0
    %7211 = vmatprep.subr.mxu0 0.0
    %7212 = vmatpush1.msra.mxu0 0.0
    %7213 = vmatprep.subr.mxu0 0.0
    %7214 = vmatpush1.msra.mxu0 0.0
    %7215 = vmatprep.subr.mxu0 0.0
    %7216 = vmatpush1.msra.mxu0 0.0
    %7217 = vmatprep.subr.mxu0 0.0
    %7218 = vmatpush1.msra.mxu0 0.0
    %7219 = vmatprep.subr.mxu0 0.0
    %v7220 = vand.u32 %v4688, 4294901760
    %v7221 = vsub.f32 %v4688, %v7220
    %v7222 = vand.u32 %v7221, 4294901760
    %7223 = vmatpush1.msra.mxu0 %v7222
    %7224 = vmatprep.subr.mxu0 0.0
    %v7225 = vand.u32 %v4687, 4294901760
    %v7226 = vsub.f32 %v4687, %v7225
    %v7227 = vand.u32 %v7226, 4294901760
    %7228 = vmatpush1.msra.mxu0 %v7227
    %7229 = vmatprep.subr.mxu0 0.0
    %v7230 = vand.u32 %v4686, 4294901760
    %v7231 = vsub.f32 %v4686, %v7230
    %v7232 = vand.u32 %v7231, 4294901760
    %7233 = vmatpush1.msra.mxu0 %v7232
    %7234 = vmatprep.subr.mxu0 0.0
    %v7235 = vand.u32 %v4685, 4294901760
    %v7236 = vsub.f32 %v4685, %v7235
    %v7237 = vand.u32 %v7236, 4294901760
    %7238 = vmatpush1.msra.mxu0 %v7237
    %7239 = vmatprep.subr.mxu0 0.0
    %7240 = vmatpush2.msra.mxu0 0.0
    %7241 = vmatprep.subr.mxu0 0.0
    %7242 = vmatpush2.msra.mxu0 0.0
    %7243 = vmatprep.subr.mxu0 0.0
    %7244 = vmatpush2.msra.mxu0 0.0
    %7245 = vmatprep.subr.mxu0 0.0
    %7246 = vmatpush2.msra.mxu0 0.0
    %7247 = vmatprep.subr.mxu0 0.0
    %7248 = vmatpush2.msra.mxu0 0.0
    %7249 = vmatprep.subr.mxu0 0.0
    %7250 = vmatpush2.msra.mxu0 0.0
    %7251 = vmatprep.subr.mxu0 0.0
    %7252 = vmatpush2.msra.mxu0 0.0
    %7253 = vmatprep.subr.mxu0 0.0
    %7254 = vmatpush2.msra.mxu0 0.0
    %7255 = vmatprep.subr.mxu0 0.0
    %7256 = vmatpush2.msra.mxu0 0.0
    %7257 = vmatprep.subr.mxu0 0.0
    %7258 = vmatpush2.msra.mxu0 0.0
    %7259 = vmatprep.subr.mxu0 0.0
    %7260 = vmatpush2.msra.mxu0 0.0
    %7261 = vmatprep.subr.mxu0 0.0
    %7262 = vmatpush2.msra.mxu0 0.0
    %7263 = vmatprep.subr.mxu0 0.0
    %7264 = vmatpush2.msra.mxu0 0.0
    %7265 = vmatprep.subr.mxu0 0.0
    %7266 = vmatpush2.msra.mxu0 0.0
    %7267 = vmatprep.subr.mxu0 0.0
    %7268 = vmatpush2.msra.mxu0 0.0
    %7269 = vmatprep.subr.mxu0 0.0
    %7270 = vmatpush2.msra.mxu0 0.0
    %7271 = vmatprep.mubr.f32.mxu0 0.0
    %v7272 = vand.u32 %v6866, 4294901760
    %7273 = vmatmul.mubr.f32.gmra.mxu0 %v7272
    %v7274 = vpop.f32.mrf.mxu0
    %v7275 = vadd.f32 %v7192, %v7274
    %v7276 = vpop.f32.mrf.mxu0
    %7277 = vdwg.mxu0
    %7278 = vmatprep.subr.mxu0 0.0
    %7279 = vmatpush1.msra.mxu0 0.0
    %7280 = vmatprep.subr.mxu0 0.0
    %7281 = vmatpush1.msra.mxu0 0.0
    %7282 = vmatprep.subr.mxu0 0.0
    %7283 = vmatpush1.msra.mxu0 0.0
    %7284 = vmatprep.subr.mxu0 0.0
    %7285 = vmatpush1.msra.mxu0 0.0
    %7286 = vmatprep.subr.mxu0 0.0
    %7287 = vmatpush1.msra.mxu0 0.0
    %7288 = vmatprep.subr.mxu0 0.0
    %7289 = vmatpush1.msra.mxu0 0.0
    %7290 = vmatprep.subr.mxu0 0.0
    %7291 = vmatpush1.msra.mxu0 0.0
    %7292 = vmatprep.subr.mxu0 0.0
    %7293 = vmatpush1.msra.mxu0 0.0
    %7294 = vmatprep.subr.mxu0 0.0
    %7295 = vmatpush1.msra.mxu0 0.0
    %7296 = vmatprep.subr.mxu0 0.0
    %7297 = vmatpush1.msra.mxu0 0.0
    %7298 = vmatprep.subr.mxu0 0.0
    %7299 = vmatpush1.msra.mxu0 0.0
    %7300 = vmatprep.subr.mxu0 0.0
    %7301 = vmatpush1.msra.mxu0 0.0
    %7302 = vmatprep.subr.mxu0 0.0
    %v7303 = vand.u32 %v4688, 4294901760
    %7304 = vmatpush1.msra.mxu0 %v7303
    %7305 = vmatprep.subr.mxu0 0.0
    %v7306 = vand.u32 %v4687, 4294901760
    %7307 = vmatpush1.msra.mxu0 %v7306
    %7308 = vmatprep.subr.mxu0 0.0
    %v7309 = vand.u32 %v4686, 4294901760
    %7310 = vmatpush1.msra.mxu0 %v7309
    %7311 = vmatprep.subr.mxu0 0.0
    %v7312 = vand.u32 %v4685, 4294901760
    %7313 = vmatpush1.msra.mxu0 %v7312
    %7314 = vmatprep.subr.mxu0 0.0
    %7315 = vmatpush2.msra.mxu0 0.0
    %7316 = vmatprep.subr.mxu0 0.0
    %7317 = vmatpush2.msra.mxu0 0.0
    %7318 = vmatprep.subr.mxu0 0.0
    %7319 = vmatpush2.msra.mxu0 0.0
    %7320 = vmatprep.subr.mxu0 0.0
    %7321 = vmatpush2.msra.mxu0 0.0
    %7322 = vmatprep.subr.mxu0 0.0
    %7323 = vmatpush2.msra.mxu0 0.0
    %7324 = vmatprep.subr.mxu0 0.0
    %7325 = vmatpush2.msra.mxu0 0.0
    %7326 = vmatprep.subr.mxu0 0.0
    %7327 = vmatpush2.msra.mxu0 0.0
    %7328 = vmatprep.subr.mxu0 0.0
    %7329 = vmatpush2.msra.mxu0 0.0
    %7330 = vmatprep.subr.mxu0 0.0
    %7331 = vmatpush2.msra.mxu0 0.0
    %7332 = vmatprep.subr.mxu0 0.0
    %7333 = vmatpush2.msra.mxu0 0.0
    %7334 = vmatprep.subr.mxu0 0.0
    %7335 = vmatpush2.msra.mxu0 0.0
    %7336 = vmatprep.subr.mxu0 0.0
    %7337 = vmatpush2.msra.mxu0 0.0
    %7338 = vmatprep.subr.mxu0 0.0
    %7339 = vmatpush2.msra.mxu0 0.0
    %7340 = vmatprep.subr.mxu0 0.0
    %7341 = vmatpush2.msra.mxu0 0.0
    %7342 = vmatprep.subr.mxu0 0.0
    %7343 = vmatpush2.msra.mxu0 0.0
    %7344 = vmatprep.subr.mxu0 0.0
    %7345 = vmatpush2.msra.mxu0 0.0
    %7346 = vmatprep.mubr.f32.mxu0 0.0
    %v7347 = vand.u32 %v6866, 4294901760
    %7348 = vmatmul.mubr.f32.gmra.mxu0 %v7347
    %v7349 = vpop.f32.mrf.mxu0
    %v7350 = vadd.f32 %v7275, %v7349
    %v7351 = vpop.f32.mrf.mxu0
    %7352 = vdwg.mxu0
    %v7354 = vrot.slane %v7350, 4
    %v7356 = vadd.f32 %v5311, %v7354
    %v7357 = vtanh.pop %v7356
    %v7358 = vadd.f32 %v7357, 1.0
    %v7359 = vmul.f32 %v7358, 0.5
    %v7361 = vrot.slane %v7359, 4
    %v7363 = vmul.f32 %v6856, %v7361
    %7365 = vrot.lane.b32.xlu0 %v7357, 64
    %v7366 = vpop.permute.xlu0 %7365
    %v7368 = vmul.f32 %v7359, %v7366
    %v7370 = vrot.slane %v7368, 4
    %7371 = vrot.lane.b32.xlu0 %v7370, 32
    %v7372 = vpop.permute.xlu0 %7371
    %v7374 = vadd.f32 %v7363, %v7372
    %v7375 = vtanh.pop %v7374
    %v7377 = vrot.slane %v7375, 4
    %7378 = vrot.lane.b32.xlu0 %v7377, 64
    %v7379 = vpop.permute.xlu0 %7378
    %v7381 = vmul.f32 %v7359, %v7379
    %v7383 = vrot.slane %v7381, 4
    %7384 = vrot.lane.b32.xlu0 %v7383, 32
    %v7385 = vpop.permute.xlu0 %7384
    %v7386 = vsel %vm556, %v7385, 0
    %7388 = vmatprep.subr.mxu0 0.0
    %7389 = vmatpush1.msra.mxu0 0.0
    %7390 = vmatprep.subr.mxu0 0.0
    %7391 = vmatpush1.msra.mxu0 0.0
    %7392 = vmatprep.subr.mxu0 0.0
    %7393 = vmatpush1.msra.mxu0 0.0
    %7394 = vmatprep.subr.mxu0 0.0
    %7395 = vmatpush1.msra.mxu0 0.0
    %7396 = vmatprep.subr.mxu0 0.0
    %7397 = vmatpush1.msra.mxu0 0.0
    %7398 = vmatprep.subr.mxu0 0.0
    %7399 = vmatpush1.msra.mxu0 0.0
    %7400 = vmatprep.subr.mxu0 0.0
    %7401 = vmatpush1.msra.mxu0 0.0
    %7402 = vmatprep.subr.mxu0 0.0
    %7403 = vmatpush1.msra.mxu0 0.0
    %7404 = vmatprep.subr.mxu0 0.0
    %7405 = vmatpush1.msra.mxu0 0.0
    %7406 = vmatprep.subr.mxu0 0.0
    %7407 = vmatpush1.msra.mxu0 0.0
    %7408 = vmatprep.subr.mxu0 0.0
    %7409 = vmatpush1.msra.mxu0 0.0
    %7410 = vmatprep.subr.mxu0 0.0
    %7411 = vmatpush1.msra.mxu0 0.0
    %7412 = vmatprep.subr.mxu0 0.0
    %v7413 = vand.u32 %v4688, 4294901760
    %7414 = vmatpush1.msra.mxu0 %v7413
    %7415 = vmatprep.subr.mxu0 0.0
    %v7416 = vand.u32 %v4687, 4294901760
    %7417 = vmatpush1.msra.mxu0 %v7416
    %7418 = vmatprep.subr.mxu0 0.0
    %v7419 = vand.u32 %v4686, 4294901760
    %7420 = vmatpush1.msra.mxu0 %v7419
    %7421 = vmatprep.subr.mxu0 0.0
    %v7422 = vand.u32 %v4685, 4294901760
    %7423 = vmatpush1.msra.mxu0 %v7422
    %7424 = vmatprep.subr.mxu0 0.0
    %7425 = vmatpush2.msra.mxu0 0.0
    %7426 = vmatprep.subr.mxu0 0.0
    %7427 = vmatpush2.msra.mxu0 0.0
    %7428 = vmatprep.subr.mxu0 0.0
    %7429 = vmatpush2.msra.mxu0 0.0
    %7430 = vmatprep.subr.mxu0 0.0
    %7431 = vmatpush2.msra.mxu0 0.0
    %7432 = vmatprep.subr.mxu0 0.0
    %7433 = vmatpush2.msra.mxu0 0.0
    %7434 = vmatprep.subr.mxu0 0.0
    %7435 = vmatpush2.msra.mxu0 0.0
    %7436 = vmatprep.subr.mxu0 0.0
    %7437 = vmatpush2.msra.mxu0 0.0
    %7438 = vmatprep.subr.mxu0 0.0
    %7439 = vmatpush2.msra.mxu0 0.0
    %7440 = vmatprep.subr.mxu0 0.0
    %7441 = vmatpush2.msra.mxu0 0.0
    %7442 = vmatprep.subr.mxu0 0.0
    %7443 = vmatpush2.msra.mxu0 0.0
    %7444 = vmatprep.subr.mxu0 0.0
    %7445 = vmatpush2.msra.mxu0 0.0
    %7446 = vmatprep.subr.mxu0 0.0
    %7447 = vmatpush2.msra.mxu0 0.0
    %7448 = vmatprep.subr.mxu0 0.0
    %7449 = vmatpush2.msra.mxu0 0.0
    %7450 = vmatprep.subr.mxu0 0.0
    %7451 = vmatpush2.msra.mxu0 0.0
    %7452 = vmatprep.subr.mxu0 0.0
    %7453 = vmatpush2.msra.mxu0 0.0
    %7454 = vmatprep.subr.mxu0 0.0
    %7455 = vmatpush2.msra.mxu0 0.0
    %7456 = vmatprep.mubr.f32.mxu0 0.0
    %v7457 = vand.u32 %v7386, 4294901760
    %v7458 = vsub.f32 %v7386, %v7457
    %v7459 = vand.u32 %v7458, 4294901760
    %v7460 = vsub.f32 %v7458, %v7459
    %v7461 = vand.u32 %v7460, 4294901760
    %7462 = vmatmul.mubr.f32.gmra.mxu0 %v7461
    %v7463 = vpop.f32.mrf.mxu0
    %v7464 = vadd.f32 0.0, %v7463
    %v7465 = vpop.f32.mrf.mxu0
    %7466 = vdwg.mxu0
    %7467 = vmatprep.subr.mxu0 0.0
    %7468 = vmatpush1.msra.mxu0 0.0
    %7469 = vmatprep.subr.mxu0 0.0
    %7470 = vmatpush1.msra.mxu0 0.0
    %7471 = vmatprep.subr.mxu0 0.0
    %7472 = vmatpush1.msra.mxu0 0.0
    %7473 = vmatprep.subr.mxu0 0.0
    %7474 = vmatpush1.msra.mxu0 0.0
    %7475 = vmatprep.subr.mxu0 0.0
    %7476 = vmatpush1.msra.mxu0 0.0
    %7477 = vmatprep.subr.mxu0 0.0
    %7478 = vmatpush1.msra.mxu0 0.0
    %7479 = vmatprep.subr.mxu0 0.0
    %7480 = vmatpush1.msra.mxu0 0.0
    %7481 = vmatprep.subr.mxu0 0.0
    %7482 = vmatpush1.msra.mxu0 0.0
    %7483 = vmatprep.subr.mxu0 0.0
    %7484 = vmatpush1.msra.mxu0 0.0
    %7485 = vmatprep.subr.mxu0 0.0
    %7486 = vmatpush1.msra.mxu0 0.0
    %7487 = vmatprep.subr.mxu0 0.0
    %7488 = vmatpush1.msra.mxu0 0.0
    %7489 = vmatprep.subr.mxu0 0.0
    %7490 = vmatpush1.msra.mxu0 0.0
    %7491 = vmatprep.subr.mxu0 0.0
    %v7492 = vand.u32 %v4688, 4294901760
    %v7493 = vsub.f32 %v4688, %v7492
    %v7494 = vand.u32 %v7493, 4294901760
    %v7495 = vsub.f32 %v7493, %v7494
    %v7496 = vand.u32 %v7495, 4294901760
    %7497 = vmatpush1.msra.mxu0 %v7496
    %7498 = vmatprep.subr.mxu0 0.0
    %v7499 = vand.u32 %v4687, 4294901760
    %v7500 = vsub.f32 %v4687, %v7499
    %v7501 = vand.u32 %v7500, 4294901760
    %v7502 = vsub.f32 %v7500, %v7501
    %v7503 = vand.u32 %v7502, 4294901760
    %7504 = vmatpush1.msra.mxu0 %v7503
    %7505 = vmatprep.subr.mxu0 0.0
    %v7506 = vand.u32 %v4686, 4294901760
    %v7507 = vsub.f32 %v4686, %v7506
    %v7508 = vand.u32 %v7507, 4294901760
    %v7509 = vsub.f32 %v7507, %v7508
    %v7510 = vand.u32 %v7509, 4294901760
    %7511 = vmatpush1.msra.mxu0 %v7510
    %7512 = vmatprep.subr.mxu0 0.0
    %v7513 = vand.u32 %v4685, 4294901760
    %v7514 = vsub.f32 %v4685, %v7513
    %v7515 = vand.u32 %v7514, 4294901760
    %v7516 = vsub.f32 %v7514, %v7515
    %v7517 = vand.u32 %v7516, 4294901760
    %7518 = vmatpush1.msra.mxu0 %v7517
    %7519 = vmatprep.subr.mxu0 0.0
    %7520 = vmatpush2.msra.mxu0 0.0
    %7521 = vmatprep.subr.mxu0 0.0
    %7522 = vmatpush2.msra.mxu0 0.0
    %7523 = vmatprep.subr.mxu0 0.0
    %7524 = vmatpush2.msra.mxu0 0.0
    %7525 = vmatprep.subr.mxu0 0.0
    %7526 = vmatpush2.msra.mxu0 0.0
    %7527 = vmatprep.subr.mxu0 0.0
    %7528 = vmatpush2.msra.mxu0 0.0
    %7529 = vmatprep.subr.mxu0 0.0
    %7530 = vmatpush2.msra.mxu0 0.0
    %7531 = vmatprep.subr.mxu0 0.0
    %7532 = vmatpush2.msra.mxu0 0.0
    %7533 = vmatprep.subr.mxu0 0.0
    %7534 = vmatpush2.msra.mxu0 0.0
    %7535 = vmatprep.subr.mxu0 0.0
    %7536 = vmatpush2.msra.mxu0 0.0
    %7537 = vmatprep.subr.mxu0 0.0
    %7538 = vmatpush2.msra.mxu0 0.0
    %7539 = vmatprep.subr.mxu0 0.0
    %7540 = vmatpush2.msra.mxu0 0.0
    %7541 = vmatprep.subr.mxu0 0.0
    %7542 = vmatpush2.msra.mxu0 0.0
    %7543 = vmatprep.subr.mxu0 0.0
    %7544 = vmatpush2.msra.mxu0 0.0
    %7545 = vmatprep.subr.mxu0 0.0
    %7546 = vmatpush2.msra.mxu0 0.0
    %7547 = vmatprep.subr.mxu0 0.0
    %7548 = vmatpush2.msra.mxu0 0.0
    %7549 = vmatprep.subr.mxu0 0.0
    %7550 = vmatpush2.msra.mxu0 0.0
    %7551 = vmatprep.mubr.f32.mxu0 0.0
    %v7552 = vand.u32 %v7386, 4294901760
    %7553 = vmatmul.mubr.f32.gmra.mxu0 %v7552
    %v7554 = vpop.f32.mrf.mxu0
    %v7555 = vadd.f32 %v7464, %v7554
    %v7556 = vpop.f32.mrf.mxu0
    %7557 = vdwg.mxu0
    %7558 = vmatprep.subr.mxu0 0.0
    %7559 = vmatpush1.msra.mxu0 0.0
    %7560 = vmatprep.subr.mxu0 0.0
    %7561 = vmatpush1.msra.mxu0 0.0
    %7562 = vmatprep.subr.mxu0 0.0
    %7563 = vmatpush1.msra.mxu0 0.0
    %7564 = vmatprep.subr.mxu0 0.0
    %7565 = vmatpush1.msra.mxu0 0.0
    %7566 = vmatprep.subr.mxu0 0.0
    %7567 = vmatpush1.msra.mxu0 0.0
    %7568 = vmatprep.subr.mxu0 0.0
    %7569 = vmatpush1.msra.mxu0 0.0
    %7570 = vmatprep.subr.mxu0 0.0
    %7571 = vmatpush1.msra.mxu0 0.0
    %7572 = vmatprep.subr.mxu0 0.0
    %7573 = vmatpush1.msra.mxu0 0.0
    %7574 = vmatprep.subr.mxu0 0.0
    %7575 = vmatpush1.msra.mxu0 0.0
    %7576 = vmatprep.subr.mxu0 0.0
    %7577 = vmatpush1.msra.mxu0 0.0
    %7578 = vmatprep.subr.mxu0 0.0
    %7579 = vmatpush1.msra.mxu0 0.0
    %7580 = vmatprep.subr.mxu0 0.0
    %7581 = vmatpush1.msra.mxu0 0.0
    %7582 = vmatprep.subr.mxu0 0.0
    %v7583 = vand.u32 %v4688, 4294901760
    %v7584 = vsub.f32 %v4688, %v7583
    %7585 = vmatpush1.msra.mxu0 %v7584
    %7586 = vmatprep.subr.mxu0 0.0
    %v7587 = vand.u32 %v4687, 4294901760
    %v7588 = vsub.f32 %v4687, %v7587
    %7589 = vmatpush1.msra.mxu0 %v7588
    %7590 = vmatprep.subr.mxu0 0.0
    %v7591 = vand.u32 %v4686, 4294901760
    %v7592 = vsub.f32 %v4686, %v7591
    %7593 = vmatpush1.msra.mxu0 %v7592
    %7594 = vmatprep.subr.mxu0 0.0
    %v7595 = vand.u32 %v4685, 4294901760
    %v7596 = vsub.f32 %v4685, %v7595
    %7597 = vmatpush1.msra.mxu0 %v7596
    %7598 = vmatprep.subr.mxu0 0.0
    %7599 = vmatpush2.msra.mxu0 0.0
    %7600 = vmatprep.subr.mxu0 0.0
    %7601 = vmatpush2.msra.mxu0 0.0
    %7602 = vmatprep.subr.mxu0 0.0
    %7603 = vmatpush2.msra.mxu0 0.0
    %7604 = vmatprep.subr.mxu0 0.0
    %7605 = vmatpush2.msra.mxu0 0.0
    %7606 = vmatprep.subr.mxu0 0.0
    %7607 = vmatpush2.msra.mxu0 0.0
    %7608 = vmatprep.subr.mxu0 0.0
    %7609 = vmatpush2.msra.mxu0 0.0
    %7610 = vmatprep.subr.mxu0 0.0
    %7611 = vmatpush2.msra.mxu0 0.0
    %7612 = vmatprep.subr.mxu0 0.0
    %7613 = vmatpush2.msra.mxu0 0.0
    %7614 = vmatprep.subr.mxu0 0.0
    %7615 = vmatpush2.msra.mxu0 0.0
    %7616 = vmatprep.subr.mxu0 0.0
    %7617 = vmatpush2.msra.mxu0 0.0
    %7618 = vmatprep.subr.mxu0 0.0
    %7619 = vmatpush2.msra.mxu0 0.0
    %7620 = vmatprep.subr.mxu0 0.0
    %7621 = vmatpush2.msra.mxu0 0.0
    %7622 = vmatprep.subr.mxu0 0.0
    %7623 = vmatpush2.msra.mxu0 0.0
    %7624 = vmatprep.subr.mxu0 0.0
    %7625 = vmatpush2.msra.mxu0 0.0
    %7626 = vmatprep.subr.mxu0 0.0
    %7627 = vmatpush2.msra.mxu0 0.0
    %7628 = vmatprep.subr.mxu0 0.0
    %7629 = vmatpush2.msra.mxu0 0.0
    %7630 = vmatprep.mubr.f32.mxu0 0.0
    %v7631 = vand.u32 %v7386, 4294901760
    %v7632 = vsub.f32 %v7386, %v7631
    %7633 = vmatmul.mubr.f32.gmra.mxu0 %v7632
    %v7634 = vpop.f32.mrf.mxu0
    %v7635 = vadd.f32 %v7555, %v7634
    %v7636 = vpop.f32.mrf.mxu0
    %7637 = vdwg.mxu0
    %7638 = vmatprep.subr.mxu0 0.0
    %7639 = vmatpush1.msra.mxu0 0.0
    %7640 = vmatprep.subr.mxu0 0.0
    %7641 = vmatpush1.msra.mxu0 0.0
    %7642 = vmatprep.subr.mxu0 0.0
    %7643 = vmatpush1.msra.mxu0 0.0
    %7644 = vmatprep.subr.mxu0 0.0
    %7645 = vmatpush1.msra.mxu0 0.0
    %7646 = vmatprep.subr.mxu0 0.0
    %7647 = vmatpush1.msra.mxu0 0.0
    %7648 = vmatprep.subr.mxu0 0.0
    %7649 = vmatpush1.msra.mxu0 0.0
    %7650 = vmatprep.subr.mxu0 0.0
    %7651 = vmatpush1.msra.mxu0 0.0
    %7652 = vmatprep.subr.mxu0 0.0
    %7653 = vmatpush1.msra.mxu0 0.0
    %7654 = vmatprep.subr.mxu0 0.0
    %7655 = vmatpush1.msra.mxu0 0.0
    %7656 = vmatprep.subr.mxu0 0.0
    %7657 = vmatpush1.msra.mxu0 0.0
    %7658 = vmatprep.subr.mxu0 0.0
    %7659 = vmatpush1.msra.mxu0 0.0
    %7660 = vmatprep.subr.mxu0 0.0
    %7661 = vmatpush1.msra.mxu0 0.0
    %7662 = vmatprep.subr.mxu0 0.0
    %v7663 = vand.u32 %v4688, 4294901760
    %7664 = vmatpush1.msra.mxu0 %v7663
    %7665 = vmatprep.subr.mxu0 0.0
    %v7666 = vand.u32 %v4687, 4294901760
    %7667 = vmatpush1.msra.mxu0 %v7666
    %7668 = vmatprep.subr.mxu0 0.0
    %v7669 = vand.u32 %v4686, 4294901760
    %7670 = vmatpush1.msra.mxu0 %v7669
    %7671 = vmatprep.subr.mxu0 0.0
    %v7672 = vand.u32 %v4685, 4294901760
    %7673 = vmatpush1.msra.mxu0 %v7672
    %7674 = vmatprep.subr.mxu0 0.0
    %7675 = vmatpush2.msra.mxu0 0.0
    %7676 = vmatprep.subr.mxu0 0.0
    %7677 = vmatpush2.msra.mxu0 0.0
    %7678 = vmatprep.subr.mxu0 0.0
    %7679 = vmatpush2.msra.mxu0 0.0
    %7680 = vmatprep.subr.mxu0 0.0
    %7681 = vmatpush2.msra.mxu0 0.0
    %7682 = vmatprep.subr.mxu0 0.0
    %7683 = vmatpush2.msra.mxu0 0.0
    %7684 = vmatprep.subr.mxu0 0.0
    %7685 = vmatpush2.msra.mxu0 0.0
    %7686 = vmatprep.subr.mxu0 0.0
    %7687 = vmatpush2.msra.mxu0 0.0
    %7688 = vmatprep.subr.mxu0 0.0
    %7689 = vmatpush2.msra.mxu0 0.0
    %7690 = vmatprep.subr.mxu0 0.0
    %7691 = vmatpush2.msra.mxu0 0.0
    %7692 = vmatprep.subr.mxu0 0.0
    %7693 = vmatpush2.msra.mxu0 0.0
    %7694 = vmatprep.subr.mxu0 0.0
    %7695 = vmatpush2.msra.mxu0 0.0
    %7696 = vmatprep.subr.mxu0 0.0
    %7697 = vmatpush2.msra.mxu0 0.0
    %7698 = vmatprep.subr.mxu0 0.0
    %7699 = vmatpush2.msra.mxu0 0.0
    %7700 = vmatprep.subr.mxu0 0.0
    %7701 = vmatpush2.msra.mxu0 0.0
    %7702 = vmatprep.subr.mxu0 0.0
    %7703 = vmatpush2.msra.mxu0 0.0
    %7704 = vmatprep.subr.mxu0 0.0
    %7705 = vmatpush2.msra.mxu0 0.0
    %7706 = vmatprep.mubr.f32.mxu0 0.0
    %v7707 = vand.u32 %v7386, 4294901760
    %v7708 = vsub.f32 %v7386, %v7707
    %v7709 = vand.u32 %v7708, 4294901760
    %7710 = vmatmul.mubr.f32.gmra.mxu0 %v7709
    %v7711 = vpop.f32.mrf.mxu0
    %v7712 = vadd.f32 %v7635, %v7711
    %v7713 = vpop.f32.mrf.mxu0
    %7714 = vdwg.mxu0
    %7715 = vmatprep.subr.mxu0 0.0
    %7716 = vmatpush1.msra.mxu0 0.0
    %7717 = vmatprep.subr.mxu0 0.0
    %7718 = vmatpush1.msra.mxu0 0.0
    %7719 = vmatprep.subr.mxu0 0.0
    %7720 = vmatpush1.msra.mxu0 0.0
    %7721 = vmatprep.subr.mxu0 0.0
    %7722 = vmatpush1.msra.mxu0 0.0
    %7723 = vmatprep.subr.mxu0 0.0
    %7724 = vmatpush1.msra.mxu0 0.0
    %7725 = vmatprep.subr.mxu0 0.0
    %7726 = vmatpush1.msra.mxu0 0.0
    %7727 = vmatprep.subr.mxu0 0.0
    %7728 = vmatpush1.msra.mxu0 0.0
    %7729 = vmatprep.subr.mxu0 0.0
    %7730 = vmatpush1.msra.mxu0 0.0
    %7731 = vmatprep.subr.mxu0 0.0
    %7732 = vmatpush1.msra.mxu0 0.0
    %7733 = vmatprep.subr.mxu0 0.0
    %7734 = vmatpush1.msra.mxu0 0.0
    %7735 = vmatprep.subr.mxu0 0.0
    %7736 = vmatpush1.msra.mxu0 0.0
    %7737 = vmatprep.subr.mxu0 0.0
    %7738 = vmatpush1.msra.mxu0 0.0
    %7739 = vmatprep.subr.mxu0 0.0
    %v7740 = vand.u32 %v4688, 4294901760
    %v7741 = vsub.f32 %v4688, %v7740
    %v7742 = vand.u32 %v7741, 4294901760
    %7743 = vmatpush1.msra.mxu0 %v7742
    %7744 = vmatprep.subr.mxu0 0.0
    %v7745 = vand.u32 %v4687, 4294901760
    %v7746 = vsub.f32 %v4687, %v7745
    %v7747 = vand.u32 %v7746, 4294901760
    %7748 = vmatpush1.msra.mxu0 %v7747
    %7749 = vmatprep.subr.mxu0 0.0
    %v7750 = vand.u32 %v4686, 4294901760
    %v7751 = vsub.f32 %v4686, %v7750
    %v7752 = vand.u32 %v7751, 4294901760
    %7753 = vmatpush1.msra.mxu0 %v7752
    %7754 = vmatprep.subr.mxu0 0.0
    %v7755 = vand.u32 %v4685, 4294901760
    %v7756 = vsub.f32 %v4685, %v7755
    %v7757 = vand.u32 %v7756, 4294901760
    %7758 = vmatpush1.msra.mxu0 %v7757
    %7759 = vmatprep.subr.mxu0 0.0
    %7760 = vmatpush2.msra.mxu0 0.0
    %7761 = vmatprep.subr.mxu0 0.0
    %7762 = vmatpush2.msra.mxu0 0.0
    %7763 = vmatprep.subr.mxu0 0.0
    %7764 = vmatpush2.msra.mxu0 0.0
    %7765 = vmatprep.subr.mxu0 0.0
    %7766 = vmatpush2.msra.mxu0 0.0
    %7767 = vmatprep.subr.mxu0 0.0
    %7768 = vmatpush2.msra.mxu0 0.0
    %7769 = vmatprep.subr.mxu0 0.0
    %7770 = vmatpush2.msra.mxu0 0.0
    %7771 = vmatprep.subr.mxu0 0.0
    %7772 = vmatpush2.msra.mxu0 0.0
    %7773 = vmatprep.subr.mxu0 0.0
    %7774 = vmatpush2.msra.mxu0 0.0
    %7775 = vmatprep.subr.mxu0 0.0
    %7776 = vmatpush2.msra.mxu0 0.0
    %7777 = vmatprep.subr.mxu0 0.0
    %7778 = vmatpush2.msra.mxu0 0.0
    %7779 = vmatprep.subr.mxu0 0.0
    %7780 = vmatpush2.msra.mxu0 0.0
    %7781 = vmatprep.subr.mxu0 0.0
    %7782 = vmatpush2.msra.mxu0 0.0
    %7783 = vmatprep.subr.mxu0 0.0
    %7784 = vmatpush2.msra.mxu0 0.0
    %7785 = vmatprep.subr.mxu0 0.0
    %7786 = vmatpush2.msra.mxu0 0.0
    %7787 = vmatprep.subr.mxu0 0.0
    %7788 = vmatpush2.msra.mxu0 0.0
    %7789 = vmatprep.subr.mxu0 0.0
    %7790 = vmatpush2.msra.mxu0 0.0
    %7791 = vmatprep.mubr.f32.mxu0 0.0
    %v7792 = vand.u32 %v7386, 4294901760
    %7793 = vmatmul.mubr.f32.gmra.mxu0 %v7792
    %v7794 = vpop.f32.mrf.mxu0
    %v7795 = vadd.f32 %v7712, %v7794
    %v7796 = vpop.f32.mrf.mxu0
    %7797 = vdwg.mxu0
    %7798 = vmatprep.subr.mxu0 0.0
    %7799 = vmatpush1.msra.mxu0 0.0
    %7800 = vmatprep.subr.mxu0 0.0
    %7801 = vmatpush1.msra.mxu0 0.0
    %7802 = vmatprep.subr.mxu0 0.0
    %7803 = vmatpush1.msra.mxu0 0.0
    %7804 = vmatprep.subr.mxu0 0.0
    %7805 = vmatpush1.msra.mxu0 0.0
    %7806 = vmatprep.subr.mxu0 0.0
    %7807 = vmatpush1.msra.mxu0 0.0
    %7808 = vmatprep.subr.mxu0 0.0
    %7809 = vmatpush1.msra.mxu0 0.0
    %7810 = vmatprep.subr.mxu0 0.0
    %7811 = vmatpush1.msra.mxu0 0.0
    %7812 = vmatprep.subr.mxu0 0.0
    %7813 = vmatpush1.msra.mxu0 0.0
    %7814 = vmatprep.subr.mxu0 0.0
    %7815 = vmatpush1.msra.mxu0 0.0
    %7816 = vmatprep.subr.mxu0 0.0
    %7817 = vmatpush1.msra.mxu0 0.0
    %7818 = vmatprep.subr.mxu0 0.0
    %7819 = vmatpush1.msra.mxu0 0.0
    %7820 = vmatprep.subr.mxu0 0.0
    %7821 = vmatpush1.msra.mxu0 0.0
    %7822 = vmatprep.subr.mxu0 0.0
    %v7823 = vand.u32 %v4688, 4294901760
    %7824 = vmatpush1.msra.mxu0 %v7823
    %7825 = vmatprep.subr.mxu0 0.0
    %v7826 = vand.u32 %v4687, 4294901760
    %7827 = vmatpush1.msra.mxu0 %v7826
    %7828 = vmatprep.subr.mxu0 0.0
    %v7829 = vand.u32 %v4686, 4294901760
    %7830 = vmatpush1.msra.mxu0 %v7829
    %7831 = vmatprep.subr.mxu0 0.0
    %v7832 = vand.u32 %v4685, 4294901760
    %7833 = vmatpush1.msra.mxu0 %v7832
    %7834 = vmatprep.subr.mxu0 0.0
    %7835 = vmatpush2.msra.mxu0 0.0
    %7836 = vmatprep.subr.mxu0 0.0
    %7837 = vmatpush2.msra.mxu0 0.0
    %7838 = vmatprep.subr.mxu0 0.0
    %7839 = vmatpush2.msra.mxu0 0.0
    %7840 = vmatprep.subr.mxu0 0.0
    %7841 = vmatpush2.msra.mxu0 0.0
    %7842 = vmatprep.subr.mxu0 0.0
    %7843 = vmatpush2.msra.mxu0 0.0
    %7844 = vmatprep.subr.mxu0 0.0
    %7845 = vmatpush2.msra.mxu0 0.0
    %7846 = vmatprep.subr.mxu0 0.0
    %7847 = vmatpush2.msra.mxu0 0.0
    %7848 = vmatprep.subr.mxu0 0.0
    %7849 = vmatpush2.msra.mxu0 0.0
    %7850 = vmatprep.subr.mxu0 0.0
    %7851 = vmatpush2.msra.mxu0 0.0
    %7852 = vmatprep.subr.mxu0 0.0
    %7853 = vmatpush2.msra.mxu0 0.0
    %7854 = vmatprep.subr.mxu0 0.0
    %7855 = vmatpush2.msra.mxu0 0.0
    %7856 = vmatprep.subr.mxu0 0.0
    %7857 = vmatpush2.msra.mxu0 0.0
    %7858 = vmatprep.subr.mxu0 0.0
    %7859 = vmatpush2.msra.mxu0 0.0
    %7860 = vmatprep.subr.mxu0 0.0
    %7861 = vmatpush2.msra.mxu0 0.0
    %7862 = vmatprep.subr.mxu0 0.0
    %7863 = vmatpush2.msra.mxu0 0.0
    %7864 = vmatprep.subr.mxu0 0.0
    %7865 = vmatpush2.msra.mxu0 0.0
    %7866 = vmatprep.mubr.f32.mxu0 0.0
    %v7867 = vand.u32 %v7386, 4294901760
    %7868 = vmatmul.mubr.f32.gmra.mxu0 %v7867
    %v7869 = vpop.f32.mrf.mxu0
    %v7870 = vadd.f32 %v7795, %v7869
    %v7871 = vpop.f32.mrf.mxu0
    %7872 = vdwg.mxu0
    %v7873 = vadd.f32 %v5317, %v7870
    %v7874 = vtanh.pop %v7873
    %v7875 = vadd.f32 %v7874, 1.0
    %v7876 = vmul.f32 %v7875, 0.5
    %v7877 = vmul.f32 %v7374, %v7876
    %7879 = vrot.lane.b32.xlu0 %v7874, 64
    %v7880 = vpop.permute.xlu0 %7879
    %v7882 = vmul.f32 %v7876, %v7880
    %7884 = vrot.lane.b32.xlu0 %v7882, 32
    %v7885 = vpop.permute.xlu0 %7884
    %v7887 = vadd.f32 %v7877, %v7885
    %v7888 = vtanh.pop %v7887
    %7890 = vrot.lane.b32.xlu0 %v7888, 64
    %v7891 = vpop.permute.xlu0 %7890
    %v7893 = vmul.f32 %v7876, %v7891
    %7895 = vrot.lane.b32.xlu0 %v7893, 32
    %v7896 = vpop.permute.xlu0 %7895
    %v7897 = vsel %vm556, %v7896, 0
    %7899 = vmatprep.subr.mxu0 0.0
    %7900 = vmatpush1.msra.mxu0 0.0
    %7901 = vmatprep.subr.mxu0 0.0
    %7902 = vmatpush1.msra.mxu0 0.0
    %7903 = vmatprep.subr.mxu0 0.0
    %7904 = vmatpush1.msra.mxu0 0.0
    %7905 = vmatprep.subr.mxu0 0.0
    %7906 = vmatpush1.msra.mxu0 0.0
    %7907 = vmatprep.subr.mxu0 0.0
    %7908 = vmatpush1.msra.mxu0 0.0
    %7909 = vmatprep.subr.mxu0 0.0
    %7910 = vmatpush1.msra.mxu0 0.0
    %7911 = vmatprep.subr.mxu0 0.0
    %7912 = vmatpush1.msra.mxu0 0.0
    %7913 = vmatprep.subr.mxu0 0.0
    %7914 = vmatpush1.msra.mxu0 0.0
    %7915 = vmatprep.subr.mxu0 0.0
    %7916 = vmatpush1.msra.mxu0 0.0
    %7917 = vmatprep.subr.mxu0 0.0
    %7918 = vmatpush1.msra.mxu0 0.0
    %7919 = vmatprep.subr.mxu0 0.0
    %7920 = vmatpush1.msra.mxu0 0.0
    %7921 = vmatprep.subr.mxu0 0.0
    %7922 = vmatpush1.msra.mxu0 0.0
    %7923 = vmatprep.subr.mxu0 0.0
    %v7924 = vand.u32 %v4688, 4294901760
    %7925 = vmatpush1.msra.mxu0 %v7924
    %7926 = vmatprep.subr.mxu0 0.0
    %v7927 = vand.u32 %v4687, 4294901760
    %7928 = vmatpush1.msra.mxu0 %v7927
    %7929 = vmatprep.subr.mxu0 0.0
    %v7930 = vand.u32 %v4686, 4294901760
    %7931 = vmatpush1.msra.mxu0 %v7930
    %7932 = vmatprep.subr.mxu0 0.0
    %v7933 = vand.u32 %v4685, 4294901760
    %7934 = vmatpush1.msra.mxu0 %v7933
    %7935 = vmatprep.subr.mxu0 0.0
    %7936 = vmatpush2.msra.mxu0 0.0
    %7937 = vmatprep.subr.mxu0 0.0
    %7938 = vmatpush2.msra.mxu0 0.0
    %7939 = vmatprep.subr.mxu0 0.0
    %7940 = vmatpush2.msra.mxu0 0.0
    %7941 = vmatprep.subr.mxu0 0.0
    %7942 = vmatpush2.msra.mxu0 0.0
    %7943 = vmatprep.subr.mxu0 0.0
    %7944 = vmatpush2.msra.mxu0 0.0
    %7945 = vmatprep.subr.mxu0 0.0
    %7946 = vmatpush2.msra.mxu0 0.0
    %7947 = vmatprep.subr.mxu0 0.0
    %7948 = vmatpush2.msra.mxu0 0.0
    %7949 = vmatprep.subr.mxu0 0.0
    %7950 = vmatpush2.msra.mxu0 0.0
    %7951 = vmatprep.subr.mxu0 0.0
    %7952 = vmatpush2.msra.mxu0 0.0
    %7953 = vmatprep.subr.mxu0 0.0
    %7954 = vmatpush2.msra.mxu0 0.0
    %7955 = vmatprep.subr.mxu0 0.0
    %7956 = vmatpush2.msra.mxu0 0.0
    %7957 = vmatprep.subr.mxu0 0.0
    %7958 = vmatpush2.msra.mxu0 0.0
    %7959 = vmatprep.subr.mxu0 0.0
    %7960 = vmatpush2.msra.mxu0 0.0
    %7961 = vmatprep.subr.mxu0 0.0
    %7962 = vmatpush2.msra.mxu0 0.0
    %7963 = vmatprep.subr.mxu0 0.0
    %7964 = vmatpush2.msra.mxu0 0.0
    %7965 = vmatprep.subr.mxu0 0.0
    %7966 = vmatpush2.msra.mxu0 0.0
    %7967 = vmatprep.mubr.f32.mxu0 0.0
    %v7968 = vand.u32 %v7897, 4294901760
    %v7969 = vsub.f32 %v7897, %v7968
    %v7970 = vand.u32 %v7969, 4294901760
    %v7971 = vsub.f32 %v7969, %v7970
    %v7972 = vand.u32 %v7971, 4294901760
    %7973 = vmatmul.mubr.f32.gmra.mxu0 %v7972
    %v7974 = vpop.f32.mrf.mxu0
    %v7975 = vadd.f32 0.0, %v7974
    %v7976 = vpop.f32.mrf.mxu0
    %7977 = vdwg.mxu0
    %7978 = vmatprep.subr.mxu0 0.0
    %7979 = vmatpush1.msra.mxu0 0.0
    %7980 = vmatprep.subr.mxu0 0.0
    %7981 = vmatpush1.msra.mxu0 0.0
    %7982 = vmatprep.subr.mxu0 0.0
    %7983 = vmatpush1.msra.mxu0 0.0
    %7984 = vmatprep.subr.mxu0 0.0
    %7985 = vmatpush1.msra.mxu0 0.0
    %7986 = vmatprep.subr.mxu0 0.0
    %7987 = vmatpush1.msra.mxu0 0.0
    %7988 = vmatprep.subr.mxu0 0.0
    %7989 = vmatpush1.msra.mxu0 0.0
    %7990 = vmatprep.subr.mxu0 0.0
    %7991 = vmatpush1.msra.mxu0 0.0
    %7992 = vmatprep.subr.mxu0 0.0
    %7993 = vmatpush1.msra.mxu0 0.0
    %7994 = vmatprep.subr.mxu0 0.0
    %7995 = vmatpush1.msra.mxu0 0.0
    %7996 = vmatprep.subr.mxu0 0.0
    %7997 = vmatpush1.msra.mxu0 0.0
    %7998 = vmatprep.subr.mxu0 0.0
    %7999 = vmatpush1.msra.mxu0 0.0
    %8000 = vmatprep.subr.mxu0 0.0
    %8001 = vmatpush1.msra.mxu0 0.0
    %8002 = vmatprep.subr.mxu0 0.0
    %v8003 = vand.u32 %v4688, 4294901760
    %v8004 = vsub.f32 %v4688, %v8003
    %v8005 = vand.u32 %v8004, 4294901760
    %v8006 = vsub.f32 %v8004, %v8005
    %v8007 = vand.u32 %v8006, 4294901760
    %8008 = vmatpush1.msra.mxu0 %v8007
    %8009 = vmatprep.subr.mxu0 0.0
    %v8010 = vand.u32 %v4687, 4294901760
    %v8011 = vsub.f32 %v4687, %v8010
    %v8012 = vand.u32 %v8011, 4294901760
    %v8013 = vsub.f32 %v8011, %v8012
    %v8014 = vand.u32 %v8013, 4294901760
    %8015 = vmatpush1.msra.mxu0 %v8014
    %8016 = vmatprep.subr.mxu0 0.0
    %v8017 = vand.u32 %v4686, 4294901760
    %v8018 = vsub.f32 %v4686, %v8017
    %v8019 = vand.u32 %v8018, 4294901760
    %v8020 = vsub.f32 %v8018, %v8019
    %v8021 = vand.u32 %v8020, 4294901760
    %8022 = vmatpush1.msra.mxu0 %v8021
    %8023 = vmatprep.subr.mxu0 0.0
    %v8024 = vand.u32 %v4685, 4294901760
    %v8025 = vsub.f32 %v4685, %v8024
    %v8026 = vand.u32 %v8025, 4294901760
    %v8027 = vsub.f32 %v8025, %v8026
    %v8028 = vand.u32 %v8027, 4294901760
    %8029 = vmatpush1.msra.mxu0 %v8028
    %8030 = vmatprep.subr.mxu0 0.0
    %8031 = vmatpush2.msra.mxu0 0.0
    %8032 = vmatprep.subr.mxu0 0.0
    %8033 = vmatpush2.msra.mxu0 0.0
    %8034 = vmatprep.subr.mxu0 0.0
    %8035 = vmatpush2.msra.mxu0 0.0
    %8036 = vmatprep.subr.mxu0 0.0
    %8037 = vmatpush2.msra.mxu0 0.0
    %8038 = vmatprep.subr.mxu0 0.0
    %8039 = vmatpush2.msra.mxu0 0.0
    %8040 = vmatprep.subr.mxu0 0.0
    %8041 = vmatpush2.msra.mxu0 0.0
    %8042 = vmatprep.subr.mxu0 0.0
    %8043 = vmatpush2.msra.mxu0 0.0
    %8044 = vmatprep.subr.mxu0 0.0
    %8045 = vmatpush2.msra.mxu0 0.0
    %8046 = vmatprep.subr.mxu0 0.0
    %8047 = vmatpush2.msra.mxu0 0.0
    %8048 = vmatprep.subr.mxu0 0.0
    %8049 = vmatpush2.msra.mxu0 0.0
    %8050 = vmatprep.subr.mxu0 0.0
    %8051 = vmatpush2.msra.mxu0 0.0
    %8052 = vmatprep.subr.mxu0 0.0
    %8053 = vmatpush2.msra.mxu0 0.0
    %8054 = vmatprep.subr.mxu0 0.0
    %8055 = vmatpush2.msra.mxu0 0.0
    %8056 = vmatprep.subr.mxu0 0.0
    %8057 = vmatpush2.msra.mxu0 0.0
    %8058 = vmatprep.subr.mxu0 0.0
    %8059 = vmatpush2.msra.mxu0 0.0
    %8060 = vmatprep.subr.mxu0 0.0
    %8061 = vmatpush2.msra.mxu0 0.0
    %8062 = vmatprep.mubr.f32.mxu0 0.0
    %v8063 = vand.u32 %v7897, 4294901760
    %8064 = vmatmul.mubr.f32.gmra.mxu0 %v8063
    %v8065 = vpop.f32.mrf.mxu0
    %v8066 = vadd.f32 %v7975, %v8065
    %v8067 = vpop.f32.mrf.mxu0
    %8068 = vdwg.mxu0
    %8069 = vmatprep.subr.mxu0 0.0
    %8070 = vmatpush1.msra.mxu0 0.0
    %8071 = vmatprep.subr.mxu0 0.0
    %8072 = vmatpush1.msra.mxu0 0.0
    %8073 = vmatprep.subr.mxu0 0.0
    %8074 = vmatpush1.msra.mxu0 0.0
    %8075 = vmatprep.subr.mxu0 0.0
    %8076 = vmatpush1.msra.mxu0 0.0
    %8077 = vmatprep.subr.mxu0 0.0
    %8078 = vmatpush1.msra.mxu0 0.0
    %8079 = vmatprep.subr.mxu0 0.0
    %8080 = vmatpush1.msra.mxu0 0.0
    %8081 = vmatprep.subr.mxu0 0.0
    %8082 = vmatpush1.msra.mxu0 0.0
    %8083 = vmatprep.subr.mxu0 0.0
    %8084 = vmatpush1.msra.mxu0 0.0
    %8085 = vmatprep.subr.mxu0 0.0
    %8086 = vmatpush1.msra.mxu0 0.0
    %8087 = vmatprep.subr.mxu0 0.0
    %8088 = vmatpush1.msra.mxu0 0.0
    %8089 = vmatprep.subr.mxu0 0.0
    %8090 = vmatpush1.msra.mxu0 0.0
    %8091 = vmatprep.subr.mxu0 0.0
    %8092 = vmatpush1.msra.mxu0 0.0
    %8093 = vmatprep.subr.mxu0 0.0
    %v8094 = vand.u32 %v4688, 4294901760
    %v8095 = vsub.f32 %v4688, %v8094
    %8096 = vmatpush1.msra.mxu0 %v8095
    %8097 = vmatprep.subr.mxu0 0.0
    %v8098 = vand.u32 %v4687, 4294901760
    %v8099 = vsub.f32 %v4687, %v8098
    %8100 = vmatpush1.msra.mxu0 %v8099
    %8101 = vmatprep.subr.mxu0 0.0
    %v8102 = vand.u32 %v4686, 4294901760
    %v8103 = vsub.f32 %v4686, %v8102
    %8104 = vmatpush1.msra.mxu0 %v8103
    %8105 = vmatprep.subr.mxu0 0.0
    %v8106 = vand.u32 %v4685, 4294901760
    %v8107 = vsub.f32 %v4685, %v8106
    %8108 = vmatpush1.msra.mxu0 %v8107
    %8109 = vmatprep.subr.mxu0 0.0
    %8110 = vmatpush2.msra.mxu0 0.0
    %8111 = vmatprep.subr.mxu0 0.0
    %8112 = vmatpush2.msra.mxu0 0.0
    %8113 = vmatprep.subr.mxu0 0.0
    %8114 = vmatpush2.msra.mxu0 0.0
    %8115 = vmatprep.subr.mxu0 0.0
    %8116 = vmatpush2.msra.mxu0 0.0
    %8117 = vmatprep.subr.mxu0 0.0
    %8118 = vmatpush2.msra.mxu0 0.0
    %8119 = vmatprep.subr.mxu0 0.0
    %8120 = vmatpush2.msra.mxu0 0.0
    %8121 = vmatprep.subr.mxu0 0.0
    %8122 = vmatpush2.msra.mxu0 0.0
    %8123 = vmatprep.subr.mxu0 0.0
    %8124 = vmatpush2.msra.mxu0 0.0
    %8125 = vmatprep.subr.mxu0 0.0
    %8126 = vmatpush2.msra.mxu0 0.0
    %8127 = vmatprep.subr.mxu0 0.0
    %8128 = vmatpush2.msra.mxu0 0.0
    %8129 = vmatprep.subr.mxu0 0.0
    %8130 = vmatpush2.msra.mxu0 0.0
    %8131 = vmatprep.subr.mxu0 0.0
    %8132 = vmatpush2.msra.mxu0 0.0
    %8133 = vmatprep.subr.mxu0 0.0
    %8134 = vmatpush2.msra.mxu0 0.0
    %8135 = vmatprep.subr.mxu0 0.0
    %8136 = vmatpush2.msra.mxu0 0.0
    %8137 = vmatprep.subr.mxu0 0.0
    %8138 = vmatpush2.msra.mxu0 0.0
    %8139 = vmatprep.subr.mxu0 0.0
    %8140 = vmatpush2.msra.mxu0 0.0
    %8141 = vmatprep.mubr.f32.mxu0 0.0
    %v8142 = vand.u32 %v7897, 4294901760
    %v8143 = vsub.f32 %v7897, %v8142
    %8144 = vmatmul.mubr.f32.gmra.mxu0 %v8143
    %v8145 = vpop.f32.mrf.mxu0
    %v8146 = vadd.f32 %v8066, %v8145
    %v8147 = vpop.f32.mrf.mxu0
    %8148 = vdwg.mxu0
    %8149 = vmatprep.subr.mxu0 0.0
    %8150 = vmatpush1.msra.mxu0 0.0
    %8151 = vmatprep.subr.mxu0 0.0
    %8152 = vmatpush1.msra.mxu0 0.0
    %8153 = vmatprep.subr.mxu0 0.0
    %8154 = vmatpush1.msra.mxu0 0.0
    %8155 = vmatprep.subr.mxu0 0.0
    %8156 = vmatpush1.msra.mxu0 0.0
    %8157 = vmatprep.subr.mxu0 0.0
    %8158 = vmatpush1.msra.mxu0 0.0
    %8159 = vmatprep.subr.mxu0 0.0
    %8160 = vmatpush1.msra.mxu0 0.0
    %8161 = vmatprep.subr.mxu0 0.0
    %8162 = vmatpush1.msra.mxu0 0.0
    %8163 = vmatprep.subr.mxu0 0.0
    %8164 = vmatpush1.msra.mxu0 0.0
    %8165 = vmatprep.subr.mxu0 0.0
    %8166 = vmatpush1.msra.mxu0 0.0
    %8167 = vmatprep.subr.mxu0 0.0
    %8168 = vmatpush1.msra.mxu0 0.0
    %8169 = vmatprep.subr.mxu0 0.0
    %8170 = vmatpush1.msra.mxu0 0.0
    %8171 = vmatprep.subr.mxu0 0.0
    %8172 = vmatpush1.msra.mxu0 0.0
    %8173 = vmatprep.subr.mxu0 0.0
    %v8174 = vand.u32 %v4688, 4294901760
    %8175 = vmatpush1.msra.mxu0 %v8174
    %8176 = vmatprep.subr.mxu0 0.0
    %v8177 = vand.u32 %v4687, 4294901760
    %8178 = vmatpush1.msra.mxu0 %v8177
    %8179 = vmatprep.subr.mxu0 0.0
    %v8180 = vand.u32 %v4686, 4294901760
    %8181 = vmatpush1.msra.mxu0 %v8180
    %8182 = vmatprep.subr.mxu0 0.0
    %v8183 = vand.u32 %v4685, 4294901760
    %8184 = vmatpush1.msra.mxu0 %v8183
    %8185 = vmatprep.subr.mxu0 0.0
    %8186 = vmatpush2.msra.mxu0 0.0
    %8187 = vmatprep.subr.mxu0 0.0
    %8188 = vmatpush2.msra.mxu0 0.0
    %8189 = vmatprep.subr.mxu0 0.0
    %8190 = vmatpush2.msra.mxu0 0.0
    %8191 = vmatprep.subr.mxu0 0.0
    %8192 = vmatpush2.msra.mxu0 0.0
    %8193 = vmatprep.subr.mxu0 0.0
    %8194 = vmatpush2.msra.mxu0 0.0
    %8195 = vmatprep.subr.mxu0 0.0
    %8196 = vmatpush2.msra.mxu0 0.0
    %8197 = vmatprep.subr.mxu0 0.0
    %8198 = vmatpush2.msra.mxu0 0.0
    %8199 = vmatprep.subr.mxu0 0.0
    %8200 = vmatpush2.msra.mxu0 0.0
    %8201 = vmatprep.subr.mxu0 0.0
    %8202 = vmatpush2.msra.mxu0 0.0
    %8203 = vmatprep.subr.mxu0 0.0
    %8204 = vmatpush2.msra.mxu0 0.0
    %8205 = vmatprep.subr.mxu0 0.0
    %8206 = vmatpush2.msra.mxu0 0.0
    %8207 = vmatprep.subr.mxu0 0.0
    %8208 = vmatpush2.msra.mxu0 0.0
    %8209 = vmatprep.subr.mxu0 0.0
    %8210 = vmatpush2.msra.mxu0 0.0
    %8211 = vmatprep.subr.mxu0 0.0
    %8212 = vmatpush2.msra.mxu0 0.0
    %8213 = vmatprep.subr.mxu0 0.0
    %8214 = vmatpush2.msra.mxu0 0.0
    %8215 = vmatprep.subr.mxu0 0.0
    %8216 = vmatpush2.msra.mxu0 0.0
    %8217 = vmatprep.mubr.f32.mxu0 0.0
    %v8218 = vand.u32 %v7897, 4294901760
    %v8219 = vsub.f32 %v7897, %v8218
    %v8220 = vand.u32 %v8219, 4294901760
    %8221 = vmatmul.mubr.f32.gmra.mxu0 %v8220
    %v8222 = vpop.f32.mrf.mxu0
    %v8223 = vadd.f32 %v8146, %v8222
    %v8224 = vpop.f32.mrf.mxu0
    %8225 = vdwg.mxu0
    %8226 = vmatprep.subr.mxu0 0.0
    %8227 = vmatpush1.msra.mxu0 0.0
    %8228 = vmatprep.subr.mxu0 0.0
    %8229 = vmatpush1.msra.mxu0 0.0
    %8230 = vmatprep.subr.mxu0 0.0
    %8231 = vmatpush1.msra.mxu0 0.0
    %8232 = vmatprep.subr.mxu0 0.0
    %8233 = vmatpush1.msra.mxu0 0.0
    %8234 = vmatprep.subr.mxu0 0.0
    %8235 = vmatpush1.msra.mxu0 0.0
    %8236 = vmatprep.subr.mxu0 0.0
    %8237 = vmatpush1.msra.mxu0 0.0
    %8238 = vmatprep.subr.mxu0 0.0
    %8239 = vmatpush1.msra.mxu0 0.0
    %8240 = vmatprep.subr.mxu0 0.0
    %8241 = vmatpush1.msra.mxu0 0.0
    %8242 = vmatprep.subr.mxu0 0.0
    %8243 = vmatpush1.msra.mxu0 0.0
    %8244 = vmatprep.subr.mxu0 0.0
    %8245 = vmatpush1.msra.mxu0 0.0
    %8246 = vmatprep.subr.mxu0 0.0
    %8247 = vmatpush1.msra.mxu0 0.0
    %8248 = vmatprep.subr.mxu0 0.0
    %8249 = vmatpush1.msra.mxu0 0.0
    %8250 = vmatprep.subr.mxu0 0.0
    %v8251 = vand.u32 %v4688, 4294901760
    %v8252 = vsub.f32 %v4688, %v8251
    %v8253 = vand.u32 %v8252, 4294901760
    %8254 = vmatpush1.msra.mxu0 %v8253
    %8255 = vmatprep.subr.mxu0 0.0
    %v8256 = vand.u32 %v4687, 4294901760
    %v8257 = vsub.f32 %v4687, %v8256
    %v8258 = vand.u32 %v8257, 4294901760
    %8259 = vmatpush1.msra.mxu0 %v8258
    %8260 = vmatprep.subr.mxu0 0.0
    %v8261 = vand.u32 %v4686, 4294901760
    %v8262 = vsub.f32 %v4686, %v8261
    %v8263 = vand.u32 %v8262, 4294901760
    %8264 = vmatpush1.msra.mxu0 %v8263
    %8265 = vmatprep.subr.mxu0 0.0
    %v8266 = vand.u32 %v4685, 4294901760
    %v8267 = vsub.f32 %v4685, %v8266
    %v8268 = vand.u32 %v8267, 4294901760
    %8269 = vmatpush1.msra.mxu0 %v8268
    %8270 = vmatprep.subr.mxu0 0.0
    %8271 = vmatpush2.msra.mxu0 0.0
    %8272 = vmatprep.subr.mxu0 0.0
    %8273 = vmatpush2.msra.mxu0 0.0
    %8274 = vmatprep.subr.mxu0 0.0
    %8275 = vmatpush2.msra.mxu0 0.0
    %8276 = vmatprep.subr.mxu0 0.0
    %8277 = vmatpush2.msra.mxu0 0.0
    %8278 = vmatprep.subr.mxu0 0.0
    %8279 = vmatpush2.msra.mxu0 0.0
    %8280 = vmatprep.subr.mxu0 0.0
    %8281 = vmatpush2.msra.mxu0 0.0
    %8282 = vmatprep.subr.mxu0 0.0
    %8283 = vmatpush2.msra.mxu0 0.0
    %8284 = vmatprep.subr.mxu0 0.0
    %8285 = vmatpush2.msra.mxu0 0.0
    %8286 = vmatprep.subr.mxu0 0.0
    %8287 = vmatpush2.msra.mxu0 0.0
    %8288 = vmatprep.subr.mxu0 0.0
    %8289 = vmatpush2.msra.mxu0 0.0
    %8290 = vmatprep.subr.mxu0 0.0
    %8291 = vmatpush2.msra.mxu0 0.0
    %8292 = vmatprep.subr.mxu0 0.0
    %8293 = vmatpush2.msra.mxu0 0.0
    %8294 = vmatprep.subr.mxu0 0.0
    %8295 = vmatpush2.msra.mxu0 0.0
    %8296 = vmatprep.subr.mxu0 0.0
    %8297 = vmatpush2.msra.mxu0 0.0
    %8298 = vmatprep.subr.mxu0 0.0
    %8299 = vmatpush2.msra.mxu0 0.0
    %8300 = vmatprep.subr.mxu0 0.0
    %8301 = vmatpush2.msra.mxu0 0.0
    %8302 = vmatprep.mubr.f32.mxu0 0.0
    %v8303 = vand.u32 %v7897, 4294901760
    %8304 = vmatmul.mubr.f32.gmra.mxu0 %v8303
    %v8305 = vpop.f32.mrf.mxu0
    %v8306 = vadd.f32 %v8223, %v8305
    %v8307 = vpop.f32.mrf.mxu0
    %8308 = vdwg.mxu0
    %8309 = vmatprep.subr.mxu0 0.0
    %8310 = vmatpush1.msra.mxu0 0.0
    %8311 = vmatprep.subr.mxu0 0.0
    %8312 = vmatpush1.msra.mxu0 0.0
    %8313 = vmatprep.subr.mxu0 0.0
    %8314 = vmatpush1.msra.mxu0 0.0
    %8315 = vmatprep.subr.mxu0 0.0
    %8316 = vmatpush1.msra.mxu0 0.0
    %8317 = vmatprep.subr.mxu0 0.0
    %8318 = vmatpush1.msra.mxu0 0.0
    %8319 = vmatprep.subr.mxu0 0.0
    %8320 = vmatpush1.msra.mxu0 0.0
    %8321 = vmatprep.subr.mxu0 0.0
    %8322 = vmatpush1.msra.mxu0 0.0
    %8323 = vmatprep.subr.mxu0 0.0
    %8324 = vmatpush1.msra.mxu0 0.0
    %8325 = vmatprep.subr.mxu0 0.0
    %8326 = vmatpush1.msra.mxu0 0.0
    %8327 = vmatprep.subr.mxu0 0.0
    %8328 = vmatpush1.msra.mxu0 0.0
    %8329 = vmatprep.subr.mxu0 0.0
    %8330 = vmatpush1.msra.mxu0 0.0
    %8331 = vmatprep.subr.mxu0 0.0
    %8332 = vmatpush1.msra.mxu0 0.0
    %8333 = vmatprep.subr.mxu0 0.0
    %v8334 = vand.u32 %v4688, 4294901760
    %8335 = vmatpush1.msra.mxu0 %v8334
    %8336 = vmatprep.subr.mxu0 0.0
    %v8337 = vand.u32 %v4687, 4294901760
    %8338 = vmatpush1.msra.mxu0 %v8337
    %8339 = vmatprep.subr.mxu0 0.0
    %v8340 = vand.u32 %v4686, 4294901760
    %8341 = vmatpush1.msra.mxu0 %v8340
    %8342 = vmatprep.subr.mxu0 0.0
    %v8343 = vand.u32 %v4685, 4294901760
    %8344 = vmatpush1.msra.mxu0 %v8343
    %8345 = vmatprep.subr.mxu0 0.0
    %8346 = vmatpush2.msra.mxu0 0.0
    %8347 = vmatprep.subr.mxu0 0.0
    %8348 = vmatpush2.msra.mxu0 0.0
    %8349 = vmatprep.subr.mxu0 0.0
    %8350 = vmatpush2.msra.mxu0 0.0
    %8351 = vmatprep.subr.mxu0 0.0
    %8352 = vmatpush2.msra.mxu0 0.0
    %8353 = vmatprep.subr.mxu0 0.0
    %8354 = vmatpush2.msra.mxu0 0.0
    %8355 = vmatprep.subr.mxu0 0.0
    %8356 = vmatpush2.msra.mxu0 0.0
    %8357 = vmatprep.subr.mxu0 0.0
    %8358 = vmatpush2.msra.mxu0 0.0
    %8359 = vmatprep.subr.mxu0 0.0
    %8360 = vmatpush2.msra.mxu0 0.0
    %8361 = vmatprep.subr.mxu0 0.0
    %8362 = vmatpush2.msra.mxu0 0.0
    %8363 = vmatprep.subr.mxu0 0.0
    %8364 = vmatpush2.msra.mxu0 0.0
    %8365 = vmatprep.subr.mxu0 0.0
    %8366 = vmatpush2.msra.mxu0 0.0
    %8367 = vmatprep.subr.mxu0 0.0
    %8368 = vmatpush2.msra.mxu0 0.0
    %8369 = vmatprep.subr.mxu0 0.0
    %8370 = vmatpush2.msra.mxu0 0.0
    %8371 = vmatprep.subr.mxu0 0.0
    %8372 = vmatpush2.msra.mxu0 0.0
    %8373 = vmatprep.subr.mxu0 0.0
    %8374 = vmatpush2.msra.mxu0 0.0
    %8375 = vmatprep.subr.mxu0 0.0
    %8376 = vmatpush2.msra.mxu0 0.0
    %8377 = vmatprep.mubr.f32.mxu0 0.0
    %v8378 = vand.u32 %v7897, 4294901760
    %8379 = vmatmul.mubr.f32.gmra.mxu0 %v8378
    %v8380 = vpop.f32.mrf.mxu0
    %v8381 = vadd.f32 %v8306, %v8380
    %v8382 = vpop.f32.mrf.mxu0
    %8383 = vdwg.mxu0
    %v8385 = vrot.slane %v8381, 4
    %v8387 = vadd.f32 %v5317, %v8385
    %v8388 = vtanh.pop %v8387
    %v8389 = vadd.f32 %v8388, 1.0
    %v8390 = vmul.f32 %v8389, 0.5
    %v8392 = vrot.slane %v8390, 4
    %v8394 = vmul.f32 %v7887, %v8392
    %8396 = vrot.lane.b32.xlu0 %v8388, 64
    %v8397 = vpop.permute.xlu0 %8396
    %v8399 = vmul.f32 %v8390, %v8397
    %v8401 = vrot.slane %v8399, 4
    %8402 = vrot.lane.b32.xlu0 %v8401, 32
    %v8403 = vpop.permute.xlu0 %8402
    %v8405 = vadd.f32 %v8394, %v8403
    %v8406 = vtanh.pop %v8405
    %v8408 = vrot.slane %v8406, 4
    %8409 = vrot.lane.b32.xlu0 %v8408, 64
    %v8410 = vpop.permute.xlu0 %8409
    %v8412 = vmul.f32 %v8390, %v8410
    %v8414 = vrot.slane %v8412, 4
    %8415 = vrot.lane.b32.xlu0 %v8414, 32
    %v8416 = vpop.permute.xlu0 %8415
    %v8417 = vsel %vm556, %v8416, 0
    %8419 = vmatprep.subr.mxu0 0.0
    %8420 = vmatpush1.msra.mxu0 0.0
    %8421 = vmatprep.subr.mxu0 0.0
    %8422 = vmatpush1.msra.mxu0 0.0
    %8423 = vmatprep.subr.mxu0 0.0
    %8424 = vmatpush1.msra.mxu0 0.0
    %8425 = vmatprep.subr.mxu0 0.0
    %8426 = vmatpush1.msra.mxu0 0.0
    %8427 = vmatprep.subr.mxu0 0.0
    %8428 = vmatpush1.msra.mxu0 0.0
    %8429 = vmatprep.subr.mxu0 0.0
    %8430 = vmatpush1.msra.mxu0 0.0
    %8431 = vmatprep.subr.mxu0 0.0
    %8432 = vmatpush1.msra.mxu0 0.0
    %8433 = vmatprep.subr.mxu0 0.0
    %8434 = vmatpush1.msra.mxu0 0.0
    %8435 = vmatprep.subr.mxu0 0.0
    %8436 = vmatpush1.msra.mxu0 0.0
    %8437 = vmatprep.subr.mxu0 0.0
    %8438 = vmatpush1.msra.mxu0 0.0
    %8439 = vmatprep.subr.mxu0 0.0
    %8440 = vmatpush1.msra.mxu0 0.0
    %8441 = vmatprep.subr.mxu0 0.0
    %8442 = vmatpush1.msra.mxu0 0.0
    %8443 = vmatprep.subr.mxu0 0.0
    %v8444 = vand.u32 %v4688, 4294901760
    %8445 = vmatpush1.msra.mxu0 %v8444
    %8446 = vmatprep.subr.mxu0 0.0
    %v8447 = vand.u32 %v4687, 4294901760
    %8448 = vmatpush1.msra.mxu0 %v8447
    %8449 = vmatprep.subr.mxu0 0.0
    %v8450 = vand.u32 %v4686, 4294901760
    %8451 = vmatpush1.msra.mxu0 %v8450
    %8452 = vmatprep.subr.mxu0 0.0
    %v8453 = vand.u32 %v4685, 4294901760
    %8454 = vmatpush1.msra.mxu0 %v8453
    %8455 = vmatprep.subr.mxu0 0.0
    %8456 = vmatpush2.msra.mxu0 0.0
    %8457 = vmatprep.subr.mxu0 0.0
    %8458 = vmatpush2.msra.mxu0 0.0
    %8459 = vmatprep.subr.mxu0 0.0
    %8460 = vmatpush2.msra.mxu0 0.0
    %8461 = vmatprep.subr.mxu0 0.0
    %8462 = vmatpush2.msra.mxu0 0.0
    %8463 = vmatprep.subr.mxu0 0.0
    %8464 = vmatpush2.msra.mxu0 0.0
    %8465 = vmatprep.subr.mxu0 0.0
    %8466 = vmatpush2.msra.mxu0 0.0
    %8467 = vmatprep.subr.mxu0 0.0
    %8468 = vmatpush2.msra.mxu0 0.0
    %8469 = vmatprep.subr.mxu0 0.0
    %8470 = vmatpush2.msra.mxu0 0.0
    %8471 = vmatprep.subr.mxu0 0.0
    %8472 = vmatpush2.msra.mxu0 0.0
    %8473 = vmatprep.subr.mxu0 0.0
    %8474 = vmatpush2.msra.mxu0 0.0
    %8475 = vmatprep.subr.mxu0 0.0
    %8476 = vmatpush2.msra.mxu0 0.0
    %8477 = vmatprep.subr.mxu0 0.0
    %8478 = vmatpush2.msra.mxu0 0.0
    %8479 = vmatprep.subr.mxu0 0.0
    %8480 = vmatpush2.msra.mxu0 0.0
    %8481 = vmatprep.subr.mxu0 0.0
    %8482 = vmatpush2.msra.mxu0 0.0
    %8483 = vmatprep.subr.mxu0 0.0
    %8484 = vmatpush2.msra.mxu0 0.0
    %8485 = vmatprep.subr.mxu0 0.0
    %8486 = vmatpush2.msra.mxu0 0.0
    %8487 = vmatprep.mubr.f32.mxu0 0.0
    %v8488 = vand.u32 %v8417, 4294901760
    %v8489 = vsub.f32 %v8417, %v8488
    %v8490 = vand.u32 %v8489, 4294901760
    %v8491 = vsub.f32 %v8489, %v8490
    %v8492 = vand.u32 %v8491, 4294901760
    %8493 = vmatmul.mubr.f32.gmra.mxu0 %v8492
    %v8494 = vpop.f32.mrf.mxu0
    %v8495 = vadd.f32 0.0, %v8494
    %v8496 = vpop.f32.mrf.mxu0
    %8497 = vdwg.mxu0
    %8498 = vmatprep.subr.mxu0 0.0
    %8499 = vmatpush1.msra.mxu0 0.0
    %8500 = vmatprep.subr.mxu0 0.0
    %8501 = vmatpush1.msra.mxu0 0.0
    %8502 = vmatprep.subr.mxu0 0.0
    %8503 = vmatpush1.msra.mxu0 0.0
    %8504 = vmatprep.subr.mxu0 0.0
    %8505 = vmatpush1.msra.mxu0 0.0
    %8506 = vmatprep.subr.mxu0 0.0
    %8507 = vmatpush1.msra.mxu0 0.0
    %8508 = vmatprep.subr.mxu0 0.0
    %8509 = vmatpush1.msra.mxu0 0.0
    %8510 = vmatprep.subr.mxu0 0.0
    %8511 = vmatpush1.msra.mxu0 0.0
    %8512 = vmatprep.subr.mxu0 0.0
    %8513 = vmatpush1.msra.mxu0 0.0
    %8514 = vmatprep.subr.mxu0 0.0
    %8515 = vmatpush1.msra.mxu0 0.0
    %8516 = vmatprep.subr.mxu0 0.0
    %8517 = vmatpush1.msra.mxu0 0.0
    %8518 = vmatprep.subr.mxu0 0.0
    %8519 = vmatpush1.msra.mxu0 0.0
    %8520 = vmatprep.subr.mxu0 0.0
    %8521 = vmatpush1.msra.mxu0 0.0
    %8522 = vmatprep.subr.mxu0 0.0
    %v8523 = vand.u32 %v4688, 4294901760
    %v8524 = vsub.f32 %v4688, %v8523
    %v8525 = vand.u32 %v8524, 4294901760
    %v8526 = vsub.f32 %v8524, %v8525
    %v8527 = vand.u32 %v8526, 4294901760
    %8528 = vmatpush1.msra.mxu0 %v8527
    %8529 = vmatprep.subr.mxu0 0.0
    %v8530 = vand.u32 %v4687, 4294901760
    %v8531 = vsub.f32 %v4687, %v8530
    %v8532 = vand.u32 %v8531, 4294901760
    %v8533 = vsub.f32 %v8531, %v8532
    %v8534 = vand.u32 %v8533, 4294901760
    %8535 = vmatpush1.msra.mxu0 %v8534
    %8536 = vmatprep.subr.mxu0 0.0
    %v8537 = vand.u32 %v4686, 4294901760
    %v8538 = vsub.f32 %v4686, %v8537
    %v8539 = vand.u32 %v8538, 4294901760
    %v8540 = vsub.f32 %v8538, %v8539
    %v8541 = vand.u32 %v8540, 4294901760
    %8542 = vmatpush1.msra.mxu0 %v8541
    %8543 = vmatprep.subr.mxu0 0.0
    %v8544 = vand.u32 %v4685, 4294901760
    %v8545 = vsub.f32 %v4685, %v8544
    %v8546 = vand.u32 %v8545, 4294901760
    %v8547 = vsub.f32 %v8545, %v8546
    %v8548 = vand.u32 %v8547, 4294901760
    %8549 = vmatpush1.msra.mxu0 %v8548
    %8550 = vmatprep.subr.mxu0 0.0
    %8551 = vmatpush2.msra.mxu0 0.0
    %8552 = vmatprep.subr.mxu0 0.0
    %8553 = vmatpush2.msra.mxu0 0.0
    %8554 = vmatprep.subr.mxu0 0.0
    %8555 = vmatpush2.msra.mxu0 0.0
    %8556 = vmatprep.subr.mxu0 0.0
    %8557 = vmatpush2.msra.mxu0 0.0
    %8558 = vmatprep.subr.mxu0 0.0
    %8559 = vmatpush2.msra.mxu0 0.0
    %8560 = vmatprep.subr.mxu0 0.0
    %8561 = vmatpush2.msra.mxu0 0.0
    %8562 = vmatprep.subr.mxu0 0.0
    %8563 = vmatpush2.msra.mxu0 0.0
    %8564 = vmatprep.subr.mxu0 0.0
    %8565 = vmatpush2.msra.mxu0 0.0
    %8566 = vmatprep.subr.mxu0 0.0
    %8567 = vmatpush2.msra.mxu0 0.0
    %8568 = vmatprep.subr.mxu0 0.0
    %8569 = vmatpush2.msra.mxu0 0.0
    %8570 = vmatprep.subr.mxu0 0.0
    %8571 = vmatpush2.msra.mxu0 0.0
    %8572 = vmatprep.subr.mxu0 0.0
    %8573 = vmatpush2.msra.mxu0 0.0
    %8574 = vmatprep.subr.mxu0 0.0
    %8575 = vmatpush2.msra.mxu0 0.0
    %8576 = vmatprep.subr.mxu0 0.0
    %8577 = vmatpush2.msra.mxu0 0.0
    %8578 = vmatprep.subr.mxu0 0.0
    %8579 = vmatpush2.msra.mxu0 0.0
    %8580 = vmatprep.subr.mxu0 0.0
    %8581 = vmatpush2.msra.mxu0 0.0
    %8582 = vmatprep.mubr.f32.mxu0 0.0
    %v8583 = vand.u32 %v8417, 4294901760
    %8584 = vmatmul.mubr.f32.gmra.mxu0 %v8583
    %v8585 = vpop.f32.mrf.mxu0
    %v8586 = vadd.f32 %v8495, %v8585
    %v8587 = vpop.f32.mrf.mxu0
    %8588 = vdwg.mxu0
    %8589 = vmatprep.subr.mxu0 0.0
    %8590 = vmatpush1.msra.mxu0 0.0
    %8591 = vmatprep.subr.mxu0 0.0
    %8592 = vmatpush1.msra.mxu0 0.0
    %8593 = vmatprep.subr.mxu0 0.0
    %8594 = vmatpush1.msra.mxu0 0.0
    %8595 = vmatprep.subr.mxu0 0.0
    %8596 = vmatpush1.msra.mxu0 0.0
    %8597 = vmatprep.subr.mxu0 0.0
    %8598 = vmatpush1.msra.mxu0 0.0
    %8599 = vmatprep.subr.mxu0 0.0
    %8600 = vmatpush1.msra.mxu0 0.0
    %8601 = vmatprep.subr.mxu0 0.0
    %8602 = vmatpush1.msra.mxu0 0.0
    %8603 = vmatprep.subr.mxu0 0.0
    %8604 = vmatpush1.msra.mxu0 0.0
    %8605 = vmatprep.subr.mxu0 0.0
    %8606 = vmatpush1.msra.mxu0 0.0
    %8607 = vmatprep.subr.mxu0 0.0
    %8608 = vmatpush1.msra.mxu0 0.0
    %8609 = vmatprep.subr.mxu0 0.0
    %8610 = vmatpush1.msra.mxu0 0.0
    %8611 = vmatprep.subr.mxu0 0.0
    %8612 = vmatpush1.msra.mxu0 0.0
    %8613 = vmatprep.subr.mxu0 0.0
    %v8614 = vand.u32 %v4688, 4294901760
    %v8615 = vsub.f32 %v4688, %v8614
    %8616 = vmatpush1.msra.mxu0 %v8615
    %8617 = vmatprep.subr.mxu0 0.0
    %v8618 = vand.u32 %v4687, 4294901760
    %v8619 = vsub.f32 %v4687, %v8618
    %8620 = vmatpush1.msra.mxu0 %v8619
    %8621 = vmatprep.subr.mxu0 0.0
    %v8622 = vand.u32 %v4686, 4294901760
    %v8623 = vsub.f32 %v4686, %v8622
    %8624 = vmatpush1.msra.mxu0 %v8623
    %8625 = vmatprep.subr.mxu0 0.0
    %v8626 = vand.u32 %v4685, 4294901760
    %v8627 = vsub.f32 %v4685, %v8626
    %8628 = vmatpush1.msra.mxu0 %v8627
    %8629 = vmatprep.subr.mxu0 0.0
    %8630 = vmatpush2.msra.mxu0 0.0
    %8631 = vmatprep.subr.mxu0 0.0
    %8632 = vmatpush2.msra.mxu0 0.0
    %8633 = vmatprep.subr.mxu0 0.0
    %8634 = vmatpush2.msra.mxu0 0.0
    %8635 = vmatprep.subr.mxu0 0.0
    %8636 = vmatpush2.msra.mxu0 0.0
    %8637 = vmatprep.subr.mxu0 0.0
    %8638 = vmatpush2.msra.mxu0 0.0
    %8639 = vmatprep.subr.mxu0 0.0
    %8640 = vmatpush2.msra.mxu0 0.0
    %8641 = vmatprep.subr.mxu0 0.0
    %8642 = vmatpush2.msra.mxu0 0.0
    %8643 = vmatprep.subr.mxu0 0.0
    %8644 = vmatpush2.msra.mxu0 0.0
    %8645 = vmatprep.subr.mxu0 0.0
    %8646 = vmatpush2.msra.mxu0 0.0
    %8647 = vmatprep.subr.mxu0 0.0
    %8648 = vmatpush2.msra.mxu0 0.0
    %8649 = vmatprep.subr.mxu0 0.0
    %8650 = vmatpush2.msra.mxu0 0.0
    %8651 = vmatprep.subr.mxu0 0.0
    %8652 = vmatpush2.msra.mxu0 0.0
    %8653 = vmatprep.subr.mxu0 0.0
    %8654 = vmatpush2.msra.mxu0 0.0
    %8655 = vmatprep.subr.mxu0 0.0
    %8656 = vmatpush2.msra.mxu0 0.0
    %8657 = vmatprep.subr.mxu0 0.0
    %8658 = vmatpush2.msra.mxu0 0.0
    %8659 = vmatprep.subr.mxu0 0.0
    %8660 = vmatpush2.msra.mxu0 0.0
    %8661 = vmatprep.mubr.f32.mxu0 0.0
    %v8662 = vand.u32 %v8417, 4294901760
    %v8663 = vsub.f32 %v8417, %v8662
    %8664 = vmatmul.mubr.f32.gmra.mxu0 %v8663
    %v8665 = vpop.f32.mrf.mxu0
    %v8666 = vadd.f32 %v8586, %v8665
    %v8667 = vpop.f32.mrf.mxu0
    %8668 = vdwg.mxu0
    %8669 = vmatprep.subr.mxu0 0.0
    %8670 = vmatpush1.msra.mxu0 0.0
    %8671 = vmatprep.subr.mxu0 0.0
    %8672 = vmatpush1.msra.mxu0 0.0
    %8673 = vmatprep.subr.mxu0 0.0
    %8674 = vmatpush1.msra.mxu0 0.0
    %8675 = vmatprep.subr.mxu0 0.0
    %8676 = vmatpush1.msra.mxu0 0.0
    %8677 = vmatprep.subr.mxu0 0.0
    %8678 = vmatpush1.msra.mxu0 0.0
    %8679 = vmatprep.subr.mxu0 0.0
    %8680 = vmatpush1.msra.mxu0 0.0
    %8681 = vmatprep.subr.mxu0 0.0
    %8682 = vmatpush1.msra.mxu0 0.0
    %8683 = vmatprep.subr.mxu0 0.0
    %8684 = vmatpush1.msra.mxu0 0.0
    %8685 = vmatprep.subr.mxu0 0.0
    %8686 = vmatpush1.msra.mxu0 0.0
    %8687 = vmatprep.subr.mxu0 0.0
    %8688 = vmatpush1.msra.mxu0 0.0
    %8689 = vmatprep.subr.mxu0 0.0
    %8690 = vmatpush1.msra.mxu0 0.0
    %8691 = vmatprep.subr.mxu0 0.0
    %8692 = vmatpush1.msra.mxu0 0.0
    %8693 = vmatprep.subr.mxu0 0.0
    %v8694 = vand.u32 %v4688, 4294901760
    %8695 = vmatpush1.msra.mxu0 %v8694
    %8696 = vmatprep.subr.mxu0 0.0
    %v8697 = vand.u32 %v4687, 4294901760
    %8698 = vmatpush1.msra.mxu0 %v8697
    %8699 = vmatprep.subr.mxu0 0.0
    %v8700 = vand.u32 %v4686, 4294901760
    %8701 = vmatpush1.msra.mxu0 %v8700
    %8702 = vmatprep.subr.mxu0 0.0
    %v8703 = vand.u32 %v4685, 4294901760
    %8704 = vmatpush1.msra.mxu0 %v8703
    %8705 = vmatprep.subr.mxu0 0.0
    %8706 = vmatpush2.msra.mxu0 0.0
    %8707 = vmatprep.subr.mxu0 0.0
    %8708 = vmatpush2.msra.mxu0 0.0
    %8709 = vmatprep.subr.mxu0 0.0
    %8710 = vmatpush2.msra.mxu0 0.0
    %8711 = vmatprep.subr.mxu0 0.0
    %8712 = vmatpush2.msra.mxu0 0.0
    %8713 = vmatprep.subr.mxu0 0.0
    %8714 = vmatpush2.msra.mxu0 0.0
    %8715 = vmatprep.subr.mxu0 0.0
    %8716 = vmatpush2.msra.mxu0 0.0
    %8717 = vmatprep.subr.mxu0 0.0
    %8718 = vmatpush2.msra.mxu0 0.0
    %8719 = vmatprep.subr.mxu0 0.0
    %8720 = vmatpush2.msra.mxu0 0.0
    %8721 = vmatprep.subr.mxu0 0.0
    %8722 = vmatpush2.msra.mxu0 0.0
    %8723 = vmatprep.subr.mxu0 0.0
    %8724 = vmatpush2.msra.mxu0 0.0
    %8725 = vmatprep.subr.mxu0 0.0
    %8726 = vmatpush2.msra.mxu0 0.0
    %8727 = vmatprep.subr.mxu0 0.0
    %8728 = vmatpush2.msra.mxu0 0.0
    %8729 = vmatprep.subr.mxu0 0.0
    %8730 = vmatpush2.msra.mxu0 0.0
    %8731 = vmatprep.subr.mxu0 0.0
    %8732 = vmatpush2.msra.mxu0 0.0
    %8733 = vmatprep.subr.mxu0 0.0
    %8734 = vmatpush2.msra.mxu0 0.0
    %8735 = vmatprep.subr.mxu0 0.0
    %8736 = vmatpush2.msra.mxu0 0.0
    %8737 = vmatprep.mubr.f32.mxu0 0.0
    %v8738 = vand.u32 %v8417, 4294901760
    %v8739 = vsub.f32 %v8417, %v8738
    %v8740 = vand.u32 %v8739, 4294901760
    %8741 = vmatmul.mubr.f32.gmra.mxu0 %v8740
    %v8742 = vpop.f32.mrf.mxu0
    %v8743 = vadd.f32 %v8666, %v8742
    %v8744 = vpop.f32.mrf.mxu0
    %8745 = vdwg.mxu0
    %8746 = vmatprep.subr.mxu0 0.0
    %8747 = vmatpush1.msra.mxu0 0.0
    %8748 = vmatprep.subr.mxu0 0.0
    %8749 = vmatpush1.msra.mxu0 0.0
    %8750 = vmatprep.subr.mxu0 0.0
    %8751 = vmatpush1.msra.mxu0 0.0
    %8752 = vmatprep.subr.mxu0 0.0
    %8753 = vmatpush1.msra.mxu0 0.0
    %8754 = vmatprep.subr.mxu0 0.0
    %8755 = vmatpush1.msra.mxu0 0.0
    %8756 = vmatprep.subr.mxu0 0.0
    %8757 = vmatpush1.msra.mxu0 0.0
    %8758 = vmatprep.subr.mxu0 0.0
    %8759 = vmatpush1.msra.mxu0 0.0
    %8760 = vmatprep.subr.mxu0 0.0
    %8761 = vmatpush1.msra.mxu0 0.0
    %8762 = vmatprep.subr.mxu0 0.0
    %8763 = vmatpush1.msra.mxu0 0.0
    %8764 = vmatprep.subr.mxu0 0.0
    %8765 = vmatpush1.msra.mxu0 0.0
    %8766 = vmatprep.subr.mxu0 0.0
    %8767 = vmatpush1.msra.mxu0 0.0
    %8768 = vmatprep.subr.mxu0 0.0
    %8769 = vmatpush1.msra.mxu0 0.0
    %8770 = vmatprep.subr.mxu0 0.0
    %v8771 = vand.u32 %v4688, 4294901760
    %v8772 = vsub.f32 %v4688, %v8771
    %v8773 = vand.u32 %v8772, 4294901760
    %8774 = vmatpush1.msra.mxu0 %v8773
    %8775 = vmatprep.subr.mxu0 0.0
    %v8776 = vand.u32 %v4687, 4294901760
    %v8777 = vsub.f32 %v4687, %v8776
    %v8778 = vand.u32 %v8777, 4294901760
    %8779 = vmatpush1.msra.mxu0 %v8778
    %8780 = vmatprep.subr.mxu0 0.0
    %v8781 = vand.u32 %v4686, 4294901760
    %v8782 = vsub.f32 %v4686, %v8781
    %v8783 = vand.u32 %v8782, 4294901760
    %8784 = vmatpush1.msra.mxu0 %v8783
    %8785 = vmatprep.subr.mxu0 0.0
    %v8786 = vand.u32 %v4685, 4294901760
    %v8787 = vsub.f32 %v4685, %v8786
    %v8788 = vand.u32 %v8787, 4294901760
    %8789 = vmatpush1.msra.mxu0 %v8788
    %8790 = vmatprep.subr.mxu0 0.0
    %8791 = vmatpush2.msra.mxu0 0.0
    %8792 = vmatprep.subr.mxu0 0.0
    %8793 = vmatpush2.msra.mxu0 0.0
    %8794 = vmatprep.subr.mxu0 0.0
    %8795 = vmatpush2.msra.mxu0 0.0
    %8796 = vmatprep.subr.mxu0 0.0
    %8797 = vmatpush2.msra.mxu0 0.0
    %8798 = vmatprep.subr.mxu0 0.0
    %8799 = vmatpush2.msra.mxu0 0.0
    %8800 = vmatprep.subr.mxu0 0.0
    %8801 = vmatpush2.msra.mxu0 0.0
    %8802 = vmatprep.subr.mxu0 0.0
    %8803 = vmatpush2.msra.mxu0 0.0
    %8804 = vmatprep.subr.mxu0 0.0
    %8805 = vmatpush2.msra.mxu0 0.0
    %8806 = vmatprep.subr.mxu0 0.0
    %8807 = vmatpush2.msra.mxu0 0.0
    %8808 = vmatprep.subr.mxu0 0.0
    %8809 = vmatpush2.msra.mxu0 0.0
    %8810 = vmatprep.subr.mxu0 0.0
    %8811 = vmatpush2.msra.mxu0 0.0
    %8812 = vmatprep.subr.mxu0 0.0
    %8813 = vmatpush2.msra.mxu0 0.0
    %8814 = vmatprep.subr.mxu0 0.0
    %8815 = vmatpush2.msra.mxu0 0.0
    %8816 = vmatprep.subr.mxu0 0.0
    %8817 = vmatpush2.msra.mxu0 0.0
    %8818 = vmatprep.subr.mxu0 0.0
    %8819 = vmatpush2.msra.mxu0 0.0
    %8820 = vmatprep.subr.mxu0 0.0
    %8821 = vmatpush2.msra.mxu0 0.0
    %8822 = vmatprep.mubr.f32.mxu0 0.0
    %v8823 = vand.u32 %v8417, 4294901760
    %8824 = vmatmul.mubr.f32.gmra.mxu0 %v8823
    %v8825 = vpop.f32.mrf.mxu0
    %v8826 = vadd.f32 %v8743, %v8825
    %v8827 = vpop.f32.mrf.mxu0
    %8828 = vdwg.mxu0
    %8829 = vmatprep.subr.mxu0 0.0
    %8830 = vmatpush1.msra.mxu0 0.0
    %8831 = vmatprep.subr.mxu0 0.0
    %8832 = vmatpush1.msra.mxu0 0.0
    %8833 = vmatprep.subr.mxu0 0.0
    %8834 = vmatpush1.msra.mxu0 0.0
    %8835 = vmatprep.subr.mxu0 0.0
    %8836 = vmatpush1.msra.mxu0 0.0
    %8837 = vmatprep.subr.mxu0 0.0
    %8838 = vmatpush1.msra.mxu0 0.0
    %8839 = vmatprep.subr.mxu0 0.0
    %8840 = vmatpush1.msra.mxu0 0.0
    %8841 = vmatprep.subr.mxu0 0.0
    %8842 = vmatpush1.msra.mxu0 0.0
    %8843 = vmatprep.subr.mxu0 0.0
    %8844 = vmatpush1.msra.mxu0 0.0
    %8845 = vmatprep.subr.mxu0 0.0
    %8846 = vmatpush1.msra.mxu0 0.0
    %8847 = vmatprep.subr.mxu0 0.0
    %8848 = vmatpush1.msra.mxu0 0.0
    %8849 = vmatprep.subr.mxu0 0.0
    %8850 = vmatpush1.msra.mxu0 0.0
    %8851 = vmatprep.subr.mxu0 0.0
    %8852 = vmatpush1.msra.mxu0 0.0
    %8853 = vmatprep.subr.mxu0 0.0
    %v8854 = vand.u32 %v4688, 4294901760
    %8855 = vmatpush1.msra.mxu0 %v8854
    %8856 = vmatprep.subr.mxu0 0.0
    %v8857 = vand.u32 %v4687, 4294901760
    %8858 = vmatpush1.msra.mxu0 %v8857
    %8859 = vmatprep.subr.mxu0 0.0
    %v8860 = vand.u32 %v4686, 4294901760
    %8861 = vmatpush1.msra.mxu0 %v8860
    %8862 = vmatprep.subr.mxu0 0.0
    %v8863 = vand.u32 %v4685, 4294901760
    %8864 = vmatpush1.msra.mxu0 %v8863
    %8865 = vmatprep.subr.mxu0 0.0
    %8866 = vmatpush2.msra.mxu0 0.0
    %8867 = vmatprep.subr.mxu0 0.0
    %8868 = vmatpush2.msra.mxu0 0.0
    %8869 = vmatprep.subr.mxu0 0.0
    %8870 = vmatpush2.msra.mxu0 0.0
    %8871 = vmatprep.subr.mxu0 0.0
    %8872 = vmatpush2.msra.mxu0 0.0
    %8873 = vmatprep.subr.mxu0 0.0
    %8874 = vmatpush2.msra.mxu0 0.0
    %8875 = vmatprep.subr.mxu0 0.0
    %8876 = vmatpush2.msra.mxu0 0.0
    %8877 = vmatprep.subr.mxu0 0.0
    %8878 = vmatpush2.msra.mxu0 0.0
    %8879 = vmatprep.subr.mxu0 0.0
    %8880 = vmatpush2.msra.mxu0 0.0
    %8881 = vmatprep.subr.mxu0 0.0
    %8882 = vmatpush2.msra.mxu0 0.0
    %8883 = vmatprep.subr.mxu0 0.0
    %8884 = vmatpush2.msra.mxu0 0.0
    %8885 = vmatprep.subr.mxu0 0.0
    %8886 = vmatpush2.msra.mxu0 0.0
    %8887 = vmatprep.subr.mxu0 0.0
    %8888 = vmatpush2.msra.mxu0 0.0
    %8889 = vmatprep.subr.mxu0 0.0
    %8890 = vmatpush2.msra.mxu0 0.0
    %8891 = vmatprep.subr.mxu0 0.0
    %8892 = vmatpush2.msra.mxu0 0.0
    %8893 = vmatprep.subr.mxu0 0.0
    %8894 = vmatpush2.msra.mxu0 0.0
    %8895 = vmatprep.subr.mxu0 0.0
    %8896 = vmatpush2.msra.mxu0 0.0
    %8897 = vmatprep.mubr.f32.mxu0 0.0
    %v8898 = vand.u32 %v8417, 4294901760
    %8899 = vmatmul.mubr.f32.gmra.mxu0 %v8898
    %v8900 = vpop.f32.mrf.mxu0
    %v8901 = vadd.f32 %v8826, %v8900
    %v8902 = vpop.f32.mrf.mxu0
    %8903 = vdwg.mxu0
    %v8904 = vadd.f32 %v5323, %v8901
    %v8905 = vtanh.pop %v8904
    %v8906 = vadd.f32 %v8905, 1.0
    %v8907 = vmul.f32 %v8906, 0.5
    %v8908 = vmul.f32 %v8405, %v8907
    %8910 = vrot.lane.b32.xlu0 %v8905, 64
    %v8911 = vpop.permute.xlu0 %8910
    %v8913 = vmul.f32 %v8907, %v8911
    %8915 = vrot.lane.b32.xlu0 %v8913, 32
    %v8916 = vpop.permute.xlu0 %8915
    %v8918 = vadd.f32 %v8908, %v8916
    %v8919 = vtanh.pop %v8918
    %8921 = vrot.lane.b32.xlu0 %v8919, 64
    %v8922 = vpop.permute.xlu0 %8921
    %v8924 = vmul.f32 %v8907, %v8922
    %8926 = vrot.lane.b32.xlu0 %v8924, 32
    %v8927 = vpop.permute.xlu0 %8926
    %v8928 = vsel %vm556, %v8927, 0
    %8930 = vmatprep.subr.mxu0 0.0
    %8931 = vmatpush1.msra.mxu0 0.0
    %8932 = vmatprep.subr.mxu0 0.0
    %8933 = vmatpush1.msra.mxu0 0.0
    %8934 = vmatprep.subr.mxu0 0.0
    %8935 = vmatpush1.msra.mxu0 0.0
    %8936 = vmatprep.subr.mxu0 0.0
    %8937 = vmatpush1.msra.mxu0 0.0
    %8938 = vmatprep.subr.mxu0 0.0
    %8939 = vmatpush1.msra.mxu0 0.0
    %8940 = vmatprep.subr.mxu0 0.0
    %8941 = vmatpush1.msra.mxu0 0.0
    %8942 = vmatprep.subr.mxu0 0.0
    %8943 = vmatpush1.msra.mxu0 0.0
    %8944 = vmatprep.subr.mxu0 0.0
    %8945 = vmatpush1.msra.mxu0 0.0
    %8946 = vmatprep.subr.mxu0 0.0
    %8947 = vmatpush1.msra.mxu0 0.0
    %8948 = vmatprep.subr.mxu0 0.0
    %8949 = vmatpush1.msra.mxu0 0.0
    %8950 = vmatprep.subr.mxu0 0.0
    %8951 = vmatpush1.msra.mxu0 0.0
    %8952 = vmatprep.subr.mxu0 0.0
    %8953 = vmatpush1.msra.mxu0 0.0
    %8954 = vmatprep.subr.mxu0 0.0
    %v8955 = vand.u32 %v4688, 4294901760
    %8956 = vmatpush1.msra.mxu0 %v8955
    %8957 = vmatprep.subr.mxu0 0.0
    %v8958 = vand.u32 %v4687, 4294901760
    %8959 = vmatpush1.msra.mxu0 %v8958
    %8960 = vmatprep.subr.mxu0 0.0
    %v8961 = vand.u32 %v4686, 4294901760
    %8962 = vmatpush1.msra.mxu0 %v8961
    %8963 = vmatprep.subr.mxu0 0.0
    %v8964 = vand.u32 %v4685, 4294901760
    %8965 = vmatpush1.msra.mxu0 %v8964
    %8966 = vmatprep.subr.mxu0 0.0
    %8967 = vmatpush2.msra.mxu0 0.0
    %8968 = vmatprep.subr.mxu0 0.0
    %8969 = vmatpush2.msra.mxu0 0.0
    %8970 = vmatprep.subr.mxu0 0.0
    %8971 = vmatpush2.msra.mxu0 0.0
    %8972 = vmatprep.subr.mxu0 0.0
    %8973 = vmatpush2.msra.mxu0 0.0
    %8974 = vmatprep.subr.mxu0 0.0
    %8975 = vmatpush2.msra.mxu0 0.0
    %8976 = vmatprep.subr.mxu0 0.0
    %8977 = vmatpush2.msra.mxu0 0.0
    %8978 = vmatprep.subr.mxu0 0.0
    %8979 = vmatpush2.msra.mxu0 0.0
    %8980 = vmatprep.subr.mxu0 0.0
    %8981 = vmatpush2.msra.mxu0 0.0
    %8982 = vmatprep.subr.mxu0 0.0
    %8983 = vmatpush2.msra.mxu0 0.0
    %8984 = vmatprep.subr.mxu0 0.0
    %8985 = vmatpush2.msra.mxu0 0.0
    %8986 = vmatprep.subr.mxu0 0.0
    %8987 = vmatpush2.msra.mxu0 0.0
    %8988 = vmatprep.subr.mxu0 0.0
    %8989 = vmatpush2.msra.mxu0 0.0
    %8990 = vmatprep.subr.mxu0 0.0
    %8991 = vmatpush2.msra.mxu0 0.0
    %8992 = vmatprep.subr.mxu0 0.0
    %8993 = vmatpush2.msra.mxu0 0.0
    %8994 = vmatprep.subr.mxu0 0.0
    %8995 = vmatpush2.msra.mxu0 0.0
    %8996 = vmatprep.subr.mxu0 0.0
    %8997 = vmatpush2.msra.mxu0 0.0
    %8998 = vmatprep.mubr.f32.mxu0 0.0
    %v8999 = vand.u32 %v8928, 4294901760
    %v9000 = vsub.f32 %v8928, %v8999
    %v9001 = vand.u32 %v9000, 4294901760
    %v9002 = vsub.f32 %v9000, %v9001
    %v9003 = vand.u32 %v9002, 4294901760
    %9004 = vmatmul.mubr.f32.gmra.mxu0 %v9003
    %v9005 = vpop.f32.mrf.mxu0
    %v9006 = vadd.f32 0.0, %v9005
    %v9007 = vpop.f32.mrf.mxu0
    %9008 = vdwg.mxu0
    %9009 = vmatprep.subr.mxu0 0.0
    %9010 = vmatpush1.msra.mxu0 0.0
    %9011 = vmatprep.subr.mxu0 0.0
    %9012 = vmatpush1.msra.mxu0 0.0
    %9013 = vmatprep.subr.mxu0 0.0
    %9014 = vmatpush1.msra.mxu0 0.0
    %9015 = vmatprep.subr.mxu0 0.0
    %9016 = vmatpush1.msra.mxu0 0.0
    %9017 = vmatprep.subr.mxu0 0.0
    %9018 = vmatpush1.msra.mxu0 0.0
    %9019 = vmatprep.subr.mxu0 0.0
    %9020 = vmatpush1.msra.mxu0 0.0
    %9021 = vmatprep.subr.mxu0 0.0
    %9022 = vmatpush1.msra.mxu0 0.0
    %9023 = vmatprep.subr.mxu0 0.0
    %9024 = vmatpush1.msra.mxu0 0.0
    %9025 = vmatprep.subr.mxu0 0.0
    %9026 = vmatpush1.msra.mxu0 0.0
    %9027 = vmatprep.subr.mxu0 0.0
    %9028 = vmatpush1.msra.mxu0 0.0
    %9029 = vmatprep.subr.mxu0 0.0
    %9030 = vmatpush1.msra.mxu0 0.0
    %9031 = vmatprep.subr.mxu0 0.0
    %9032 = vmatpush1.msra.mxu0 0.0
    %9033 = vmatprep.subr.mxu0 0.0
    %v9034 = vand.u32 %v4688, 4294901760
    %v9035 = vsub.f32 %v4688, %v9034
    %v9036 = vand.u32 %v9035, 4294901760
    %v9037 = vsub.f32 %v9035, %v9036
    %v9038 = vand.u32 %v9037, 4294901760
    %9039 = vmatpush1.msra.mxu0 %v9038
    %9040 = vmatprep.subr.mxu0 0.0
    %v9041 = vand.u32 %v4687, 4294901760
    %v9042 = vsub.f32 %v4687, %v9041
    %v9043 = vand.u32 %v9042, 4294901760
    %v9044 = vsub.f32 %v9042, %v9043
    %v9045 = vand.u32 %v9044, 4294901760
    %9046 = vmatpush1.msra.mxu0 %v9045
    %9047 = vmatprep.subr.mxu0 0.0
    %v9048 = vand.u32 %v4686, 4294901760
    %v9049 = vsub.f32 %v4686, %v9048
    %v9050 = vand.u32 %v9049, 4294901760
    %v9051 = vsub.f32 %v9049, %v9050
    %v9052 = vand.u32 %v9051, 4294901760
    %9053 = vmatpush1.msra.mxu0 %v9052
    %9054 = vmatprep.subr.mxu0 0.0
    %v9055 = vand.u32 %v4685, 4294901760
    %v9056 = vsub.f32 %v4685, %v9055
    %v9057 = vand.u32 %v9056, 4294901760
    %v9058 = vsub.f32 %v9056, %v9057
    %v9059 = vand.u32 %v9058, 4294901760
    %9060 = vmatpush1.msra.mxu0 %v9059
    %9061 = vmatprep.subr.mxu0 0.0
    %9062 = vmatpush2.msra.mxu0 0.0
    %9063 = vmatprep.subr.mxu0 0.0
    %9064 = vmatpush2.msra.mxu0 0.0
    %9065 = vmatprep.subr.mxu0 0.0
    %9066 = vmatpush2.msra.mxu0 0.0
    %9067 = vmatprep.subr.mxu0 0.0
    %9068 = vmatpush2.msra.mxu0 0.0
    %9069 = vmatprep.subr.mxu0 0.0
    %9070 = vmatpush2.msra.mxu0 0.0
    %9071 = vmatprep.subr.mxu0 0.0
    %9072 = vmatpush2.msra.mxu0 0.0
    %9073 = vmatprep.subr.mxu0 0.0
    %9074 = vmatpush2.msra.mxu0 0.0
    %9075 = vmatprep.subr.mxu0 0.0
    %9076 = vmatpush2.msra.mxu0 0.0
    %9077 = vmatprep.subr.mxu0 0.0
    %9078 = vmatpush2.msra.mxu0 0.0
    %9079 = vmatprep.subr.mxu0 0.0
    %9080 = vmatpush2.msra.mxu0 0.0
    %9081 = vmatprep.subr.mxu0 0.0
    %9082 = vmatpush2.msra.mxu0 0.0
    %9083 = vmatprep.subr.mxu0 0.0
    %9084 = vmatpush2.msra.mxu0 0.0
    %9085 = vmatprep.subr.mxu0 0.0
    %9086 = vmatpush2.msra.mxu0 0.0
    %9087 = vmatprep.subr.mxu0 0.0
    %9088 = vmatpush2.msra.mxu0 0.0
    %9089 = vmatprep.subr.mxu0 0.0
    %9090 = vmatpush2.msra.mxu0 0.0
    %9091 = vmatprep.subr.mxu0 0.0
    %9092 = vmatpush2.msra.mxu0 0.0
    %9093 = vmatprep.mubr.f32.mxu0 0.0
    %v9094 = vand.u32 %v8928, 4294901760
    %9095 = vmatmul.mubr.f32.gmra.mxu0 %v9094
    %v9096 = vpop.f32.mrf.mxu0
    %v9097 = vadd.f32 %v9006, %v9096
    %v9098 = vpop.f32.mrf.mxu0
    %9099 = vdwg.mxu0
    %9100 = vmatprep.subr.mxu0 0.0
    %9101 = vmatpush1.msra.mxu0 0.0
    %9102 = vmatprep.subr.mxu0 0.0
    %9103 = vmatpush1.msra.mxu0 0.0
    %9104 = vmatprep.subr.mxu0 0.0
    %9105 = vmatpush1.msra.mxu0 0.0
    %9106 = vmatprep.subr.mxu0 0.0
    %9107 = vmatpush1.msra.mxu0 0.0
    %9108 = vmatprep.subr.mxu0 0.0
    %9109 = vmatpush1.msra.mxu0 0.0
    %9110 = vmatprep.subr.mxu0 0.0
    %9111 = vmatpush1.msra.mxu0 0.0
    %9112 = vmatprep.subr.mxu0 0.0
    %9113 = vmatpush1.msra.mxu0 0.0
    %9114 = vmatprep.subr.mxu0 0.0
    %9115 = vmatpush1.msra.mxu0 0.0
    %9116 = vmatprep.subr.mxu0 0.0
    %9117 = vmatpush1.msra.mxu0 0.0
    %9118 = vmatprep.subr.mxu0 0.0
    %9119 = vmatpush1.msra.mxu0 0.0
    %9120 = vmatprep.subr.mxu0 0.0
    %9121 = vmatpush1.msra.mxu0 0.0
    %9122 = vmatprep.subr.mxu0 0.0
    %9123 = vmatpush1.msra.mxu0 0.0
    %9124 = vmatprep.subr.mxu0 0.0
    %v9125 = vand.u32 %v4688, 4294901760
    %v9126 = vsub.f32 %v4688, %v9125
    %9127 = vmatpush1.msra.mxu0 %v9126
    %9128 = vmatprep.subr.mxu0 0.0
    %v9129 = vand.u32 %v4687, 4294901760
    %v9130 = vsub.f32 %v4687, %v9129
    %9131 = vmatpush1.msra.mxu0 %v9130
    %9132 = vmatprep.subr.mxu0 0.0
    %v9133 = vand.u32 %v4686, 4294901760
    %v9134 = vsub.f32 %v4686, %v9133
    %9135 = vmatpush1.msra.mxu0 %v9134
    %9136 = vmatprep.subr.mxu0 0.0
    %v9137 = vand.u32 %v4685, 4294901760
    %v9138 = vsub.f32 %v4685, %v9137
    %9139 = vmatpush1.msra.mxu0 %v9138
    %9140 = vmatprep.subr.mxu0 0.0
    %9141 = vmatpush2.msra.mxu0 0.0
    %9142 = vmatprep.subr.mxu0 0.0
    %9143 = vmatpush2.msra.mxu0 0.0
    %9144 = vmatprep.subr.mxu0 0.0
    %9145 = vmatpush2.msra.mxu0 0.0
    %9146 = vmatprep.subr.mxu0 0.0
    %9147 = vmatpush2.msra.mxu0 0.0
    %9148 = vmatprep.subr.mxu0 0.0
    %9149 = vmatpush2.msra.mxu0 0.0
    %9150 = vmatprep.subr.mxu0 0.0
    %9151 = vmatpush2.msra.mxu0 0.0
    %9152 = vmatprep.subr.mxu0 0.0
    %9153 = vmatpush2.msra.mxu0 0.0
    %9154 = vmatprep.subr.mxu0 0.0
    %9155 = vmatpush2.msra.mxu0 0.0
    %9156 = vmatprep.subr.mxu0 0.0
    %9157 = vmatpush2.msra.mxu0 0.0
    %9158 = vmatprep.subr.mxu0 0.0
    %9159 = vmatpush2.msra.mxu0 0.0
    %9160 = vmatprep.subr.mxu0 0.0
    %9161 = vmatpush2.msra.mxu0 0.0
    %9162 = vmatprep.subr.mxu0 0.0
    %9163 = vmatpush2.msra.mxu0 0.0
    %9164 = vmatprep.subr.mxu0 0.0
    %9165 = vmatpush2.msra.mxu0 0.0
    %9166 = vmatprep.subr.mxu0 0.0
    %9167 = vmatpush2.msra.mxu0 0.0
    %9168 = vmatprep.subr.mxu0 0.0
    %9169 = vmatpush2.msra.mxu0 0.0
    %9170 = vmatprep.subr.mxu0 0.0
    %9171 = vmatpush2.msra.mxu0 0.0
    %9172 = vmatprep.mubr.f32.mxu0 0.0
    %v9173 = vand.u32 %v8928, 4294901760
    %v9174 = vsub.f32 %v8928, %v9173
    %9175 = vmatmul.mubr.f32.gmra.mxu0 %v9174
    %v9176 = vpop.f32.mrf.mxu0
    %v9177 = vadd.f32 %v9097, %v9176
    %v9178 = vpop.f32.mrf.mxu0
    %9179 = vdwg.mxu0
    %9180 = vmatprep.subr.mxu0 0.0
    %9181 = vmatpush1.msra.mxu0 0.0
    %9182 = vmatprep.subr.mxu0 0.0
    %9183 = vmatpush1.msra.mxu0 0.0
    %9184 = vmatprep.subr.mxu0 0.0
    %9185 = vmatpush1.msra.mxu0 0.0
    %9186 = vmatprep.subr.mxu0 0.0
    %9187 = vmatpush1.msra.mxu0 0.0
    %9188 = vmatprep.subr.mxu0 0.0
    %9189 = vmatpush1.msra.mxu0 0.0
    %9190 = vmatprep.subr.mxu0 0.0
    %9191 = vmatpush1.msra.mxu0 0.0
    %9192 = vmatprep.subr.mxu0 0.0
    %9193 = vmatpush1.msra.mxu0 0.0
    %9194 = vmatprep.subr.mxu0 0.0
    %9195 = vmatpush1.msra.mxu0 0.0
    %9196 = vmatprep.subr.mxu0 0.0
    %9197 = vmatpush1.msra.mxu0 0.0
    %9198 = vmatprep.subr.mxu0 0.0
    %9199 = vmatpush1.msra.mxu0 0.0
    %9200 = vmatprep.subr.mxu0 0.0
    %9201 = vmatpush1.msra.mxu0 0.0
    %9202 = vmatprep.subr.mxu0 0.0
    %9203 = vmatpush1.msra.mxu0 0.0
    %9204 = vmatprep.subr.mxu0 0.0
    %v9205 = vand.u32 %v4688, 4294901760
    %9206 = vmatpush1.msra.mxu0 %v9205
    %9207 = vmatprep.subr.mxu0 0.0
    %v9208 = vand.u32 %v4687, 4294901760
    %9209 = vmatpush1.msra.mxu0 %v9208
    %9210 = vmatprep.subr.mxu0 0.0
    %v9211 = vand.u32 %v4686, 4294901760
    %9212 = vmatpush1.msra.mxu0 %v9211
    %9213 = vmatprep.subr.mxu0 0.0
    %v9214 = vand.u32 %v4685, 4294901760
    %9215 = vmatpush1.msra.mxu0 %v9214
    %9216 = vmatprep.subr.mxu0 0.0
    %9217 = vmatpush2.msra.mxu0 0.0
    %9218 = vmatprep.subr.mxu0 0.0
    %9219 = vmatpush2.msra.mxu0 0.0
    %9220 = vmatprep.subr.mxu0 0.0
    %9221 = vmatpush2.msra.mxu0 0.0
    %9222 = vmatprep.subr.mxu0 0.0
    %9223 = vmatpush2.msra.mxu0 0.0
    %9224 = vmatprep.subr.mxu0 0.0
    %9225 = vmatpush2.msra.mxu0 0.0
    %9226 = vmatprep.subr.mxu0 0.0
    %9227 = vmatpush2.msra.mxu0 0.0
    %9228 = vmatprep.subr.mxu0 0.0
    %9229 = vmatpush2.msra.mxu0 0.0
    %9230 = vmatprep.subr.mxu0 0.0
    %9231 = vmatpush2.msra.mxu0 0.0
    %9232 = vmatprep.subr.mxu0 0.0
    %9233 = vmatpush2.msra.mxu0 0.0
    %9234 = vmatprep.subr.mxu0 0.0
    %9235 = vmatpush2.msra.mxu0 0.0
    %9236 = vmatprep.subr.mxu0 0.0
    %9237 = vmatpush2.msra.mxu0 0.0
    %9238 = vmatprep.subr.mxu0 0.0
    %9239 = vmatpush2.msra.mxu0 0.0
    %9240 = vmatprep.subr.mxu0 0.0
    %9241 = vmatpush2.msra.mxu0 0.0
    %9242 = vmatprep.subr.mxu0 0.0
    %9243 = vmatpush2.msra.mxu0 0.0
    %9244 = vmatprep.subr.mxu0 0.0
    %9245 = vmatpush2.msra.mxu0 0.0
    %9246 = vmatprep.subr.mxu0 0.0
    %9247 = vmatpush2.msra.mxu0 0.0
    %9248 = vmatprep.mubr.f32.mxu0 0.0
    %v9249 = vand.u32 %v8928, 4294901760
    %v9250 = vsub.f32 %v8928, %v9249
    %v9251 = vand.u32 %v9250, 4294901760
    %9252 = vmatmul.mubr.f32.gmra.mxu0 %v9251
    %v9253 = vpop.f32.mrf.mxu0
    %v9254 = vadd.f32 %v9177, %v9253
    %v9255 = vpop.f32.mrf.mxu0
    %9256 = vdwg.mxu0
    %9257 = vmatprep.subr.mxu0 0.0
    %9258 = vmatpush1.msra.mxu0 0.0
    %9259 = vmatprep.subr.mxu0 0.0
    %9260 = vmatpush1.msra.mxu0 0.0
    %9261 = vmatprep.subr.mxu0 0.0
    %9262 = vmatpush1.msra.mxu0 0.0
    %9263 = vmatprep.subr.mxu0 0.0
    %9264 = vmatpush1.msra.mxu0 0.0
    %9265 = vmatprep.subr.mxu0 0.0
    %9266 = vmatpush1.msra.mxu0 0.0
    %9267 = vmatprep.subr.mxu0 0.0
    %9268 = vmatpush1.msra.mxu0 0.0
    %9269 = vmatprep.subr.mxu0 0.0
    %9270 = vmatpush1.msra.mxu0 0.0
    %9271 = vmatprep.subr.mxu0 0.0
    %9272 = vmatpush1.msra.mxu0 0.0
    %9273 = vmatprep.subr.mxu0 0.0
    %9274 = vmatpush1.msra.mxu0 0.0
    %9275 = vmatprep.subr.mxu0 0.0
    %9276 = vmatpush1.msra.mxu0 0.0
    %9277 = vmatprep.subr.mxu0 0.0
    %9278 = vmatpush1.msra.mxu0 0.0
    %9279 = vmatprep.subr.mxu0 0.0
    %9280 = vmatpush1.msra.mxu0 0.0
    %9281 = vmatprep.subr.mxu0 0.0
    %v9282 = vand.u32 %v4688, 4294901760
    %v9283 = vsub.f32 %v4688, %v9282
    %v9284 = vand.u32 %v9283, 4294901760
    %9285 = vmatpush1.msra.mxu0 %v9284
    %9286 = vmatprep.subr.mxu0 0.0
    %v9287 = vand.u32 %v4687, 4294901760
    %v9288 = vsub.f32 %v4687, %v9287
    %v9289 = vand.u32 %v9288, 4294901760
    %9290 = vmatpush1.msra.mxu0 %v9289
    %9291 = vmatprep.subr.mxu0 0.0
    %v9292 = vand.u32 %v4686, 4294901760
    %v9293 = vsub.f32 %v4686, %v9292
    %v9294 = vand.u32 %v9293, 4294901760
    %9295 = vmatpush1.msra.mxu0 %v9294
    %9296 = vmatprep.subr.mxu0 0.0
    %v9297 = vand.u32 %v4685, 4294901760
    %v9298 = vsub.f32 %v4685, %v9297
    %v9299 = vand.u32 %v9298, 4294901760
    %9300 = vmatpush1.msra.mxu0 %v9299
    %9301 = vmatprep.subr.mxu0 0.0
    %9302 = vmatpush2.msra.mxu0 0.0
    %9303 = vmatprep.subr.mxu0 0.0
    %9304 = vmatpush2.msra.mxu0 0.0
    %9305 = vmatprep.subr.mxu0 0.0
    %9306 = vmatpush2.msra.mxu0 0.0
    %9307 = vmatprep.subr.mxu0 0.0
    %9308 = vmatpush2.msra.mxu0 0.0
    %9309 = vmatprep.subr.mxu0 0.0
    %9310 = vmatpush2.msra.mxu0 0.0
    %9311 = vmatprep.subr.mxu0 0.0
    %9312 = vmatpush2.msra.mxu0 0.0
    %9313 = vmatprep.subr.mxu0 0.0
    %9314 = vmatpush2.msra.mxu0 0.0
    %9315 = vmatprep.subr.mxu0 0.0
    %9316 = vmatpush2.msra.mxu0 0.0
    %9317 = vmatprep.subr.mxu0 0.0
    %9318 = vmatpush2.msra.mxu0 0.0
    %9319 = vmatprep.subr.mxu0 0.0
    %9320 = vmatpush2.msra.mxu0 0.0
    %9321 = vmatprep.subr.mxu0 0.0
    %9322 = vmatpush2.msra.mxu0 0.0
    %9323 = vmatprep.subr.mxu0 0.0
    %9324 = vmatpush2.msra.mxu0 0.0
    %9325 = vmatprep.subr.mxu0 0.0
    %9326 = vmatpush2.msra.mxu0 0.0
    %9327 = vmatprep.subr.mxu0 0.0
    %9328 = vmatpush2.msra.mxu0 0.0
    %9329 = vmatprep.subr.mxu0 0.0
    %9330 = vmatpush2.msra.mxu0 0.0
    %9331 = vmatprep.subr.mxu0 0.0
    %9332 = vmatpush2.msra.mxu0 0.0
    %9333 = vmatprep.mubr.f32.mxu0 0.0
    %v9334 = vand.u32 %v8928, 4294901760
    %9335 = vmatmul.mubr.f32.gmra.mxu0 %v9334
    %v9336 = vpop.f32.mrf.mxu0
    %v9337 = vadd.f32 %v9254, %v9336
    %v9338 = vpop.f32.mrf.mxu0
    %9339 = vdwg.mxu0
    %9340 = vmatprep.subr.mxu0 0.0
    %9341 = vmatpush1.msra.mxu0 0.0
    %9342 = vmatprep.subr.mxu0 0.0
    %9343 = vmatpush1.msra.mxu0 0.0
    %9344 = vmatprep.subr.mxu0 0.0
    %9345 = vmatpush1.msra.mxu0 0.0
    %9346 = vmatprep.subr.mxu0 0.0
    %9347 = vmatpush1.msra.mxu0 0.0
    %9348 = vmatprep.subr.mxu0 0.0
    %9349 = vmatpush1.msra.mxu0 0.0
    %9350 = vmatprep.subr.mxu0 0.0
    %9351 = vmatpush1.msra.mxu0 0.0
    %9352 = vmatprep.subr.mxu0 0.0
    %9353 = vmatpush1.msra.mxu0 0.0
    %9354 = vmatprep.subr.mxu0 0.0
    %9355 = vmatpush1.msra.mxu0 0.0
    %9356 = vmatprep.subr.mxu0 0.0
    %9357 = vmatpush1.msra.mxu0 0.0
    %9358 = vmatprep.subr.mxu0 0.0
    %9359 = vmatpush1.msra.mxu0 0.0
    %9360 = vmatprep.subr.mxu0 0.0
    %9361 = vmatpush1.msra.mxu0 0.0
    %9362 = vmatprep.subr.mxu0 0.0
    %9363 = vmatpush1.msra.mxu0 0.0
    %9364 = vmatprep.subr.mxu0 0.0
    %v9365 = vand.u32 %v4688, 4294901760
    %9366 = vmatpush1.msra.mxu0 %v9365
    %9367 = vmatprep.subr.mxu0 0.0
    %v9368 = vand.u32 %v4687, 4294901760
    %9369 = vmatpush1.msra.mxu0 %v9368
    %9370 = vmatprep.subr.mxu0 0.0
    %v9371 = vand.u32 %v4686, 4294901760
    %9372 = vmatpush1.msra.mxu0 %v9371
    %9373 = vmatprep.subr.mxu0 0.0
    %v9374 = vand.u32 %v4685, 4294901760
    %9375 = vmatpush1.msra.mxu0 %v9374
    %9376 = vmatprep.subr.mxu0 0.0
    %9377 = vmatpush2.msra.mxu0 0.0
    %9378 = vmatprep.subr.mxu0 0.0
    %9379 = vmatpush2.msra.mxu0 0.0
    %9380 = vmatprep.subr.mxu0 0.0
    %9381 = vmatpush2.msra.mxu0 0.0
    %9382 = vmatprep.subr.mxu0 0.0
    %9383 = vmatpush2.msra.mxu0 0.0
    %9384 = vmatprep.subr.mxu0 0.0
    %9385 = vmatpush2.msra.mxu0 0.0
    %9386 = vmatprep.subr.mxu0 0.0
    %9387 = vmatpush2.msra.mxu0 0.0
    %9388 = vmatprep.subr.mxu0 0.0
    %9389 = vmatpush2.msra.mxu0 0.0
    %9390 = vmatprep.subr.mxu0 0.0
    %9391 = vmatpush2.msra.mxu0 0.0
    %9392 = vmatprep.subr.mxu0 0.0
    %9393 = vmatpush2.msra.mxu0 0.0
    %9394 = vmatprep.subr.mxu0 0.0
    %9395 = vmatpush2.msra.mxu0 0.0
    %9396 = vmatprep.subr.mxu0 0.0
    %9397 = vmatpush2.msra.mxu0 0.0
    %9398 = vmatprep.subr.mxu0 0.0
    %9399 = vmatpush2.msra.mxu0 0.0
    %9400 = vmatprep.subr.mxu0 0.0
    %9401 = vmatpush2.msra.mxu0 0.0
    %9402 = vmatprep.subr.mxu0 0.0
    %9403 = vmatpush2.msra.mxu0 0.0
    %9404 = vmatprep.subr.mxu0 0.0
    %9405 = vmatpush2.msra.mxu0 0.0
    %9406 = vmatprep.subr.mxu0 0.0
    %9407 = vmatpush2.msra.mxu0 0.0
    %9408 = vmatprep.mubr.f32.mxu0 0.0
    %v9409 = vand.u32 %v8928, 4294901760
    %9410 = vmatmul.mubr.f32.gmra.mxu0 %v9409
    %v9411 = vpop.f32.mrf.mxu0
    %v9412 = vadd.f32 %v9337, %v9411
    %v9413 = vpop.f32.mrf.mxu0
    %9414 = vdwg.mxu0
    %v9416 = vrot.slane %v9412, 4
    %v9418 = vadd.f32 %v5323, %v9416
    %v9419 = vtanh.pop %v9418
    %v9420 = vadd.f32 %v9419, 1.0
    %v9421 = vmul.f32 %v9420, 0.5
    %v9423 = vrot.slane %v9421, 4
    %v9425 = vmul.f32 %v8918, %v9423
    %9427 = vrot.lane.b32.xlu0 %v9419, 64
    %v9428 = vpop.permute.xlu0 %9427
    %v9430 = vmul.f32 %v9421, %v9428
    %v9432 = vrot.slane %v9430, 4
    %9433 = vrot.lane.b32.xlu0 %v9432, 32
    %v9434 = vpop.permute.xlu0 %9433
    %v9436 = vadd.f32 %v9425, %v9434
    %v9437 = vtanh.pop %v9436
    %v9439 = vrot.slane %v9437, 4
    %9440 = vrot.lane.b32.xlu0 %v9439, 64
    %v9441 = vpop.permute.xlu0 %9440
    %v9443 = vmul.f32 %v9421, %v9441
    %v9444 = vld [vmem:[%s5] sm:$0xff]
    %v9445 = vld [vmem:[%s5 + $0x8] sm:$0xff]
    %v9446 = vld [vmem:[%s5 + $0x10] sm:$0xff]
    %v9447 = vld [vmem:[%s5 + $0x18] sm:$0xff]
    %v9448 = vld [vmem:[%s5 + $0x20] sm:$0xff]
    %v9449 = vld [vmem:[%s5 + $0x28] sm:$0xff]
    %v9450 = vld [vmem:[%s5 + $0x30] sm:$0xff]
    %v9451 = vld [vmem:[%s5 + $0x38] sm:$0xff]
    %v9452 = vrot.slane %v5831, 2
    %9453 = vrot.lane.b32.xlu0 %v9452, 32
    %v9454 = vpop.permute.xlu0 %9453
    %v9455 = vsel %vm556, %v9454, 0
    %9457 = vmatprep.subr.mxu0 0.0
    %9458 = vmatpush1.msra.mxu0 0.0
    %9459 = vmatprep.subr.mxu0 0.0
    %9460 = vmatpush1.msra.mxu0 0.0
    %9461 = vmatprep.subr.mxu0 0.0
    %9462 = vmatpush1.msra.mxu0 0.0
    %9463 = vmatprep.subr.mxu0 0.0
    %9464 = vmatpush1.msra.mxu0 0.0
    %9465 = vmatprep.subr.mxu0 0.0
    %9466 = vmatpush1.msra.mxu0 0.0
    %9467 = vmatprep.subr.mxu0 0.0
    %9468 = vmatpush1.msra.mxu0 0.0
    %9469 = vmatprep.subr.mxu0 0.0
    %9470 = vmatpush1.msra.mxu0 0.0
    %9471 = vmatprep.subr.mxu0 0.0
    %9472 = vmatpush1.msra.mxu0 0.0
    %9473 = vmatprep.subr.mxu0 0.0
    %9474 = vmatpush1.msra.mxu0 0.0
    %9475 = vmatprep.subr.mxu0 0.0
    %9476 = vmatpush1.msra.mxu0 0.0
    %9477 = vmatprep.subr.mxu0 0.0
    %9478 = vmatpush1.msra.mxu0 0.0
    %9479 = vmatprep.subr.mxu0 0.0
    %9480 = vmatpush1.msra.mxu0 0.0
    %9481 = vmatprep.subr.mxu0 0.0
    %v9482 = vand.u32 %v9451, 4294901760
    %9483 = vmatpush1.msra.mxu0 %v9482
    %9484 = vmatprep.subr.mxu0 0.0
    %v9485 = vand.u32 %v9450, 4294901760
    %9486 = vmatpush1.msra.mxu0 %v9485
    %9487 = vmatprep.subr.mxu0 0.0
    %v9488 = vand.u32 %v9449, 4294901760
    %9489 = vmatpush1.msra.mxu0 %v9488
    %9490 = vmatprep.subr.mxu0 0.0
    %v9491 = vand.u32 %v9448, 4294901760
    %9492 = vmatpush1.msra.mxu0 %v9491
    %9493 = vmatprep.subr.mxu0 0.0
    %9494 = vmatpush2.msra.mxu0 0.0
    %9495 = vmatprep.subr.mxu0 0.0
    %9496 = vmatpush2.msra.mxu0 0.0
    %9497 = vmatprep.subr.mxu0 0.0
    %9498 = vmatpush2.msra.mxu0 0.0
    %9499 = vmatprep.subr.mxu0 0.0
    %9500 = vmatpush2.msra.mxu0 0.0
    %9501 = vmatprep.subr.mxu0 0.0
    %9502 = vmatpush2.msra.mxu0 0.0
    %9503 = vmatprep.subr.mxu0 0.0
    %9504 = vmatpush2.msra.mxu0 0.0
    %9505 = vmatprep.subr.mxu0 0.0
    %9506 = vmatpush2.msra.mxu0 0.0
    %9507 = vmatprep.subr.mxu0 0.0
    %9508 = vmatpush2.msra.mxu0 0.0
    %9509 = vmatprep.subr.mxu0 0.0
    %9510 = vmatpush2.msra.mxu0 0.0
    %9511 = vmatprep.subr.mxu0 0.0
    %9512 = vmatpush2.msra.mxu0 0.0
    %9513 = vmatprep.subr.mxu0 0.0
    %9514 = vmatpush2.msra.mxu0 0.0
    %9515 = vmatprep.subr.mxu0 0.0
    %9516 = vmatpush2.msra.mxu0 0.0
    %9517 = vmatprep.subr.mxu0 0.0
    %9518 = vmatpush2.msra.mxu0 0.0
    %9519 = vmatprep.subr.mxu0 0.0
    %9520 = vmatpush2.msra.mxu0 0.0
    %9521 = vmatprep.subr.mxu0 0.0
    %9522 = vmatpush2.msra.mxu0 0.0
    %9523 = vmatprep.subr.mxu0 0.0
    %9524 = vmatpush2.msra.mxu0 0.0
    %9525 = vmatprep.mubr.f32.mxu0 0.0
    %v9526 = vand.u32 %v9455, 4294901760
    %v9527 = vsub.f32 %v9455, %v9526
    %v9528 = vand.u32 %v9527, 4294901760
    %v9529 = vsub.f32 %v9527, %v9528
    %v9530 = vand.u32 %v9529, 4294901760
    %9531 = vmatmul.mubr.f32.gmra.mxu0 %v9530
    %v9532 = vpop.f32.mrf.mxu0
    %v9533 = vadd.f32 0.0, %v9532
    %v9534 = vpop.f32.mrf.mxu0
    %9535 = vdwg.mxu0
    %9536 = vmatprep.subr.mxu0 0.0
    %9537 = vmatpush1.msra.mxu0 0.0
    %9538 = vmatprep.subr.mxu0 0.0
    %9539 = vmatpush1.msra.mxu0 0.0
    %9540 = vmatprep.subr.mxu0 0.0
    %9541 = vmatpush1.msra.mxu0 0.0
    %9542 = vmatprep.subr.mxu0 0.0
    %9543 = vmatpush1.msra.mxu0 0.0
    %9544 = vmatprep.subr.mxu0 0.0
    %9545 = vmatpush1.msra.mxu0 0.0
    %9546 = vmatprep.subr.mxu0 0.0
    %9547 = vmatpush1.msra.mxu0 0.0
    %9548 = vmatprep.subr.mxu0 0.0
    %9549 = vmatpush1.msra.mxu0 0.0
    %9550 = vmatprep.subr.mxu0 0.0
    %9551 = vmatpush1.msra.mxu0 0.0
    %9552 = vmatprep.subr.mxu0 0.0
    %9553 = vmatpush1.msra.mxu0 0.0
    %9554 = vmatprep.subr.mxu0 0.0
    %9555 = vmatpush1.msra.mxu0 0.0
    %9556 = vmatprep.subr.mxu0 0.0
    %9557 = vmatpush1.msra.mxu0 0.0
    %9558 = vmatprep.subr.mxu0 0.0
    %9559 = vmatpush1.msra.mxu0 0.0
    %9560 = vmatprep.subr.mxu0 0.0
    %v9561 = vand.u32 %v9451, 4294901760
    %v9562 = vsub.f32 %v9451, %v9561
    %v9563 = vand.u32 %v9562, 4294901760
    %v9564 = vsub.f32 %v9562, %v9563
    %v9565 = vand.u32 %v9564, 4294901760
    %9566 = vmatpush1.msra.mxu0 %v9565
    %9567 = vmatprep.subr.mxu0 0.0
    %v9568 = vand.u32 %v9450, 4294901760
    %v9569 = vsub.f32 %v9450, %v9568
    %v9570 = vand.u32 %v9569, 4294901760
    %v9571 = vsub.f32 %v9569, %v9570
    %v9572 = vand.u32 %v9571, 4294901760
    %9573 = vmatpush1.msra.mxu0 %v9572
    %9574 = vmatprep.subr.mxu0 0.0
    %v9575 = vand.u32 %v9449, 4294901760
    %v9576 = vsub.f32 %v9449, %v9575
    %v9577 = vand.u32 %v9576, 4294901760
    %v9578 = vsub.f32 %v9576, %v9577
    %v9579 = vand.u32 %v9578, 4294901760
    %9580 = vmatpush1.msra.mxu0 %v9579
    %9581 = vmatprep.subr.mxu0 0.0
    %v9582 = vand.u32 %v9448, 4294901760
    %v9583 = vsub.f32 %v9448, %v9582
    %v9584 = vand.u32 %v9583, 4294901760
    %v9585 = vsub.f32 %v9583, %v9584
    %v9586 = vand.u32 %v9585, 4294901760
    %9587 = vmatpush1.msra.mxu0 %v9586
    %9588 = vmatprep.subr.mxu0 0.0
    %9589 = vmatpush2.msra.mxu0 0.0
    %9590 = vmatprep.subr.mxu0 0.0
    %9591 = vmatpush2.msra.mxu0 0.0
    %9592 = vmatprep.subr.mxu0 0.0
    %9593 = vmatpush2.msra.mxu0 0.0
    %9594 = vmatprep.subr.mxu0 0.0
    %9595 = vmatpush2.msra.mxu0 0.0
    %9596 = vmatprep.subr.mxu0 0.0
    %9597 = vmatpush2.msra.mxu0 0.0
    %9598 = vmatprep.subr.mxu0 0.0
    %9599 = vmatpush2.msra.mxu0 0.0
    %9600 = vmatprep.subr.mxu0 0.0
    %9601 = vmatpush2.msra.mxu0 0.0
    %9602 = vmatprep.subr.mxu0 0.0
    %9603 = vmatpush2.msra.mxu0 0.0
    %9604 = vmatprep.subr.mxu0 0.0
    %9605 = vmatpush2.msra.mxu0 0.0
    %9606 = vmatprep.subr.mxu0 0.0
    %9607 = vmatpush2.msra.mxu0 0.0
    %9608 = vmatprep.subr.mxu0 0.0
    %9609 = vmatpush2.msra.mxu0 0.0
    %9610 = vmatprep.subr.mxu0 0.0
    %9611 = vmatpush2.msra.mxu0 0.0
    %9612 = vmatprep.subr.mxu0 0.0
    %9613 = vmatpush2.msra.mxu0 0.0
    %9614 = vmatprep.subr.mxu0 0.0
    %9615 = vmatpush2.msra.mxu0 0.0
    %9616 = vmatprep.subr.mxu0 0.0
    %9617 = vmatpush2.msra.mxu0 0.0
    %9618 = vmatprep.subr.mxu0 0.0
    %9619 = vmatpush2.msra.mxu0 0.0
    %9620 = vmatprep.mubr.f32.mxu0 0.0
    %v9621 = vand.u32 %v9455, 4294901760
    %9622 = vmatmul.mubr.f32.gmra.mxu0 %v9621
    %v9623 = vpop.f32.mrf.mxu0
    %v9624 = vadd.f32 %v9533, %v9623
    %v9625 = vpop.f32.mrf.mxu0
    %9626 = vdwg.mxu0
    %9627 = vmatprep.subr.mxu0 0.0
    %9628 = vmatpush1.msra.mxu0 0.0
    %9629 = vmatprep.subr.mxu0 0.0
    %9630 = vmatpush1.msra.mxu0 0.0
    %9631 = vmatprep.subr.mxu0 0.0
    %9632 = vmatpush1.msra.mxu0 0.0
    %9633 = vmatprep.subr.mxu0 0.0
    %9634 = vmatpush1.msra.mxu0 0.0
    %9635 = vmatprep.subr.mxu0 0.0
    %9636 = vmatpush1.msra.mxu0 0.0
    %9637 = vmatprep.subr.mxu0 0.0
    %9638 = vmatpush1.msra.mxu0 0.0
    %9639 = vmatprep.subr.mxu0 0.0
    %9640 = vmatpush1.msra.mxu0 0.0
    %9641 = vmatprep.subr.mxu0 0.0
    %9642 = vmatpush1.msra.mxu0 0.0
    %9643 = vmatprep.subr.mxu0 0.0
    %9644 = vmatpush1.msra.mxu0 0.0
    %9645 = vmatprep.subr.mxu0 0.0
    %9646 = vmatpush1.msra.mxu0 0.0
    %9647 = vmatprep.subr.mxu0 0.0
    %9648 = vmatpush1.msra.mxu0 0.0
    %9649 = vmatprep.subr.mxu0 0.0
    %9650 = vmatpush1.msra.mxu0 0.0
    %9651 = vmatprep.subr.mxu0 0.0
    %v9652 = vand.u32 %v9451, 4294901760
    %v9653 = vsub.f32 %v9451, %v9652
    %9654 = vmatpush1.msra.mxu0 %v9653
    %9655 = vmatprep.subr.mxu0 0.0
    %v9656 = vand.u32 %v9450, 4294901760
    %v9657 = vsub.f32 %v9450, %v9656
    %9658 = vmatpush1.msra.mxu0 %v9657
    %9659 = vmatprep.subr.mxu0 0.0
    %v9660 = vand.u32 %v9449, 4294901760
    %v9661 = vsub.f32 %v9449, %v9660
    %9662 = vmatpush1.msra.mxu0 %v9661
    %9663 = vmatprep.subr.mxu0 0.0
    %v9664 = vand.u32 %v9448, 4294901760
    %v9665 = vsub.f32 %v9448, %v9664
    %9666 = vmatpush1.msra.mxu0 %v9665
    %9667 = vmatprep.subr.mxu0 0.0
    %9668 = vmatpush2.msra.mxu0 0.0
    %9669 = vmatprep.subr.mxu0 0.0
    %9670 = vmatpush2.msra.mxu0 0.0
    %9671 = vmatprep.subr.mxu0 0.0
    %9672 = vmatpush2.msra.mxu0 0.0
    %9673 = vmatprep.subr.mxu0 0.0
    %9674 = vmatpush2.msra.mxu0 0.0
    %9675 = vmatprep.subr.mxu0 0.0
    %9676 = vmatpush2.msra.mxu0 0.0
    %9677 = vmatprep.subr.mxu0 0.0
    %9678 = vmatpush2.msra.mxu0 0.0
    %9679 = vmatprep.subr.mxu0 0.0
    %9680 = vmatpush2.msra.mxu0 0.0
    %9681 = vmatprep.subr.mxu0 0.0
    %9682 = vmatpush2.msra.mxu0 0.0
    %9683 = vmatprep.subr.mxu0 0.0
    %9684 = vmatpush2.msra.mxu0 0.0
    %9685 = vmatprep.subr.mxu0 0.0
    %9686 = vmatpush2.msra.mxu0 0.0
    %9687 = vmatprep.subr.mxu0 0.0
    %9688 = vmatpush2.msra.mxu0 0.0
    %9689 = vmatprep.subr.mxu0 0.0
    %9690 = vmatpush2.msra.mxu0 0.0
    %9691 = vmatprep.subr.mxu0 0.0
    %9692 = vmatpush2.msra.mxu0 0.0
    %9693 = vmatprep.subr.mxu0 0.0
    %9694 = vmatpush2.msra.mxu0 0.0
    %9695 = vmatprep.subr.mxu0 0.0
    %9696 = vmatpush2.msra.mxu0 0.0
    %9697 = vmatprep.subr.mxu0 0.0
    %9698 = vmatpush2.msra.mxu0 0.0
    %9699 = vmatprep.mubr.f32.mxu0 0.0
    %v9700 = vand.u32 %v9455, 4294901760
    %v9701 = vsub.f32 %v9455, %v9700
    %9702 = vmatmul.mubr.f32.gmra.mxu0 %v9701
    %v9703 = vpop.f32.mrf.mxu0
    %v9704 = vadd.f32 %v9624, %v9703
    %v9705 = vpop.f32.mrf.mxu0
    %9706 = vdwg.mxu0
    %9707 = vmatprep.subr.mxu0 0.0
    %9708 = vmatpush1.msra.mxu0 0.0
    %9709 = vmatprep.subr.mxu0 0.0
    %9710 = vmatpush1.msra.mxu0 0.0
    %9711 = vmatprep.subr.mxu0 0.0
    %9712 = vmatpush1.msra.mxu0 0.0
    %9713 = vmatprep.subr.mxu0 0.0
    %9714 = vmatpush1.msra.mxu0 0.0
    %9715 = vmatprep.subr.mxu0 0.0
    %9716 = vmatpush1.msra.mxu0 0.0
    %9717 = vmatprep.subr.mxu0 0.0
    %9718 = vmatpush1.msra.mxu0 0.0
    %9719 = vmatprep.subr.mxu0 0.0
    %9720 = vmatpush1.msra.mxu0 0.0
    %9721 = vmatprep.subr.mxu0 0.0
    %9722 = vmatpush1.msra.mxu0 0.0
    %9723 = vmatprep.subr.mxu0 0.0
    %9724 = vmatpush1.msra.mxu0 0.0
    %9725 = vmatprep.subr.mxu0 0.0
    %9726 = vmatpush1.msra.mxu0 0.0
    %9727 = vmatprep.subr.mxu0 0.0
    %9728 = vmatpush1.msra.mxu0 0.0
    %9729 = vmatprep.subr.mxu0 0.0
    %9730 = vmatpush1.msra.mxu0 0.0
    %9731 = vmatprep.subr.mxu0 0.0
    %v9732 = vand.u32 %v9451, 4294901760
    %9733 = vmatpush1.msra.mxu0 %v9732
    %9734 = vmatprep.subr.mxu0 0.0
    %v9735 = vand.u32 %v9450, 4294901760
    %9736 = vmatpush1.msra.mxu0 %v9735
    %9737 = vmatprep.subr.mxu0 0.0
    %v9738 = vand.u32 %v9449, 4294901760
    %9739 = vmatpush1.msra.mxu0 %v9738
    %9740 = vmatprep.subr.mxu0 0.0
    %v9741 = vand.u32 %v9448, 4294901760
    %9742 = vmatpush1.msra.mxu0 %v9741
    %9743 = vmatprep.subr.mxu0 0.0
    %9744 = vmatpush2.msra.mxu0 0.0
    %9745 = vmatprep.subr.mxu0 0.0
    %9746 = vmatpush2.msra.mxu0 0.0
    %9747 = vmatprep.subr.mxu0 0.0
    %9748 = vmatpush2.msra.mxu0 0.0
    %9749 = vmatprep.subr.mxu0 0.0
    %9750 = vmatpush2.msra.mxu0 0.0
    %9751 = vmatprep.subr.mxu0 0.0
    %9752 = vmatpush2.msra.mxu0 0.0
    %9753 = vmatprep.subr.mxu0 0.0
    %9754 = vmatpush2.msra.mxu0 0.0
    %9755 = vmatprep.subr.mxu0 0.0
    %9756 = vmatpush2.msra.mxu0 0.0
    %9757 = vmatprep.subr.mxu0 0.0
    %9758 = vmatpush2.msra.mxu0 0.0
    %9759 = vmatprep.subr.mxu0 0.0
    %9760 = vmatpush2.msra.mxu0 0.0
    %9761 = vmatprep.subr.mxu0 0.0
    %9762 = vmatpush2.msra.mxu0 0.0
    %9763 = vmatprep.subr.mxu0 0.0
    %9764 = vmatpush2.msra.mxu0 0.0
    %9765 = vmatprep.subr.mxu0 0.0
    %9766 = vmatpush2.msra.mxu0 0.0
    %9767 = vmatprep.subr.mxu0 0.0
    %9768 = vmatpush2.msra.mxu0 0.0
    %9769 = vmatprep.subr.mxu0 0.0
    %9770 = vmatpush2.msra.mxu0 0.0
    %9771 = vmatprep.subr.mxu0 0.0
    %9772 = vmatpush2.msra.mxu0 0.0
    %9773 = vmatprep.subr.mxu0 0.0
    %9774 = vmatpush2.msra.mxu0 0.0
    %9775 = vmatprep.mubr.f32.mxu0 0.0
    %v9776 = vand.u32 %v9455, 4294901760
    %v9777 = vsub.f32 %v9455, %v9776
    %v9778 = vand.u32 %v9777, 4294901760
    %9779 = vmatmul.mubr.f32.gmra.mxu0 %v9778
    %v9780 = vpop.f32.mrf.mxu0
    %v9781 = vadd.f32 %v9704, %v9780
    %v9782 = vpop.f32.mrf.mxu0
    %9783 = vdwg.mxu0
    %9784 = vmatprep.subr.mxu0 0.0
    %9785 = vmatpush1.msra.mxu0 0.0
    %9786 = vmatprep.subr.mxu0 0.0
    %9787 = vmatpush1.msra.mxu0 0.0
    %9788 = vmatprep.subr.mxu0 0.0
    %9789 = vmatpush1.msra.mxu0 0.0
    %9790 = vmatprep.subr.mxu0 0.0
    %9791 = vmatpush1.msra.mxu0 0.0
    %9792 = vmatprep.subr.mxu0 0.0
    %9793 = vmatpush1.msra.mxu0 0.0
    %9794 = vmatprep.subr.mxu0 0.0
    %9795 = vmatpush1.msra.mxu0 0.0
    %9796 = vmatprep.subr.mxu0 0.0
    %9797 = vmatpush1.msra.mxu0 0.0
    %9798 = vmatprep.subr.mxu0 0.0
    %9799 = vmatpush1.msra.mxu0 0.0
    %9800 = vmatprep.subr.mxu0 0.0
    %9801 = vmatpush1.msra.mxu0 0.0
    %9802 = vmatprep.subr.mxu0 0.0
    %9803 = vmatpush1.msra.mxu0 0.0
    %9804 = vmatprep.subr.mxu0 0.0
    %9805 = vmatpush1.msra.mxu0 0.0
    %9806 = vmatprep.subr.mxu0 0.0
    %9807 = vmatpush1.msra.mxu0 0.0
    %9808 = vmatprep.subr.mxu0 0.0
    %v9809 = vand.u32 %v9451, 4294901760
    %v9810 = vsub.f32 %v9451, %v9809
    %v9811 = vand.u32 %v9810, 4294901760
    %9812 = vmatpush1.msra.mxu0 %v9811
    %9813 = vmatprep.subr.mxu0 0.0
    %v9814 = vand.u32 %v9450, 4294901760
    %v9815 = vsub.f32 %v9450, %v9814
    %v9816 = vand.u32 %v9815, 4294901760
    %9817 = vmatpush1.msra.mxu0 %v9816
    %9818 = vmatprep.subr.mxu0 0.0
    %v9819 = vand.u32 %v9449, 4294901760
    %v9820 = vsub.f32 %v9449, %v9819
    %v9821 = vand.u32 %v9820, 4294901760
    %9822 = vmatpush1.msra.mxu0 %v9821
    %9823 = vmatprep.subr.mxu0 0.0
    %v9824 = vand.u32 %v9448, 4294901760
    %v9825 = vsub.f32 %v9448, %v9824
    %v9826 = vand.u32 %v9825, 4294901760
    %9827 = vmatpush1.msra.mxu0 %v9826
    %9828 = vmatprep.subr.mxu0 0.0
    %9829 = vmatpush2.msra.mxu0 0.0
    %9830 = vmatprep.subr.mxu0 0.0
    %9831 = vmatpush2.msra.mxu0 0.0
    %9832 = vmatprep.subr.mxu0 0.0
    %9833 = vmatpush2.msra.mxu0 0.0
    %9834 = vmatprep.subr.mxu0 0.0
    %9835 = vmatpush2.msra.mxu0 0.0
    %9836 = vmatprep.subr.mxu0 0.0
    %9837 = vmatpush2.msra.mxu0 0.0
    %9838 = vmatprep.subr.mxu0 0.0
    %9839 = vmatpush2.msra.mxu0 0.0
    %9840 = vmatprep.subr.mxu0 0.0
    %9841 = vmatpush2.msra.mxu0 0.0
    %9842 = vmatprep.subr.mxu0 0.0
    %9843 = vmatpush2.msra.mxu0 0.0
    %9844 = vmatprep.subr.mxu0 0.0
    %9845 = vmatpush2.msra.mxu0 0.0
    %9846 = vmatprep.subr.mxu0 0.0
    %9847 = vmatpush2.msra.mxu0 0.0
    %9848 = vmatprep.subr.mxu0 0.0
    %9849 = vmatpush2.msra.mxu0 0.0
    %9850 = vmatprep.subr.mxu0 0.0
    %9851 = vmatpush2.msra.mxu0 0.0
    %9852 = vmatprep.subr.mxu0 0.0
    %9853 = vmatpush2.msra.mxu0 0.0
    %9854 = vmatprep.subr.mxu0 0.0
    %9855 = vmatpush2.msra.mxu0 0.0
    %9856 = vmatprep.subr.mxu0 0.0
    %9857 = vmatpush2.msra.mxu0 0.0
    %9858 = vmatprep.subr.mxu0 0.0
    %9859 = vmatpush2.msra.mxu0 0.0
    %9860 = vmatprep.mubr.f32.mxu0 0.0
    %v9861 = vand.u32 %v9455, 4294901760
    %9862 = vmatmul.mubr.f32.gmra.mxu0 %v9861
    %v9863 = vpop.f32.mrf.mxu0
    %v9864 = vadd.f32 %v9781, %v9863
    %v9865 = vpop.f32.mrf.mxu0
    %9866 = vdwg.mxu0
    %9867 = vmatprep.subr.mxu0 0.0
    %9868 = vmatpush1.msra.mxu0 0.0
    %9869 = vmatprep.subr.mxu0 0.0
    %9870 = vmatpush1.msra.mxu0 0.0
    %9871 = vmatprep.subr.mxu0 0.0
    %9872 = vmatpush1.msra.mxu0 0.0
    %9873 = vmatprep.subr.mxu0 0.0
    %9874 = vmatpush1.msra.mxu0 0.0
    %9875 = vmatprep.subr.mxu0 0.0
    %9876 = vmatpush1.msra.mxu0 0.0
    %9877 = vmatprep.subr.mxu0 0.0
    %9878 = vmatpush1.msra.mxu0 0.0
    %9879 = vmatprep.subr.mxu0 0.0
    %9880 = vmatpush1.msra.mxu0 0.0
    %9881 = vmatprep.subr.mxu0 0.0
    %9882 = vmatpush1.msra.mxu0 0.0
    %9883 = vmatprep.subr.mxu0 0.0
    %9884 = vmatpush1.msra.mxu0 0.0
    %9885 = vmatprep.subr.mxu0 0.0
    %9886 = vmatpush1.msra.mxu0 0.0
    %9887 = vmatprep.subr.mxu0 0.0
    %9888 = vmatpush1.msra.mxu0 0.0
    %9889 = vmatprep.subr.mxu0 0.0
    %9890 = vmatpush1.msra.mxu0 0.0
    %9891 = vmatprep.subr.mxu0 0.0
    %v9892 = vand.u32 %v9451, 4294901760
    %9893 = vmatpush1.msra.mxu0 %v9892
    %9894 = vmatprep.subr.mxu0 0.0
    %v9895 = vand.u32 %v9450, 4294901760
    %9896 = vmatpush1.msra.mxu0 %v9895
    %9897 = vmatprep.subr.mxu0 0.0
    %v9898 = vand.u32 %v9449, 4294901760
    %9899 = vmatpush1.msra.mxu0 %v9898
    %9900 = vmatprep.subr.mxu0 0.0
    %v9901 = vand.u32 %v9448, 4294901760
    %9902 = vmatpush1.msra.mxu0 %v9901
    %9903 = vmatprep.subr.mxu0 0.0
    %9904 = vmatpush2.msra.mxu0 0.0
    %9905 = vmatprep.subr.mxu0 0.0
    %9906 = vmatpush2.msra.mxu0 0.0
    %9907 = vmatprep.subr.mxu0 0.0
    %9908 = vmatpush2.msra.mxu0 0.0
    %9909 = vmatprep.subr.mxu0 0.0
    %9910 = vmatpush2.msra.mxu0 0.0
    %9911 = vmatprep.subr.mxu0 0.0
    %9912 = vmatpush2.msra.mxu0 0.0
    %9913 = vmatprep.subr.mxu0 0.0
    %9914 = vmatpush2.msra.mxu0 0.0
    %9915 = vmatprep.subr.mxu0 0.0
    %9916 = vmatpush2.msra.mxu0 0.0
    %9917 = vmatprep.subr.mxu0 0.0
    %9918 = vmatpush2.msra.mxu0 0.0
    %9919 = vmatprep.subr.mxu0 0.0
    %9920 = vmatpush2.msra.mxu0 0.0
    %9921 = vmatprep.subr.mxu0 0.0
    %9922 = vmatpush2.msra.mxu0 0.0
    %9923 = vmatprep.subr.mxu0 0.0
    %9924 = vmatpush2.msra.mxu0 0.0
    %9925 = vmatprep.subr.mxu0 0.0
    %9926 = vmatpush2.msra.mxu0 0.0
    %9927 = vmatprep.subr.mxu0 0.0
    %9928 = vmatpush2.msra.mxu0 0.0
    %9929 = vmatprep.subr.mxu0 0.0
    %9930 = vmatpush2.msra.mxu0 0.0
    %9931 = vmatprep.subr.mxu0 0.0
    %9932 = vmatpush2.msra.mxu0 0.0
    %9933 = vmatprep.subr.mxu0 0.0
    %9934 = vmatpush2.msra.mxu0 0.0
    %9935 = vmatprep.mubr.f32.mxu0 0.0
    %v9936 = vand.u32 %v9455, 4294901760
    %9937 = vmatmul.mubr.f32.gmra.mxu0 %v9936
    %v9938 = vpop.f32.mrf.mxu0
    %v9939 = vadd.f32 %v9864, %v9938
    %v9940 = vpop.f32.mrf.mxu0
    %9941 = vdwg.mxu0
    %v9943 = vrot.slane %v9443, 4
    %9944 = vrot.lane.b32.xlu0 %v9943, 32
    %v9945 = vpop.permute.xlu0 %9944
    %v9946 = vsel %vm556, %v9945, 0
    %9948 = vmatprep.subr.mxu0 0.0
    %9949 = vmatpush1.msra.mxu0 0.0
    %9950 = vmatprep.subr.mxu0 0.0
    %9951 = vmatpush1.msra.mxu0 0.0
    %9952 = vmatprep.subr.mxu0 0.0
    %9953 = vmatpush1.msra.mxu0 0.0
    %9954 = vmatprep.subr.mxu0 0.0
    %9955 = vmatpush1.msra.mxu0 0.0
    %9956 = vmatprep.subr.mxu0 0.0
    %9957 = vmatpush1.msra.mxu0 0.0
    %9958 = vmatprep.subr.mxu0 0.0
    %9959 = vmatpush1.msra.mxu0 0.0
    %9960 = vmatprep.subr.mxu0 0.0
    %9961 = vmatpush1.msra.mxu0 0.0
    %9962 = vmatprep.subr.mxu0 0.0
    %9963 = vmatpush1.msra.mxu0 0.0
    %9964 = vmatprep.subr.mxu0 0.0
    %9965 = vmatpush1.msra.mxu0 0.0
    %9966 = vmatprep.subr.mxu0 0.0
    %9967 = vmatpush1.msra.mxu0 0.0
    %9968 = vmatprep.subr.mxu0 0.0
    %9969 = vmatpush1.msra.mxu0 0.0
    %9970 = vmatprep.subr.mxu0 0.0
    %9971 = vmatpush1.msra.mxu0 0.0
    %9972 = vmatprep.subr.mxu0 0.0
    %v9973 = vand.u32 %v9447, 4294901760
    %9974 = vmatpush1.msra.mxu0 %v9973
    %9975 = vmatprep.subr.mxu0 0.0
    %v9976 = vand.u32 %v9446, 4294901760
    %9977 = vmatpush1.msra.mxu0 %v9976
    %9978 = vmatprep.subr.mxu0 0.0
    %v9979 = vand.u32 %v9445, 4294901760
    %9980 = vmatpush1.msra.mxu0 %v9979
    %9981 = vmatprep.subr.mxu0 0.0
    %v9982 = vand.u32 %v9444, 4294901760
    %9983 = vmatpush1.msra.mxu0 %v9982
    %9984 = vmatprep.subr.mxu0 0.0
    %9985 = vmatpush2.msra.mxu0 0.0
    %9986 = vmatprep.subr.mxu0 0.0
    %9987 = vmatpush2.msra.mxu0 0.0
    %9988 = vmatprep.subr.mxu0 0.0
    %9989 = vmatpush2.msra.mxu0 0.0
    %9990 = vmatprep.subr.mxu0 0.0
    %9991 = vmatpush2.msra.mxu0 0.0
    %9992 = vmatprep.subr.mxu0 0.0
    %9993 = vmatpush2.msra.mxu0 0.0
    %9994 = vmatprep.subr.mxu0 0.0
    %9995 = vmatpush2.msra.mxu0 0.0
    %9996 = vmatprep.subr.mxu0 0.0
    %9997 = vmatpush2.msra.mxu0 0.0
    %9998 = vmatprep.subr.mxu0 0.0
    %9999 = vmatpush2.msra.mxu0 0.0
    %10000 = vmatprep.subr.mxu0 0.0
    %10001 = vmatpush2.msra.mxu0 0.0
    %10002 = vmatprep.subr.mxu0 0.0
    %10003 = vmatpush2.msra.mxu0 0.0
    %10004 = vmatprep.subr.mxu0 0.0
    %10005 = vmatpush2.msra.mxu0 0.0
    %10006 = vmatprep.subr.mxu0 0.0
    %10007 = vmatpush2.msra.mxu0 0.0
    %10008 = vmatprep.subr.mxu0 0.0
    %10009 = vmatpush2.msra.mxu0 0.0
    %10010 = vmatprep.subr.mxu0 0.0
    %10011 = vmatpush2.msra.mxu0 0.0
    %10012 = vmatprep.subr.mxu0 0.0
    %10013 = vmatpush2.msra.mxu0 0.0
    %10014 = vmatprep.subr.mxu0 0.0
    %10015 = vmatpush2.msra.mxu0 0.0
    %10016 = vmatprep.mubr.f32.mxu0 0.0
    %v10017 = vand.u32 %v9946, 4294901760
    %v10018 = vsub.f32 %v9946, %v10017
    %v10019 = vand.u32 %v10018, 4294901760
    %v10020 = vsub.f32 %v10018, %v10019
    %v10021 = vand.u32 %v10020, 4294901760
    %10022 = vmatmul.mubr.f32.gmra.mxu0 %v10021
    %v10023 = vpop.f32.mrf.mxu0
    %v10024 = vadd.f32 %v9939, %v10023
    %v10025 = vpop.f32.mrf.mxu0
    %10026 = vdwg.mxu0
    %10027 = vmatprep.subr.mxu0 0.0
    %10028 = vmatpush1.msra.mxu0 0.0
    %10029 = vmatprep.subr.mxu0 0.0
    %10030 = vmatpush1.msra.mxu0 0.0
    %10031 = vmatprep.subr.mxu0 0.0
    %10032 = vmatpush1.msra.mxu0 0.0
    %10033 = vmatprep.subr.mxu0 0.0
    %10034 = vmatpush1.msra.mxu0 0.0
    %10035 = vmatprep.subr.mxu0 0.0
    %10036 = vmatpush1.msra.mxu0 0.0
    %10037 = vmatprep.subr.mxu0 0.0
    %10038 = vmatpush1.msra.mxu0 0.0
    %10039 = vmatprep.subr.mxu0 0.0
    %10040 = vmatpush1.msra.mxu0 0.0
    %10041 = vmatprep.subr.mxu0 0.0
    %10042 = vmatpush1.msra.mxu0 0.0
    %10043 = vmatprep.subr.mxu0 0.0
    %10044 = vmatpush1.msra.mxu0 0.0
    %10045 = vmatprep.subr.mxu0 0.0
    %10046 = vmatpush1.msra.mxu0 0.0
    %10047 = vmatprep.subr.mxu0 0.0
    %10048 = vmatpush1.msra.mxu0 0.0
    %10049 = vmatprep.subr.mxu0 0.0
    %10050 = vmatpush1.msra.mxu0 0.0
    %10051 = vmatprep.subr.mxu0 0.0
    %v10052 = vand.u32 %v9447, 4294901760
    %v10053 = vsub.f32 %v9447, %v10052
    %v10054 = vand.u32 %v10053, 4294901760
    %v10055 = vsub.f32 %v10053, %v10054
    %v10056 = vand.u32 %v10055, 4294901760
    %10057 = vmatpush1.msra.mxu0 %v10056
    %10058 = vmatprep.subr.mxu0 0.0
    %v10059 = vand.u32 %v9446, 4294901760
    %v10060 = vsub.f32 %v9446, %v10059
    %v10061 = vand.u32 %v10060, 4294901760
    %v10062 = vsub.f32 %v10060, %v10061
    %v10063 = vand.u32 %v10062, 4294901760
    %10064 = vmatpush1.msra.mxu0 %v10063
    %10065 = vmatprep.subr.mxu0 0.0
    %v10066 = vand.u32 %v9445, 4294901760
    %v10067 = vsub.f32 %v9445, %v10066
    %v10068 = vand.u32 %v10067, 4294901760
    %v10069 = vsub.f32 %v10067, %v10068
    %v10070 = vand.u32 %v10069, 4294901760
    %10071 = vmatpush1.msra.mxu0 %v10070
    %10072 = vmatprep.subr.mxu0 0.0
    %v10073 = vand.u32 %v9444, 4294901760
    %v10074 = vsub.f32 %v9444, %v10073
    %v10075 = vand.u32 %v10074, 4294901760
    %v10076 = vsub.f32 %v10074, %v10075
    %v10077 = vand.u32 %v10076, 4294901760
    %10078 = vmatpush1.msra.mxu0 %v10077
    %10079 = vmatprep.subr.mxu0 0.0
    %10080 = vmatpush2.msra.mxu0 0.0
    %10081 = vmatprep.subr.mxu0 0.0
    %10082 = vmatpush2.msra.mxu0 0.0
    %10083 = vmatprep.subr.mxu0 0.0
    %10084 = vmatpush2.msra.mxu0 0.0
    %10085 = vmatprep.subr.mxu0 0.0
    %10086 = vmatpush2.msra.mxu0 0.0
    %10087 = vmatprep.subr.mxu0 0.0
    %10088 = vmatpush2.msra.mxu0 0.0
    %10089 = vmatprep.subr.mxu0 0.0
    %10090 = vmatpush2.msra.mxu0 0.0
    %10091 = vmatprep.subr.mxu0 0.0
    %10092 = vmatpush2.msra.mxu0 0.0
    %10093 = vmatprep.subr.mxu0 0.0
    %10094 = vmatpush2.msra.mxu0 0.0
    %10095 = vmatprep.subr.mxu0 0.0
    %10096 = vmatpush2.msra.mxu0 0.0
    %10097 = vmatprep.subr.mxu0 0.0
    %10098 = vmatpush2.msra.mxu0 0.0
    %10099 = vmatprep.subr.mxu0 0.0
    %10100 = vmatpush2.msra.mxu0 0.0
    %10101 = vmatprep.subr.mxu0 0.0
    %10102 = vmatpush2.msra.mxu0 0.0
    %10103 = vmatprep.subr.mxu0 0.0
    %10104 = vmatpush2.msra.mxu0 0.0
    %10105 = vmatprep.subr.mxu0 0.0
    %10106 = vmatpush2.msra.mxu0 0.0
    %10107 = vmatprep.subr.mxu0 0.0
    %10108 = vmatpush2.msra.mxu0 0.0
    %10109 = vmatprep.subr.mxu0 0.0
    %10110 = vmatpush2.msra.mxu0 0.0
    %10111 = vmatprep.mubr.f32.mxu0 0.0
    %v10112 = vand.u32 %v9946, 4294901760
    %10113 = vmatmul.mubr.f32.gmra.mxu0 %v10112
    %v10114 = vpop.f32.mrf.mxu0
    %v10115 = vadd.f32 %v10024, %v10114
    %v10116 = vpop.f32.mrf.mxu0
    %10117 = vdwg.mxu0
    %10118 = vmatprep.subr.mxu0 0.0
    %10119 = vmatpush1.msra.mxu0 0.0
    %10120 = vmatprep.subr.mxu0 0.0
    %10121 = vmatpush1.msra.mxu0 0.0
    %10122 = vmatprep.subr.mxu0 0.0
    %10123 = vmatpush1.msra.mxu0 0.0
    %10124 = vmatprep.subr.mxu0 0.0
    %10125 = vmatpush1.msra.mxu0 0.0
    %10126 = vmatprep.subr.mxu0 0.0
    %10127 = vmatpush1.msra.mxu0 0.0
    %10128 = vmatprep.subr.mxu0 0.0
    %10129 = vmatpush1.msra.mxu0 0.0
    %10130 = vmatprep.subr.mxu0 0.0
    %10131 = vmatpush1.msra.mxu0 0.0
    %10132 = vmatprep.subr.mxu0 0.0
    %10133 = vmatpush1.msra.mxu0 0.0
    %10134 = vmatprep.subr.mxu0 0.0
    %10135 = vmatpush1.msra.mxu0 0.0
    %10136 = vmatprep.subr.mxu0 0.0
    %10137 = vmatpush1.msra.mxu0 0.0
    %10138 = vmatprep.subr.mxu0 0.0
    %10139 = vmatpush1.msra.mxu0 0.0
    %10140 = vmatprep.subr.mxu0 0.0
    %10141 = vmatpush1.msra.mxu0 0.0
    %10142 = vmatprep.subr.mxu0 0.0
    %v10143 = vand.u32 %v9447, 4294901760
    %v10144 = vsub.f32 %v9447, %v10143
    %10145 = vmatpush1.msra.mxu0 %v10144
    %10146 = vmatprep.subr.mxu0 0.0
    %v10147 = vand.u32 %v9446, 4294901760
    %v10148 = vsub.f32 %v9446, %v10147
    %10149 = vmatpush1.msra.mxu0 %v10148
    %10150 = vmatprep.subr.mxu0 0.0
    %v10151 = vand.u32 %v9445, 4294901760
    %v10152 = vsub.f32 %v9445, %v10151
    %10153 = vmatpush1.msra.mxu0 %v10152
    %10154 = vmatprep.subr.mxu0 0.0
    %v10155 = vand.u32 %v9444, 4294901760
    %v10156 = vsub.f32 %v9444, %v10155
    %10157 = vmatpush1.msra.mxu0 %v10156
    %10158 = vmatprep.subr.mxu0 0.0
    %10159 = vmatpush2.msra.mxu0 0.0
    %10160 = vmatprep.subr.mxu0 0.0
    %10161 = vmatpush2.msra.mxu0 0.0
    %10162 = vmatprep.subr.mxu0 0.0
    %10163 = vmatpush2.msra.mxu0 0.0
    %10164 = vmatprep.subr.mxu0 0.0
    %10165 = vmatpush2.msra.mxu0 0.0
    %10166 = vmatprep.subr.mxu0 0.0
    %10167 = vmatpush2.msra.mxu0 0.0
    %10168 = vmatprep.subr.mxu0 0.0
    %10169 = vmatpush2.msra.mxu0 0.0
    %10170 = vmatprep.subr.mxu0 0.0
    %10171 = vmatpush2.msra.mxu0 0.0
    %10172 = vmatprep.subr.mxu0 0.0
    %10173 = vmatpush2.msra.mxu0 0.0
    %10174 = vmatprep.subr.mxu0 0.0
    %10175 = vmatpush2.msra.mxu0 0.0
    %10176 = vmatprep.subr.mxu0 0.0
    %10177 = vmatpush2.msra.mxu0 0.0
    %10178 = vmatprep.subr.mxu0 0.0
    %10179 = vmatpush2.msra.mxu0 0.0
    %10180 = vmatprep.subr.mxu0 0.0
    %10181 = vmatpush2.msra.mxu0 0.0
    %10182 = vmatprep.subr.mxu0 0.0
    %10183 = vmatpush2.msra.mxu0 0.0
    %10184 = vmatprep.subr.mxu0 0.0
    %10185 = vmatpush2.msra.mxu0 0.0
    %10186 = vmatprep.subr.mxu0 0.0
    %10187 = vmatpush2.msra.mxu0 0.0
    %10188 = vmatprep.subr.mxu0 0.0
    %10189 = vmatpush2.msra.mxu0 0.0
    %10190 = vmatprep.mubr.f32.mxu0 0.0
    %v10191 = vand.u32 %v9946, 4294901760
    %v10192 = vsub.f32 %v9946, %v10191
    %10193 = vmatmul.mubr.f32.gmra.mxu0 %v10192
    %v10194 = vpop.f32.mrf.mxu0
    %v10195 = vadd.f32 %v10115, %v10194
    %v10196 = vpop.f32.mrf.mxu0
    %10197 = vdwg.mxu0
    %10198 = vmatprep.subr.mxu0 0.0
    %10199 = vmatpush1.msra.mxu0 0.0
    %10200 = vmatprep.subr.mxu0 0.0
    %10201 = vmatpush1.msra.mxu0 0.0
    %10202 = vmatprep.subr.mxu0 0.0
    %10203 = vmatpush1.msra.mxu0 0.0
    %10204 = vmatprep.subr.mxu0 0.0
    %10205 = vmatpush1.msra.mxu0 0.0
    %10206 = vmatprep.subr.mxu0 0.0
    %10207 = vmatpush1.msra.mxu0 0.0
    %10208 = vmatprep.subr.mxu0 0.0
    %10209 = vmatpush1.msra.mxu0 0.0
    %10210 = vmatprep.subr.mxu0 0.0
    %10211 = vmatpush1.msra.mxu0 0.0
    %10212 = vmatprep.subr.mxu0 0.0
    %10213 = vmatpush1.msra.mxu0 0.0
    %10214 = vmatprep.subr.mxu0 0.0
    %10215 = vmatpush1.msra.mxu0 0.0
    %10216 = vmatprep.subr.mxu0 0.0
    %10217 = vmatpush1.msra.mxu0 0.0
    %10218 = vmatprep.subr.mxu0 0.0
    %10219 = vmatpush1.msra.mxu0 0.0
    %10220 = vmatprep.subr.mxu0 0.0
    %10221 = vmatpush1.msra.mxu0 0.0
    %10222 = vmatprep.subr.mxu0 0.0
    %v10223 = vand.u32 %v9447, 4294901760
    %10224 = vmatpush1.msra.mxu0 %v10223
    %10225 = vmatprep.subr.mxu0 0.0
    %v10226 = vand.u32 %v9446, 4294901760
    %10227 = vmatpush1.msra.mxu0 %v10226
    %10228 = vmatprep.subr.mxu0 0.0
    %v10229 = vand.u32 %v9445, 4294901760
    %10230 = vmatpush1.msra.mxu0 %v10229
    %10231 = vmatprep.subr.mxu0 0.0
    %v10232 = vand.u32 %v9444, 4294901760
    %10233 = vmatpush1.msra.mxu0 %v10232
    %10234 = vmatprep.subr.mxu0 0.0
    %10235 = vmatpush2.msra.mxu0 0.0
    %10236 = vmatprep.subr.mxu0 0.0
    %10237 = vmatpush2.msra.mxu0 0.0
    %10238 = vmatprep.subr.mxu0 0.0
    %10239 = vmatpush2.msra.mxu0 0.0
    %10240 = vmatprep.subr.mxu0 0.0
    %10241 = vmatpush2.msra.mxu0 0.0
    %10242 = vmatprep.subr.mxu0 0.0
    %10243 = vmatpush2.msra.mxu0 0.0
    %10244 = vmatprep.subr.mxu0 0.0
    %10245 = vmatpush2.msra.mxu0 0.0
    %10246 = vmatprep.subr.mxu0 0.0
    %10247 = vmatpush2.msra.mxu0 0.0
    %10248 = vmatprep.subr.mxu0 0.0
    %10249 = vmatpush2.msra.mxu0 0.0
    %10250 = vmatprep.subr.mxu0 0.0
    %10251 = vmatpush2.msra.mxu0 0.0
    %10252 = vmatprep.subr.mxu0 0.0
    %10253 = vmatpush2.msra.mxu0 0.0
    %10254 = vmatprep.subr.mxu0 0.0
    %10255 = vmatpush2.msra.mxu0 0.0
    %10256 = vmatprep.subr.mxu0 0.0
    %10257 = vmatpush2.msra.mxu0 0.0
    %10258 = vmatprep.subr.mxu0 0.0
    %10259 = vmatpush2.msra.mxu0 0.0
    %10260 = vmatprep.subr.mxu0 0.0
    %10261 = vmatpush2.msra.mxu0 0.0
    %10262 = vmatprep.subr.mxu0 0.0
    %10263 = vmatpush2.msra.mxu0 0.0
    %10264 = vmatprep.subr.mxu0 0.0
    %10265 = vmatpush2.msra.mxu0 0.0
    %10266 = vmatprep.mubr.f32.mxu0 0.0
    %v10267 = vand.u32 %v9946, 4294901760
    %v10268 = vsub.f32 %v9946, %v10267
    %v10269 = vand.u32 %v10268, 4294901760
    %10270 = vmatmul.mubr.f32.gmra.mxu0 %v10269
    %v10271 = vpop.f32.mrf.mxu0
    %v10272 = vadd.f32 %v10195, %v10271
    %v10273 = vpop.f32.mrf.mxu0
    %10274 = vdwg.mxu0
    %10275 = vmatprep.subr.mxu0 0.0
    %10276 = vmatpush1.msra.mxu0 0.0
    %10277 = vmatprep.subr.mxu0 0.0
    %10278 = vmatpush1.msra.mxu0 0.0
    %10279 = vmatprep.subr.mxu0 0.0
    %10280 = vmatpush1.msra.mxu0 0.0
    %10281 = vmatprep.subr.mxu0 0.0
    %10282 = vmatpush1.msra.mxu0 0.0
    %10283 = vmatprep.subr.mxu0 0.0
    %10284 = vmatpush1.msra.mxu0 0.0
    %10285 = vmatprep.subr.mxu0 0.0
    %10286 = vmatpush1.msra.mxu0 0.0
    %10287 = vmatprep.subr.mxu0 0.0
    %10288 = vmatpush1.msra.mxu0 0.0
    %10289 = vmatprep.subr.mxu0 0.0
    %10290 = vmatpush1.msra.mxu0 0.0
    %10291 = vmatprep.subr.mxu0 0.0
    %10292 = vmatpush1.msra.mxu0 0.0
    %10293 = vmatprep.subr.mxu0 0.0
    %10294 = vmatpush1.msra.mxu0 0.0
    %10295 = vmatprep.subr.mxu0 0.0
    %10296 = vmatpush1.msra.mxu0 0.0
    %10297 = vmatprep.subr.mxu0 0.0
    %10298 = vmatpush1.msra.mxu0 0.0
    %10299 = vmatprep.subr.mxu0 0.0
    %v10300 = vand.u32 %v9447, 4294901760
    %v10301 = vsub.f32 %v9447, %v10300
    %v10302 = vand.u32 %v10301, 4294901760
    %10303 = vmatpush1.msra.mxu0 %v10302
    %10304 = vmatprep.subr.mxu0 0.0
    %v10305 = vand.u32 %v9446, 4294901760
    %v10306 = vsub.f32 %v9446, %v10305
    %v10307 = vand.u32 %v10306, 4294901760
    %10308 = vmatpush1.msra.mxu0 %v10307
    %10309 = vmatprep.subr.mxu0 0.0
    %v10310 = vand.u32 %v9445, 4294901760
    %v10311 = vsub.f32 %v9445, %v10310
    %v10312 = vand.u32 %v10311, 4294901760
    %10313 = vmatpush1.msra.mxu0 %v10312
    %10314 = vmatprep.subr.mxu0 0.0
    %v10315 = vand.u32 %v9444, 4294901760
    %v10316 = vsub.f32 %v9444, %v10315
    %v10317 = vand.u32 %v10316, 4294901760
    %10318 = vmatpush1.msra.mxu0 %v10317
    %10319 = vmatprep.subr.mxu0 0.0
    %10320 = vmatpush2.msra.mxu0 0.0
    %10321 = vmatprep.subr.mxu0 0.0
    %10322 = vmatpush2.msra.mxu0 0.0
    %10323 = vmatprep.subr.mxu0 0.0
    %10324 = vmatpush2.msra.mxu0 0.0
    %10325 = vmatprep.subr.mxu0 0.0
    %10326 = vmatpush2.msra.mxu0 0.0
    %10327 = vmatprep.subr.mxu0 0.0
    %10328 = vmatpush2.msra.mxu0 0.0
    %10329 = vmatprep.subr.mxu0 0.0
    %10330 = vmatpush2.msra.mxu0 0.0
    %10331 = vmatprep.subr.mxu0 0.0
    %10332 = vmatpush2.msra.mxu0 0.0
    %10333 = vmatprep.subr.mxu0 0.0
    %10334 = vmatpush2.msra.mxu0 0.0
    %10335 = vmatprep.subr.mxu0 0.0
    %10336 = vmatpush2.msra.mxu0 0.0
    %10337 = vmatprep.subr.mxu0 0.0
    %10338 = vmatpush2.msra.mxu0 0.0
    %10339 = vmatprep.subr.mxu0 0.0
    %10340 = vmatpush2.msra.mxu0 0.0
    %10341 = vmatprep.subr.mxu0 0.0
    %10342 = vmatpush2.msra.mxu0 0.0
    %10343 = vmatprep.subr.mxu0 0.0
    %10344 = vmatpush2.msra.mxu0 0.0
    %10345 = vmatprep.subr.mxu0 0.0
    %10346 = vmatpush2.msra.mxu0 0.0
    %10347 = vmatprep.subr.mxu0 0.0
    %10348 = vmatpush2.msra.mxu0 0.0
    %10349 = vmatprep.subr.mxu0 0.0
    %10350 = vmatpush2.msra.mxu0 0.0
    %10351 = vmatprep.mubr.f32.mxu0 0.0
    %v10352 = vand.u32 %v9946, 4294901760
    %10353 = vmatmul.mubr.f32.gmra.mxu0 %v10352
    %v10354 = vpop.f32.mrf.mxu0
    %v10355 = vadd.f32 %v10272, %v10354
    %v10356 = vpop.f32.mrf.mxu0
    %10357 = vdwg.mxu0
    %10358 = vmatprep.subr.mxu0 0.0
    %10359 = vmatpush1.msra.mxu0 0.0
    %10360 = vmatprep.subr.mxu0 0.0
    %10361 = vmatpush1.msra.mxu0 0.0
    %10362 = vmatprep.subr.mxu0 0.0
    %10363 = vmatpush1.msra.mxu0 0.0
    %10364 = vmatprep.subr.mxu0 0.0
    %10365 = vmatpush1.msra.mxu0 0.0
    %10366 = vmatprep.subr.mxu0 0.0
    %10367 = vmatpush1.msra.mxu0 0.0
    %10368 = vmatprep.subr.mxu0 0.0
    %10369 = vmatpush1.msra.mxu0 0.0
    %10370 = vmatprep.subr.mxu0 0.0
    %10371 = vmatpush1.msra.mxu0 0.0
    %10372 = vmatprep.subr.mxu0 0.0
    %10373 = vmatpush1.msra.mxu0 0.0
    %10374 = vmatprep.subr.mxu0 0.0
    %10375 = vmatpush1.msra.mxu0 0.0
    %10376 = vmatprep.subr.mxu0 0.0
    %10377 = vmatpush1.msra.mxu0 0.0
    %10378 = vmatprep.subr.mxu0 0.0
    %10379 = vmatpush1.msra.mxu0 0.0
    %10380 = vmatprep.subr.mxu0 0.0
    %10381 = vmatpush1.msra.mxu0 0.0
    %10382 = vmatprep.subr.mxu0 0.0
    %v10383 = vand.u32 %v9447, 4294901760
    %10384 = vmatpush1.msra.mxu0 %v10383
    %10385 = vmatprep.subr.mxu0 0.0
    %v10386 = vand.u32 %v9446, 4294901760
    %10387 = vmatpush1.msra.mxu0 %v10386
    %10388 = vmatprep.subr.mxu0 0.0
    %v10389 = vand.u32 %v9445, 4294901760
    %10390 = vmatpush1.msra.mxu0 %v10389
    %10391 = vmatprep.subr.mxu0 0.0
    %v10392 = vand.u32 %v9444, 4294901760
    %10393 = vmatpush1.msra.mxu0 %v10392
    %10394 = vmatprep.subr.mxu0 0.0
    %10395 = vmatpush2.msra.mxu0 0.0
    %10396 = vmatprep.subr.mxu0 0.0
    %10397 = vmatpush2.msra.mxu0 0.0
    %10398 = vmatprep.subr.mxu0 0.0
    %10399 = vmatpush2.msra.mxu0 0.0
    %10400 = vmatprep.subr.mxu0 0.0
    %10401 = vmatpush2.msra.mxu0 0.0
    %10402 = vmatprep.subr.mxu0 0.0
    %10403 = vmatpush2.msra.mxu0 0.0
    %10404 = vmatprep.subr.mxu0 0.0
    %10405 = vmatpush2.msra.mxu0 0.0
    %10406 = vmatprep.subr.mxu0 0.0
    %10407 = vmatpush2.msra.mxu0 0.0
    %10408 = vmatprep.subr.mxu0 0.0
    %10409 = vmatpush2.msra.mxu0 0.0
    %10410 = vmatprep.subr.mxu0 0.0
    %10411 = vmatpush2.msra.mxu0 0.0
    %10412 = vmatprep.subr.mxu0 0.0
    %10413 = vmatpush2.msra.mxu0 0.0
    %10414 = vmatprep.subr.mxu0 0.0
    %10415 = vmatpush2.msra.mxu0 0.0
    %10416 = vmatprep.subr.mxu0 0.0
    %10417 = vmatpush2.msra.mxu0 0.0
    %10418 = vmatprep.subr.mxu0 0.0
    %10419 = vmatpush2.msra.mxu0 0.0
    %10420 = vmatprep.subr.mxu0 0.0
    %10421 = vmatpush2.msra.mxu0 0.0
    %10422 = vmatprep.subr.mxu0 0.0
    %10423 = vmatpush2.msra.mxu0 0.0
    %10424 = vmatprep.subr.mxu0 0.0
    %10425 = vmatpush2.msra.mxu0 0.0
    %10426 = vmatprep.mubr.f32.mxu0 0.0
    %v10427 = vand.u32 %v9946, 4294901760
    %10428 = vmatmul.mubr.f32.gmra.mxu0 %v10427
    %v10429 = vpop.f32.mrf.mxu0
    %v10430 = vadd.f32 %v10355, %v10429
    %v10431 = vpop.f32.mrf.mxu0
    %10432 = vdwg.mxu0
    %v10433 = vld [vmem:[%s6] sm:$0x1]
    %v10435 = vlaneseq
    %v10436 = vshrl.u32 %v10435, 7
    %v10437 = vsub.s32 0, %v10436
    %v10438 = vrot.slane %v10433, %v10437
    %v10440 = vadd.f32 %v10430, %v10438
    %vm10441 = vcmask 74752
    %10442 = vst.msk [vmem:[#allocation3] sm:$0x3] %vm10441, %v10440
    // Predicated region
    $region30: #{bidir_recurrent_model.1} parent=1 // pred_check
      _
    $region31: #{bidir_recurrent_model.1} parent=1 // pred_check_branch
      %10444 = sbr.rel (0) target = $region33
    $region32: #{bidir_recurrent_model.1} parent=1 // pred_region
      %s10446 = ssub.s32 32, 32
      %10447 = vsyncadd [#allocation4], %s10446
      %s10449 = sshll.u32 [#allocation3], 4
      %s10450 = int_to_ptr.vmem [resolvable:$true] %s10449
      %10452 = dma.vmem_to_hbm [thread:$0]  %s10450, 32, %s7, [#allocation4]
    $region33: #{bidir_recurrent_model.1} parent=1 // pred_fallthru
      _
    // Predicated region
    $region34: #{bidir_recurrent_model.1} parent=1 // pred_check
      _
    $region35: #{bidir_recurrent_model.1} parent=1 // pred_check_branch
      %10454 = sbr.rel (0) target = $region37
    $region36: #{bidir_recurrent_model.1} parent=1 // pred_region
      %10455 = dma.done [#allocation4], 32
    $region37: #{bidir_recurrent_model.1} parent=1 // pred_fallthru
      _
    %10456 = vsyncpa [#allocation4], 1

</llo_original>
